<compile_context>
chip_gen: v5e
topology: v5e:2x2
jax: 0.10.0
libtpu: 0.0.40
codegen_flags: <defaults>
</compile_context>

<pallas_src>
import jax
import jax.numpy as jnp
from jax.experimental import pallas as pl
from jax.experimental.pallas import tpu as pltpu


# ----------------------------- fused kernel ----------------------------------

def _head_depth_kernel(x_ref, w1_ref, b1_ref, up_ref, w2_ref, b2_ref,
                       w3_ref, b3_ref, o_ref, xpad1, col1, xpad2, col2):
    # x_ref : (1, F, H, W)           one image, channels-first
    # w1_ref: (F//2, 9*F)            im2col weights, tap-major (ki, kj, cin)
    # b1_ref: (F//2, 1)
    # up_ref: (H*W, Ho*Wo)           bilinear x2 align_corners matrix
    # w2_ref: (32, 9*(F//2)), b2_ref: (32, 1)
    # w3_ref: (1, 32),        b3_ref: (1, 1)
    # o_ref : (1, 1, Ho*Wo)          lane-dense output
    F, H, W = x_ref.shape[1], x_ref.shape[2], x_ref.shape[3]
    C1 = w1_ref.shape[0]
    Ho, Wo = 2 * H, 2 * W
    HW, HoWo = H * W, Ho * Wo

    # ---- stage 1: Conv2d(F -> F//2, 3x3, pad=1) via one im2col matmul -------
    xpad1[...] = jnp.zeros_like(xpad1)                 # zero halo in VMEM
    xpad1[:, 1:H + 1, 1:W + 1] = x_ref[0]
    for ki in range(3):
        for kj in range(3):
            t = ki * 3 + kj
            col1[t * F:(t + 1) * F, :] = (
                xpad1[:, ki:ki + H, kj:kj + W].reshape(F, HW))
    y1 = jnp.dot(w1_ref[...], col1[...],
                 preferred_element_type=jnp.float32) + b1_ref[...]   # (C1, HW)

    # ---- stage 2: bilinear x2 (align_corners=True), lane-dense matmul -------
    y2 = jnp.dot(y1, up_ref[...],
                 preferred_element_type=jnp.float32)                 # (C1, HoWo)

    # ---- stage 3: Conv2d(F//2 -> 32, 3x3, pad=1) + ReLU ----------------------
    xpad2[...] = jnp.zeros_like(xpad2)
    xpad2[:, 1:Ho + 1, 1:Wo + 1] = y2.reshape(C1, Ho, Wo)
    for ki in range(3):
        for kj in range(3):
            t = ki * 3 + kj
            col2[t * C1:(t + 1) * C1, :] = (
                xpad2[:, ki:ki + Ho, kj:kj + Wo].reshape(C1, HoWo))
    y3 = jnp.dot(w2_ref[...], col2[...],
                 preferred_element_type=jnp.float32) + b2_ref[...]   # (32, HoWo)
    y3 = jnp.maximum(y3, 0.0)

    # ---- stage 4: Conv2d(32 -> 1, 1x1) + Sigmoid, lane-dense store ----------
    y4 = jnp.dot(w3_ref[...], y3,
                 preferred_element_type=jnp.float32) + b3_ref[...]   # (1, HoWo)
    o_ref[...] = jax.nn.sigmoid(y4).reshape(1, 1, HoWo).astype(o_ref.dtype)


# ----------------------------- wrapper ----------------------------------------

def _interp_matrix(n_in, n_out, dtype=jnp.float32):
    # Linear interpolation matrix for align_corners=True (torch bilinear).
    if n_in == 1:
        return jnp.ones((n_out, 1), dtype)
    src = jnp.arange(n_out, dtype=jnp.float32) * (n_in - 1) / (n_out - 1)
    i0 = jnp.clip(jnp.floor(src).astype(jnp.int32), 0, n_in - 2)
    i1 = i0 + 1
    w1 = src - i0.astype(jnp.float32)
    w0 = 1.0 - w1
    A = (w0[:, None] * jax.nn.one_hot(i0, n_in, dtype=jnp.float32)
         + w1[:, None] * jax.nn.one_hot(i1, n_in, dtype=jnp.float32))
    return A.astype(dtype)


def head_depth_forward(x_nchw, params):
    """HeadDepth forward. Input NCHW (N, F, H, W), output NCHW (N, 1, 2H, 2W)."""
    N, F, H, W = x_nchw.shape
    C1 = params["w1"].shape[-1]          # F // 2
    C2 = params["w2"].shape[-1]          # 32
    Ho, Wo = 2 * H, 2 * W
    HW, HoWo = H * W, Ho * Wo

    # Reorder HWIO conv weights into (Cout, 9*Cin), tap-major (ki, kj, cin).
    w1r = jnp.transpose(params["w1"], (3, 0, 1, 2)).reshape(C1, 9 * F)
    w2r = jnp.transpose(params["w2"], (3, 0, 1, 2)).reshape(C2, 9 * C1)
    w3r = jnp.transpose(params["w3"], (1, 0))                         # (1, 32)
    b1 = params["b1"].reshape(C1, 1)
    b2 = params["b2"].reshape(C2, 1)
    b3 = params["b3"].reshape(1, 1)

    # Bilinear x2 (align_corners=True) as one dense (HW, HoWo) matrix:
    # up[h*W+w, ho*Wo+wo] = Ah[ho, h] * Aw[wo, w].
    Ah = _interp_matrix(H, Ho)
    Aw = _interp_matrix(W, Wo)
    up = jnp.einsum("oh,pw->hwop", Ah, Aw).reshape(HW, HoWo)

    out = pl.pallas_call(
        _head_depth_kernel,
        out_shape=jax.ShapeDtypeStruct((N, 1, HoWo), x_nchw.dtype),
        grid_spec=pltpu.PrefetchScalarGridSpec(
            num_scalar_prefetch=0,
            grid=(N,),
            in_specs=[
                pl.BlockSpec((1, F, H, W), lambda n: (n, 0, 0, 0)),
                pl.BlockSpec((C1, 9 * F), lambda n: (0, 0)),
                pl.BlockSpec((C1, 1), lambda n: (0, 0)),
                pl.BlockSpec((HW, HoWo), lambda n: (0, 0)),
                pl.BlockSpec((C2, 9 * C1), lambda n: (0, 0)),
                pl.BlockSpec((C2, 1), lambda n: (0, 0)),
                pl.BlockSpec((1, C2), lambda n: (0, 0)),
                pl.BlockSpec((1, 1), lambda n: (0, 0)),
            ],
            out_specs=pl.BlockSpec((1, 1, HoWo), lambda n: (n, 0, 0)),
            scratch_shapes=[
                pltpu.VMEM((F, H + 2, W + 2), jnp.float32),    # padded stage-1 in
                pltpu.VMEM((9 * F, HW), jnp.float32),          # stage-1 im2col
                pltpu.VMEM((C1, Ho + 2, Wo + 2), jnp.float32),  # padded stage-3 in
                pltpu.VMEM((9 * C1, HoWo), jnp.float32),       # stage-3 im2col
            ]),
        compiler_params=pltpu.CompilerParams(
            dimension_semantics=("parallel",)),
    )(x_nchw, w1r, b1, up, w2r, b2, w3r, b3)

    # (N, 1, Ho*Wo) -> (N, 1, Ho, Wo): contiguous, free reshape.
    return out.reshape(N, 1, Ho, Wo)


# ----------------------------- reference (plain JAX) --------------------------

def ref_forward(x_nchw, params):
    dn = ("NHWC", "HWIO", "NHWC")
    x = jnp.transpose(x_nchw, (0, 2, 3, 1))
    x = jax.lax.conv_general_dilated(x, params["w1"], (1, 1), "SAME",
                                     dimension_numbers=dn) + params["b1"]
    Ah = _interp_matrix(x.shape[1], 2 * x.shape[1])
    Aw = _interp_matrix(x.shape[2], 2 * x.shape[2])
    x = jnp.einsum("oh,nhwc->nowc", Ah, x)
    x = jnp.einsum("pw,nowc->nopc", Aw, x)
    x = jax.lax.conv_general_dilated(x, params["w2"], (1, 1), "SAME",
                                     dimension_numbers=dn) + params["b2"]
    x = jnp.maximum(x, 0.0)
    x = jnp.einsum("nhwc,co->nhwo", x, params["w3"]) + params["b3"]
    x = jax.nn.sigmoid(x)
    return jnp.transpose(x, (0, 3, 1, 2))


# ----------------------------- main -------------------------------------------

if __name__ == "__main__":
    features = 8           # "features" in HeadDepth.__init__
    N, H, W = 2, 16, 16

    key = jax.random.PRNGKey(0)
    ks = jax.random.split(key, 7)
    params = {
        # Conv2d(features, features//2, 3) weight stored HWIO
        "w1": jax.random.normal(ks[0], (3, 3, features, features // 2), jnp.float32) * 0.1,
        "b1": jax.random.normal(ks[1], (features // 2,), jnp.float32) * 0.01,
        # Conv2d(features//2, 32, 3)
        "w2": jax.random.normal(ks[2], (3, 3, features // 2, 32), jnp.float32) * 0.1,
        "b2": jax.random.normal(ks[3], (32,), jnp.float32) * 0.01,
        # Conv2d(32, 1, 1)
        "w3": jax.random.normal(ks[4], (32, 1), jnp.float32) * 0.1,
        "b3": jax.random.normal(ks[5], (1,), jnp.float32) * 0.01,
    }
    x = jax.random.normal(ks[6], (N, features, H, W), jnp.float32)  # NCHW

    fwd = jax.jit(head_depth_forward)
    out = jax.block_until_ready(fwd(x, params))

    assert out.shape == (N, 1, 2 * H, 2 * W), out.shape
    assert bool(jnp.all(jnp.isfinite(out)))

    ref = jax.block_until_ready(ref_forward(x, params))
    assert bool(jnp.allclose(out, ref, atol=1e-4, rtol=1e-4)), \
        float(jnp.max(jnp.abs(out - ref)))

    print("KERNEL_OK")
</pallas_src>

<mosaic_0001>
module attributes {stable_mosaic.version = 11 : i64} {
  func.func @_head_depth_kernel(%arg0: i32, %arg1: memref<1x8x16x16xf32, #tpu.memory_space<vmem>>, %arg2: memref<4x72xf32, #tpu.memory_space<vmem>>, %arg3: memref<4x1xf32, #tpu.memory_space<vmem>>, %arg4: memref<256x1024xf32, #tpu.memory_space<vmem>>, %arg5: memref<32x36xf32, #tpu.memory_space<vmem>>, %arg6: memref<32x1xf32, #tpu.memory_space<vmem>>, %arg7: memref<1x32xf32, #tpu.memory_space<vmem>>, %arg8: memref<1x1xf32, #tpu.memory_space<vmem>>, %arg9: memref<1x1x1024xf32, #tpu.memory_space<vmem>>, %arg10: memref<8x18x18xf32, #tpu.memory_space<vmem>>, %arg11: memref<72x256xf32, #tpu.memory_space<vmem>>, %arg12: memref<4x34x34xf32, #tpu.memory_space<vmem>>, %arg13: memref<36x1024xf32, #tpu.memory_space<vmem>>) attributes {dimension_semantics = [#tpu.dimension_semantics<parallel>], iteration_bounds = array<i64: 2>, scalar_prefetch = 0 : i64, scratch_operands = 4 : i64, tpu.core_type = #tpu.core_type<tc>, window_params = [{transform_indices = @transform_0, window_bounds = array<i64: 1, 8, 16, 16>}, {pipeline_mode = #tpu.pipeline_mode<synchronous>, transform_indices = @transform_1, window_bounds = array<i64: 4, 72>}, {pipeline_mode = #tpu.pipeline_mode<synchronous>, transform_indices = @transform_2, window_bounds = array<i64: 4, 1>}, {pipeline_mode = #tpu.pipeline_mode<synchronous>, transform_indices = @transform_3, window_bounds = array<i64: 256, 1024>}, {pipeline_mode = #tpu.pipeline_mode<synchronous>, transform_indices = @transform_4, window_bounds = array<i64: 32, 36>}, {pipeline_mode = #tpu.pipeline_mode<synchronous>, transform_indices = @transform_5, window_bounds = array<i64: 32, 1>}, {pipeline_mode = #tpu.pipeline_mode<synchronous>, transform_indices = @transform_6, window_bounds = array<i64: 1, 32>}, {pipeline_mode = #tpu.pipeline_mode<synchronous>, transform_indices = @transform_7, window_bounds = array<i64: 1, 1>}, {transform_indices = @transform_8, window_bounds = array<i64: 1, 1, 1024>}]} {
    %cst = arith.constant 0.000000e+00 : f32
    %0 = vector.broadcast %cst : f32 to vector<8x18x18xf32>
    %c0 = arith.constant 0 : index
    %c0_0 = arith.constant 0 : index
    %c0_1 = arith.constant 0 : index
    %1 = vector.load %arg10[%c0, %c0_0, %c0_1] : memref<8x18x18xf32, #tpu.memory_space<vmem>>, vector<8x18x18xf32>
    tpu.vector_store %arg10[%c0, %c0_0, %c0_1], %0 {strides = array<i32>} : memref<8x18x18xf32, #tpu.memory_space<vmem>>, vector<8x18x18xf32>,
    %c0_2 = arith.constant 0 : index
    %c0_3 = arith.constant 0 : index
    %c0_4 = arith.constant 0 : index
    %c0_5 = arith.constant 0 : index
    %2 = vector.load %arg1[%c0_2, %c0_3, %c0_4, %c0_5] : memref<1x8x16x16xf32, #tpu.memory_space<vmem>>, vector<1x8x16x16xf32>
    %3 = vector.shape_cast %2 : vector<1x8x16x16xf32> to vector<8x16x16xf32>
    %c0_6 = arith.constant 0 : index
    %c1 = arith.constant 1 : index
    %c1_7 = arith.constant 1 : index
    %4 = vector.load %arg10[%c0_6, %c1, %c1_7] : memref<8x18x18xf32, #tpu.memory_space<vmem>>, vector<8x16x16xf32>
    tpu.vector_store %arg10[%c0_6, %c1, %c1_7], %3 {strides = array<i32>} : memref<8x18x18xf32, #tpu.memory_space<vmem>>, vector<8x16x16xf32>,
    %c0_8 = arith.constant 0 : index
    %c0_9 = arith.constant 0 : index
    %c0_10 = arith.constant 0 : index
    %5 = vector.load %arg10[%c0_8, %c0_9, %c0_10] : memref<8x18x18xf32, #tpu.memory_space<vmem>>, vector<8x16x16xf32>
    %6 = vector.shape_cast %5 : vector<8x16x16xf32> to vector<8x256xf32>
    %c0_11 = arith.constant 0 : index
    %c0_12 = arith.constant 0 : index
    %7 = vector.load %arg11[%c0_11, %c0_12] : memref<72x256xf32, #tpu.memory_space<vmem>>, vector<8x256xf32>
    tpu.vector_store %arg11[%c0_11, %c0_12], %6 {strides = array<i32>} : memref<72x256xf32, #tpu.memory_space<vmem>>, vector<8x256xf32>,
    %c0_13 = arith.constant 0 : index
    %c0_14 = arith.constant 0 : index
    %c1_15 = arith.constant 1 : index
    %8 = vector.load %arg10[%c0_13, %c0_14, %c1_15] : memref<8x18x18xf32, #tpu.memory_space<vmem>>, vector<8x16x16xf32>
    %9 = vector.shape_cast %8 : vector<8x16x16xf32> to vector<8x256xf32>
    %c8 = arith.constant 8 : index
    %c0_16 = arith.constant 0 : index
    %10 = vector.load %arg11[%c8, %c0_16] : memref<72x256xf32, #tpu.memory_space<vmem>>, vector<8x256xf32>
    tpu.vector_store %arg11[%c8, %c0_16], %9 {strides = array<i32>} : memref<72x256xf32, #tpu.memory_space<vmem>>, vector<8x256xf32>,
    %c0_17 = arith.constant 0 : index
    %c0_18 = arith.constant 0 : index
    %c2 = arith.constant 2 : index
    %11 = vector.load %arg10[%c0_17, %c0_18, %c2] : memref<8x18x18xf32, #tpu.memory_space<vmem>>, vector<8x16x16xf32>
    %12 = vector.shape_cast %11 : vector<8x16x16xf32> to vector<8x256xf32>
    %c16 = arith.constant 16 : index
    %c0_19 = arith.constant 0 : index
    %13 = vector.load %arg11[%c16, %c0_19] : memref<72x256xf32, #tpu.memory_space<vmem>>, vector<8x256xf32>
    tpu.vector_store %arg11[%c16, %c0_19], %12 {strides = array<i32>} : memref<72x256xf32, #tpu.memory_space<vmem>>, vector<8x256xf32>,
    %c0_20 = arith.constant 0 : index
    %c1_21 = arith.constant 1 : index
    %c0_22 = arith.constant 0 : index
    %14 = vector.load %arg10[%c0_20, %c1_21, %c0_22] : memref<8x18x18xf32, #tpu.memory_space<vmem>>, vector<8x16x16xf32>
    %15 = vector.shape_cast %14 : vector<8x16x16xf32> to vector<8x256xf32>
    %c24 = arith.constant 24 : index
    %c0_23 = arith.constant 0 : index
    %16 = vector.load %arg11[%c24, %c0_23] : memref<72x256xf32, #tpu.memory_space<vmem>>, vector<8x256xf32>
    tpu.vector_store %arg11[%c24, %c0_23], %15 {strides = array<i32>} : memref<72x256xf32, #tpu.memory_space<vmem>>, vector<8x256xf32>,
    %c0_24 = arith.constant 0 : index
    %c1_25 = arith.constant 1 : index
    %c1_26 = arith.constant 1 : index
    %17 = vector.load %arg10[%c0_24, %c1_25, %c1_26] : memref<8x18x18xf32, #tpu.memory_space<vmem>>, vector<8x16x16xf32>
    %18 = vector.shape_cast %17 : vector<8x16x16xf32> to vector<8x256xf32>
    %c32 = arith.constant 32 : index
    %c0_27 = arith.constant 0 : index
    %19 = vector.load %arg11[%c32, %c0_27] : memref<72x256xf32, #tpu.memory_space<vmem>>, vector<8x256xf32>
    tpu.vector_store %arg11[%c32, %c0_27], %18 {strides = array<i32>} : memref<72x256xf32, #tpu.memory_space<vmem>>, vector<8x256xf32>,
    %c0_28 = arith.constant 0 : index
    %c1_29 = arith.constant 1 : index
    %c2_30 = arith.constant 2 : index
    %20 = vector.load %arg10[%c0_28, %c1_29, %c2_30] : memref<8x18x18xf32, #tpu.memory_space<vmem>>, vector<8x16x16xf32>
    %21 = vector.shape_cast %20 : vector<8x16x16xf32> to vector<8x256xf32>
    %c40 = arith.constant 40 : index
    %c0_31 = arith.constant 0 : index
    %22 = vector.load %arg11[%c40, %c0_31] : memref<72x256xf32, #tpu.memory_space<vmem>>, vector<8x256xf32>
    tpu.vector_store %arg11[%c40, %c0_31], %21 {strides = array<i32>} : memref<72x256xf32, #tpu.memory_space<vmem>>, vector<8x256xf32>,
    %c0_32 = arith.constant 0 : index
    %c2_33 = arith.constant 2 : index
    %c0_34 = arith.constant 0 : index
    %23 = vector.load %arg10[%c0_32, %c2_33, %c0_34] : memref<8x18x18xf32, #tpu.memory_space<vmem>>, vector<8x16x16xf32>
    %24 = vector.shape_cast %23 : vector<8x16x16xf32> to vector<8x256xf32>
    %c48 = arith.constant 48 : index
    %c0_35 = arith.constant 0 : index
    %25 = vector.load %arg11[%c48, %c0_35] : memref<72x256xf32, #tpu.memory_space<vmem>>, vector<8x256xf32>
    tpu.vector_store %arg11[%c48, %c0_35], %24 {strides = array<i32>} : memref<72x256xf32, #tpu.memory_space<vmem>>, vector<8x256xf32>,
    %c0_36 = arith.constant 0 : index
    %c2_37 = arith.constant 2 : index
    %c1_38 = arith.constant 1 : index
    %26 = vector.load %arg10[%c0_36, %c2_37, %c1_38] : memref<8x18x18xf32, #tpu.memory_space<vmem>>, vector<8x16x16xf32>
    %27 = vector.shape_cast %26 : vector<8x16x16xf32> to vector<8x256xf32>
    %c56 = arith.constant 56 : index
    %c0_39 = arith.constant 0 : index
    %28 = vector.load %arg11[%c56, %c0_39] : memref<72x256xf32, #tpu.memory_space<vmem>>, vector<8x256xf32>
    tpu.vector_store %arg11[%c56, %c0_39], %27 {strides = array<i32>} : memref<72x256xf32, #tpu.memory_space<vmem>>, vector<8x256xf32>,
    %c0_40 = arith.constant 0 : index
    %c2_41 = arith.constant 2 : index
    %c2_42 = arith.constant 2 : index
    %29 = vector.load %arg10[%c0_40, %c2_41, %c2_42] : memref<8x18x18xf32, #tpu.memory_space<vmem>>, vector<8x16x16xf32>
    %30 = vector.shape_cast %29 : vector<8x16x16xf32> to vector<8x256xf32>
    %c64 = arith.constant 64 : index
    %c0_43 = arith.constant 0 : index
    %31 = vector.load %arg11[%c64, %c0_43] : memref<72x256xf32, #tpu.memory_space<vmem>>, vector<8x256xf32>
    tpu.vector_store %arg11[%c64, %c0_43], %30 {strides = array<i32>} : memref<72x256xf32, #tpu.memory_space<vmem>>, vector<8x256xf32>,
    %c0_44 = arith.constant 0 : index
    %c0_45 = arith.constant 0 : index
    %32 = vector.load %arg2[%c0_44, %c0_45] : memref<4x72xf32, #tpu.memory_space<vmem>>, vector<4x72xf32>
    %c0_46 = arith.constant 0 : index
    %c0_47 = arith.constant 0 : index
    %33 = vector.load %arg11[%c0_46, %c0_47] : memref<72x256xf32, #tpu.memory_space<vmem>>, vector<72x256xf32>
    %cst_48 = arith.constant dense<0.000000e+00> : vector<4x256xf32>
    %34 = tpu.matmul %32, %33, %cst_48 {dimension_numbers = #tpu.dot_dimension_numbers<[1], [0], [0], [1], [0, 0, 1, 1], [], []>} : vector<4x72xf32>, vector<72x256xf32>, vector<4x256xf32> -> vector<4x256xf32>
    %c0_49 = arith.constant 0 : index
    %c0_50 = arith.constant 0 : index
    %35 = vector.load %arg3[%c0_49, %c0_50] : memref<4x1xf32, #tpu.memory_space<vmem>>, vector<4x1xf32>
    %36 = vector.broadcast %35 : vector<4x1xf32> to vector<4x256xf32>
    %37 = arith.addf %34, %36 : vector<4x256xf32>
    %c0_51 = arith.constant 0 : index
    %c0_52 = arith.constant 0 : index
    %38 = vector.load %arg4[%c0_51, %c0_52] : memref<256x1024xf32, #tpu.memory_space<vmem>>, vector<256x1024xf32>
    %cst_53 = arith.constant dense<0.000000e+00> : vector<4x1024xf32>
    %39 = tpu.matmul %37, %38, %cst_53 {dimension_numbers = #tpu.dot_dimension_numbers<[1], [0], [0], [1], [0, 0, 1, 1], [], []>} : vector<4x256xf32>, vector<256x1024xf32>, vector<4x1024xf32> -> vector<4x1024xf32>
    %cst_54 = arith.constant 0.000000e+00 : f32
    %40 = vector.broadcast %cst_54 : f32 to vector<4x34x34xf32>
    %c0_55 = arith.constant 0 : index
    %c0_56 = arith.constant 0 : index
    %c0_57 = arith.constant 0 : index
    %41 = vector.load %arg12[%c0_55, %c0_56, %c0_57] : memref<4x34x34xf32, #tpu.memory_space<vmem>>, vector<4x34x34xf32>
    tpu.vector_store %arg12[%c0_55, %c0_56, %c0_57], %40 {strides = array<i32>} : memref<4x34x34xf32, #tpu.memory_space<vmem>>, vector<4x34x34xf32>,
    %42 = vector.shape_cast %39 : vector<4x1024xf32> to vector<4x32x32xf32>
    %c0_58 = arith.constant 0 : index
    %c1_59 = arith.constant 1 : index
    %c1_60 = arith.constant 1 : index
    %43 = vector.load %arg12[%c0_58, %c1_59, %c1_60] : memref<4x34x34xf32, #tpu.memory_space<vmem>>, vector<4x32x32xf32>
    tpu.vector_store %arg12[%c0_58, %c1_59, %c1_60], %42 {strides = array<i32>} : memref<4x34x34xf32, #tpu.memory_space<vmem>>, vector<4x32x32xf32>,
    %c0_61 = arith.constant 0 : index
    %c0_62 = arith.constant 0 : index
    %c0_63 = arith.constant 0 : index
    %44 = vector.load %arg12[%c0_61, %c0_62, %c0_63] : memref<4x34x34xf32, #tpu.memory_space<vmem>>, vector<4x32x32xf32>
    %45 = vector.shape_cast %44 : vector<4x32x32xf32> to vector<4x1024xf32>
    %c0_64 = arith.constant 0 : index
    %c0_65 = arith.constant 0 : index
    %46 = vector.load %arg13[%c0_64, %c0_65] : memref<36x1024xf32, #tpu.memory_space<vmem>>, vector<4x1024xf32>
    tpu.vector_store %arg13[%c0_64, %c0_65], %45 {strides = array<i32>} : memref<36x1024xf32, #tpu.memory_space<vmem>>, vector<4x1024xf32>,
    %c0_66 = arith.constant 0 : index
    %c0_67 = arith.constant 0 : index
    %c1_68 = arith.constant 1 : index
    %47 = vector.load %arg12[%c0_66, %c0_67, %c1_68] : memref<4x34x34xf32, #tpu.memory_space<vmem>>, vector<4x32x32xf32>
    %48 = vector.shape_cast %47 : vector<4x32x32xf32> to vector<4x1024xf32>
    %c4 = arith.constant 4 : index
    %c0_69 = arith.constant 0 : index
    %49 = vector.load %arg13[%c4, %c0_69] : memref<36x1024xf32, #tpu.memory_space<vmem>>, vector<4x1024xf32>
    tpu.vector_store %arg13[%c4, %c0_69], %48 {strides = array<i32>} : memref<36x1024xf32, #tpu.memory_space<vmem>>, vector<4x1024xf32>,
    %c0_70 = arith.constant 0 : index
    %c0_71 = arith.constant 0 : index
    %c2_72 = arith.constant 2 : index
    %50 = vector.load %arg12[%c0_70, %c0_71, %c2_72] : memref<4x34x34xf32, #tpu.memory_space<vmem>>, vector<4x32x32xf32>
    %51 = vector.shape_cast %50 : vector<4x32x32xf32> to vector<4x1024xf32>
    %c8_73 = arith.constant 8 : index
    %c0_74 = arith.constant 0 : index
    %52 = vector.load %arg13[%c8_73, %c0_74] : memref<36x1024xf32, #tpu.memory_space<vmem>>, vector<4x1024xf32>
    tpu.vector_store %arg13[%c8_73, %c0_74], %51 {strides = array<i32>} : memref<36x1024xf32, #tpu.memory_space<vmem>>, vector<4x1024xf32>,
    %c0_75 = arith.constant 0 : index
    %c1_76 = arith.constant 1 : index
    %c0_77 = arith.constant 0 : index
    %53 = vector.load %arg12[%c0_75, %c1_76, %c0_77] : memref<4x34x34xf32, #tpu.memory_space<vmem>>, vector<4x32x32xf32>
    %54 = vector.shape_cast %53 : vector<4x32x32xf32> to vector<4x1024xf32>
    %c12 = arith.constant 12 : index
    %c0_78 = arith.constant 0 : index
    %55 = vector.load %arg13[%c12, %c0_78] : memref<36x1024xf32, #tpu.memory_space<vmem>>, vector<4x1024xf32>
    tpu.vector_store %arg13[%c12, %c0_78], %54 {strides = array<i32>} : memref<36x1024xf32, #tpu.memory_space<vmem>>, vector<4x1024xf32>,
    %c0_79 = arith.constant 0 : index
    %c1_80 = arith.constant 1 : index
    %c1_81 = arith.constant 1 : index
    %56 = vector.load %arg12[%c0_79, %c1_80, %c1_81] : memref<4x34x34xf32, #tpu.memory_space<vmem>>, vector<4x32x32xf32>
    %57 = vector.shape_cast %56 : vector<4x32x32xf32> to vector<4x1024xf32>
    %c16_82 = arith.constant 16 : index
    %c0_83 = arith.constant 0 : index
    %58 = vector.load %arg13[%c16_82, %c0_83] : memref<36x1024xf32, #tpu.memory_space<vmem>>, vector<4x1024xf32>
    tpu.vector_store %arg13[%c16_82, %c0_83], %57 {strides = array<i32>} : memref<36x1024xf32, #tpu.memory_space<vmem>>, vector<4x1024xf32>,
    %c0_84 = arith.constant 0 : index
    %c1_85 = arith.constant 1 : index
    %c2_86 = arith.constant 2 : index
    %59 = vector.load %arg12[%c0_84, %c1_85, %c2_86] : memref<4x34x34xf32, #tpu.memory_space<vmem>>, vector<4x32x32xf32>
    %60 = vector.shape_cast %59 : vector<4x32x32xf32> to vector<4x1024xf32>
    %c20 = arith.constant 20 : index
    %c0_87 = arith.constant 0 : index
    %61 = vector.load %arg13[%c20, %c0_87] : memref<36x1024xf32, #tpu.memory_space<vmem>>, vector<4x1024xf32>
    tpu.vector_store %arg13[%c20, %c0_87], %60 {strides = array<i32>} : memref<36x1024xf32, #tpu.memory_space<vmem>>, vector<4x1024xf32>,
    %c0_88 = arith.constant 0 : index
    %c2_89 = arith.constant 2 : index
    %c0_90 = arith.constant 0 : index
    %62 = vector.load %arg12[%c0_88, %c2_89, %c0_90] : memref<4x34x34xf32, #tpu.memory_space<vmem>>, vector<4x32x32xf32>
    %63 = vector.shape_cast %62 : vector<4x32x32xf32> to vector<4x1024xf32>
    %c24_91 = arith.constant 24 : index
    %c0_92 = arith.constant 0 : index
    %64 = vector.load %arg13[%c24_91, %c0_92] : memref<36x1024xf32, #tpu.memory_space<vmem>>, vector<4x1024xf32>
    tpu.vector_store %arg13[%c24_91, %c0_92], %63 {strides = array<i32>} : memref<36x1024xf32, #tpu.memory_space<vmem>>, vector<4x1024xf32>,
    %c0_93 = arith.constant 0 : index
    %c2_94 = arith.constant 2 : index
    %c1_95 = arith.constant 1 : index
    %65 = vector.load %arg12[%c0_93, %c2_94, %c1_95] : memref<4x34x34xf32, #tpu.memory_space<vmem>>, vector<4x32x32xf32>
    %66 = vector.shape_cast %65 : vector<4x32x32xf32> to vector<4x1024xf32>
    %c28 = arith.constant 28 : index
    %c0_96 = arith.constant 0 : index
    %67 = vector.load %arg13[%c28, %c0_96] : memref<36x1024xf32, #tpu.memory_space<vmem>>, vector<4x1024xf32>
    tpu.vector_store %arg13[%c28, %c0_96], %66 {strides = array<i32>} : memref<36x1024xf32, #tpu.memory_space<vmem>>, vector<4x1024xf32>,
    %c0_97 = arith.constant 0 : index
    %c2_98 = arith.constant 2 : index
    %c2_99 = arith.constant 2 : index
    %68 = vector.load %arg12[%c0_97, %c2_98, %c2_99] : memref<4x34x34xf32, #tpu.memory_space<vmem>>, vector<4x32x32xf32>
    %69 = vector.shape_cast %68 : vector<4x32x32xf32> to vector<4x1024xf32>
    %c32_100 = arith.constant 32 : index
    %c0_101 = arith.constant 0 : index
    %70 = vector.load %arg13[%c32_100, %c0_101] : memref<36x1024xf32, #tpu.memory_space<vmem>>, vector<4x1024xf32>
    tpu.vector_store %arg13[%c32_100, %c0_101], %69 {strides = array<i32>} : memref<36x1024xf32, #tpu.memory_space<vmem>>, vector<4x1024xf32>,
    %c0_102 = arith.constant 0 : index
    %c0_103 = arith.constant 0 : index
    %71 = vector.load %arg5[%c0_102, %c0_103] : memref<32x36xf32, #tpu.memory_space<vmem>>, vector<32x36xf32>
    %c0_104 = arith.constant 0 : index
    %c0_105 = arith.constant 0 : index
    %72 = vector.load %arg13[%c0_104, %c0_105] : memref<36x1024xf32, #tpu.memory_space<vmem>>, vector<36x1024xf32>
    %cst_106 = arith.constant dense<0.000000e+00> : vector<32x1024xf32>
    %73 = tpu.matmul %71, %72, %cst_106 {dimension_numbers = #tpu.dot_dimension_numbers<[1], [0], [0], [1], [0, 0, 1, 1], [], []>} : vector<32x36xf32>, vector<36x1024xf32>, vector<32x1024xf32> -> vector<32x1024xf32>
    %c0_107 = arith.constant 0 : index
    %c0_108 = arith.constant 0 : index
    %74 = vector.load %arg6[%c0_107, %c0_108] : memref<32x1xf32, #tpu.memory_space<vmem>>, vector<32x1xf32>
    %75 = vector.broadcast %74 : vector<32x1xf32> to vector<32x1024xf32>
    %76 = arith.addf %73, %75 : vector<32x1024xf32>
    %cst_109 = arith.constant 0.000000e+00 : f32
    %77 = vector.broadcast %cst_109 : f32 to vector<32x1024xf32>
    %78 = arith.maximumf %76, %77 : vector<32x1024xf32>
    %c0_110 = arith.constant 0 : index
    %c0_111 = arith.constant 0 : index
    %79 = vector.load %arg7[%c0_110, %c0_111] : memref<1x32xf32, #tpu.memory_space<vmem>>, vector<1x32xf32>
    %cst_112 = arith.constant dense<0.000000e+00> : vector<1x1024xf32>
    %80 = tpu.matmul %79, %78, %cst_112 {dimension_numbers = #tpu.dot_dimension_numbers<[1], [0], [0], [1], [0, 0, 1, 1], [], []>} : vector<1x32xf32>, vector<32x1024xf32>, vector<1x1024xf32> -> vector<1x1024xf32>
    %c0_113 = arith.constant 0 : index
    %c0_114 = arith.constant 0 : index
    %81 = vector.load %arg8[%c0_113, %c0_114] : memref<1x1xf32, #tpu.memory_space<vmem>>, vector<1x1xf32>
    %82 = vector.broadcast %81 : vector<1x1xf32> to vector<1x1024xf32>
    %83 = arith.addf %80, %82 : vector<1x1024xf32>
    %84 = arith.negf %83 : vector<1x1024xf32>
    %85 = math.exp %84 : vector<1x1024xf32>
    %cst_115 = arith.constant 1.000000e+00 : f32
    %86 = vector.broadcast %cst_115 : f32 to vector<1x1024xf32>
    %87 = arith.addf %86, %85 : vector<1x1024xf32>
    %88 = arith.divf %86, %87 : vector<1x1024xf32>
    %89 = vector.shape_cast %88 : vector<1x1024xf32> to vector<1x1x1024xf32>
    %c0_116 = arith.constant 0 : index
    %c0_117 = arith.constant 0 : index
    %c0_118 = arith.constant 0 : index
    %90 = vector.load %arg9[%c0_116, %c0_117, %c0_118] : memref<1x1x1024xf32, #tpu.memory_space<vmem>>, vector<1x1x1024xf32>
    tpu.vector_store %arg9[%c0_116, %c0_117, %c0_118], %89 {strides = array<i32>} : memref<1x1x1024xf32, #tpu.memory_space<vmem>>, vector<1x1x1024xf32>,
    return
  }
  func.func @transform_0(%arg0: i32) -> (i32, i32, i32, i32) {
    %c0_i32 = arith.constant 0 : i32
    %c0_i32_0 = arith.constant 0 : i32
    %c0_i32_1 = arith.constant 0 : i32
    %c0_i32_2 = arith.constant 0 : i32
    return %arg0, %c0_i32, %c0_i32_0, %c0_i32_1 : i32, i32, i32, i32
  }
  func.func @transform_1(%arg0: i32) -> (i32, i32) {
    %c0_i32 = arith.constant 0 : i32
    %c0_i32_0 = arith.constant 0 : i32
    %c0_i32_1 = arith.constant 0 : i32
    return %c0_i32, %c0_i32_0 : i32, i32
  }
  func.func @transform_2(%arg0: i32) -> (i32, i32) {
    %c0_i32 = arith.constant 0 : i32
    %c0_i32_0 = arith.constant 0 : i32
    %c0_i32_1 = arith.constant 0 : i32
    return %c0_i32, %c0_i32_0 : i32, i32
  }
  func.func @transform_3(%arg0: i32) -> (i32, i32) {
    %c0_i32 = arith.constant 0 : i32
    %c0_i32_0 = arith.constant 0 : i32
    %c0_i32_1 = arith.constant 0 : i32
    return %c0_i32, %c0_i32_0 : i32, i32
  }
  func.func @transform_4(%arg0: i32) -> (i32, i32) {
    %c0_i32 = arith.constant 0 : i32
    %c0_i32_0 = arith.constant 0 : i32
    %c0_i32_1 = arith.constant 0 : i32
    return %c0_i32, %c0_i32_0 : i32, i32
  }
  func.func @transform_5(%arg0: i32) -> (i32, i32) {
    %c0_i32 = arith.constant 0 : i32
    %c0_i32_0 = arith.constant 0 : i32
    %c0_i32_1 = arith.constant 0 : i32
    return %c0_i32, %c0_i32_0 : i32, i32
  }
  func.func @transform_6(%arg0: i32) -> (i32, i32) {
    %c0_i32 = arith.constant 0 : i32
    %c0_i32_0 = arith.constant 0 : i32
    %c0_i32_1 = arith.constant 0 : i32
    return %c0_i32, %c0_i32_0 : i32, i32
  }
  func.func @transform_7(%arg0: i32) -> (i32, i32) {
    %c0_i32 = arith.constant 0 : i32
    %c0_i32_0 = arith.constant 0 : i32
    %c0_i32_1 = arith.constant 0 : i32
    return %c0_i32, %c0_i32_0 : i32, i32
  }
  func.func @transform_8(%arg0: i32) -> (i32, i32, i32) {
    %c0_i32 = arith.constant 0 : i32
    %c0_i32_0 = arith.constant 0 : i32
    %c0_i32_1 = arith.constant 0 : i32
    return %arg0, %c0_i32, %c0_i32_0 : i32, i32, i32
  }
}

</mosaic_0001>

<llo_original>
// kernel: head_depth_forward.1
$region0: #{head_depth_forward.1}
  #allocation0 [shape = 'u32[]', space=smem, size = 0x4, offset = 0x4, fixed_abs, tag = 'smem constant byte address 0x4 - core index']
  #allocation1 [shape = 'u32[72,128]{1,0:T(1,128)}', space=vmem, size = 0x9000, scoped, tag = 'internal scratch']
  #allocation2 [shape = 'f32[8,18,18]{2,1,0:T(8,128)}', space=vmem, size = 0x18000, scoped, tag = 'scratch operand']
  #allocation3 [shape = 'f32[72,256]{1,0:T(8,128)}', space=vmem, size = 0x12000, scoped, tag = 'scratch operand']
  #allocation4 [shape = 'f32[4,34,34]{2,1,0:T(8,128)}', space=vmem, size = 0x14000, scoped, tag = 'scratch operand']
  #allocation5 [shape = 'f32[36,1024]{1,0:T(8,128)}', space=vmem, size = 0x28000, scoped, tag = 'scratch operand']
  #allocation6 [shape = 'f32[1,1]{1,0:T(1,128)S(1)}', space=vmem, size = 0x200, scoped, tag = 'scoped memory for head_depth_forward.1']
  %s0 = inlined_call_operand.vmem [shape: f32[2,8,16,16], index: 0, kind: input, shape index: {}]
  %s1 = inlined_call_operand.vmem [shape: f32[4,72], index: 1, kind: input, shape index: {}]
  %s2 = inlined_call_operand.vmem [shape: f32[4,1], index: 2, kind: input, shape index: {}]
  %s3 = inlined_call_operand.vmem [shape: f32[256,1024], index: 3, kind: input, shape index: {}]
  %s4 = inlined_call_operand.vmem [shape: f32[32,36], index: 4, kind: input, shape index: {}]
  %s5 = inlined_call_operand.vmem [shape: f32[32,1], index: 5, kind: input, shape index: {}]
  %s6 = inlined_call_operand.vmem [shape: f32[1,32], index: 6, kind: input, shape index: {}]
  %s7 = inlined_call_operand.<no memory space> [shape: f32[1,1], index: 7, kind: input, shape index: {}]
  %s8 = inlined_call_operand.vmem [shape: f32[2,1,1024], index: 8, kind: output, shape index: {}]
  %s9 = sld [smem:[#allocation0]]
  $region65: #{head_depth_forward.1} parent=0
    _
  %s11 = ssub.s32 1, %s9
  %s12 = scalar_select 0, %s11, %s9
  %v13 = vstv %s7
  %14 = vst [vmem:[#allocation6] sm:$0x1] %v13
  loop: start=0, step=1, limit=4
  $region2: #{head_depth_forward.1} parent=0 // loop_pre_header
    _
  $region3: #{head_depth_forward.1} parent=0 // loop_header
    %s16 = sphi 0, %s20
    %p17 = scmp.ge.s32.totalorder %s16, 4
    %s26 = sphi 0, %s28
    %s29 = sphi 0, %s26
    %s30 = sphi 0, %s29
    %s46 = sphi 0, %s30
    %s50 = sphi 0, %s50
    %s52 = sphi 0, %s50
    %s53 = sphi 0, %s52
    %s67 = sphi 0, %s53
    %s71 = sphi 0, %s71
    %s73 = sphi 0, %s71
    %s74 = sphi 0, %s73
    %s88 = sphi 0, %s74
    %s92 = sphi 0, %s92
    %s94 = sphi 0, %s92
    %s95 = sphi 0, %s94
    %s109 = sphi 0, %s95
    %s113 = sphi 0, %s113
    %s115 = sphi 0, %s113
    %s116 = sphi 0, %s115
    %s130 = sphi 0, %s116
    %s134 = sphi 0, %s134
    %s136 = sphi 0, %s134
    %s137 = sphi 0, %s136
    %s151 = sphi 0, %s137
    %s155 = sphi 0, %s155
    %s157 = sphi 0, %s155
    %s158 = sphi 0, %s157
    %s172 = sphi 0, %s158
    %s176 = sphi 0, %s176
    %s178 = sphi 0, %s176
    %s179 = sphi 0, %s178
    %s193 = sphi 0, %s179
    %s199 = sphi 0, %s201
    %s202 = sphi 0, %s199
    %s203 = sphi 0, %s202
    %s219 = sphi 0, %s203
  $region4: #{head_depth_forward.1} parent=0 // loop_header_branch
    %19 = sbr.rel (%p17) target = $region8
  $region5: #{head_depth_forward.1} parent=0 // loop_body
    %s21 = ssub.s32 %s16, 1
    %s22 = ssub.s32 %s16, 2
    %s23 = sadd.s32 %s16, 1
    %s24 = ssub.s32 %s16, %s23
    %p25 = scmp.eq.s32.totalorder %s24, 0
    %s27 = sadd.s32 %s26, 1
    %s28 = scalar_select %p25, %s26, %s27
    %p31 = pneg %p25
    %p32 = scmp.eq.s32.totalorder %s16, 1
    %p33 = por %p31, %p32
    %p34 = scmp.ne.s32.totalorder %s26, %s29
    %p35 = scmp.eq.s32.totalorder %s16, 0
    %p36 = por %p34, %p35
    %p37 = scmp.ne.s32.totalorder %s26, %s29
    %p38 = scmp.eq.s32.totalorder %s21, 1
    %p39 = por %p37, %p38
    %p40 = scmp.ne.s32.totalorder %s29, %s30
    %p41 = scmp.eq.s32.totalorder %s21, 0
    %p42 = por %p40, %p41
    %p43 = scmp.ne.s32.totalorder %s29, %s30
    %p44 = scmp.eq.s32.totalorder %s22, 1
    %p45 = por %p43, %p44
    %p47 = scmp.ne.s32.totalorder %s30, %s46
    %p48 = scmp.eq.s32.totalorder %s22, 0
    %p49 = por %p47, %p48
    %s51 = sadd.s32 %s50, 1
    %p54 = scmp.eq.s32.totalorder %s16, 1
    %p55 = scmp.ne.s32.totalorder %s50, %s52
    %p56 = scmp.eq.s32.totalorder %s16, 0
    %p57 = por %p55, %p56
    %p58 = scmp.ne.s32.totalorder %s50, %s52
    %p59 = scmp.eq.s32.totalorder %s21, 1
    %p60 = por %p58, %p59
    %p61 = scmp.ne.s32.totalorder %s52, %s53
    %p62 = scmp.eq.s32.totalorder %s21, 0
    %p63 = por %p61, %p62
    %p64 = scmp.ne.s32.totalorder %s52, %s53
    %p65 = scmp.eq.s32.totalorder %s22, 1
    %p66 = por %p64, %p65
    %p68 = scmp.ne.s32.totalorder %s53, %s67
    %p69 = scmp.eq.s32.totalorder %s22, 0
    %p70 = por %p68, %p69
    %s72 = sadd.s32 %s71, 1
    %p75 = scmp.eq.s32.totalorder %s16, 1
    %p76 = scmp.ne.s32.totalorder %s71, %s73
    %p77 = scmp.eq.s32.totalorder %s16, 0
    %p78 = por %p76, %p77
    %p79 = scmp.ne.s32.totalorder %s71, %s73
    %p80 = scmp.eq.s32.totalorder %s21, 1
    %p81 = por %p79, %p80
    %p82 = scmp.ne.s32.totalorder %s73, %s74
    %p83 = scmp.eq.s32.totalorder %s21, 0
    %p84 = por %p82, %p83
    %p85 = scmp.ne.s32.totalorder %s73, %s74
    %p86 = scmp.eq.s32.totalorder %s22, 1
    %p87 = por %p85, %p86
    %p89 = scmp.ne.s32.totalorder %s74, %s88
    %p90 = scmp.eq.s32.totalorder %s22, 0
    %p91 = por %p89, %p90
    %s93 = sadd.s32 %s92, 1
    %p96 = scmp.eq.s32.totalorder %s16, 1
    %p97 = scmp.ne.s32.totalorder %s92, %s94
    %p98 = scmp.eq.s32.totalorder %s16, 0
    %p99 = por %p97, %p98
    %p100 = scmp.ne.s32.totalorder %s92, %s94
    %p101 = scmp.eq.s32.totalorder %s21, 1
    %p102 = por %p100, %p101
    %p103 = scmp.ne.s32.totalorder %s94, %s95
    %p104 = scmp.eq.s32.totalorder %s21, 0
    %p105 = por %p103, %p104
    %p106 = scmp.ne.s32.totalorder %s94, %s95
    %p107 = scmp.eq.s32.totalorder %s22, 1
    %p108 = por %p106, %p107
    %p110 = scmp.ne.s32.totalorder %s95, %s109
    %p111 = scmp.eq.s32.totalorder %s22, 0
    %p112 = por %p110, %p111
    %s114 = sadd.s32 %s113, 1
    %p117 = scmp.eq.s32.totalorder %s16, 1
    %p118 = scmp.ne.s32.totalorder %s113, %s115
    %p119 = scmp.eq.s32.totalorder %s16, 0
    %p120 = por %p118, %p119
    %p121 = scmp.ne.s32.totalorder %s113, %s115
    %p122 = scmp.eq.s32.totalorder %s21, 1
    %p123 = por %p121, %p122
    %p124 = scmp.ne.s32.totalorder %s115, %s116
    %p125 = scmp.eq.s32.totalorder %s21, 0
    %p126 = por %p124, %p125
    %p127 = scmp.ne.s32.totalorder %s115, %s116
    %p128 = scmp.eq.s32.totalorder %s22, 1
    %p129 = por %p127, %p128
    %p131 = scmp.ne.s32.totalorder %s116, %s130
    %p132 = scmp.eq.s32.totalorder %s22, 0
    %p133 = por %p131, %p132
    %s135 = sadd.s32 %s134, 1
    %p138 = scmp.eq.s32.totalorder %s16, 1
    %p139 = scmp.ne.s32.totalorder %s134, %s136
    %p140 = scmp.eq.s32.totalorder %s16, 0
    %p141 = por %p139, %p140
    %p142 = scmp.ne.s32.totalorder %s134, %s136
    %p143 = scmp.eq.s32.totalorder %s21, 1
    %p144 = por %p142, %p143
    %p145 = scmp.ne.s32.totalorder %s136, %s137
    %p146 = scmp.eq.s32.totalorder %s21, 0
    %p147 = por %p145, %p146
    %p148 = scmp.ne.s32.totalorder %s136, %s137
    %p149 = scmp.eq.s32.totalorder %s22, 1
    %p150 = por %p148, %p149
    %p152 = scmp.ne.s32.totalorder %s137, %s151
    %p153 = scmp.eq.s32.totalorder %s22, 0
    %p154 = por %p152, %p153
    %s156 = sadd.s32 %s155, 1
    %p159 = scmp.eq.s32.totalorder %s16, 1
    %p160 = scmp.ne.s32.totalorder %s155, %s157
    %p161 = scmp.eq.s32.totalorder %s16, 0
    %p162 = por %p160, %p161
    %p163 = scmp.ne.s32.totalorder %s155, %s157
    %p164 = scmp.eq.s32.totalorder %s21, 1
    %p165 = por %p163, %p164
    %p166 = scmp.ne.s32.totalorder %s157, %s158
    %p167 = scmp.eq.s32.totalorder %s21, 0
    %p168 = por %p166, %p167
    %p169 = scmp.ne.s32.totalorder %s157, %s158
    %p170 = scmp.eq.s32.totalorder %s22, 1
    %p171 = por %p169, %p170
    %p173 = scmp.ne.s32.totalorder %s158, %s172
    %p174 = scmp.eq.s32.totalorder %s22, 0
    %p175 = por %p173, %p174
    %s177 = sadd.s32 %s176, 1
    %p180 = scmp.eq.s32.totalorder %s16, 1
    %p181 = scmp.ne.s32.totalorder %s176, %s178
    %p182 = scmp.eq.s32.totalorder %s16, 0
    %p183 = por %p181, %p182
    %p184 = scmp.ne.s32.totalorder %s176, %s178
    %p185 = scmp.eq.s32.totalorder %s21, 1
    %p186 = por %p184, %p185
    %p187 = scmp.ne.s32.totalorder %s178, %s179
    %p188 = scmp.eq.s32.totalorder %s21, 0
    %p189 = por %p187, %p188
    %p190 = scmp.ne.s32.totalorder %s178, %s179
    %p191 = scmp.eq.s32.totalorder %s22, 1
    %p192 = por %p190, %p191
    %p194 = scmp.ne.s32.totalorder %s179, %s193
    %p195 = scmp.eq.s32.totalorder %s22, 0
    %p196 = por %p194, %p195
    %s197 = ssub.s32 %s16, %s23
    %p198 = scmp.eq.s32.totalorder %s197, 0
    %s200 = sadd.s32 %s199, 1
    %s201 = scalar_select %p198, %s199, %s200
    %p204 = pneg %p198
    %p205 = scmp.eq.s32.totalorder %s16, 1
    %p206 = por %p204, %p205
    %p207 = scmp.ne.s32.totalorder %s199, %s202
    %p208 = scmp.eq.s32.totalorder %s16, 0
    %p209 = por %p207, %p208
    %p210 = scmp.ne.s32.totalorder %s199, %s202
    %p211 = scmp.eq.s32.totalorder %s21, 1
    %p212 = por %p210, %p211
    %p213 = scmp.ne.s32.totalorder %s202, %s203
    %p214 = scmp.eq.s32.totalorder %s21, 0
    %p215 = por %p213, %p214
    %p216 = scmp.ne.s32.totalorder %s202, %s203
    %p217 = scmp.eq.s32.totalorder %s22, 1
    %p218 = por %p216, %p217
    %p220 = scmp.ne.s32.totalorder %s203, %s219
    %p221 = scmp.eq.s32.totalorder %s22, 0
    %p222 = por %p220, %p221
    %p223 = scmp.le.s32.totalorder 1, %s16
    %p224 = scmp.lt.s32.totalorder %s16, 3
    %p225 = pnand %p223, %p224
    %p226 = pneg %p225
    // Predicated region
    $region9: #{head_depth_forward.1} parent=5 // pred_check
      _
    $region10: #{head_depth_forward.1} parent=5 // pred_check_branch
      %228 = sbr.rel (%p225) target = $region12
    $region11: #{head_depth_forward.1} parent=5 // pred_region
      %s229 = ssub.s32 %s16, 1
      // Predicated region
      $region13: #{head_depth_forward.1} parent=11 // pred_check
        %p230 = pneg %p63
      $region14: #{head_depth_forward.1} parent=11 // pred_check_branch
        %232 = sbr.rel (%p230) target = $region16
      $region15: #{head_depth_forward.1} parent=11 // pred_region
        _
      $region16: #{head_depth_forward.1} parent=11 // pred_fallthru
        _
      // Predicated region
      $region17: #{head_depth_forward.1} parent=11 // pred_check
        %p233 = pneg %p84
      $region18: #{head_depth_forward.1} parent=11 // pred_check_branch
        %235 = sbr.rel (%p233) target = $region20
      $region19: #{head_depth_forward.1} parent=11 // pred_region
        _
      $region20: #{head_depth_forward.1} parent=11 // pred_fallthru
        _
      // Predicated region
      $region21: #{head_depth_forward.1} parent=11 // pred_check
        %p236 = pneg %p105
      $region22: #{head_depth_forward.1} parent=11 // pred_check_branch
        %238 = sbr.rel (%p236) target = $region24
      $region23: #{head_depth_forward.1} parent=11 // pred_region
        _
      $region24: #{head_depth_forward.1} parent=11 // pred_fallthru
        _
      // Predicated region
      $region25: #{head_depth_forward.1} parent=11 // pred_check
        %p239 = pneg %p126
      $region26: #{head_depth_forward.1} parent=11 // pred_check_branch
        %241 = sbr.rel (%p239) target = $region28
      $region27: #{head_depth_forward.1} parent=11 // pred_region
        _
      $region28: #{head_depth_forward.1} parent=11 // pred_fallthru
        _
      // Predicated region
      $region29: #{head_depth_forward.1} parent=11 // pred_check
        %p242 = pneg %p147
      $region30: #{head_depth_forward.1} parent=11 // pred_check_branch
        %244 = sbr.rel (%p242) target = $region32
      $region31: #{head_depth_forward.1} parent=11 // pred_region
        _
      $region32: #{head_depth_forward.1} parent=11 // pred_fallthru
        _
      // Predicated region
      $region33: #{head_depth_forward.1} parent=11 // pred_check
        %p245 = pneg %p168
      $region34: #{head_depth_forward.1} parent=11 // pred_check_branch
        %247 = sbr.rel (%p245) target = $region36
      $region35: #{head_depth_forward.1} parent=11 // pred_region
        _
      $region36: #{head_depth_forward.1} parent=11 // pred_fallthru
        _
      // Predicated region
      $region37: #{head_depth_forward.1} parent=11 // pred_check
        %p248 = pneg %p189
      $region38: #{head_depth_forward.1} parent=11 // pred_check_branch
        %250 = sbr.rel (%p248) target = $region40
      $region39: #{head_depth_forward.1} parent=11 // pred_region
        _
      $region40: #{head_depth_forward.1} parent=11 // pred_fallthru
        _
    $region12: #{head_depth_forward.1} parent=5 // pred_fallthru
      _
    %p251 = scmp.lt.s32.totalorder %s16, 2
    // Predicated region
    $region41: #{head_depth_forward.1} parent=5 // pred_check
      %p252 = pneg %p251
    $region42: #{head_depth_forward.1} parent=5 // pred_check_branch
      %254 = sbr.rel (%p252) target = $region44
    $region43: #{head_depth_forward.1} parent=5 // pred_region
      // Predicated region
      $region45: #{head_depth_forward.1} parent=43 // pred_check
        %p255 = pneg %p36
      $region46: #{head_depth_forward.1} parent=43 // pred_check_branch
        %257 = sbr.rel (%p255) target = $region48
      $region47: #{head_depth_forward.1} parent=43 // pred_region
        %p258 = scmp.lt.s32.totalorder %s16, 1
        %s259 = scalar_select %p258, %s16, 1
        %s260 = smul.addr %s259, 16
        %s261 = smul.addr %s260, 8
        %s262 = scalar_lea.vmem %s0, %s261
      $region48: #{head_depth_forward.1} parent=43 // pred_fallthru
        _
    $region44: #{head_depth_forward.1} parent=5 // pred_fallthru
      _
    %p263 = scmp.le.s32.totalorder 1, %s16
    %p264 = scmp.lt.s32.totalorder %s16, 3
    %p265 = pnand %p263, %p264
    %p266 = pneg %p265
    // Predicated region
    $region49: #{head_depth_forward.1} parent=5 // pred_check
      _
    $region50: #{head_depth_forward.1} parent=5 // pred_check_branch
      %268 = sbr.rel (%p265) target = $region52
    $region51: #{head_depth_forward.1} parent=5 // pred_region
      %s269 = ssub.s32 %s16, 1
      %p270 = scmp.lt.s32.totalorder %s21, 1
      %s271 = scalar_select %p270, %s21, 1
      %s272 = smul.addr %s271, 16
      %s273 = smul.addr %s272, 8
      %s274 = scalar_lea.vmem %s0, %s273
      %p275 = pneg %p42
      %p276 = pneg %p39
      %p277 = pneg %p63
      %p278 = pneg %p60
      %p279 = pneg %p84
      %p280 = pneg %p81
      %p281 = pneg %p105
      %p282 = pneg %p102
      %p283 = pneg %p126
      %p284 = pneg %p123
      %p285 = pneg %p147
      %p286 = pneg %p144
      %p287 = pneg %p168
      %p288 = pneg %p165
      %p289 = pneg %p189
      %p290 = pneg %p186
      %p291 = pneg %p215
      %p292 = pneg %p212
      %p293 = scmp.lt.s32.totalorder %s21, 1
      %s294 = scalar_select %p293, %s21, 1
      %s295 = smul.addr %s294, 8
      %s296 = scalar_lea.vmem %s8, %s295
      %p297 = scmp.lt.s32.totalorder %s21, 1
      %s298 = scalar_select %p297, %s21, 1
      %s299 = smul.addr %s298, 16
      %s300 = smul.addr %s299, 8
      %s301 = scalar_lea.vmem %s0, %s300
      %p302 = scmp.lt.s32.totalorder %s21, 1
      %s303 = scalar_select %p302, %s21, 1
      %s304 = smul.addr %s303, 8
      %s305 = scalar_lea.vmem %s8, %s304
      %vm306 = vcmask 146432
      %307 = vst.msk [vmem:[#allocation2] sm:$0xff] %vm306, 0.0
      %308 = vst.msk [vmem:[#allocation2 + $0x8] sm:$0xff] %vm306, 0.0
      %vm309 = vcmask 140288
      %310 = vst.msk [vmem:[#allocation2 + $0x10] sm:$0x3] %vm309, 0.0
      %311 = vst.msk [vmem:[#allocation2 + $0x18] sm:$0xff] %vm306, 0.0
      %312 = vst.msk [vmem:[#allocation2 + $0x20] sm:$0xff] %vm306, 0.0
      %313 = vst.msk [vmem:[#allocation2 + $0x28] sm:$0x3] %vm309, 0.0
      %314 = vst.msk [vmem:[#allocation2 + $0x30] sm:$0xff] %vm306, 0.0
      %315 = vst.msk [vmem:[#allocation2 + $0x38] sm:$0xff] %vm306, 0.0
      %316 = vst.msk [vmem:[#allocation2 + $0x40] sm:$0x3] %vm309, 0.0
      %317 = vst.msk [vmem:[#allocation2 + $0x48] sm:$0xff] %vm306, 0.0
      %318 = vst.msk [vmem:[#allocation2 + $0x50] sm:$0xff] %vm306, 0.0
      %319 = vst.msk [vmem:[#allocation2 + $0x58] sm:$0x3] %vm309, 0.0
      %320 = vst.msk [vmem:[#allocation2 + $0x60] sm:$0xff] %vm306, 0.0
      %321 = vst.msk [vmem:[#allocation2 + $0x68] sm:$0xff] %vm306, 0.0
      %322 = vst.msk [vmem:[#allocation2 + $0x70] sm:$0x3] %vm309, 0.0
      %323 = vst.msk [vmem:[#allocation2 + $0x78] sm:$0xff] %vm306, 0.0
      %324 = vst.msk [vmem:[#allocation2 + $0x80] sm:$0xff] %vm306, 0.0
      %325 = vst.msk [vmem:[#allocation2 + $0x88] sm:$0x3] %vm309, 0.0
      %326 = vst.msk [vmem:[#allocation2 + $0x90] sm:$0xff] %vm306, 0.0
      %327 = vst.msk [vmem:[#allocation2 + $0x98] sm:$0xff] %vm306, 0.0
      %328 = vst.msk [vmem:[#allocation2 + $0xa0] sm:$0x3] %vm309, 0.0
      %329 = vst.msk [vmem:[#allocation2 + $0xa8] sm:$0xff] %vm306, 0.0
      %330 = vst.msk [vmem:[#allocation2 + $0xb0] sm:$0xff] %vm306, 0.0
      %331 = vst.msk [vmem:[#allocation2 + $0xb8] sm:$0x3] %vm309, 0.0
      %v332 = vld [vmem:[%s301] sm:$0xff]
      %v333 = vld [vmem:[%s301 + $0x8] sm:$0xff]
      %v334 = vld [vmem:[%s301 + $0x10] sm:$0xff]
      %v335 = vld [vmem:[%s301 + $0x18] sm:$0xff]
      %v336 = vld [vmem:[%s301 + $0x20] sm:$0xff]
      %v337 = vld [vmem:[%s301 + $0x28] sm:$0xff]
      %v338 = vld [vmem:[%s301 + $0x30] sm:$0xff]
      %v339 = vld [vmem:[%s301 + $0x38] sm:$0xff]
      %v340 = vld [vmem:[%s301 + $0x40] sm:$0xff]
      %v341 = vld [vmem:[%s301 + $0x48] sm:$0xff]
      %v342 = vld [vmem:[%s301 + $0x50] sm:$0xff]
      %v343 = vld [vmem:[%s301 + $0x58] sm:$0xff]
      %v344 = vld [vmem:[%s301 + $0x60] sm:$0xff]
      %v345 = vld [vmem:[%s301 + $0x68] sm:$0xff]
      %v346 = vld [vmem:[%s301 + $0x70] sm:$0xff]
      %v347 = vld [vmem:[%s301 + $0x78] sm:$0xff]
      %364 = vrot.lane.b32.xlu0 %v332, 1
      %v365 = vpop.permute.xlu0 %364
      %366 = vrot.lane.b32.xlu0 %v333, 1
      %v367 = vpop.permute.xlu0 %366
      %368 = vrot.lane.b32.xlu0 %v334, 1
      %v369 = vpop.permute.xlu0 %368
      %370 = vrot.lane.b32.xlu0 %v335, 1
      %v371 = vpop.permute.xlu0 %370
      %372 = vrot.lane.b32.xlu0 %v336, 1
      %v373 = vpop.permute.xlu0 %372
      %374 = vrot.lane.b32.xlu0 %v337, 1
      %v375 = vpop.permute.xlu0 %374
      %376 = vrot.lane.b32.xlu0 %v338, 1
      %v377 = vpop.permute.xlu0 %376
      %378 = vrot.lane.b32.xlu0 %v339, 1
      %v379 = vpop.permute.xlu0 %378
      %380 = vrot.lane.b32.xlu0 %v340, 1
      %v381 = vpop.permute.xlu0 %380
      %382 = vrot.lane.b32.xlu0 %v341, 1
      %v383 = vpop.permute.xlu0 %382
      %384 = vrot.lane.b32.xlu0 %v342, 1
      %v385 = vpop.permute.xlu0 %384
      %386 = vrot.lane.b32.xlu0 %v343, 1
      %v387 = vpop.permute.xlu0 %386
      %388 = vrot.lane.b32.xlu0 %v344, 1
      %v389 = vpop.permute.xlu0 %388
      %390 = vrot.lane.b32.xlu0 %v345, 1
      %v391 = vpop.permute.xlu0 %390
      %392 = vrot.lane.b32.xlu0 %v346, 1
      %v393 = vpop.permute.xlu0 %392
      %394 = vrot.lane.b32.xlu0 %v347, 1
      %v395 = vpop.permute.xlu0 %394
      %vm412 = vcmask 138248
      %413 = vst.msk [vmem:[#allocation2 + $0x1] sm:$0xff] %vm412, %v365
      %414 = vst.msk [vmem:[#allocation2 + $0x9] sm:$0xff] %vm412, %v367
      %415 = vst.msk [vmem:[#allocation2 + $0x19] sm:$0xff] %vm412, %v369
      %416 = vst.msk [vmem:[#allocation2 + $0x21] sm:$0xff] %vm412, %v371
      %417 = vst.msk [vmem:[#allocation2 + $0x31] sm:$0xff] %vm412, %v373
      %418 = vst.msk [vmem:[#allocation2 + $0x39] sm:$0xff] %vm412, %v375
      %419 = vst.msk [vmem:[#allocation2 + $0x49] sm:$0xff] %vm412, %v377
      %420 = vst.msk [vmem:[#allocation2 + $0x51] sm:$0xff] %vm412, %v379
      %421 = vst.msk [vmem:[#allocation2 + $0x61] sm:$0xff] %vm412, %v381
      %422 = vst.msk [vmem:[#allocation2 + $0x69] sm:$0xff] %vm412, %v383
      %423 = vst.msk [vmem:[#allocation2 + $0x79] sm:$0xff] %vm412, %v385
      %424 = vst.msk [vmem:[#allocation2 + $0x81] sm:$0xff] %vm412, %v387
      %425 = vst.msk [vmem:[#allocation2 + $0x91] sm:$0xff] %vm412, %v389
      %426 = vst.msk [vmem:[#allocation2 + $0x99] sm:$0xff] %vm412, %v391
      %427 = vst.msk [vmem:[#allocation2 + $0xa9] sm:$0xff] %vm412, %v393
      %428 = vst.msk [vmem:[#allocation2 + $0xb1] sm:$0xff] %vm412, %v395
      %v429 = vld [vmem:[#allocation2] sm:$0xff]
      %v430 = vld [vmem:[#allocation2 + $0x8] sm:$0xff]
      %v431 = vld [vmem:[#allocation2 + $0x18] sm:$0xff]
      %v432 = vld [vmem:[#allocation2 + $0x20] sm:$0xff]
      %v433 = vld [vmem:[#allocation2 + $0x30] sm:$0xff]
      %v434 = vld [vmem:[#allocation2 + $0x38] sm:$0xff]
      %v435 = vld [vmem:[#allocation2 + $0x48] sm:$0xff]
      %v436 = vld [vmem:[#allocation2 + $0x50] sm:$0xff]
      %v437 = vld [vmem:[#allocation2 + $0x60] sm:$0xff]
      %v438 = vld [vmem:[#allocation2 + $0x68] sm:$0xff]
      %v439 = vld [vmem:[#allocation2 + $0x78] sm:$0xff]
      %v440 = vld [vmem:[#allocation2 + $0x80] sm:$0xff]
      %v441 = vld [vmem:[#allocation2 + $0x90] sm:$0xff]
      %v442 = vld [vmem:[#allocation2 + $0x98] sm:$0xff]
      %v443 = vld [vmem:[#allocation2 + $0xa8] sm:$0xff]
      %v444 = vld [vmem:[#allocation2 + $0xb0] sm:$0xff]
      %v445 = vrot.slane %v433, 4
      %vm446 = vcmask 1047556
      %v447 = vsel %vm446, %v445, %v429
      %v448 = vrot.slane %v429, 4
      %v449 = vsel %vm446, %v433, %v448
      %v451 = vunpack.c.l.s4 1983009808
      %v452 = vunpack.c.0.s8 %v451
      %v453 = vperm.slane %v447, %v452
      %v455 = vunpack.c.l.s4 1983009808
      %v456 = vunpack.c.0.s8 %v455
      %v457 = vperm.slane %v449, %v456
      %v458 = vrot.slane %v435, 4
      %v459 = vsel %vm446, %v458, %v431
      %v460 = vrot.slane %v431, 4
      %v461 = vsel %vm446, %v435, %v460
      %v463 = vunpack.c.l.s4 1983009808
      %v464 = vunpack.c.0.s8 %v463
      %v465 = vperm.slane %v459, %v464
      %v467 = vunpack.c.l.s4 1983009808
      %v468 = vunpack.c.0.s8 %v467
      %v469 = vperm.slane %v461, %v468
      %v470 = vrot.slane %v441, 4
      %v471 = vsel %vm446, %v470, %v437
      %v472 = vrot.slane %v437, 4
      %v473 = vsel %vm446, %v441, %v472
      %v475 = vunpack.c.l.s4 1983009808
      %v476 = vunpack.c.0.s8 %v475
      %v477 = vperm.slane %v471, %v476
      %v479 = vunpack.c.l.s4 1983009808
      %v480 = vunpack.c.0.s8 %v479
      %v481 = vperm.slane %v473, %v480
      %v482 = vrot.slane %v443, 4
      %v483 = vsel %vm446, %v482, %v439
      %v484 = vrot.slane %v439, 4
      %v485 = vsel %vm446, %v443, %v484
      %v487 = vunpack.c.l.s4 1983009808
      %v488 = vunpack.c.0.s8 %v487
      %v489 = vperm.slane %v483, %v488
      %v491 = vunpack.c.l.s4 1983009808
      %v492 = vunpack.c.0.s8 %v491
      %v493 = vperm.slane %v485, %v492
      %v494 = vrot.slane %v465, 4
      %v495 = vsel %vm446, %v494, %v453
      %v496 = vrot.slane %v453, 4
      %v497 = vsel %vm446, %v465, %v496
      %v499 = vunpack.c.l.s4 1934713408
      %v500 = vunpack.c.0.s8 %v499
      %v501 = vperm.slane %v495, %v500
      %v503 = vunpack.c.l.s4 1934713408
      %v504 = vunpack.c.0.s8 %v503
      %v505 = vperm.slane %v497, %v504
      %v506 = vrot.slane %v469, 4
      %v507 = vsel %vm446, %v506, %v457
      %v508 = vrot.slane %v457, 4
      %v509 = vsel %vm446, %v469, %v508
      %v511 = vunpack.c.l.s4 1934713408
      %v512 = vunpack.c.0.s8 %v511
      %v513 = vperm.slane %v507, %v512
      %v515 = vunpack.c.l.s4 1934713408
      %v516 = vunpack.c.0.s8 %v515
      %v517 = vperm.slane %v509, %v516
      %v518 = vrot.slane %v489, 4
      %v519 = vsel %vm446, %v518, %v477
      %v520 = vrot.slane %v477, 4
      %v521 = vsel %vm446, %v489, %v520
      %v523 = vunpack.c.l.s4 1934713408
      %v524 = vunpack.c.0.s8 %v523
      %v525 = vperm.slane %v519, %v524
      %v527 = vunpack.c.l.s4 1934713408
      %v528 = vunpack.c.0.s8 %v527
      %v529 = vperm.slane %v521, %v528
      %v530 = vrot.slane %v493, 4
      %v531 = vsel %vm446, %v530, %v481
      %v532 = vrot.slane %v481, 4
      %v533 = vsel %vm446, %v493, %v532
      %v535 = vunpack.c.l.s4 1934713408
      %v536 = vunpack.c.0.s8 %v535
      %v537 = vperm.slane %v531, %v536
      %v539 = vunpack.c.l.s4 1934713408
      %v540 = vunpack.c.0.s8 %v539
      %v541 = vperm.slane %v533, %v540
      %v542 = vrot.slane %v525, 4
      %v543 = vsel %vm446, %v542, %v501
      %v544 = vrot.slane %v501, 4
      %v545 = vsel %vm446, %v525, %v544
      %v546 = vrot.slane %v529, 4
      %v547 = vsel %vm446, %v546, %v505
      %v548 = vrot.slane %v505, 4
      %v549 = vsel %vm446, %v529, %v548
      %v550 = vrot.slane %v537, 4
      %v551 = vsel %vm446, %v550, %v513
      %v552 = vrot.slane %v513, 4
      %v553 = vsel %vm446, %v537, %v552
      %v554 = vrot.slane %v541, 4
      %v555 = vsel %vm446, %v554, %v517
      %v556 = vrot.slane %v517, 4
      %v557 = vsel %vm446, %v541, %v556
      %v558 = vrot.slane %v434, 4
      %v559 = vsel %vm446, %v558, %v430
      %v560 = vrot.slane %v430, 4
      %v561 = vsel %vm446, %v434, %v560
      %v563 = vunpack.c.l.s4 1983009808
      %v564 = vunpack.c.0.s8 %v563
      %v565 = vperm.slane %v559, %v564
      %v567 = vunpack.c.l.s4 1983009808
      %v568 = vunpack.c.0.s8 %v567
      %v569 = vperm.slane %v561, %v568
      %v570 = vrot.slane %v436, 4
      %v571 = vsel %vm446, %v570, %v432
      %v572 = vrot.slane %v432, 4
      %v573 = vsel %vm446, %v436, %v572
      %v575 = vunpack.c.l.s4 1983009808
      %v576 = vunpack.c.0.s8 %v575
      %v577 = vperm.slane %v571, %v576
      %v579 = vunpack.c.l.s4 1983009808
      %v580 = vunpack.c.0.s8 %v579
      %v581 = vperm.slane %v573, %v580
      %v582 = vrot.slane %v442, 4
      %v583 = vsel %vm446, %v582, %v438
      %v584 = vrot.slane %v438, 4
      %v585 = vsel %vm446, %v442, %v584
      %v587 = vunpack.c.l.s4 1983009808
      %v588 = vunpack.c.0.s8 %v587
      %v589 = vperm.slane %v583, %v588
      %v591 = vunpack.c.l.s4 1983009808
      %v592 = vunpack.c.0.s8 %v591
      %v593 = vperm.slane %v585, %v592
      %v594 = vrot.slane %v444, 4
      %v595 = vsel %vm446, %v594, %v440
      %v596 = vrot.slane %v440, 4
      %v597 = vsel %vm446, %v444, %v596
      %v599 = vunpack.c.l.s4 1983009808
      %v600 = vunpack.c.0.s8 %v599
      %v601 = vperm.slane %v595, %v600
      %v603 = vunpack.c.l.s4 1983009808
      %v604 = vunpack.c.0.s8 %v603
      %v605 = vperm.slane %v597, %v604
      %v606 = vrot.slane %v577, 4
      %v607 = vsel %vm446, %v606, %v565
      %v608 = vrot.slane %v565, 4
      %v609 = vsel %vm446, %v577, %v608
      %v611 = vunpack.c.l.s4 1934713408
      %v612 = vunpack.c.0.s8 %v611
      %v613 = vperm.slane %v607, %v612
      %v615 = vunpack.c.l.s4 1934713408
      %v616 = vunpack.c.0.s8 %v615
      %v617 = vperm.slane %v609, %v616
      %v618 = vrot.slane %v581, 4
      %v619 = vsel %vm446, %v618, %v569
      %v620 = vrot.slane %v569, 4
      %v621 = vsel %vm446, %v581, %v620
      %v623 = vunpack.c.l.s4 1934713408
      %v624 = vunpack.c.0.s8 %v623
      %v625 = vperm.slane %v619, %v624
      %v627 = vunpack.c.l.s4 1934713408
      %v628 = vunpack.c.0.s8 %v627
      %v629 = vperm.slane %v621, %v628
      %v630 = vrot.slane %v601, 4
      %v631 = vsel %vm446, %v630, %v589
      %v632 = vrot.slane %v589, 4
      %v633 = vsel %vm446, %v601, %v632
      %v635 = vunpack.c.l.s4 1934713408
      %v636 = vunpack.c.0.s8 %v635
      %v637 = vperm.slane %v631, %v636
      %v639 = vunpack.c.l.s4 1934713408
      %v640 = vunpack.c.0.s8 %v639
      %v641 = vperm.slane %v633, %v640
      %v642 = vrot.slane %v605, 4
      %v643 = vsel %vm446, %v642, %v593
      %v644 = vrot.slane %v593, 4
      %v645 = vsel %vm446, %v605, %v644
      %v647 = vunpack.c.l.s4 1934713408
      %v648 = vunpack.c.0.s8 %v647
      %v649 = vperm.slane %v643, %v648
      %v651 = vunpack.c.l.s4 1934713408
      %v652 = vunpack.c.0.s8 %v651
      %v653 = vperm.slane %v645, %v652
      %v654 = vrot.slane %v637, 4
      %v655 = vsel %vm446, %v654, %v613
      %v656 = vrot.slane %v613, 4
      %v657 = vsel %vm446, %v637, %v656
      %v658 = vrot.slane %v641, 4
      %v659 = vsel %vm446, %v658, %v617
      %v660 = vrot.slane %v617, 4
      %v661 = vsel %vm446, %v641, %v660
      %v662 = vrot.slane %v649, 4
      %v663 = vsel %vm446, %v662, %v625
      %v664 = vrot.slane %v625, 4
      %v665 = vsel %vm446, %v649, %v664
      %v666 = vrot.slane %v653, 4
      %v667 = vsel %vm446, %v666, %v629
      %v668 = vrot.slane %v629, 4
      %v669 = vsel %vm446, %v653, %v668
      %671 = vrot.lane.b32.xlu0 %v545, 16
      %v672 = vpop.permute.xlu0 %671
      %675 = vrot.lane.b32.xlu0 %v547, 32
      %v676 = vpop.permute.xlu0 %675
      %679 = vrot.lane.b32.xlu0 %v549, 48
      %v680 = vpop.permute.xlu0 %679
      %683 = vrot.lane.b32.xlu0 %v551, 64
      %v684 = vpop.permute.xlu0 %683
      %687 = vrot.lane.b32.xlu0 %v553, 80
      %v688 = vpop.permute.xlu0 %687
      %691 = vrot.lane.b32.xlu0 %v555, 96
      %v692 = vpop.permute.xlu0 %691
      %695 = vrot.lane.b32.xlu0 %v557, 112
      %v696 = vpop.permute.xlu0 %695
      %699 = vrot.lane.b32.xlu0 %v657, 16
      %v700 = vpop.permute.xlu0 %699
      %703 = vrot.lane.b32.xlu0 %v659, 32
      %v704 = vpop.permute.xlu0 %703
      %707 = vrot.lane.b32.xlu0 %v661, 48
      %v708 = vpop.permute.xlu0 %707
      %711 = vrot.lane.b32.xlu0 %v663, 64
      %v712 = vpop.permute.xlu0 %711
      %715 = vrot.lane.b32.xlu0 %v665, 80
      %v716 = vpop.permute.xlu0 %715
      %719 = vrot.lane.b32.xlu0 %v667, 96
      %v720 = vpop.permute.xlu0 %719
      %723 = vrot.lane.b32.xlu0 %v669, 112
      %v724 = vpop.permute.xlu0 %723
      %vm726 = vcmask 130048
      %v727 = vsel %vm726, %v543, %v672
      %vm728 = vcmask 261120
      %v729 = vsel %vm728, %v727, %v676
      %vm730 = vcmask 392192
      %v731 = vsel %vm730, %v729, %v680
      %vm732 = vcmask 523264
      %v733 = vsel %vm732, %v731, %v684
      %vm734 = vcmask 654336
      %v735 = vsel %vm734, %v733, %v688
      %vm736 = vcmask 785408
      %v737 = vsel %vm736, %v735, %v692
      %vm738 = vcmask 916480
      %v739 = vsel %vm738, %v737, %v696
      %v740 = vsel %vm726, %v655, %v700
      %v741 = vsel %vm728, %v740, %v704
      %v742 = vsel %vm730, %v741, %v708
      %v743 = vsel %vm732, %v742, %v712
      %v744 = vsel %vm734, %v743, %v716
      %v745 = vsel %vm736, %v744, %v720
      %v746 = vsel %vm738, %v745, %v724
      %747 = vst [vmem:[#allocation3] sm:$0xff] %v739
      %748 = vst [vmem:[#allocation3 + $0x8] sm:$0xff] %v746
      %v749 = vld [vmem:[#allocation2] sm:$0xff]
      %v750 = vld [vmem:[#allocation2 + $0x8] sm:$0xff]
      %v751 = vld [vmem:[#allocation2 + $0x18] sm:$0xff]
      %v752 = vld [vmem:[#allocation2 + $0x20] sm:$0xff]
      %v753 = vld [vmem:[#allocation2 + $0x30] sm:$0xff]
      %v754 = vld [vmem:[#allocation2 + $0x38] sm:$0xff]
      %v755 = vld [vmem:[#allocation2 + $0x48] sm:$0xff]
      %v756 = vld [vmem:[#allocation2 + $0x50] sm:$0xff]
      %v757 = vld [vmem:[#allocation2 + $0x60] sm:$0xff]
      %v758 = vld [vmem:[#allocation2 + $0x68] sm:$0xff]
      %v759 = vld [vmem:[#allocation2 + $0x78] sm:$0xff]
      %v760 = vld [vmem:[#allocation2 + $0x80] sm:$0xff]
      %v761 = vld [vmem:[#allocation2 + $0x90] sm:$0xff]
      %v762 = vld [vmem:[#allocation2 + $0x98] sm:$0xff]
      %v763 = vld [vmem:[#allocation2 + $0xa8] sm:$0xff]
      %v764 = vld [vmem:[#allocation2 + $0xb0] sm:$0xff]
      %781 = vrot.lane.b32.xlu0 %v749, 127
      %v782 = vpop.permute.xlu0 %781
      %783 = vrot.lane.b32.xlu0 %v750, 127
      %v784 = vpop.permute.xlu0 %783
      %785 = vrot.lane.b32.xlu0 %v751, 127
      %v786 = vpop.permute.xlu0 %785
      %787 = vrot.lane.b32.xlu0 %v752, 127
      %v788 = vpop.permute.xlu0 %787
      %789 = vrot.lane.b32.xlu0 %v753, 127
      %v790 = vpop.permute.xlu0 %789
      %791 = vrot.lane.b32.xlu0 %v754, 127
      %v792 = vpop.permute.xlu0 %791
      %793 = vrot.lane.b32.xlu0 %v755, 127
      %v794 = vpop.permute.xlu0 %793
      %795 = vrot.lane.b32.xlu0 %v756, 127
      %v796 = vpop.permute.xlu0 %795
      %797 = vrot.lane.b32.xlu0 %v757, 127
      %v798 = vpop.permute.xlu0 %797
      %799 = vrot.lane.b32.xlu0 %v758, 127
      %v800 = vpop.permute.xlu0 %799
      %801 = vrot.lane.b32.xlu0 %v759, 127
      %v802 = vpop.permute.xlu0 %801
      %803 = vrot.lane.b32.xlu0 %v760, 127
      %v804 = vpop.permute.xlu0 %803
      %805 = vrot.lane.b32.xlu0 %v761, 127
      %v806 = vpop.permute.xlu0 %805
      %807 = vrot.lane.b32.xlu0 %v762, 127
      %v808 = vpop.permute.xlu0 %807
      %809 = vrot.lane.b32.xlu0 %v763, 127
      %v810 = vpop.permute.xlu0 %809
      %811 = vrot.lane.b32.xlu0 %v764, 127
      %v812 = vpop.permute.xlu0 %811
      %v829 = vrot.slane %v790, 4
      %v830 = vsel %vm446, %v829, %v782
      %v831 = vrot.slane %v782, 4
      %v832 = vsel %vm446, %v790, %v831
      %v834 = vunpack.c.l.s4 1983009808
      %v835 = vunpack.c.0.s8 %v834
      %v836 = vperm.slane %v830, %v835
      %v838 = vunpack.c.l.s4 1983009808
      %v839 = vunpack.c.0.s8 %v838
      %v840 = vperm.slane %v832, %v839
      %v841 = vrot.slane %v794, 4
      %v842 = vsel %vm446, %v841, %v786
      %v843 = vrot.slane %v786, 4
      %v844 = vsel %vm446, %v794, %v843
      %v846 = vunpack.c.l.s4 1983009808
      %v847 = vunpack.c.0.s8 %v846
      %v848 = vperm.slane %v842, %v847
      %v850 = vunpack.c.l.s4 1983009808
      %v851 = vunpack.c.0.s8 %v850
      %v852 = vperm.slane %v844, %v851
      %v853 = vrot.slane %v806, 4
      %v854 = vsel %vm446, %v853, %v798
      %v855 = vrot.slane %v798, 4
      %v856 = vsel %vm446, %v806, %v855
      %v858 = vunpack.c.l.s4 1983009808
      %v859 = vunpack.c.0.s8 %v858
      %v860 = vperm.slane %v854, %v859
      %v862 = vunpack.c.l.s4 1983009808
      %v863 = vunpack.c.0.s8 %v862
      %v864 = vperm.slane %v856, %v863
      %v865 = vrot.slane %v810, 4
      %v866 = vsel %vm446, %v865, %v802
      %v867 = vrot.slane %v802, 4
      %v868 = vsel %vm446, %v810, %v867
      %v870 = vunpack.c.l.s4 1983009808
      %v871 = vunpack.c.0.s8 %v870
      %v872 = vperm.slane %v866, %v871
      %v874 = vunpack.c.l.s4 1983009808
      %v875 = vunpack.c.0.s8 %v874
      %v876 = vperm.slane %v868, %v875
      %v877 = vrot.slane %v848, 4
      %v878 = vsel %vm446, %v877, %v836
      %v879 = vrot.slane %v836, 4
      %v880 = vsel %vm446, %v848, %v879
      %v882 = vunpack.c.l.s4 1934713408
      %v883 = vunpack.c.0.s8 %v882
      %v884 = vperm.slane %v878, %v883
      %v886 = vunpack.c.l.s4 1934713408
      %v887 = vunpack.c.0.s8 %v886
      %v888 = vperm.slane %v880, %v887
      %v889 = vrot.slane %v852, 4
      %v890 = vsel %vm446, %v889, %v840
      %v891 = vrot.slane %v840, 4
      %v892 = vsel %vm446, %v852, %v891
      %v894 = vunpack.c.l.s4 1934713408
      %v895 = vunpack.c.0.s8 %v894
      %v896 = vperm.slane %v890, %v895
      %v898 = vunpack.c.l.s4 1934713408
      %v899 = vunpack.c.0.s8 %v898
      %v900 = vperm.slane %v892, %v899
      %v901 = vrot.slane %v872, 4
      %v902 = vsel %vm446, %v901, %v860
      %v903 = vrot.slane %v860, 4
      %v904 = vsel %vm446, %v872, %v903
      %v906 = vunpack.c.l.s4 1934713408
      %v907 = vunpack.c.0.s8 %v906
      %v908 = vperm.slane %v902, %v907
      %v910 = vunpack.c.l.s4 1934713408
      %v911 = vunpack.c.0.s8 %v910
      %v912 = vperm.slane %v904, %v911
      %v913 = vrot.slane %v876, 4
      %v914 = vsel %vm446, %v913, %v864
      %v915 = vrot.slane %v864, 4
      %v916 = vsel %vm446, %v876, %v915
      %v918 = vunpack.c.l.s4 1934713408
      %v919 = vunpack.c.0.s8 %v918
      %v920 = vperm.slane %v914, %v919
      %v922 = vunpack.c.l.s4 1934713408
      %v923 = vunpack.c.0.s8 %v922
      %v924 = vperm.slane %v916, %v923
      %v925 = vrot.slane %v908, 4
      %v926 = vsel %vm446, %v925, %v884
      %v927 = vrot.slane %v884, 4
      %v928 = vsel %vm446, %v908, %v927
      %v929 = vrot.slane %v912, 4
      %v930 = vsel %vm446, %v929, %v888
      %v931 = vrot.slane %v888, 4
      %v932 = vsel %vm446, %v912, %v931
      %v933 = vrot.slane %v920, 4
      %v934 = vsel %vm446, %v933, %v896
      %v935 = vrot.slane %v896, 4
      %v936 = vsel %vm446, %v920, %v935
      %v937 = vrot.slane %v924, 4
      %v938 = vsel %vm446, %v937, %v900
      %v939 = vrot.slane %v900, 4
      %v940 = vsel %vm446, %v924, %v939
      %v941 = vrot.slane %v792, 4
      %v942 = vsel %vm446, %v941, %v784
      %v943 = vrot.slane %v784, 4
      %v944 = vsel %vm446, %v792, %v943
      %v946 = vunpack.c.l.s4 1983009808
      %v947 = vunpack.c.0.s8 %v946
      %v948 = vperm.slane %v942, %v947
      %v950 = vunpack.c.l.s4 1983009808
      %v951 = vunpack.c.0.s8 %v950
      %v952 = vperm.slane %v944, %v951
      %v953 = vrot.slane %v796, 4
      %v954 = vsel %vm446, %v953, %v788
      %v955 = vrot.slane %v788, 4
      %v956 = vsel %vm446, %v796, %v955
      %v958 = vunpack.c.l.s4 1983009808
      %v959 = vunpack.c.0.s8 %v958
      %v960 = vperm.slane %v954, %v959
      %v962 = vunpack.c.l.s4 1983009808
      %v963 = vunpack.c.0.s8 %v962
      %v964 = vperm.slane %v956, %v963
      %v965 = vrot.slane %v808, 4
      %v966 = vsel %vm446, %v965, %v800
      %v967 = vrot.slane %v800, 4
      %v968 = vsel %vm446, %v808, %v967
      %v970 = vunpack.c.l.s4 1983009808
      %v971 = vunpack.c.0.s8 %v970
      %v972 = vperm.slane %v966, %v971
      %v974 = vunpack.c.l.s4 1983009808
      %v975 = vunpack.c.0.s8 %v974
      %v976 = vperm.slane %v968, %v975
      %v977 = vrot.slane %v812, 4
      %v978 = vsel %vm446, %v977, %v804
      %v979 = vrot.slane %v804, 4
      %v980 = vsel %vm446, %v812, %v979
      %v982 = vunpack.c.l.s4 1983009808
      %v983 = vunpack.c.0.s8 %v982
      %v984 = vperm.slane %v978, %v983
      %v986 = vunpack.c.l.s4 1983009808
      %v987 = vunpack.c.0.s8 %v986
      %v988 = vperm.slane %v980, %v987
      %v989 = vrot.slane %v960, 4
      %v990 = vsel %vm446, %v989, %v948
      %v991 = vrot.slane %v948, 4
      %v992 = vsel %vm446, %v960, %v991
      %v994 = vunpack.c.l.s4 1934713408
      %v995 = vunpack.c.0.s8 %v994
      %v996 = vperm.slane %v990, %v995
      %v998 = vunpack.c.l.s4 1934713408
      %v999 = vunpack.c.0.s8 %v998
      %v1000 = vperm.slane %v992, %v999
      %v1001 = vrot.slane %v964, 4
      %v1002 = vsel %vm446, %v1001, %v952
      %v1003 = vrot.slane %v952, 4
      %v1004 = vsel %vm446, %v964, %v1003
      %v1006 = vunpack.c.l.s4 1934713408
      %v1007 = vunpack.c.0.s8 %v1006
      %v1008 = vperm.slane %v1002, %v1007
      %v1010 = vunpack.c.l.s4 1934713408
      %v1011 = vunpack.c.0.s8 %v1010
      %v1012 = vperm.slane %v1004, %v1011
      %v1013 = vrot.slane %v984, 4
      %v1014 = vsel %vm446, %v1013, %v972
      %v1015 = vrot.slane %v972, 4
      %v1016 = vsel %vm446, %v984, %v1015
      %v1018 = vunpack.c.l.s4 1934713408
      %v1019 = vunpack.c.0.s8 %v1018
      %v1020 = vperm.slane %v1014, %v1019
      %v1022 = vunpack.c.l.s4 1934713408
      %v1023 = vunpack.c.0.s8 %v1022
      %v1024 = vperm.slane %v1016, %v1023
      %v1025 = vrot.slane %v988, 4
      %v1026 = vsel %vm446, %v1025, %v976
      %v1027 = vrot.slane %v976, 4
      %v1028 = vsel %vm446, %v988, %v1027
      %v1030 = vunpack.c.l.s4 1934713408
      %v1031 = vunpack.c.0.s8 %v1030
      %v1032 = vperm.slane %v1026, %v1031
      %v1034 = vunpack.c.l.s4 1934713408
      %v1035 = vunpack.c.0.s8 %v1034
      %v1036 = vperm.slane %v1028, %v1035
      %v1037 = vrot.slane %v1020, 4
      %v1038 = vsel %vm446, %v1037, %v996
      %v1039 = vrot.slane %v996, 4
      %v1040 = vsel %vm446, %v1020, %v1039
      %v1041 = vrot.slane %v1024, 4
      %v1042 = vsel %vm446, %v1041, %v1000
      %v1043 = vrot.slane %v1000, 4
      %v1044 = vsel %vm446, %v1024, %v1043
      %v1045 = vrot.slane %v1032, 4
      %v1046 = vsel %vm446, %v1045, %v1008
      %v1047 = vrot.slane %v1008, 4
      %v1048 = vsel %vm446, %v1032, %v1047
      %v1049 = vrot.slane %v1036, 4
      %v1050 = vsel %vm446, %v1049, %v1012
      %v1051 = vrot.slane %v1012, 4
      %v1052 = vsel %vm446, %v1036, %v1051
      %1054 = vrot.lane.b32.xlu0 %v928, 16
      %v1055 = vpop.permute.xlu0 %1054
      %1058 = vrot.lane.b32.xlu0 %v930, 32
      %v1059 = vpop.permute.xlu0 %1058
      %1062 = vrot.lane.b32.xlu0 %v932, 48
      %v1063 = vpop.permute.xlu0 %1062
      %1066 = vrot.lane.b32.xlu0 %v934, 64
      %v1067 = vpop.permute.xlu0 %1066
      %1070 = vrot.lane.b32.xlu0 %v936, 80
      %v1071 = vpop.permute.xlu0 %1070
      %1074 = vrot.lane.b32.xlu0 %v938, 96
      %v1075 = vpop.permute.xlu0 %1074
      %1078 = vrot.lane.b32.xlu0 %v940, 112
      %v1079 = vpop.permute.xlu0 %1078
      %1082 = vrot.lane.b32.xlu0 %v1040, 16
      %v1083 = vpop.permute.xlu0 %1082
      %1086 = vrot.lane.b32.xlu0 %v1042, 32
      %v1087 = vpop.permute.xlu0 %1086
      %1090 = vrot.lane.b32.xlu0 %v1044, 48
      %v1091 = vpop.permute.xlu0 %1090
      %1094 = vrot.lane.b32.xlu0 %v1046, 64
      %v1095 = vpop.permute.xlu0 %1094
      %1098 = vrot.lane.b32.xlu0 %v1048, 80
      %v1099 = vpop.permute.xlu0 %1098
      %1102 = vrot.lane.b32.xlu0 %v1050, 96
      %v1103 = vpop.permute.xlu0 %1102
      %1106 = vrot.lane.b32.xlu0 %v1052, 112
      %v1107 = vpop.permute.xlu0 %1106
      %v1109 = vsel %vm726, %v926, %v1055
      %v1110 = vsel %vm728, %v1109, %v1059
      %v1111 = vsel %vm730, %v1110, %v1063
      %v1112 = vsel %vm732, %v1111, %v1067
      %v1113 = vsel %vm734, %v1112, %v1071
      %v1114 = vsel %vm736, %v1113, %v1075
      %v1115 = vsel %vm738, %v1114, %v1079
      %v1116 = vsel %vm726, %v1038, %v1083
      %v1117 = vsel %vm728, %v1116, %v1087
      %v1118 = vsel %vm730, %v1117, %v1091
      %v1119 = vsel %vm732, %v1118, %v1095
      %v1120 = vsel %vm734, %v1119, %v1099
      %v1121 = vsel %vm736, %v1120, %v1103
      %v1122 = vsel %vm738, %v1121, %v1107
      %1123 = vst [vmem:[#allocation3 + $0x10] sm:$0xff] %v1115
      %1124 = vst [vmem:[#allocation3 + $0x18] sm:$0xff] %v1122
      %v1125 = vld [vmem:[#allocation2] sm:$0xff]
      %v1126 = vld [vmem:[#allocation2 + $0x8] sm:$0xff]
      %v1127 = vld [vmem:[#allocation2 + $0x18] sm:$0xff]
      %v1128 = vld [vmem:[#allocation2 + $0x20] sm:$0xff]
      %v1129 = vld [vmem:[#allocation2 + $0x30] sm:$0xff]
      %v1130 = vld [vmem:[#allocation2 + $0x38] sm:$0xff]
      %v1131 = vld [vmem:[#allocation2 + $0x48] sm:$0xff]
      %v1132 = vld [vmem:[#allocation2 + $0x50] sm:$0xff]
      %v1133 = vld [vmem:[#allocation2 + $0x60] sm:$0xff]
      %v1134 = vld [vmem:[#allocation2 + $0x68] sm:$0xff]
      %v1135 = vld [vmem:[#allocation2 + $0x78] sm:$0xff]
      %v1136 = vld [vmem:[#allocation2 + $0x80] sm:$0xff]
      %v1137 = vld [vmem:[#allocation2 + $0x90] sm:$0xff]
      %v1138 = vld [vmem:[#allocation2 + $0x98] sm:$0xff]
      %v1139 = vld [vmem:[#allocation2 + $0xa8] sm:$0xff]
      %v1140 = vld [vmem:[#allocation2 + $0xb0] sm:$0xff]
      %1157 = vrot.lane.b32.xlu0 %v1125, 126
      %v1158 = vpop.permute.xlu0 %1157
      %1159 = vrot.lane.b32.xlu0 %v1126, 126
      %v1160 = vpop.permute.xlu0 %1159
      %1161 = vrot.lane.b32.xlu0 %v1127, 126
      %v1162 = vpop.permute.xlu0 %1161
      %1163 = vrot.lane.b32.xlu0 %v1128, 126
      %v1164 = vpop.permute.xlu0 %1163
      %1165 = vrot.lane.b32.xlu0 %v1129, 126
      %v1166 = vpop.permute.xlu0 %1165
      %1167 = vrot.lane.b32.xlu0 %v1130, 126
      %v1168 = vpop.permute.xlu0 %1167
      %1169 = vrot.lane.b32.xlu0 %v1131, 126
      %v1170 = vpop.permute.xlu0 %1169
      %1171 = vrot.lane.b32.xlu0 %v1132, 126
      %v1172 = vpop.permute.xlu0 %1171
      %1173 = vrot.lane.b32.xlu0 %v1133, 126
      %v1174 = vpop.permute.xlu0 %1173
      %1175 = vrot.lane.b32.xlu0 %v1134, 126
      %v1176 = vpop.permute.xlu0 %1175
      %1177 = vrot.lane.b32.xlu0 %v1135, 126
      %v1178 = vpop.permute.xlu0 %1177
      %1179 = vrot.lane.b32.xlu0 %v1136, 126
      %v1180 = vpop.permute.xlu0 %1179
      %1181 = vrot.lane.b32.xlu0 %v1137, 126
      %v1182 = vpop.permute.xlu0 %1181
      %1183 = vrot.lane.b32.xlu0 %v1138, 126
      %v1184 = vpop.permute.xlu0 %1183
      %1185 = vrot.lane.b32.xlu0 %v1139, 126
      %v1186 = vpop.permute.xlu0 %1185
      %1187 = vrot.lane.b32.xlu0 %v1140, 126
      %v1188 = vpop.permute.xlu0 %1187
      %v1205 = vrot.slane %v1166, 4
      %v1206 = vsel %vm446, %v1205, %v1158
      %v1207 = vrot.slane %v1158, 4
      %v1208 = vsel %vm446, %v1166, %v1207
      %v1210 = vunpack.c.l.s4 1983009808
      %v1211 = vunpack.c.0.s8 %v1210
      %v1212 = vperm.slane %v1206, %v1211
      %v1214 = vunpack.c.l.s4 1983009808
      %v1215 = vunpack.c.0.s8 %v1214
      %v1216 = vperm.slane %v1208, %v1215
      %v1217 = vrot.slane %v1170, 4
      %v1218 = vsel %vm446, %v1217, %v1162
      %v1219 = vrot.slane %v1162, 4
      %v1220 = vsel %vm446, %v1170, %v1219
      %v1222 = vunpack.c.l.s4 1983009808
      %v1223 = vunpack.c.0.s8 %v1222
      %v1224 = vperm.slane %v1218, %v1223
      %v1226 = vunpack.c.l.s4 1983009808
      %v1227 = vunpack.c.0.s8 %v1226
      %v1228 = vperm.slane %v1220, %v1227
      %v1229 = vrot.slane %v1182, 4
      %v1230 = vsel %vm446, %v1229, %v1174
      %v1231 = vrot.slane %v1174, 4
      %v1232 = vsel %vm446, %v1182, %v1231
      %v1234 = vunpack.c.l.s4 1983009808
      %v1235 = vunpack.c.0.s8 %v1234
      %v1236 = vperm.slane %v1230, %v1235
      %v1238 = vunpack.c.l.s4 1983009808
      %v1239 = vunpack.c.0.s8 %v1238
      %v1240 = vperm.slane %v1232, %v1239
      %v1241 = vrot.slane %v1186, 4
      %v1242 = vsel %vm446, %v1241, %v1178
      %v1243 = vrot.slane %v1178, 4
      %v1244 = vsel %vm446, %v1186, %v1243
      %v1246 = vunpack.c.l.s4 1983009808
      %v1247 = vunpack.c.0.s8 %v1246
      %v1248 = vperm.slane %v1242, %v1247
      %v1250 = vunpack.c.l.s4 1983009808
      %v1251 = vunpack.c.0.s8 %v1250
      %v1252 = vperm.slane %v1244, %v1251
      %v1253 = vrot.slane %v1224, 4
      %v1254 = vsel %vm446, %v1253, %v1212
      %v1255 = vrot.slane %v1212, 4
      %v1256 = vsel %vm446, %v1224, %v1255
      %v1258 = vunpack.c.l.s4 1934713408
      %v1259 = vunpack.c.0.s8 %v1258
      %v1260 = vperm.slane %v1254, %v1259
      %v1262 = vunpack.c.l.s4 1934713408
      %v1263 = vunpack.c.0.s8 %v1262
      %v1264 = vperm.slane %v1256, %v1263
      %v1265 = vrot.slane %v1228, 4
      %v1266 = vsel %vm446, %v1265, %v1216
      %v1267 = vrot.slane %v1216, 4
      %v1268 = vsel %vm446, %v1228, %v1267
      %v1270 = vunpack.c.l.s4 1934713408
      %v1271 = vunpack.c.0.s8 %v1270
      %v1272 = vperm.slane %v1266, %v1271
      %v1274 = vunpack.c.l.s4 1934713408
      %v1275 = vunpack.c.0.s8 %v1274
      %v1276 = vperm.slane %v1268, %v1275
      %v1277 = vrot.slane %v1248, 4
      %v1278 = vsel %vm446, %v1277, %v1236
      %v1279 = vrot.slane %v1236, 4
      %v1280 = vsel %vm446, %v1248, %v1279
      %v1282 = vunpack.c.l.s4 1934713408
      %v1283 = vunpack.c.0.s8 %v1282
      %v1284 = vperm.slane %v1278, %v1283
      %v1286 = vunpack.c.l.s4 1934713408
      %v1287 = vunpack.c.0.s8 %v1286
      %v1288 = vperm.slane %v1280, %v1287
      %v1289 = vrot.slane %v1252, 4
      %v1290 = vsel %vm446, %v1289, %v1240
      %v1291 = vrot.slane %v1240, 4
      %v1292 = vsel %vm446, %v1252, %v1291
      %v1294 = vunpack.c.l.s4 1934713408
      %v1295 = vunpack.c.0.s8 %v1294
      %v1296 = vperm.slane %v1290, %v1295
      %v1298 = vunpack.c.l.s4 1934713408
      %v1299 = vunpack.c.0.s8 %v1298
      %v1300 = vperm.slane %v1292, %v1299
      %v1301 = vrot.slane %v1284, 4
      %v1302 = vsel %vm446, %v1301, %v1260
      %v1303 = vrot.slane %v1260, 4
      %v1304 = vsel %vm446, %v1284, %v1303
      %v1305 = vrot.slane %v1288, 4
      %v1306 = vsel %vm446, %v1305, %v1264
      %v1307 = vrot.slane %v1264, 4
      %v1308 = vsel %vm446, %v1288, %v1307
      %v1309 = vrot.slane %v1296, 4
      %v1310 = vsel %vm446, %v1309, %v1272
      %v1311 = vrot.slane %v1272, 4
      %v1312 = vsel %vm446, %v1296, %v1311
      %v1313 = vrot.slane %v1300, 4
      %v1314 = vsel %vm446, %v1313, %v1276
      %v1315 = vrot.slane %v1276, 4
      %v1316 = vsel %vm446, %v1300, %v1315
      %v1317 = vrot.slane %v1168, 4
      %v1318 = vsel %vm446, %v1317, %v1160
      %v1319 = vrot.slane %v1160, 4
      %v1320 = vsel %vm446, %v1168, %v1319
      %v1322 = vunpack.c.l.s4 1983009808
      %v1323 = vunpack.c.0.s8 %v1322
      %v1324 = vperm.slane %v1318, %v1323
      %v1326 = vunpack.c.l.s4 1983009808
      %v1327 = vunpack.c.0.s8 %v1326
      %v1328 = vperm.slane %v1320, %v1327
      %v1329 = vrot.slane %v1172, 4
      %v1330 = vsel %vm446, %v1329, %v1164
      %v1331 = vrot.slane %v1164, 4
      %v1332 = vsel %vm446, %v1172, %v1331
      %v1334 = vunpack.c.l.s4 1983009808
      %v1335 = vunpack.c.0.s8 %v1334
      %v1336 = vperm.slane %v1330, %v1335
      %v1338 = vunpack.c.l.s4 1983009808
      %v1339 = vunpack.c.0.s8 %v1338
      %v1340 = vperm.slane %v1332, %v1339
      %v1341 = vrot.slane %v1184, 4
      %v1342 = vsel %vm446, %v1341, %v1176
      %v1343 = vrot.slane %v1176, 4
      %v1344 = vsel %vm446, %v1184, %v1343
      %v1346 = vunpack.c.l.s4 1983009808
      %v1347 = vunpack.c.0.s8 %v1346
      %v1348 = vperm.slane %v1342, %v1347
      %v1350 = vunpack.c.l.s4 1983009808
      %v1351 = vunpack.c.0.s8 %v1350
      %v1352 = vperm.slane %v1344, %v1351
      %v1353 = vrot.slane %v1188, 4
      %v1354 = vsel %vm446, %v1353, %v1180
      %v1355 = vrot.slane %v1180, 4
      %v1356 = vsel %vm446, %v1188, %v1355
      %v1358 = vunpack.c.l.s4 1983009808
      %v1359 = vunpack.c.0.s8 %v1358
      %v1360 = vperm.slane %v1354, %v1359
      %v1362 = vunpack.c.l.s4 1983009808
      %v1363 = vunpack.c.0.s8 %v1362
      %v1364 = vperm.slane %v1356, %v1363
      %v1365 = vrot.slane %v1336, 4
      %v1366 = vsel %vm446, %v1365, %v1324
      %v1367 = vrot.slane %v1324, 4
      %v1368 = vsel %vm446, %v1336, %v1367
      %v1370 = vunpack.c.l.s4 1934713408
      %v1371 = vunpack.c.0.s8 %v1370
      %v1372 = vperm.slane %v1366, %v1371
      %v1374 = vunpack.c.l.s4 1934713408
      %v1375 = vunpack.c.0.s8 %v1374
      %v1376 = vperm.slane %v1368, %v1375
      %v1377 = vrot.slane %v1340, 4
      %v1378 = vsel %vm446, %v1377, %v1328
      %v1379 = vrot.slane %v1328, 4
      %v1380 = vsel %vm446, %v1340, %v1379
      %v1382 = vunpack.c.l.s4 1934713408
      %v1383 = vunpack.c.0.s8 %v1382
      %v1384 = vperm.slane %v1378, %v1383
      %v1386 = vunpack.c.l.s4 1934713408
      %v1387 = vunpack.c.0.s8 %v1386
      %v1388 = vperm.slane %v1380, %v1387
      %v1389 = vrot.slane %v1360, 4
      %v1390 = vsel %vm446, %v1389, %v1348
      %v1391 = vrot.slane %v1348, 4
      %v1392 = vsel %vm446, %v1360, %v1391
      %v1394 = vunpack.c.l.s4 1934713408
      %v1395 = vunpack.c.0.s8 %v1394
      %v1396 = vperm.slane %v1390, %v1395
      %v1398 = vunpack.c.l.s4 1934713408
      %v1399 = vunpack.c.0.s8 %v1398
      %v1400 = vperm.slane %v1392, %v1399
      %v1401 = vrot.slane %v1364, 4
      %v1402 = vsel %vm446, %v1401, %v1352
      %v1403 = vrot.slane %v1352, 4
      %v1404 = vsel %vm446, %v1364, %v1403
      %v1406 = vunpack.c.l.s4 1934713408
      %v1407 = vunpack.c.0.s8 %v1406
      %v1408 = vperm.slane %v1402, %v1407
      %v1410 = vunpack.c.l.s4 1934713408
      %v1411 = vunpack.c.0.s8 %v1410
      %v1412 = vperm.slane %v1404, %v1411
      %v1413 = vrot.slane %v1396, 4
      %v1414 = vsel %vm446, %v1413, %v1372
      %v1415 = vrot.slane %v1372, 4
      %v1416 = vsel %vm446, %v1396, %v1415
      %v1417 = vrot.slane %v1400, 4
      %v1418 = vsel %vm446, %v1417, %v1376
      %v1419 = vrot.slane %v1376, 4
      %v1420 = vsel %vm446, %v1400, %v1419
      %v1421 = vrot.slane %v1408, 4
      %v1422 = vsel %vm446, %v1421, %v1384
      %v1423 = vrot.slane %v1384, 4
      %v1424 = vsel %vm446, %v1408, %v1423
      %v1425 = vrot.slane %v1412, 4
      %v1426 = vsel %vm446, %v1425, %v1388
      %v1427 = vrot.slane %v1388, 4
      %v1428 = vsel %vm446, %v1412, %v1427
      %1430 = vrot.lane.b32.xlu0 %v1304, 16
      %v1431 = vpop.permute.xlu0 %1430
      %1434 = vrot.lane.b32.xlu0 %v1306, 32
      %v1435 = vpop.permute.xlu0 %1434
      %1438 = vrot.lane.b32.xlu0 %v1308, 48
      %v1439 = vpop.permute.xlu0 %1438
      %1442 = vrot.lane.b32.xlu0 %v1310, 64
      %v1443 = vpop.permute.xlu0 %1442
      %1446 = vrot.lane.b32.xlu0 %v1312, 80
      %v1447 = vpop.permute.xlu0 %1446
      %1450 = vrot.lane.b32.xlu0 %v1314, 96
      %v1451 = vpop.permute.xlu0 %1450
      %1454 = vrot.lane.b32.xlu0 %v1316, 112
      %v1455 = vpop.permute.xlu0 %1454
      %1458 = vrot.lane.b32.xlu0 %v1416, 16
      %v1459 = vpop.permute.xlu0 %1458
      %1462 = vrot.lane.b32.xlu0 %v1418, 32
      %v1463 = vpop.permute.xlu0 %1462
      %1466 = vrot.lane.b32.xlu0 %v1420, 48
      %v1467 = vpop.permute.xlu0 %1466
      %1470 = vrot.lane.b32.xlu0 %v1422, 64
      %v1471 = vpop.permute.xlu0 %1470
      %1474 = vrot.lane.b32.xlu0 %v1424, 80
      %v1475 = vpop.permute.xlu0 %1474
      %1478 = vrot.lane.b32.xlu0 %v1426, 96
      %v1479 = vpop.permute.xlu0 %1478
      %1482 = vrot.lane.b32.xlu0 %v1428, 112
      %v1483 = vpop.permute.xlu0 %1482
      %v1485 = vsel %vm726, %v1302, %v1431
      %v1486 = vsel %vm728, %v1485, %v1435
      %v1487 = vsel %vm730, %v1486, %v1439
      %v1488 = vsel %vm732, %v1487, %v1443
      %v1489 = vsel %vm734, %v1488, %v1447
      %v1490 = vsel %vm736, %v1489, %v1451
      %v1491 = vsel %vm738, %v1490, %v1455
      %v1492 = vsel %vm726, %v1414, %v1459
      %v1493 = vsel %vm728, %v1492, %v1463
      %v1494 = vsel %vm730, %v1493, %v1467
      %v1495 = vsel %vm732, %v1494, %v1471
      %v1496 = vsel %vm734, %v1495, %v1475
      %v1497 = vsel %vm736, %v1496, %v1479
      %v1498 = vsel %vm738, %v1497, %v1483
      %1499 = vst [vmem:[#allocation3 + $0x20] sm:$0xff] %v1491
      %1500 = vst [vmem:[#allocation3 + $0x28] sm:$0xff] %v1498
      %v1501 = vld [vmem:[#allocation2 + $0x1] sm:$0xff]
      %v1502 = vld [vmem:[#allocation2 + $0x9] sm:$0xff]
      %v1503 = vld [vmem:[#allocation2 + $0x19] sm:$0xff]
      %v1504 = vld [vmem:[#allocation2 + $0x21] sm:$0xff]
      %v1505 = vld [vmem:[#allocation2 + $0x31] sm:$0xff]
      %v1506 = vld [vmem:[#allocation2 + $0x39] sm:$0xff]
      %v1507 = vld [vmem:[#allocation2 + $0x49] sm:$0xff]
      %v1508 = vld [vmem:[#allocation2 + $0x51] sm:$0xff]
      %v1509 = vld [vmem:[#allocation2 + $0x61] sm:$0xff]
      %v1510 = vld [vmem:[#allocation2 + $0x69] sm:$0xff]
      %v1511 = vld [vmem:[#allocation2 + $0x79] sm:$0xff]
      %v1512 = vld [vmem:[#allocation2 + $0x81] sm:$0xff]
      %v1513 = vld [vmem:[#allocation2 + $0x91] sm:$0xff]
      %v1514 = vld [vmem:[#allocation2 + $0x99] sm:$0xff]
      %v1515 = vld [vmem:[#allocation2 + $0xa9] sm:$0xff]
      %v1516 = vld [vmem:[#allocation2 + $0xb1] sm:$0xff]
      %v1517 = vrot.slane %v1505, 4
      %v1518 = vsel %vm446, %v1517, %v1501
      %v1519 = vrot.slane %v1501, 4
      %v1520 = vsel %vm446, %v1505, %v1519
      %v1522 = vunpack.c.l.s4 1983009808
      %v1523 = vunpack.c.0.s8 %v1522
      %v1524 = vperm.slane %v1518, %v1523
      %v1526 = vunpack.c.l.s4 1983009808
      %v1527 = vunpack.c.0.s8 %v1526
      %v1528 = vperm.slane %v1520, %v1527
      %v1529 = vrot.slane %v1507, 4
      %v1530 = vsel %vm446, %v1529, %v1503
      %v1531 = vrot.slane %v1503, 4
      %v1532 = vsel %vm446, %v1507, %v1531
      %v1534 = vunpack.c.l.s4 1983009808
      %v1535 = vunpack.c.0.s8 %v1534
      %v1536 = vperm.slane %v1530, %v1535
      %v1538 = vunpack.c.l.s4 1983009808
      %v1539 = vunpack.c.0.s8 %v1538
      %v1540 = vperm.slane %v1532, %v1539
      %v1541 = vrot.slane %v1513, 4
      %v1542 = vsel %vm446, %v1541, %v1509
      %v1543 = vrot.slane %v1509, 4
      %v1544 = vsel %vm446, %v1513, %v1543
      %v1546 = vunpack.c.l.s4 1983009808
      %v1547 = vunpack.c.0.s8 %v1546
      %v1548 = vperm.slane %v1542, %v1547
      %v1550 = vunpack.c.l.s4 1983009808
      %v1551 = vunpack.c.0.s8 %v1550
      %v1552 = vperm.slane %v1544, %v1551
      %v1553 = vrot.slane %v1515, 4
      %v1554 = vsel %vm446, %v1553, %v1511
      %v1555 = vrot.slane %v1511, 4
      %v1556 = vsel %vm446, %v1515, %v1555
      %v1558 = vunpack.c.l.s4 1983009808
      %v1559 = vunpack.c.0.s8 %v1558
      %v1560 = vperm.slane %v1554, %v1559
      %v1562 = vunpack.c.l.s4 1983009808
      %v1563 = vunpack.c.0.s8 %v1562
      %v1564 = vperm.slane %v1556, %v1563
      %v1565 = vrot.slane %v1536, 4
      %v1566 = vsel %vm446, %v1565, %v1524
      %v1567 = vrot.slane %v1524, 4
      %v1568 = vsel %vm446, %v1536, %v1567
      %v1570 = vunpack.c.l.s4 1934713408
      %v1571 = vunpack.c.0.s8 %v1570
      %v1572 = vperm.slane %v1566, %v1571
      %v1574 = vunpack.c.l.s4 1934713408
      %v1575 = vunpack.c.0.s8 %v1574
      %v1576 = vperm.slane %v1568, %v1575
      %v1577 = vrot.slane %v1540, 4
      %v1578 = vsel %vm446, %v1577, %v1528
      %v1579 = vrot.slane %v1528, 4
      %v1580 = vsel %vm446, %v1540, %v1579
      %v1582 = vunpack.c.l.s4 1934713408
      %v1583 = vunpack.c.0.s8 %v1582
      %v1584 = vperm.slane %v1578, %v1583
      %v1586 = vunpack.c.l.s4 1934713408
      %v1587 = vunpack.c.0.s8 %v1586
      %v1588 = vperm.slane %v1580, %v1587
      %v1589 = vrot.slane %v1560, 4
      %v1590 = vsel %vm446, %v1589, %v1548
      %v1591 = vrot.slane %v1548, 4
      %v1592 = vsel %vm446, %v1560, %v1591
      %v1594 = vunpack.c.l.s4 1934713408
      %v1595 = vunpack.c.0.s8 %v1594
      %v1596 = vperm.slane %v1590, %v1595
      %v1598 = vunpack.c.l.s4 1934713408
      %v1599 = vunpack.c.0.s8 %v1598
      %v1600 = vperm.slane %v1592, %v1599
      %v1601 = vrot.slane %v1564, 4
      %v1602 = vsel %vm446, %v1601, %v1552
      %v1603 = vrot.slane %v1552, 4
      %v1604 = vsel %vm446, %v1564, %v1603
      %v1606 = vunpack.c.l.s4 1934713408
      %v1607 = vunpack.c.0.s8 %v1606
      %v1608 = vperm.slane %v1602, %v1607
      %v1610 = vunpack.c.l.s4 1934713408
      %v1611 = vunpack.c.0.s8 %v1610
      %v1612 = vperm.slane %v1604, %v1611
      %v1613 = vrot.slane %v1596, 4
      %v1614 = vsel %vm446, %v1613, %v1572
      %v1615 = vrot.slane %v1572, 4
      %v1616 = vsel %vm446, %v1596, %v1615
      %v1617 = vrot.slane %v1600, 4
      %v1618 = vsel %vm446, %v1617, %v1576
      %v1619 = vrot.slane %v1576, 4
      %v1620 = vsel %vm446, %v1600, %v1619
      %v1621 = vrot.slane %v1608, 4
      %v1622 = vsel %vm446, %v1621, %v1584
      %v1623 = vrot.slane %v1584, 4
      %v1624 = vsel %vm446, %v1608, %v1623
      %v1625 = vrot.slane %v1612, 4
      %v1626 = vsel %vm446, %v1625, %v1588
      %v1627 = vrot.slane %v1588, 4
      %v1628 = vsel %vm446, %v1612, %v1627
      %v1629 = vrot.slane %v1506, 4
      %v1630 = vsel %vm446, %v1629, %v1502
      %v1631 = vrot.slane %v1502, 4
      %v1632 = vsel %vm446, %v1506, %v1631
      %v1634 = vunpack.c.l.s4 1983009808
      %v1635 = vunpack.c.0.s8 %v1634
      %v1636 = vperm.slane %v1630, %v1635
      %v1638 = vunpack.c.l.s4 1983009808
      %v1639 = vunpack.c.0.s8 %v1638
      %v1640 = vperm.slane %v1632, %v1639
      %v1641 = vrot.slane %v1508, 4
      %v1642 = vsel %vm446, %v1641, %v1504
      %v1643 = vrot.slane %v1504, 4
      %v1644 = vsel %vm446, %v1508, %v1643
      %v1646 = vunpack.c.l.s4 1983009808
      %v1647 = vunpack.c.0.s8 %v1646
      %v1648 = vperm.slane %v1642, %v1647
      %v1650 = vunpack.c.l.s4 1983009808
      %v1651 = vunpack.c.0.s8 %v1650
      %v1652 = vperm.slane %v1644, %v1651
      %v1653 = vrot.slane %v1514, 4
      %v1654 = vsel %vm446, %v1653, %v1510
      %v1655 = vrot.slane %v1510, 4
      %v1656 = vsel %vm446, %v1514, %v1655
      %v1658 = vunpack.c.l.s4 1983009808
      %v1659 = vunpack.c.0.s8 %v1658
      %v1660 = vperm.slane %v1654, %v1659
      %v1662 = vunpack.c.l.s4 1983009808
      %v1663 = vunpack.c.0.s8 %v1662
      %v1664 = vperm.slane %v1656, %v1663
      %v1665 = vrot.slane %v1516, 4
      %v1666 = vsel %vm446, %v1665, %v1512
      %v1667 = vrot.slane %v1512, 4
      %v1668 = vsel %vm446, %v1516, %v1667
      %v1670 = vunpack.c.l.s4 1983009808
      %v1671 = vunpack.c.0.s8 %v1670
      %v1672 = vperm.slane %v1666, %v1671
      %v1674 = vunpack.c.l.s4 1983009808
      %v1675 = vunpack.c.0.s8 %v1674
      %v1676 = vperm.slane %v1668, %v1675
      %v1677 = vrot.slane %v1648, 4
      %v1678 = vsel %vm446, %v1677, %v1636
      %v1679 = vrot.slane %v1636, 4
      %v1680 = vsel %vm446, %v1648, %v1679
      %v1682 = vunpack.c.l.s4 1934713408
      %v1683 = vunpack.c.0.s8 %v1682
      %v1684 = vperm.slane %v1678, %v1683
      %v1686 = vunpack.c.l.s4 1934713408
      %v1687 = vunpack.c.0.s8 %v1686
      %v1688 = vperm.slane %v1680, %v1687
      %v1689 = vrot.slane %v1652, 4
      %v1690 = vsel %vm446, %v1689, %v1640
      %v1691 = vrot.slane %v1640, 4
      %v1692 = vsel %vm446, %v1652, %v1691
      %v1694 = vunpack.c.l.s4 1934713408
      %v1695 = vunpack.c.0.s8 %v1694
      %v1696 = vperm.slane %v1690, %v1695
      %v1698 = vunpack.c.l.s4 1934713408
      %v1699 = vunpack.c.0.s8 %v1698
      %v1700 = vperm.slane %v1692, %v1699
      %v1701 = vrot.slane %v1672, 4
      %v1702 = vsel %vm446, %v1701, %v1660
      %v1703 = vrot.slane %v1660, 4
      %v1704 = vsel %vm446, %v1672, %v1703
      %v1706 = vunpack.c.l.s4 1934713408
      %v1707 = vunpack.c.0.s8 %v1706
      %v1708 = vperm.slane %v1702, %v1707
      %v1710 = vunpack.c.l.s4 1934713408
      %v1711 = vunpack.c.0.s8 %v1710
      %v1712 = vperm.slane %v1704, %v1711
      %v1713 = vrot.slane %v1676, 4
      %v1714 = vsel %vm446, %v1713, %v1664
      %v1715 = vrot.slane %v1664, 4
      %v1716 = vsel %vm446, %v1676, %v1715
      %v1718 = vunpack.c.l.s4 1934713408
      %v1719 = vunpack.c.0.s8 %v1718
      %v1720 = vperm.slane %v1714, %v1719
      %v1722 = vunpack.c.l.s4 1934713408
      %v1723 = vunpack.c.0.s8 %v1722
      %v1724 = vperm.slane %v1716, %v1723
      %v1725 = vrot.slane %v1708, 4
      %v1726 = vsel %vm446, %v1725, %v1684
      %v1727 = vrot.slane %v1684, 4
      %v1728 = vsel %vm446, %v1708, %v1727
      %v1729 = vrot.slane %v1712, 4
      %v1730 = vsel %vm446, %v1729, %v1688
      %v1731 = vrot.slane %v1688, 4
      %v1732 = vsel %vm446, %v1712, %v1731
      %v1733 = vrot.slane %v1720, 4
      %v1734 = vsel %vm446, %v1733, %v1696
      %v1735 = vrot.slane %v1696, 4
      %v1736 = vsel %vm446, %v1720, %v1735
      %v1737 = vrot.slane %v1724, 4
      %v1738 = vsel %vm446, %v1737, %v1700
      %v1739 = vrot.slane %v1700, 4
      %v1740 = vsel %vm446, %v1724, %v1739
      %1742 = vrot.lane.b32.xlu0 %v1616, 16
      %v1743 = vpop.permute.xlu0 %1742
      %1746 = vrot.lane.b32.xlu0 %v1618, 32
      %v1747 = vpop.permute.xlu0 %1746
      %1750 = vrot.lane.b32.xlu0 %v1620, 48
      %v1751 = vpop.permute.xlu0 %1750
      %1754 = vrot.lane.b32.xlu0 %v1622, 64
      %v1755 = vpop.permute.xlu0 %1754
      %1758 = vrot.lane.b32.xlu0 %v1624, 80
      %v1759 = vpop.permute.xlu0 %1758
      %1762 = vrot.lane.b32.xlu0 %v1626, 96
      %v1763 = vpop.permute.xlu0 %1762
      %1766 = vrot.lane.b32.xlu0 %v1628, 112
      %v1767 = vpop.permute.xlu0 %1766
      %1770 = vrot.lane.b32.xlu0 %v1728, 16
      %v1771 = vpop.permute.xlu0 %1770
      %1774 = vrot.lane.b32.xlu0 %v1730, 32
      %v1775 = vpop.permute.xlu0 %1774
      %1778 = vrot.lane.b32.xlu0 %v1732, 48
      %v1779 = vpop.permute.xlu0 %1778
      %1782 = vrot.lane.b32.xlu0 %v1734, 64
      %v1783 = vpop.permute.xlu0 %1782
      %1786 = vrot.lane.b32.xlu0 %v1736, 80
      %v1787 = vpop.permute.xlu0 %1786
      %1790 = vrot.lane.b32.xlu0 %v1738, 96
      %v1791 = vpop.permute.xlu0 %1790
      %1794 = vrot.lane.b32.xlu0 %v1740, 112
      %v1795 = vpop.permute.xlu0 %1794
      %v1797 = vsel %vm726, %v1614, %v1743
      %v1798 = vsel %vm728, %v1797, %v1747
      %v1799 = vsel %vm730, %v1798, %v1751
      %v1800 = vsel %vm732, %v1799, %v1755
      %v1801 = vsel %vm734, %v1800, %v1759
      %v1802 = vsel %vm736, %v1801, %v1763
      %v1803 = vsel %vm738, %v1802, %v1767
      %v1804 = vsel %vm726, %v1726, %v1771
      %v1805 = vsel %vm728, %v1804, %v1775
      %v1806 = vsel %vm730, %v1805, %v1779
      %v1807 = vsel %vm732, %v1806, %v1783
      %v1808 = vsel %vm734, %v1807, %v1787
      %v1809 = vsel %vm736, %v1808, %v1791
      %v1810 = vsel %vm738, %v1809, %v1795
      %1811 = vst [vmem:[#allocation3 + $0x30] sm:$0xff] %v1803
      %1812 = vst [vmem:[#allocation3 + $0x38] sm:$0xff] %v1810
      %v1813 = vld [vmem:[#allocation2 + $0x1] sm:$0xff]
      %v1814 = vld [vmem:[#allocation2 + $0x9] sm:$0xff]
      %v1815 = vld [vmem:[#allocation2 + $0x19] sm:$0xff]
      %v1816 = vld [vmem:[#allocation2 + $0x21] sm:$0xff]
      %v1817 = vld [vmem:[#allocation2 + $0x31] sm:$0xff]
      %v1818 = vld [vmem:[#allocation2 + $0x39] sm:$0xff]
      %v1819 = vld [vmem:[#allocation2 + $0x49] sm:$0xff]
      %v1820 = vld [vmem:[#allocation2 + $0x51] sm:$0xff]
      %v1821 = vld [vmem:[#allocation2 + $0x61] sm:$0xff]
      %v1822 = vld [vmem:[#allocation2 + $0x69] sm:$0xff]
      %v1823 = vld [vmem:[#allocation2 + $0x79] sm:$0xff]
      %v1824 = vld [vmem:[#allocation2 + $0x81] sm:$0xff]
      %v1825 = vld [vmem:[#allocation2 + $0x91] sm:$0xff]
      %v1826 = vld [vmem:[#allocation2 + $0x99] sm:$0xff]
      %v1827 = vld [vmem:[#allocation2 + $0xa9] sm:$0xff]
      %v1828 = vld [vmem:[#allocation2 + $0xb1] sm:$0xff]
      %1845 = vrot.lane.b32.xlu0 %v1813, 127
      %v1846 = vpop.permute.xlu0 %1845
      %1847 = vrot.lane.b32.xlu0 %v1814, 127
      %v1848 = vpop.permute.xlu0 %1847
      %1849 = vrot.lane.b32.xlu0 %v1815, 127
      %v1850 = vpop.permute.xlu0 %1849
      %1851 = vrot.lane.b32.xlu0 %v1816, 127
      %v1852 = vpop.permute.xlu0 %1851
      %1853 = vrot.lane.b32.xlu0 %v1817, 127
      %v1854 = vpop.permute.xlu0 %1853
      %1855 = vrot.lane.b32.xlu0 %v1818, 127
      %v1856 = vpop.permute.xlu0 %1855
      %1857 = vrot.lane.b32.xlu0 %v1819, 127
      %v1858 = vpop.permute.xlu0 %1857
      %1859 = vrot.lane.b32.xlu0 %v1820, 127
      %v1860 = vpop.permute.xlu0 %1859
      %1861 = vrot.lane.b32.xlu0 %v1821, 127
      %v1862 = vpop.permute.xlu0 %1861
      %1863 = vrot.lane.b32.xlu0 %v1822, 127
      %v1864 = vpop.permute.xlu0 %1863
      %1865 = vrot.lane.b32.xlu0 %v1823, 127
      %v1866 = vpop.permute.xlu0 %1865
      %1867 = vrot.lane.b32.xlu0 %v1824, 127
      %v1868 = vpop.permute.xlu0 %1867
      %1869 = vrot.lane.b32.xlu0 %v1825, 127
      %v1870 = vpop.permute.xlu0 %1869
      %1871 = vrot.lane.b32.xlu0 %v1826, 127
      %v1872 = vpop.permute.xlu0 %1871
      %1873 = vrot.lane.b32.xlu0 %v1827, 127
      %v1874 = vpop.permute.xlu0 %1873
      %1875 = vrot.lane.b32.xlu0 %v1828, 127
      %v1876 = vpop.permute.xlu0 %1875
      %v1893 = vrot.slane %v1854, 4
      %v1894 = vsel %vm446, %v1893, %v1846
      %v1895 = vrot.slane %v1846, 4
      %v1896 = vsel %vm446, %v1854, %v1895
      %v1898 = vunpack.c.l.s4 1983009808
      %v1899 = vunpack.c.0.s8 %v1898
      %v1900 = vperm.slane %v1894, %v1899
      %v1902 = vunpack.c.l.s4 1983009808
      %v1903 = vunpack.c.0.s8 %v1902
      %v1904 = vperm.slane %v1896, %v1903
      %v1905 = vrot.slane %v1858, 4
      %v1906 = vsel %vm446, %v1905, %v1850
      %v1907 = vrot.slane %v1850, 4
      %v1908 = vsel %vm446, %v1858, %v1907
      %v1910 = vunpack.c.l.s4 1983009808
      %v1911 = vunpack.c.0.s8 %v1910
      %v1912 = vperm.slane %v1906, %v1911
      %v1914 = vunpack.c.l.s4 1983009808
      %v1915 = vunpack.c.0.s8 %v1914
      %v1916 = vperm.slane %v1908, %v1915
      %v1917 = vrot.slane %v1870, 4
      %v1918 = vsel %vm446, %v1917, %v1862
      %v1919 = vrot.slane %v1862, 4
      %v1920 = vsel %vm446, %v1870, %v1919
      %v1922 = vunpack.c.l.s4 1983009808
      %v1923 = vunpack.c.0.s8 %v1922
      %v1924 = vperm.slane %v1918, %v1923
      %v1926 = vunpack.c.l.s4 1983009808
      %v1927 = vunpack.c.0.s8 %v1926
      %v1928 = vperm.slane %v1920, %v1927
      %v1929 = vrot.slane %v1874, 4
      %v1930 = vsel %vm446, %v1929, %v1866
      %v1931 = vrot.slane %v1866, 4
      %v1932 = vsel %vm446, %v1874, %v1931
      %v1934 = vunpack.c.l.s4 1983009808
      %v1935 = vunpack.c.0.s8 %v1934
      %v1936 = vperm.slane %v1930, %v1935
      %v1938 = vunpack.c.l.s4 1983009808
      %v1939 = vunpack.c.0.s8 %v1938
      %v1940 = vperm.slane %v1932, %v1939
      %v1941 = vrot.slane %v1912, 4
      %v1942 = vsel %vm446, %v1941, %v1900
      %v1943 = vrot.slane %v1900, 4
      %v1944 = vsel %vm446, %v1912, %v1943
      %v1946 = vunpack.c.l.s4 1934713408
      %v1947 = vunpack.c.0.s8 %v1946
      %v1948 = vperm.slane %v1942, %v1947
      %v1950 = vunpack.c.l.s4 1934713408
      %v1951 = vunpack.c.0.s8 %v1950
      %v1952 = vperm.slane %v1944, %v1951
      %v1953 = vrot.slane %v1916, 4
      %v1954 = vsel %vm446, %v1953, %v1904
      %v1955 = vrot.slane %v1904, 4
      %v1956 = vsel %vm446, %v1916, %v1955
      %v1958 = vunpack.c.l.s4 1934713408
      %v1959 = vunpack.c.0.s8 %v1958
      %v1960 = vperm.slane %v1954, %v1959
      %v1962 = vunpack.c.l.s4 1934713408
      %v1963 = vunpack.c.0.s8 %v1962
      %v1964 = vperm.slane %v1956, %v1963
      %v1965 = vrot.slane %v1936, 4
      %v1966 = vsel %vm446, %v1965, %v1924
      %v1967 = vrot.slane %v1924, 4
      %v1968 = vsel %vm446, %v1936, %v1967
      %v1970 = vunpack.c.l.s4 1934713408
      %v1971 = vunpack.c.0.s8 %v1970
      %v1972 = vperm.slane %v1966, %v1971
      %v1974 = vunpack.c.l.s4 1934713408
      %v1975 = vunpack.c.0.s8 %v1974
      %v1976 = vperm.slane %v1968, %v1975
      %v1977 = vrot.slane %v1940, 4
      %v1978 = vsel %vm446, %v1977, %v1928
      %v1979 = vrot.slane %v1928, 4
      %v1980 = vsel %vm446, %v1940, %v1979
      %v1982 = vunpack.c.l.s4 1934713408
      %v1983 = vunpack.c.0.s8 %v1982
      %v1984 = vperm.slane %v1978, %v1983
      %v1986 = vunpack.c.l.s4 1934713408
      %v1987 = vunpack.c.0.s8 %v1986
      %v1988 = vperm.slane %v1980, %v1987
      %v1989 = vrot.slane %v1972, 4
      %v1990 = vsel %vm446, %v1989, %v1948
      %v1991 = vrot.slane %v1948, 4
      %v1992 = vsel %vm446, %v1972, %v1991
      %v1993 = vrot.slane %v1976, 4
      %v1994 = vsel %vm446, %v1993, %v1952
      %v1995 = vrot.slane %v1952, 4
      %v1996 = vsel %vm446, %v1976, %v1995
      %v1997 = vrot.slane %v1984, 4
      %v1998 = vsel %vm446, %v1997, %v1960
      %v1999 = vrot.slane %v1960, 4
      %v2000 = vsel %vm446, %v1984, %v1999
      %v2001 = vrot.slane %v1988, 4
      %v2002 = vsel %vm446, %v2001, %v1964
      %v2003 = vrot.slane %v1964, 4
      %v2004 = vsel %vm446, %v1988, %v2003
      %v2005 = vrot.slane %v1856, 4
      %v2006 = vsel %vm446, %v2005, %v1848
      %v2007 = vrot.slane %v1848, 4
      %v2008 = vsel %vm446, %v1856, %v2007
      %v2010 = vunpack.c.l.s4 1983009808
      %v2011 = vunpack.c.0.s8 %v2010
      %v2012 = vperm.slane %v2006, %v2011
      %v2014 = vunpack.c.l.s4 1983009808
      %v2015 = vunpack.c.0.s8 %v2014
      %v2016 = vperm.slane %v2008, %v2015
      %v2017 = vrot.slane %v1860, 4
      %v2018 = vsel %vm446, %v2017, %v1852
      %v2019 = vrot.slane %v1852, 4
      %v2020 = vsel %vm446, %v1860, %v2019
      %v2022 = vunpack.c.l.s4 1983009808
      %v2023 = vunpack.c.0.s8 %v2022
      %v2024 = vperm.slane %v2018, %v2023
      %v2026 = vunpack.c.l.s4 1983009808
      %v2027 = vunpack.c.0.s8 %v2026
      %v2028 = vperm.slane %v2020, %v2027
      %v2029 = vrot.slane %v1872, 4
      %v2030 = vsel %vm446, %v2029, %v1864
      %v2031 = vrot.slane %v1864, 4
      %v2032 = vsel %vm446, %v1872, %v2031
      %v2034 = vunpack.c.l.s4 1983009808
      %v2035 = vunpack.c.0.s8 %v2034
      %v2036 = vperm.slane %v2030, %v2035
      %v2038 = vunpack.c.l.s4 1983009808
      %v2039 = vunpack.c.0.s8 %v2038
      %v2040 = vperm.slane %v2032, %v2039
      %v2041 = vrot.slane %v1876, 4
      %v2042 = vsel %vm446, %v2041, %v1868
      %v2043 = vrot.slane %v1868, 4
      %v2044 = vsel %vm446, %v1876, %v2043
      %v2046 = vunpack.c.l.s4 1983009808
      %v2047 = vunpack.c.0.s8 %v2046
      %v2048 = vperm.slane %v2042, %v2047
      %v2050 = vunpack.c.l.s4 1983009808
      %v2051 = vunpack.c.0.s8 %v2050
      %v2052 = vperm.slane %v2044, %v2051
      %v2053 = vrot.slane %v2024, 4
      %v2054 = vsel %vm446, %v2053, %v2012
      %v2055 = vrot.slane %v2012, 4
      %v2056 = vsel %vm446, %v2024, %v2055
      %v2058 = vunpack.c.l.s4 1934713408
      %v2059 = vunpack.c.0.s8 %v2058
      %v2060 = vperm.slane %v2054, %v2059
      %v2062 = vunpack.c.l.s4 1934713408
      %v2063 = vunpack.c.0.s8 %v2062
      %v2064 = vperm.slane %v2056, %v2063
      %v2065 = vrot.slane %v2028, 4
      %v2066 = vsel %vm446, %v2065, %v2016
      %v2067 = vrot.slane %v2016, 4
      %v2068 = vsel %vm446, %v2028, %v2067
      %v2070 = vunpack.c.l.s4 1934713408
      %v2071 = vunpack.c.0.s8 %v2070
      %v2072 = vperm.slane %v2066, %v2071
      %v2074 = vunpack.c.l.s4 1934713408
      %v2075 = vunpack.c.0.s8 %v2074
      %v2076 = vperm.slane %v2068, %v2075
      %v2077 = vrot.slane %v2048, 4
      %v2078 = vsel %vm446, %v2077, %v2036
      %v2079 = vrot.slane %v2036, 4
      %v2080 = vsel %vm446, %v2048, %v2079
      %v2082 = vunpack.c.l.s4 1934713408
      %v2083 = vunpack.c.0.s8 %v2082
      %v2084 = vperm.slane %v2078, %v2083
      %v2086 = vunpack.c.l.s4 1934713408
      %v2087 = vunpack.c.0.s8 %v2086
      %v2088 = vperm.slane %v2080, %v2087
      %v2089 = vrot.slane %v2052, 4
      %v2090 = vsel %vm446, %v2089, %v2040
      %v2091 = vrot.slane %v2040, 4
      %v2092 = vsel %vm446, %v2052, %v2091
      %v2094 = vunpack.c.l.s4 1934713408
      %v2095 = vunpack.c.0.s8 %v2094
      %v2096 = vperm.slane %v2090, %v2095
      %v2098 = vunpack.c.l.s4 1934713408
      %v2099 = vunpack.c.0.s8 %v2098
      %v2100 = vperm.slane %v2092, %v2099
      %v2101 = vrot.slane %v2084, 4
      %v2102 = vsel %vm446, %v2101, %v2060
      %v2103 = vrot.slane %v2060, 4
      %v2104 = vsel %vm446, %v2084, %v2103
      %v2105 = vrot.slane %v2088, 4
      %v2106 = vsel %vm446, %v2105, %v2064
      %v2107 = vrot.slane %v2064, 4
      %v2108 = vsel %vm446, %v2088, %v2107
      %v2109 = vrot.slane %v2096, 4
      %v2110 = vsel %vm446, %v2109, %v2072
      %v2111 = vrot.slane %v2072, 4
      %v2112 = vsel %vm446, %v2096, %v2111
      %v2113 = vrot.slane %v2100, 4
      %v2114 = vsel %vm446, %v2113, %v2076
      %v2115 = vrot.slane %v2076, 4
      %v2116 = vsel %vm446, %v2100, %v2115
      %2118 = vrot.lane.b32.xlu0 %v1992, 16
      %v2119 = vpop.permute.xlu0 %2118
      %2122 = vrot.lane.b32.xlu0 %v1994, 32
      %v2123 = vpop.permute.xlu0 %2122
      %2126 = vrot.lane.b32.xlu0 %v1996, 48
      %v2127 = vpop.permute.xlu0 %2126
      %2130 = vrot.lane.b32.xlu0 %v1998, 64
      %v2131 = vpop.permute.xlu0 %2130
      %2134 = vrot.lane.b32.xlu0 %v2000, 80
      %v2135 = vpop.permute.xlu0 %2134
      %2138 = vrot.lane.b32.xlu0 %v2002, 96
      %v2139 = vpop.permute.xlu0 %2138
      %2142 = vrot.lane.b32.xlu0 %v2004, 112
      %v2143 = vpop.permute.xlu0 %2142
      %2146 = vrot.lane.b32.xlu0 %v2104, 16
      %v2147 = vpop.permute.xlu0 %2146
      %2150 = vrot.lane.b32.xlu0 %v2106, 32
      %v2151 = vpop.permute.xlu0 %2150
      %2154 = vrot.lane.b32.xlu0 %v2108, 48
      %v2155 = vpop.permute.xlu0 %2154
      %2158 = vrot.lane.b32.xlu0 %v2110, 64
      %v2159 = vpop.permute.xlu0 %2158
      %2162 = vrot.lane.b32.xlu0 %v2112, 80
      %v2163 = vpop.permute.xlu0 %2162
      %2166 = vrot.lane.b32.xlu0 %v2114, 96
      %v2167 = vpop.permute.xlu0 %2166
      %2170 = vrot.lane.b32.xlu0 %v2116, 112
      %v2171 = vpop.permute.xlu0 %2170
      %v2173 = vsel %vm726, %v1990, %v2119
      %v2174 = vsel %vm728, %v2173, %v2123
      %v2175 = vsel %vm730, %v2174, %v2127
      %v2176 = vsel %vm732, %v2175, %v2131
      %v2177 = vsel %vm734, %v2176, %v2135
      %v2178 = vsel %vm736, %v2177, %v2139
      %v2179 = vsel %vm738, %v2178, %v2143
      %v2180 = vsel %vm726, %v2102, %v2147
      %v2181 = vsel %vm728, %v2180, %v2151
      %v2182 = vsel %vm730, %v2181, %v2155
      %v2183 = vsel %vm732, %v2182, %v2159
      %v2184 = vsel %vm734, %v2183, %v2163
      %v2185 = vsel %vm736, %v2184, %v2167
      %v2186 = vsel %vm738, %v2185, %v2171
      %2187 = vst [vmem:[#allocation3 + $0x40] sm:$0xff] %v2179
      %2188 = vst [vmem:[#allocation3 + $0x48] sm:$0xff] %v2186
      %v2189 = vld [vmem:[#allocation2 + $0x1] sm:$0xff]
      %v2190 = vld [vmem:[#allocation2 + $0x9] sm:$0xff]
      %v2191 = vld [vmem:[#allocation2 + $0x19] sm:$0xff]
      %v2192 = vld [vmem:[#allocation2 + $0x21] sm:$0xff]
      %v2193 = vld [vmem:[#allocation2 + $0x31] sm:$0xff]
      %v2194 = vld [vmem:[#allocation2 + $0x39] sm:$0xff]
      %v2195 = vld [vmem:[#allocation2 + $0x49] sm:$0xff]
      %v2196 = vld [vmem:[#allocation2 + $0x51] sm:$0xff]
      %v2197 = vld [vmem:[#allocation2 + $0x61] sm:$0xff]
      %v2198 = vld [vmem:[#allocation2 + $0x69] sm:$0xff]
      %v2199 = vld [vmem:[#allocation2 + $0x79] sm:$0xff]
      %v2200 = vld [vmem:[#allocation2 + $0x81] sm:$0xff]
      %v2201 = vld [vmem:[#allocation2 + $0x91] sm:$0xff]
      %v2202 = vld [vmem:[#allocation2 + $0x99] sm:$0xff]
      %v2203 = vld [vmem:[#allocation2 + $0xa9] sm:$0xff]
      %v2204 = vld [vmem:[#allocation2 + $0xb1] sm:$0xff]
      %2221 = vrot.lane.b32.xlu0 %v2189, 126
      %v2222 = vpop.permute.xlu0 %2221
      %2223 = vrot.lane.b32.xlu0 %v2190, 126
      %v2224 = vpop.permute.xlu0 %2223
      %2225 = vrot.lane.b32.xlu0 %v2191, 126
      %v2226 = vpop.permute.xlu0 %2225
      %2227 = vrot.lane.b32.xlu0 %v2192, 126
      %v2228 = vpop.permute.xlu0 %2227
      %2229 = vrot.lane.b32.xlu0 %v2193, 126
      %v2230 = vpop.permute.xlu0 %2229
      %2231 = vrot.lane.b32.xlu0 %v2194, 126
      %v2232 = vpop.permute.xlu0 %2231
      %2233 = vrot.lane.b32.xlu0 %v2195, 126
      %v2234 = vpop.permute.xlu0 %2233
      %2235 = vrot.lane.b32.xlu0 %v2196, 126
      %v2236 = vpop.permute.xlu0 %2235
      %2237 = vrot.lane.b32.xlu0 %v2197, 126
      %v2238 = vpop.permute.xlu0 %2237
      %2239 = vrot.lane.b32.xlu0 %v2198, 126
      %v2240 = vpop.permute.xlu0 %2239
      %2241 = vrot.lane.b32.xlu0 %v2199, 126
      %v2242 = vpop.permute.xlu0 %2241
      %2243 = vrot.lane.b32.xlu0 %v2200, 126
      %v2244 = vpop.permute.xlu0 %2243
      %2245 = vrot.lane.b32.xlu0 %v2201, 126
      %v2246 = vpop.permute.xlu0 %2245
      %2247 = vrot.lane.b32.xlu0 %v2202, 126
      %v2248 = vpop.permute.xlu0 %2247
      %2249 = vrot.lane.b32.xlu0 %v2203, 126
      %v2250 = vpop.permute.xlu0 %2249
      %2251 = vrot.lane.b32.xlu0 %v2204, 126
      %v2252 = vpop.permute.xlu0 %2251
      %v2269 = vrot.slane %v2230, 4
      %v2270 = vsel %vm446, %v2269, %v2222
      %v2271 = vrot.slane %v2222, 4
      %v2272 = vsel %vm446, %v2230, %v2271
      %v2274 = vunpack.c.l.s4 1983009808
      %v2275 = vunpack.c.0.s8 %v2274
      %v2276 = vperm.slane %v2270, %v2275
      %v2278 = vunpack.c.l.s4 1983009808
      %v2279 = vunpack.c.0.s8 %v2278
      %v2280 = vperm.slane %v2272, %v2279
      %v2281 = vrot.slane %v2234, 4
      %v2282 = vsel %vm446, %v2281, %v2226
      %v2283 = vrot.slane %v2226, 4
      %v2284 = vsel %vm446, %v2234, %v2283
      %v2286 = vunpack.c.l.s4 1983009808
      %v2287 = vunpack.c.0.s8 %v2286
      %v2288 = vperm.slane %v2282, %v2287
      %v2290 = vunpack.c.l.s4 1983009808
      %v2291 = vunpack.c.0.s8 %v2290
      %v2292 = vperm.slane %v2284, %v2291
      %v2293 = vrot.slane %v2246, 4
      %v2294 = vsel %vm446, %v2293, %v2238
      %v2295 = vrot.slane %v2238, 4
      %v2296 = vsel %vm446, %v2246, %v2295
      %v2298 = vunpack.c.l.s4 1983009808
      %v2299 = vunpack.c.0.s8 %v2298
      %v2300 = vperm.slane %v2294, %v2299
      %v2302 = vunpack.c.l.s4 1983009808
      %v2303 = vunpack.c.0.s8 %v2302
      %v2304 = vperm.slane %v2296, %v2303
      %v2305 = vrot.slane %v2250, 4
      %v2306 = vsel %vm446, %v2305, %v2242
      %v2307 = vrot.slane %v2242, 4
      %v2308 = vsel %vm446, %v2250, %v2307
      %v2310 = vunpack.c.l.s4 1983009808
      %v2311 = vunpack.c.0.s8 %v2310
      %v2312 = vperm.slane %v2306, %v2311
      %v2314 = vunpack.c.l.s4 1983009808
      %v2315 = vunpack.c.0.s8 %v2314
      %v2316 = vperm.slane %v2308, %v2315
      %v2317 = vrot.slane %v2288, 4
      %v2318 = vsel %vm446, %v2317, %v2276
      %v2319 = vrot.slane %v2276, 4
      %v2320 = vsel %vm446, %v2288, %v2319
      %v2322 = vunpack.c.l.s4 1934713408
      %v2323 = vunpack.c.0.s8 %v2322
      %v2324 = vperm.slane %v2318, %v2323
      %v2326 = vunpack.c.l.s4 1934713408
      %v2327 = vunpack.c.0.s8 %v2326
      %v2328 = vperm.slane %v2320, %v2327
      %v2329 = vrot.slane %v2292, 4
      %v2330 = vsel %vm446, %v2329, %v2280
      %v2331 = vrot.slane %v2280, 4
      %v2332 = vsel %vm446, %v2292, %v2331
      %v2334 = vunpack.c.l.s4 1934713408
      %v2335 = vunpack.c.0.s8 %v2334
      %v2336 = vperm.slane %v2330, %v2335
      %v2338 = vunpack.c.l.s4 1934713408
      %v2339 = vunpack.c.0.s8 %v2338
      %v2340 = vperm.slane %v2332, %v2339
      %v2341 = vrot.slane %v2312, 4
      %v2342 = vsel %vm446, %v2341, %v2300
      %v2343 = vrot.slane %v2300, 4
      %v2344 = vsel %vm446, %v2312, %v2343
      %v2346 = vunpack.c.l.s4 1934713408
      %v2347 = vunpack.c.0.s8 %v2346
      %v2348 = vperm.slane %v2342, %v2347
      %v2350 = vunpack.c.l.s4 1934713408
      %v2351 = vunpack.c.0.s8 %v2350
      %v2352 = vperm.slane %v2344, %v2351
      %v2353 = vrot.slane %v2316, 4
      %v2354 = vsel %vm446, %v2353, %v2304
      %v2355 = vrot.slane %v2304, 4
      %v2356 = vsel %vm446, %v2316, %v2355
      %v2358 = vunpack.c.l.s4 1934713408
      %v2359 = vunpack.c.0.s8 %v2358
      %v2360 = vperm.slane %v2354, %v2359
      %v2362 = vunpack.c.l.s4 1934713408
      %v2363 = vunpack.c.0.s8 %v2362
      %v2364 = vperm.slane %v2356, %v2363
      %v2365 = vrot.slane %v2348, 4
      %v2366 = vsel %vm446, %v2365, %v2324
      %v2367 = vrot.slane %v2324, 4
      %v2368 = vsel %vm446, %v2348, %v2367
      %v2369 = vrot.slane %v2352, 4
      %v2370 = vsel %vm446, %v2369, %v2328
      %v2371 = vrot.slane %v2328, 4
      %v2372 = vsel %vm446, %v2352, %v2371
      %v2373 = vrot.slane %v2360, 4
      %v2374 = vsel %vm446, %v2373, %v2336
      %v2375 = vrot.slane %v2336, 4
      %v2376 = vsel %vm446, %v2360, %v2375
      %v2377 = vrot.slane %v2364, 4
      %v2378 = vsel %vm446, %v2377, %v2340
      %v2379 = vrot.slane %v2340, 4
      %v2380 = vsel %vm446, %v2364, %v2379
      %v2381 = vrot.slane %v2232, 4
      %v2382 = vsel %vm446, %v2381, %v2224
      %v2383 = vrot.slane %v2224, 4
      %v2384 = vsel %vm446, %v2232, %v2383
      %v2386 = vunpack.c.l.s4 1983009808
      %v2387 = vunpack.c.0.s8 %v2386
      %v2388 = vperm.slane %v2382, %v2387
      %v2390 = vunpack.c.l.s4 1983009808
      %v2391 = vunpack.c.0.s8 %v2390
      %v2392 = vperm.slane %v2384, %v2391
      %v2393 = vrot.slane %v2236, 4
      %v2394 = vsel %vm446, %v2393, %v2228
      %v2395 = vrot.slane %v2228, 4
      %v2396 = vsel %vm446, %v2236, %v2395
      %v2398 = vunpack.c.l.s4 1983009808
      %v2399 = vunpack.c.0.s8 %v2398
      %v2400 = vperm.slane %v2394, %v2399
      %v2402 = vunpack.c.l.s4 1983009808
      %v2403 = vunpack.c.0.s8 %v2402
      %v2404 = vperm.slane %v2396, %v2403
      %v2405 = vrot.slane %v2248, 4
      %v2406 = vsel %vm446, %v2405, %v2240
      %v2407 = vrot.slane %v2240, 4
      %v2408 = vsel %vm446, %v2248, %v2407
      %v2410 = vunpack.c.l.s4 1983009808
      %v2411 = vunpack.c.0.s8 %v2410
      %v2412 = vperm.slane %v2406, %v2411
      %v2414 = vunpack.c.l.s4 1983009808
      %v2415 = vunpack.c.0.s8 %v2414
      %v2416 = vperm.slane %v2408, %v2415
      %v2417 = vrot.slane %v2252, 4
      %v2418 = vsel %vm446, %v2417, %v2244
      %v2419 = vrot.slane %v2244, 4
      %v2420 = vsel %vm446, %v2252, %v2419
      %v2422 = vunpack.c.l.s4 1983009808
      %v2423 = vunpack.c.0.s8 %v2422
      %v2424 = vperm.slane %v2418, %v2423
      %v2426 = vunpack.c.l.s4 1983009808
      %v2427 = vunpack.c.0.s8 %v2426
      %v2428 = vperm.slane %v2420, %v2427
      %v2429 = vrot.slane %v2400, 4
      %v2430 = vsel %vm446, %v2429, %v2388
      %v2431 = vrot.slane %v2388, 4
      %v2432 = vsel %vm446, %v2400, %v2431
      %v2434 = vunpack.c.l.s4 1934713408
      %v2435 = vunpack.c.0.s8 %v2434
      %v2436 = vperm.slane %v2430, %v2435
      %v2438 = vunpack.c.l.s4 1934713408
      %v2439 = vunpack.c.0.s8 %v2438
      %v2440 = vperm.slane %v2432, %v2439
      %v2441 = vrot.slane %v2404, 4
      %v2442 = vsel %vm446, %v2441, %v2392
      %v2443 = vrot.slane %v2392, 4
      %v2444 = vsel %vm446, %v2404, %v2443
      %v2446 = vunpack.c.l.s4 1934713408
      %v2447 = vunpack.c.0.s8 %v2446
      %v2448 = vperm.slane %v2442, %v2447
      %v2450 = vunpack.c.l.s4 1934713408
      %v2451 = vunpack.c.0.s8 %v2450
      %v2452 = vperm.slane %v2444, %v2451
      %v2453 = vrot.slane %v2424, 4
      %v2454 = vsel %vm446, %v2453, %v2412
      %v2455 = vrot.slane %v2412, 4
      %v2456 = vsel %vm446, %v2424, %v2455
      %v2458 = vunpack.c.l.s4 1934713408
      %v2459 = vunpack.c.0.s8 %v2458
      %v2460 = vperm.slane %v2454, %v2459
      %v2462 = vunpack.c.l.s4 1934713408
      %v2463 = vunpack.c.0.s8 %v2462
      %v2464 = vperm.slane %v2456, %v2463
      %v2465 = vrot.slane %v2428, 4
      %v2466 = vsel %vm446, %v2465, %v2416
      %v2467 = vrot.slane %v2416, 4
      %v2468 = vsel %vm446, %v2428, %v2467
      %v2470 = vunpack.c.l.s4 1934713408
      %v2471 = vunpack.c.0.s8 %v2470
      %v2472 = vperm.slane %v2466, %v2471
      %v2474 = vunpack.c.l.s4 1934713408
      %v2475 = vunpack.c.0.s8 %v2474
      %v2476 = vperm.slane %v2468, %v2475
      %v2477 = vrot.slane %v2460, 4
      %v2478 = vsel %vm446, %v2477, %v2436
      %v2479 = vrot.slane %v2436, 4
      %v2480 = vsel %vm446, %v2460, %v2479
      %v2481 = vrot.slane %v2464, 4
      %v2482 = vsel %vm446, %v2481, %v2440
      %v2483 = vrot.slane %v2440, 4
      %v2484 = vsel %vm446, %v2464, %v2483
      %v2485 = vrot.slane %v2472, 4
      %v2486 = vsel %vm446, %v2485, %v2448
      %v2487 = vrot.slane %v2448, 4
      %v2488 = vsel %vm446, %v2472, %v2487
      %v2489 = vrot.slane %v2476, 4
      %v2490 = vsel %vm446, %v2489, %v2452
      %v2491 = vrot.slane %v2452, 4
      %v2492 = vsel %vm446, %v2476, %v2491
      %2494 = vrot.lane.b32.xlu0 %v2368, 16
      %v2495 = vpop.permute.xlu0 %2494
      %2498 = vrot.lane.b32.xlu0 %v2370, 32
      %v2499 = vpop.permute.xlu0 %2498
      %2502 = vrot.lane.b32.xlu0 %v2372, 48
      %v2503 = vpop.permute.xlu0 %2502
      %2506 = vrot.lane.b32.xlu0 %v2374, 64
      %v2507 = vpop.permute.xlu0 %2506
      %2510 = vrot.lane.b32.xlu0 %v2376, 80
      %v2511 = vpop.permute.xlu0 %2510
      %2514 = vrot.lane.b32.xlu0 %v2378, 96
      %v2515 = vpop.permute.xlu0 %2514
      %2518 = vrot.lane.b32.xlu0 %v2380, 112
      %v2519 = vpop.permute.xlu0 %2518
      %2522 = vrot.lane.b32.xlu0 %v2480, 16
      %v2523 = vpop.permute.xlu0 %2522
      %2526 = vrot.lane.b32.xlu0 %v2482, 32
      %v2527 = vpop.permute.xlu0 %2526
      %2530 = vrot.lane.b32.xlu0 %v2484, 48
      %v2531 = vpop.permute.xlu0 %2530
      %2534 = vrot.lane.b32.xlu0 %v2486, 64
      %v2535 = vpop.permute.xlu0 %2534
      %2538 = vrot.lane.b32.xlu0 %v2488, 80
      %v2539 = vpop.permute.xlu0 %2538
      %2542 = vrot.lane.b32.xlu0 %v2490, 96
      %v2543 = vpop.permute.xlu0 %2542
      %2546 = vrot.lane.b32.xlu0 %v2492, 112
      %v2547 = vpop.permute.xlu0 %2546
      %v2549 = vsel %vm726, %v2366, %v2495
      %v2550 = vsel %vm728, %v2549, %v2499
      %v2551 = vsel %vm730, %v2550, %v2503
      %v2552 = vsel %vm732, %v2551, %v2507
      %v2553 = vsel %vm734, %v2552, %v2511
      %v2554 = vsel %vm736, %v2553, %v2515
      %v2555 = vsel %vm738, %v2554, %v2519
      %v2556 = vsel %vm726, %v2478, %v2523
      %v2557 = vsel %vm728, %v2556, %v2527
      %v2558 = vsel %vm730, %v2557, %v2531
      %v2559 = vsel %vm732, %v2558, %v2535
      %v2560 = vsel %vm734, %v2559, %v2539
      %v2561 = vsel %vm736, %v2560, %v2543
      %v2562 = vsel %vm738, %v2561, %v2547
      %2563 = vst [vmem:[#allocation3 + $0x50] sm:$0xff] %v2555
      %2564 = vst [vmem:[#allocation3 + $0x58] sm:$0xff] %v2562
      %v2565 = vld [vmem:[#allocation2 + $0x2] sm:$0xff]
      %v2566 = vld [vmem:[#allocation2 + $0xa] sm:$0xff]
      %v2567 = vld [vmem:[#allocation2 + $0x1a] sm:$0xff]
      %v2568 = vld [vmem:[#allocation2 + $0x22] sm:$0xff]
      %v2569 = vld [vmem:[#allocation2 + $0x32] sm:$0xff]
      %v2570 = vld [vmem:[#allocation2 + $0x3a] sm:$0xff]
      %v2571 = vld [vmem:[#allocation2 + $0x4a] sm:$0xff]
      %v2572 = vld [vmem:[#allocation2 + $0x52] sm:$0xff]
      %v2573 = vld [vmem:[#allocation2 + $0x62] sm:$0xff]
      %v2574 = vld [vmem:[#allocation2 + $0x6a] sm:$0xff]
      %v2575 = vld [vmem:[#allocation2 + $0x7a] sm:$0xff]
      %v2576 = vld [vmem:[#allocation2 + $0x82] sm:$0xff]
      %v2577 = vld [vmem:[#allocation2 + $0x92] sm:$0xff]
      %v2578 = vld [vmem:[#allocation2 + $0x9a] sm:$0xff]
      %v2579 = vld [vmem:[#allocation2 + $0xaa] sm:$0xff]
      %v2580 = vld [vmem:[#allocation2 + $0xb2] sm:$0xff]
      %v2581 = vrot.slane %v2569, 4
      %v2582 = vsel %vm446, %v2581, %v2565
      %v2583 = vrot.slane %v2565, 4
      %v2584 = vsel %vm446, %v2569, %v2583
      %v2586 = vunpack.c.l.s4 1983009808
      %v2587 = vunpack.c.0.s8 %v2586
      %v2588 = vperm.slane %v2582, %v2587
      %v2590 = vunpack.c.l.s4 1983009808
      %v2591 = vunpack.c.0.s8 %v2590
      %v2592 = vperm.slane %v2584, %v2591
      %v2593 = vrot.slane %v2571, 4
      %v2594 = vsel %vm446, %v2593, %v2567
      %v2595 = vrot.slane %v2567, 4
      %v2596 = vsel %vm446, %v2571, %v2595
      %v2598 = vunpack.c.l.s4 1983009808
      %v2599 = vunpack.c.0.s8 %v2598
      %v2600 = vperm.slane %v2594, %v2599
      %v2602 = vunpack.c.l.s4 1983009808
      %v2603 = vunpack.c.0.s8 %v2602
      %v2604 = vperm.slane %v2596, %v2603
      %v2605 = vrot.slane %v2577, 4
      %v2606 = vsel %vm446, %v2605, %v2573
      %v2607 = vrot.slane %v2573, 4
      %v2608 = vsel %vm446, %v2577, %v2607
      %v2610 = vunpack.c.l.s4 1983009808
      %v2611 = vunpack.c.0.s8 %v2610
      %v2612 = vperm.slane %v2606, %v2611
      %v2614 = vunpack.c.l.s4 1983009808
      %v2615 = vunpack.c.0.s8 %v2614
      %v2616 = vperm.slane %v2608, %v2615
      %v2617 = vrot.slane %v2579, 4
      %v2618 = vsel %vm446, %v2617, %v2575
      %v2619 = vrot.slane %v2575, 4
      %v2620 = vsel %vm446, %v2579, %v2619
      %v2622 = vunpack.c.l.s4 1983009808
      %v2623 = vunpack.c.0.s8 %v2622
      %v2624 = vperm.slane %v2618, %v2623
      %v2626 = vunpack.c.l.s4 1983009808
      %v2627 = vunpack.c.0.s8 %v2626
      %v2628 = vperm.slane %v2620, %v2627
      %v2629 = vrot.slane %v2600, 4
      %v2630 = vsel %vm446, %v2629, %v2588
      %v2631 = vrot.slane %v2588, 4
      %v2632 = vsel %vm446, %v2600, %v2631
      %v2634 = vunpack.c.l.s4 1934713408
      %v2635 = vunpack.c.0.s8 %v2634
      %v2636 = vperm.slane %v2630, %v2635
      %v2638 = vunpack.c.l.s4 1934713408
      %v2639 = vunpack.c.0.s8 %v2638
      %v2640 = vperm.slane %v2632, %v2639
      %v2641 = vrot.slane %v2604, 4
      %v2642 = vsel %vm446, %v2641, %v2592
      %v2643 = vrot.slane %v2592, 4
      %v2644 = vsel %vm446, %v2604, %v2643
      %v2646 = vunpack.c.l.s4 1934713408
      %v2647 = vunpack.c.0.s8 %v2646
      %v2648 = vperm.slane %v2642, %v2647
      %v2650 = vunpack.c.l.s4 1934713408
      %v2651 = vunpack.c.0.s8 %v2650
      %v2652 = vperm.slane %v2644, %v2651
      %v2653 = vrot.slane %v2624, 4
      %v2654 = vsel %vm446, %v2653, %v2612
      %v2655 = vrot.slane %v2612, 4
      %v2656 = vsel %vm446, %v2624, %v2655
      %v2658 = vunpack.c.l.s4 1934713408
      %v2659 = vunpack.c.0.s8 %v2658
      %v2660 = vperm.slane %v2654, %v2659
      %v2662 = vunpack.c.l.s4 1934713408
      %v2663 = vunpack.c.0.s8 %v2662
      %v2664 = vperm.slane %v2656, %v2663
      %v2665 = vrot.slane %v2628, 4
      %v2666 = vsel %vm446, %v2665, %v2616
      %v2667 = vrot.slane %v2616, 4
      %v2668 = vsel %vm446, %v2628, %v2667
      %v2670 = vunpack.c.l.s4 1934713408
      %v2671 = vunpack.c.0.s8 %v2670
      %v2672 = vperm.slane %v2666, %v2671
      %v2674 = vunpack.c.l.s4 1934713408
      %v2675 = vunpack.c.0.s8 %v2674
      %v2676 = vperm.slane %v2668, %v2675
      %v2677 = vrot.slane %v2660, 4
      %v2678 = vsel %vm446, %v2677, %v2636
      %v2679 = vrot.slane %v2636, 4
      %v2680 = vsel %vm446, %v2660, %v2679
      %v2681 = vrot.slane %v2664, 4
      %v2682 = vsel %vm446, %v2681, %v2640
      %v2683 = vrot.slane %v2640, 4
      %v2684 = vsel %vm446, %v2664, %v2683
      %v2685 = vrot.slane %v2672, 4
      %v2686 = vsel %vm446, %v2685, %v2648
      %v2687 = vrot.slane %v2648, 4
      %v2688 = vsel %vm446, %v2672, %v2687
      %v2689 = vrot.slane %v2676, 4
      %v2690 = vsel %vm446, %v2689, %v2652
      %v2691 = vrot.slane %v2652, 4
      %v2692 = vsel %vm446, %v2676, %v2691
      %v2693 = vrot.slane %v2570, 4
      %v2694 = vsel %vm446, %v2693, %v2566
      %v2695 = vrot.slane %v2566, 4
      %v2696 = vsel %vm446, %v2570, %v2695
      %v2698 = vunpack.c.l.s4 1983009808
      %v2699 = vunpack.c.0.s8 %v2698
      %v2700 = vperm.slane %v2694, %v2699
      %v2702 = vunpack.c.l.s4 1983009808
      %v2703 = vunpack.c.0.s8 %v2702
      %v2704 = vperm.slane %v2696, %v2703
      %v2705 = vrot.slane %v2572, 4
      %v2706 = vsel %vm446, %v2705, %v2568
      %v2707 = vrot.slane %v2568, 4
      %v2708 = vsel %vm446, %v2572, %v2707
      %v2710 = vunpack.c.l.s4 1983009808
      %v2711 = vunpack.c.0.s8 %v2710
      %v2712 = vperm.slane %v2706, %v2711
      %v2714 = vunpack.c.l.s4 1983009808
      %v2715 = vunpack.c.0.s8 %v2714
      %v2716 = vperm.slane %v2708, %v2715
      %v2717 = vrot.slane %v2578, 4
      %v2718 = vsel %vm446, %v2717, %v2574
      %v2719 = vrot.slane %v2574, 4
      %v2720 = vsel %vm446, %v2578, %v2719
      %v2722 = vunpack.c.l.s4 1983009808
      %v2723 = vunpack.c.0.s8 %v2722
      %v2724 = vperm.slane %v2718, %v2723
      %v2726 = vunpack.c.l.s4 1983009808
      %v2727 = vunpack.c.0.s8 %v2726
      %v2728 = vperm.slane %v2720, %v2727
      %v2729 = vrot.slane %v2580, 4
      %v2730 = vsel %vm446, %v2729, %v2576
      %v2731 = vrot.slane %v2576, 4
      %v2732 = vsel %vm446, %v2580, %v2731
      %v2734 = vunpack.c.l.s4 1983009808
      %v2735 = vunpack.c.0.s8 %v2734
      %v2736 = vperm.slane %v2730, %v2735
      %v2738 = vunpack.c.l.s4 1983009808
      %v2739 = vunpack.c.0.s8 %v2738
      %v2740 = vperm.slane %v2732, %v2739
      %v2741 = vrot.slane %v2712, 4
      %v2742 = vsel %vm446, %v2741, %v2700
      %v2743 = vrot.slane %v2700, 4
      %v2744 = vsel %vm446, %v2712, %v2743
      %v2746 = vunpack.c.l.s4 1934713408
      %v2747 = vunpack.c.0.s8 %v2746
      %v2748 = vperm.slane %v2742, %v2747
      %v2750 = vunpack.c.l.s4 1934713408
      %v2751 = vunpack.c.0.s8 %v2750
      %v2752 = vperm.slane %v2744, %v2751
      %v2753 = vrot.slane %v2716, 4
      %v2754 = vsel %vm446, %v2753, %v2704
      %v2755 = vrot.slane %v2704, 4
      %v2756 = vsel %vm446, %v2716, %v2755
      %v2758 = vunpack.c.l.s4 1934713408
      %v2759 = vunpack.c.0.s8 %v2758
      %v2760 = vperm.slane %v2754, %v2759
      %v2762 = vunpack.c.l.s4 1934713408
      %v2763 = vunpack.c.0.s8 %v2762
      %v2764 = vperm.slane %v2756, %v2763
      %v2765 = vrot.slane %v2736, 4
      %v2766 = vsel %vm446, %v2765, %v2724
      %v2767 = vrot.slane %v2724, 4
      %v2768 = vsel %vm446, %v2736, %v2767
      %v2770 = vunpack.c.l.s4 1934713408
      %v2771 = vunpack.c.0.s8 %v2770
      %v2772 = vperm.slane %v2766, %v2771
      %v2774 = vunpack.c.l.s4 1934713408
      %v2775 = vunpack.c.0.s8 %v2774
      %v2776 = vperm.slane %v2768, %v2775
      %v2777 = vrot.slane %v2740, 4
      %v2778 = vsel %vm446, %v2777, %v2728
      %v2779 = vrot.slane %v2728, 4
      %v2780 = vsel %vm446, %v2740, %v2779
      %v2782 = vunpack.c.l.s4 1934713408
      %v2783 = vunpack.c.0.s8 %v2782
      %v2784 = vperm.slane %v2778, %v2783
      %v2786 = vunpack.c.l.s4 1934713408
      %v2787 = vunpack.c.0.s8 %v2786
      %v2788 = vperm.slane %v2780, %v2787
      %v2789 = vrot.slane %v2772, 4
      %v2790 = vsel %vm446, %v2789, %v2748
      %v2791 = vrot.slane %v2748, 4
      %v2792 = vsel %vm446, %v2772, %v2791
      %v2793 = vrot.slane %v2776, 4
      %v2794 = vsel %vm446, %v2793, %v2752
      %v2795 = vrot.slane %v2752, 4
      %v2796 = vsel %vm446, %v2776, %v2795
      %v2797 = vrot.slane %v2784, 4
      %v2798 = vsel %vm446, %v2797, %v2760
      %v2799 = vrot.slane %v2760, 4
      %v2800 = vsel %vm446, %v2784, %v2799
      %v2801 = vrot.slane %v2788, 4
      %v2802 = vsel %vm446, %v2801, %v2764
      %v2803 = vrot.slane %v2764, 4
      %v2804 = vsel %vm446, %v2788, %v2803
      %2806 = vrot.lane.b32.xlu0 %v2680, 16
      %v2807 = vpop.permute.xlu0 %2806
      %2810 = vrot.lane.b32.xlu0 %v2682, 32
      %v2811 = vpop.permute.xlu0 %2810
      %2814 = vrot.lane.b32.xlu0 %v2684, 48
      %v2815 = vpop.permute.xlu0 %2814
      %2818 = vrot.lane.b32.xlu0 %v2686, 64
      %v2819 = vpop.permute.xlu0 %2818
      %2822 = vrot.lane.b32.xlu0 %v2688, 80
      %v2823 = vpop.permute.xlu0 %2822
      %2826 = vrot.lane.b32.xlu0 %v2690, 96
      %v2827 = vpop.permute.xlu0 %2826
      %2830 = vrot.lane.b32.xlu0 %v2692, 112
      %v2831 = vpop.permute.xlu0 %2830
      %2834 = vrot.lane.b32.xlu0 %v2792, 16
      %v2835 = vpop.permute.xlu0 %2834
      %2838 = vrot.lane.b32.xlu0 %v2794, 32
      %v2839 = vpop.permute.xlu0 %2838
      %2842 = vrot.lane.b32.xlu0 %v2796, 48
      %v2843 = vpop.permute.xlu0 %2842
      %2846 = vrot.lane.b32.xlu0 %v2798, 64
      %v2847 = vpop.permute.xlu0 %2846
      %2850 = vrot.lane.b32.xlu0 %v2800, 80
      %v2851 = vpop.permute.xlu0 %2850
      %2854 = vrot.lane.b32.xlu0 %v2802, 96
      %v2855 = vpop.permute.xlu0 %2854
      %2858 = vrot.lane.b32.xlu0 %v2804, 112
      %v2859 = vpop.permute.xlu0 %2858
      %v2861 = vsel %vm726, %v2678, %v2807
      %v2862 = vsel %vm728, %v2861, %v2811
      %v2863 = vsel %vm730, %v2862, %v2815
      %v2864 = vsel %vm732, %v2863, %v2819
      %v2865 = vsel %vm734, %v2864, %v2823
      %v2866 = vsel %vm736, %v2865, %v2827
      %v2867 = vsel %vm738, %v2866, %v2831
      %v2868 = vsel %vm726, %v2790, %v2835
      %v2869 = vsel %vm728, %v2868, %v2839
      %v2870 = vsel %vm730, %v2869, %v2843
      %v2871 = vsel %vm732, %v2870, %v2847
      %v2872 = vsel %vm734, %v2871, %v2851
      %v2873 = vsel %vm736, %v2872, %v2855
      %v2874 = vsel %vm738, %v2873, %v2859
      %2875 = vst [vmem:[#allocation3 + $0x60] sm:$0xff] %v2867
      %2876 = vst [vmem:[#allocation3 + $0x68] sm:$0xff] %v2874
      %v2877 = vld [vmem:[#allocation2 + $0x2] sm:$0xff]
      %v2878 = vld [vmem:[#allocation2 + $0xa] sm:$0xff]
      %v2879 = vld [vmem:[#allocation2 + $0x1a] sm:$0xff]
      %v2880 = vld [vmem:[#allocation2 + $0x22] sm:$0xff]
      %v2881 = vld [vmem:[#allocation2 + $0x32] sm:$0xff]
      %v2882 = vld [vmem:[#allocation2 + $0x3a] sm:$0xff]
      %v2883 = vld [vmem:[#allocation2 + $0x4a] sm:$0xff]
      %v2884 = vld [vmem:[#allocation2 + $0x52] sm:$0xff]
      %v2885 = vld [vmem:[#allocation2 + $0x62] sm:$0xff]
      %v2886 = vld [vmem:[#allocation2 + $0x6a] sm:$0xff]
      %v2887 = vld [vmem:[#allocation2 + $0x7a] sm:$0xff]
      %v2888 = vld [vmem:[#allocation2 + $0x82] sm:$0xff]
      %v2889 = vld [vmem:[#allocation2 + $0x92] sm:$0xff]
      %v2890 = vld [vmem:[#allocation2 + $0x9a] sm:$0xff]
      %v2891 = vld [vmem:[#allocation2 + $0xaa] sm:$0xff]
      %v2892 = vld [vmem:[#allocation2 + $0xb2] sm:$0xff]
      %2909 = vrot.lane.b32.xlu0 %v2877, 127
      %v2910 = vpop.permute.xlu0 %2909
      %2911 = vrot.lane.b32.xlu0 %v2878, 127
      %v2912 = vpop.permute.xlu0 %2911
      %2913 = vrot.lane.b32.xlu0 %v2879, 127
      %v2914 = vpop.permute.xlu0 %2913
      %2915 = vrot.lane.b32.xlu0 %v2880, 127
      %v2916 = vpop.permute.xlu0 %2915
      %2917 = vrot.lane.b32.xlu0 %v2881, 127
      %v2918 = vpop.permute.xlu0 %2917
      %2919 = vrot.lane.b32.xlu0 %v2882, 127
      %v2920 = vpop.permute.xlu0 %2919
      %2921 = vrot.lane.b32.xlu0 %v2883, 127
      %v2922 = vpop.permute.xlu0 %2921
      %2923 = vrot.lane.b32.xlu0 %v2884, 127
      %v2924 = vpop.permute.xlu0 %2923
      %2925 = vrot.lane.b32.xlu0 %v2885, 127
      %v2926 = vpop.permute.xlu0 %2925
      %2927 = vrot.lane.b32.xlu0 %v2886, 127
      %v2928 = vpop.permute.xlu0 %2927
      %2929 = vrot.lane.b32.xlu0 %v2887, 127
      %v2930 = vpop.permute.xlu0 %2929
      %2931 = vrot.lane.b32.xlu0 %v2888, 127
      %v2932 = vpop.permute.xlu0 %2931
      %2933 = vrot.lane.b32.xlu0 %v2889, 127
      %v2934 = vpop.permute.xlu0 %2933
      %2935 = vrot.lane.b32.xlu0 %v2890, 127
      %v2936 = vpop.permute.xlu0 %2935
      %2937 = vrot.lane.b32.xlu0 %v2891, 127
      %v2938 = vpop.permute.xlu0 %2937
      %2939 = vrot.lane.b32.xlu0 %v2892, 127
      %v2940 = vpop.permute.xlu0 %2939
      %v2957 = vrot.slane %v2918, 4
      %v2958 = vsel %vm446, %v2957, %v2910
      %v2959 = vrot.slane %v2910, 4
      %v2960 = vsel %vm446, %v2918, %v2959
      %v2962 = vunpack.c.l.s4 1983009808
      %v2963 = vunpack.c.0.s8 %v2962
      %v2964 = vperm.slane %v2958, %v2963
      %v2966 = vunpack.c.l.s4 1983009808
      %v2967 = vunpack.c.0.s8 %v2966
      %v2968 = vperm.slane %v2960, %v2967
      %v2969 = vrot.slane %v2922, 4
      %v2970 = vsel %vm446, %v2969, %v2914
      %v2971 = vrot.slane %v2914, 4
      %v2972 = vsel %vm446, %v2922, %v2971
      %v2974 = vunpack.c.l.s4 1983009808
      %v2975 = vunpack.c.0.s8 %v2974
      %v2976 = vperm.slane %v2970, %v2975
      %v2978 = vunpack.c.l.s4 1983009808
      %v2979 = vunpack.c.0.s8 %v2978
      %v2980 = vperm.slane %v2972, %v2979
      %v2981 = vrot.slane %v2934, 4
      %v2982 = vsel %vm446, %v2981, %v2926
      %v2983 = vrot.slane %v2926, 4
      %v2984 = vsel %vm446, %v2934, %v2983
      %v2986 = vunpack.c.l.s4 1983009808
      %v2987 = vunpack.c.0.s8 %v2986
      %v2988 = vperm.slane %v2982, %v2987
      %v2990 = vunpack.c.l.s4 1983009808
      %v2991 = vunpack.c.0.s8 %v2990
      %v2992 = vperm.slane %v2984, %v2991
      %v2993 = vrot.slane %v2938, 4
      %v2994 = vsel %vm446, %v2993, %v2930
      %v2995 = vrot.slane %v2930, 4
      %v2996 = vsel %vm446, %v2938, %v2995
      %v2998 = vunpack.c.l.s4 1983009808
      %v2999 = vunpack.c.0.s8 %v2998
      %v3000 = vperm.slane %v2994, %v2999
      %v3002 = vunpack.c.l.s4 1983009808
      %v3003 = vunpack.c.0.s8 %v3002
      %v3004 = vperm.slane %v2996, %v3003
      %v3005 = vrot.slane %v2976, 4
      %v3006 = vsel %vm446, %v3005, %v2964
      %v3007 = vrot.slane %v2964, 4
      %v3008 = vsel %vm446, %v2976, %v3007
      %v3010 = vunpack.c.l.s4 1934713408
      %v3011 = vunpack.c.0.s8 %v3010
      %v3012 = vperm.slane %v3006, %v3011
      %v3014 = vunpack.c.l.s4 1934713408
      %v3015 = vunpack.c.0.s8 %v3014
      %v3016 = vperm.slane %v3008, %v3015
      %v3017 = vrot.slane %v2980, 4
      %v3018 = vsel %vm446, %v3017, %v2968
      %v3019 = vrot.slane %v2968, 4
      %v3020 = vsel %vm446, %v2980, %v3019
      %v3022 = vunpack.c.l.s4 1934713408
      %v3023 = vunpack.c.0.s8 %v3022
      %v3024 = vperm.slane %v3018, %v3023
      %v3026 = vunpack.c.l.s4 1934713408
      %v3027 = vunpack.c.0.s8 %v3026
      %v3028 = vperm.slane %v3020, %v3027
      %v3029 = vrot.slane %v3000, 4
      %v3030 = vsel %vm446, %v3029, %v2988
      %v3031 = vrot.slane %v2988, 4
      %v3032 = vsel %vm446, %v3000, %v3031
      %v3034 = vunpack.c.l.s4 1934713408
      %v3035 = vunpack.c.0.s8 %v3034
      %v3036 = vperm.slane %v3030, %v3035
      %v3038 = vunpack.c.l.s4 1934713408
      %v3039 = vunpack.c.0.s8 %v3038
      %v3040 = vperm.slane %v3032, %v3039
      %v3041 = vrot.slane %v3004, 4
      %v3042 = vsel %vm446, %v3041, %v2992
      %v3043 = vrot.slane %v2992, 4
      %v3044 = vsel %vm446, %v3004, %v3043
      %v3046 = vunpack.c.l.s4 1934713408
      %v3047 = vunpack.c.0.s8 %v3046
      %v3048 = vperm.slane %v3042, %v3047
      %v3050 = vunpack.c.l.s4 1934713408
      %v3051 = vunpack.c.0.s8 %v3050
      %v3052 = vperm.slane %v3044, %v3051
      %v3053 = vrot.slane %v3036, 4
      %v3054 = vsel %vm446, %v3053, %v3012
      %v3055 = vrot.slane %v3012, 4
      %v3056 = vsel %vm446, %v3036, %v3055
      %v3057 = vrot.slane %v3040, 4
      %v3058 = vsel %vm446, %v3057, %v3016
      %v3059 = vrot.slane %v3016, 4
      %v3060 = vsel %vm446, %v3040, %v3059
      %v3061 = vrot.slane %v3048, 4
      %v3062 = vsel %vm446, %v3061, %v3024
      %v3063 = vrot.slane %v3024, 4
      %v3064 = vsel %vm446, %v3048, %v3063
      %v3065 = vrot.slane %v3052, 4
      %v3066 = vsel %vm446, %v3065, %v3028
      %v3067 = vrot.slane %v3028, 4
      %v3068 = vsel %vm446, %v3052, %v3067
      %v3069 = vrot.slane %v2920, 4
      %v3070 = vsel %vm446, %v3069, %v2912
      %v3071 = vrot.slane %v2912, 4
      %v3072 = vsel %vm446, %v2920, %v3071
      %v3074 = vunpack.c.l.s4 1983009808
      %v3075 = vunpack.c.0.s8 %v3074
      %v3076 = vperm.slane %v3070, %v3075
      %v3078 = vunpack.c.l.s4 1983009808
      %v3079 = vunpack.c.0.s8 %v3078
      %v3080 = vperm.slane %v3072, %v3079
      %v3081 = vrot.slane %v2924, 4
      %v3082 = vsel %vm446, %v3081, %v2916
      %v3083 = vrot.slane %v2916, 4
      %v3084 = vsel %vm446, %v2924, %v3083
      %v3086 = vunpack.c.l.s4 1983009808
      %v3087 = vunpack.c.0.s8 %v3086
      %v3088 = vperm.slane %v3082, %v3087
      %v3090 = vunpack.c.l.s4 1983009808
      %v3091 = vunpack.c.0.s8 %v3090
      %v3092 = vperm.slane %v3084, %v3091
      %v3093 = vrot.slane %v2936, 4
      %v3094 = vsel %vm446, %v3093, %v2928
      %v3095 = vrot.slane %v2928, 4
      %v3096 = vsel %vm446, %v2936, %v3095
      %v3098 = vunpack.c.l.s4 1983009808
      %v3099 = vunpack.c.0.s8 %v3098
      %v3100 = vperm.slane %v3094, %v3099
      %v3102 = vunpack.c.l.s4 1983009808
      %v3103 = vunpack.c.0.s8 %v3102
      %v3104 = vperm.slane %v3096, %v3103
      %v3105 = vrot.slane %v2940, 4
      %v3106 = vsel %vm446, %v3105, %v2932
      %v3107 = vrot.slane %v2932, 4
      %v3108 = vsel %vm446, %v2940, %v3107
      %v3110 = vunpack.c.l.s4 1983009808
      %v3111 = vunpack.c.0.s8 %v3110
      %v3112 = vperm.slane %v3106, %v3111
      %v3114 = vunpack.c.l.s4 1983009808
      %v3115 = vunpack.c.0.s8 %v3114
      %v3116 = vperm.slane %v3108, %v3115
      %v3117 = vrot.slane %v3088, 4
      %v3118 = vsel %vm446, %v3117, %v3076
      %v3119 = vrot.slane %v3076, 4
      %v3120 = vsel %vm446, %v3088, %v3119
      %v3122 = vunpack.c.l.s4 1934713408
      %v3123 = vunpack.c.0.s8 %v3122
      %v3124 = vperm.slane %v3118, %v3123
      %v3126 = vunpack.c.l.s4 1934713408
      %v3127 = vunpack.c.0.s8 %v3126
      %v3128 = vperm.slane %v3120, %v3127
      %v3129 = vrot.slane %v3092, 4
      %v3130 = vsel %vm446, %v3129, %v3080
      %v3131 = vrot.slane %v3080, 4
      %v3132 = vsel %vm446, %v3092, %v3131
      %v3134 = vunpack.c.l.s4 1934713408
      %v3135 = vunpack.c.0.s8 %v3134
      %v3136 = vperm.slane %v3130, %v3135
      %v3138 = vunpack.c.l.s4 1934713408
      %v3139 = vunpack.c.0.s8 %v3138
      %v3140 = vperm.slane %v3132, %v3139
      %v3141 = vrot.slane %v3112, 4
      %v3142 = vsel %vm446, %v3141, %v3100
      %v3143 = vrot.slane %v3100, 4
      %v3144 = vsel %vm446, %v3112, %v3143
      %v3146 = vunpack.c.l.s4 1934713408
      %v3147 = vunpack.c.0.s8 %v3146
      %v3148 = vperm.slane %v3142, %v3147
      %v3150 = vunpack.c.l.s4 1934713408
      %v3151 = vunpack.c.0.s8 %v3150
      %v3152 = vperm.slane %v3144, %v3151
      %v3153 = vrot.slane %v3116, 4
      %v3154 = vsel %vm446, %v3153, %v3104
      %v3155 = vrot.slane %v3104, 4
      %v3156 = vsel %vm446, %v3116, %v3155
      %v3158 = vunpack.c.l.s4 1934713408
      %v3159 = vunpack.c.0.s8 %v3158
      %v3160 = vperm.slane %v3154, %v3159
      %v3162 = vunpack.c.l.s4 1934713408
      %v3163 = vunpack.c.0.s8 %v3162
      %v3164 = vperm.slane %v3156, %v3163
      %v3165 = vrot.slane %v3148, 4
      %v3166 = vsel %vm446, %v3165, %v3124
      %v3167 = vrot.slane %v3124, 4
      %v3168 = vsel %vm446, %v3148, %v3167
      %v3169 = vrot.slane %v3152, 4
      %v3170 = vsel %vm446, %v3169, %v3128
      %v3171 = vrot.slane %v3128, 4
      %v3172 = vsel %vm446, %v3152, %v3171
      %v3173 = vrot.slane %v3160, 4
      %v3174 = vsel %vm446, %v3173, %v3136
      %v3175 = vrot.slane %v3136, 4
      %v3176 = vsel %vm446, %v3160, %v3175
      %v3177 = vrot.slane %v3164, 4
      %v3178 = vsel %vm446, %v3177, %v3140
      %v3179 = vrot.slane %v3140, 4
      %v3180 = vsel %vm446, %v3164, %v3179
      %3182 = vrot.lane.b32.xlu0 %v3056, 16
      %v3183 = vpop.permute.xlu0 %3182
      %3186 = vrot.lane.b32.xlu0 %v3058, 32
      %v3187 = vpop.permute.xlu0 %3186
      %3190 = vrot.lane.b32.xlu0 %v3060, 48
      %v3191 = vpop.permute.xlu0 %3190
      %3194 = vrot.lane.b32.xlu0 %v3062, 64
      %v3195 = vpop.permute.xlu0 %3194
      %3198 = vrot.lane.b32.xlu0 %v3064, 80
      %v3199 = vpop.permute.xlu0 %3198
      %3202 = vrot.lane.b32.xlu0 %v3066, 96
      %v3203 = vpop.permute.xlu0 %3202
      %3206 = vrot.lane.b32.xlu0 %v3068, 112
      %v3207 = vpop.permute.xlu0 %3206
      %3210 = vrot.lane.b32.xlu0 %v3168, 16
      %v3211 = vpop.permute.xlu0 %3210
      %3214 = vrot.lane.b32.xlu0 %v3170, 32
      %v3215 = vpop.permute.xlu0 %3214
      %3218 = vrot.lane.b32.xlu0 %v3172, 48
      %v3219 = vpop.permute.xlu0 %3218
      %3222 = vrot.lane.b32.xlu0 %v3174, 64
      %v3223 = vpop.permute.xlu0 %3222
      %3226 = vrot.lane.b32.xlu0 %v3176, 80
      %v3227 = vpop.permute.xlu0 %3226
      %3230 = vrot.lane.b32.xlu0 %v3178, 96
      %v3231 = vpop.permute.xlu0 %3230
      %3234 = vrot.lane.b32.xlu0 %v3180, 112
      %v3235 = vpop.permute.xlu0 %3234
      %v3237 = vsel %vm726, %v3054, %v3183
      %v3238 = vsel %vm728, %v3237, %v3187
      %v3239 = vsel %vm730, %v3238, %v3191
      %v3240 = vsel %vm732, %v3239, %v3195
      %v3241 = vsel %vm734, %v3240, %v3199
      %v3242 = vsel %vm736, %v3241, %v3203
      %v3243 = vsel %vm738, %v3242, %v3207
      %v3244 = vsel %vm726, %v3166, %v3211
      %v3245 = vsel %vm728, %v3244, %v3215
      %v3246 = vsel %vm730, %v3245, %v3219
      %v3247 = vsel %vm732, %v3246, %v3223
      %v3248 = vsel %vm734, %v3247, %v3227
      %v3249 = vsel %vm736, %v3248, %v3231
      %v3250 = vsel %vm738, %v3249, %v3235
      %3251 = vst [vmem:[#allocation3 + $0x70] sm:$0xff] %v3243
      %3252 = vst [vmem:[#allocation3 + $0x78] sm:$0xff] %v3250
      %v3253 = vld [vmem:[#allocation2 + $0x2] sm:$0xff]
      %v3254 = vld [vmem:[#allocation2 + $0xa] sm:$0xff]
      %v3255 = vld [vmem:[#allocation2 + $0x1a] sm:$0xff]
      %v3256 = vld [vmem:[#allocation2 + $0x22] sm:$0xff]
      %v3257 = vld [vmem:[#allocation2 + $0x32] sm:$0xff]
      %v3258 = vld [vmem:[#allocation2 + $0x3a] sm:$0xff]
      %v3259 = vld [vmem:[#allocation2 + $0x4a] sm:$0xff]
      %v3260 = vld [vmem:[#allocation2 + $0x52] sm:$0xff]
      %v3261 = vld [vmem:[#allocation2 + $0x62] sm:$0xff]
      %v3262 = vld [vmem:[#allocation2 + $0x6a] sm:$0xff]
      %v3263 = vld [vmem:[#allocation2 + $0x7a] sm:$0xff]
      %v3264 = vld [vmem:[#allocation2 + $0x82] sm:$0xff]
      %v3265 = vld [vmem:[#allocation2 + $0x92] sm:$0xff]
      %v3266 = vld [vmem:[#allocation2 + $0x9a] sm:$0xff]
      %v3267 = vld [vmem:[#allocation2 + $0xaa] sm:$0xff]
      %v3268 = vld [vmem:[#allocation2 + $0xb2] sm:$0xff]
      %3285 = vrot.lane.b32.xlu0 %v3253, 126
      %v3286 = vpop.permute.xlu0 %3285
      %3287 = vrot.lane.b32.xlu0 %v3254, 126
      %v3288 = vpop.permute.xlu0 %3287
      %3289 = vrot.lane.b32.xlu0 %v3255, 126
      %v3290 = vpop.permute.xlu0 %3289
      %3291 = vrot.lane.b32.xlu0 %v3256, 126
      %v3292 = vpop.permute.xlu0 %3291
      %3293 = vrot.lane.b32.xlu0 %v3257, 126
      %v3294 = vpop.permute.xlu0 %3293
      %3295 = vrot.lane.b32.xlu0 %v3258, 126
      %v3296 = vpop.permute.xlu0 %3295
      %3297 = vrot.lane.b32.xlu0 %v3259, 126
      %v3298 = vpop.permute.xlu0 %3297
      %3299 = vrot.lane.b32.xlu0 %v3260, 126
      %v3300 = vpop.permute.xlu0 %3299
      %3301 = vrot.lane.b32.xlu0 %v3261, 126
      %v3302 = vpop.permute.xlu0 %3301
      %3303 = vrot.lane.b32.xlu0 %v3262, 126
      %v3304 = vpop.permute.xlu0 %3303
      %3305 = vrot.lane.b32.xlu0 %v3263, 126
      %v3306 = vpop.permute.xlu0 %3305
      %3307 = vrot.lane.b32.xlu0 %v3264, 126
      %v3308 = vpop.permute.xlu0 %3307
      %3309 = vrot.lane.b32.xlu0 %v3265, 126
      %v3310 = vpop.permute.xlu0 %3309
      %3311 = vrot.lane.b32.xlu0 %v3266, 126
      %v3312 = vpop.permute.xlu0 %3311
      %3313 = vrot.lane.b32.xlu0 %v3267, 126
      %v3314 = vpop.permute.xlu0 %3313
      %3315 = vrot.lane.b32.xlu0 %v3268, 126
      %v3316 = vpop.permute.xlu0 %3315
      %v3333 = vrot.slane %v3294, 4
      %v3334 = vsel %vm446, %v3333, %v3286
      %v3335 = vrot.slane %v3286, 4
      %v3336 = vsel %vm446, %v3294, %v3335
      %v3338 = vunpack.c.l.s4 1983009808
      %v3339 = vunpack.c.0.s8 %v3338
      %v3340 = vperm.slane %v3334, %v3339
      %v3342 = vunpack.c.l.s4 1983009808
      %v3343 = vunpack.c.0.s8 %v3342
      %v3344 = vperm.slane %v3336, %v3343
      %v3345 = vrot.slane %v3298, 4
      %v3346 = vsel %vm446, %v3345, %v3290
      %v3347 = vrot.slane %v3290, 4
      %v3348 = vsel %vm446, %v3298, %v3347
      %v3350 = vunpack.c.l.s4 1983009808
      %v3351 = vunpack.c.0.s8 %v3350
      %v3352 = vperm.slane %v3346, %v3351
      %v3354 = vunpack.c.l.s4 1983009808
      %v3355 = vunpack.c.0.s8 %v3354
      %v3356 = vperm.slane %v3348, %v3355
      %v3357 = vrot.slane %v3310, 4
      %v3358 = vsel %vm446, %v3357, %v3302
      %v3359 = vrot.slane %v3302, 4
      %v3360 = vsel %vm446, %v3310, %v3359
      %v3362 = vunpack.c.l.s4 1983009808
      %v3363 = vunpack.c.0.s8 %v3362
      %v3364 = vperm.slane %v3358, %v3363
      %v3366 = vunpack.c.l.s4 1983009808
      %v3367 = vunpack.c.0.s8 %v3366
      %v3368 = vperm.slane %v3360, %v3367
      %v3369 = vrot.slane %v3314, 4
      %v3370 = vsel %vm446, %v3369, %v3306
      %v3371 = vrot.slane %v3306, 4
      %v3372 = vsel %vm446, %v3314, %v3371
      %v3374 = vunpack.c.l.s4 1983009808
      %v3375 = vunpack.c.0.s8 %v3374
      %v3376 = vperm.slane %v3370, %v3375
      %v3378 = vunpack.c.l.s4 1983009808
      %v3379 = vunpack.c.0.s8 %v3378
      %v3380 = vperm.slane %v3372, %v3379
      %v3381 = vrot.slane %v3352, 4
      %v3382 = vsel %vm446, %v3381, %v3340
      %v3383 = vrot.slane %v3340, 4
      %v3384 = vsel %vm446, %v3352, %v3383
      %v3386 = vunpack.c.l.s4 1934713408
      %v3387 = vunpack.c.0.s8 %v3386
      %v3388 = vperm.slane %v3382, %v3387
      %v3390 = vunpack.c.l.s4 1934713408
      %v3391 = vunpack.c.0.s8 %v3390
      %v3392 = vperm.slane %v3384, %v3391
      %v3393 = vrot.slane %v3356, 4
      %v3394 = vsel %vm446, %v3393, %v3344
      %v3395 = vrot.slane %v3344, 4
      %v3396 = vsel %vm446, %v3356, %v3395
      %v3398 = vunpack.c.l.s4 1934713408
      %v3399 = vunpack.c.0.s8 %v3398
      %v3400 = vperm.slane %v3394, %v3399
      %v3402 = vunpack.c.l.s4 1934713408
      %v3403 = vunpack.c.0.s8 %v3402
      %v3404 = vperm.slane %v3396, %v3403
      %v3405 = vrot.slane %v3376, 4
      %v3406 = vsel %vm446, %v3405, %v3364
      %v3407 = vrot.slane %v3364, 4
      %v3408 = vsel %vm446, %v3376, %v3407
      %v3410 = vunpack.c.l.s4 1934713408
      %v3411 = vunpack.c.0.s8 %v3410
      %v3412 = vperm.slane %v3406, %v3411
      %v3414 = vunpack.c.l.s4 1934713408
      %v3415 = vunpack.c.0.s8 %v3414
      %v3416 = vperm.slane %v3408, %v3415
      %v3417 = vrot.slane %v3380, 4
      %v3418 = vsel %vm446, %v3417, %v3368
      %v3419 = vrot.slane %v3368, 4
      %v3420 = vsel %vm446, %v3380, %v3419
      %v3422 = vunpack.c.l.s4 1934713408
      %v3423 = vunpack.c.0.s8 %v3422
      %v3424 = vperm.slane %v3418, %v3423
      %v3426 = vunpack.c.l.s4 1934713408
      %v3427 = vunpack.c.0.s8 %v3426
      %v3428 = vperm.slane %v3420, %v3427
      %v3429 = vrot.slane %v3412, 4
      %v3430 = vsel %vm446, %v3429, %v3388
      %v3431 = vrot.slane %v3388, 4
      %v3432 = vsel %vm446, %v3412, %v3431
      %v3433 = vrot.slane %v3416, 4
      %v3434 = vsel %vm446, %v3433, %v3392
      %v3435 = vrot.slane %v3392, 4
      %v3436 = vsel %vm446, %v3416, %v3435
      %v3437 = vrot.slane %v3424, 4
      %v3438 = vsel %vm446, %v3437, %v3400
      %v3439 = vrot.slane %v3400, 4
      %v3440 = vsel %vm446, %v3424, %v3439
      %v3441 = vrot.slane %v3428, 4
      %v3442 = vsel %vm446, %v3441, %v3404
      %v3443 = vrot.slane %v3404, 4
      %v3444 = vsel %vm446, %v3428, %v3443
      %v3445 = vrot.slane %v3296, 4
      %v3446 = vsel %vm446, %v3445, %v3288
      %v3447 = vrot.slane %v3288, 4
      %v3448 = vsel %vm446, %v3296, %v3447
      %v3450 = vunpack.c.l.s4 1983009808
      %v3451 = vunpack.c.0.s8 %v3450
      %v3452 = vperm.slane %v3446, %v3451
      %v3454 = vunpack.c.l.s4 1983009808
      %v3455 = vunpack.c.0.s8 %v3454
      %v3456 = vperm.slane %v3448, %v3455
      %v3457 = vrot.slane %v3300, 4
      %v3458 = vsel %vm446, %v3457, %v3292
      %v3459 = vrot.slane %v3292, 4
      %v3460 = vsel %vm446, %v3300, %v3459
      %v3462 = vunpack.c.l.s4 1983009808
      %v3463 = vunpack.c.0.s8 %v3462
      %v3464 = vperm.slane %v3458, %v3463
      %v3466 = vunpack.c.l.s4 1983009808
      %v3467 = vunpack.c.0.s8 %v3466
      %v3468 = vperm.slane %v3460, %v3467
      %v3469 = vrot.slane %v3312, 4
      %v3470 = vsel %vm446, %v3469, %v3304
      %v3471 = vrot.slane %v3304, 4
      %v3472 = vsel %vm446, %v3312, %v3471
      %v3474 = vunpack.c.l.s4 1983009808
      %v3475 = vunpack.c.0.s8 %v3474
      %v3476 = vperm.slane %v3470, %v3475
      %v3478 = vunpack.c.l.s4 1983009808
      %v3479 = vunpack.c.0.s8 %v3478
      %v3480 = vperm.slane %v3472, %v3479
      %v3481 = vrot.slane %v3316, 4
      %v3482 = vsel %vm446, %v3481, %v3308
      %v3483 = vrot.slane %v3308, 4
      %v3484 = vsel %vm446, %v3316, %v3483
      %v3486 = vunpack.c.l.s4 1983009808
      %v3487 = vunpack.c.0.s8 %v3486
      %v3488 = vperm.slane %v3482, %v3487
      %v3490 = vunpack.c.l.s4 1983009808
      %v3491 = vunpack.c.0.s8 %v3490
      %v3492 = vperm.slane %v3484, %v3491
      %v3493 = vrot.slane %v3464, 4
      %v3494 = vsel %vm446, %v3493, %v3452
      %v3495 = vrot.slane %v3452, 4
      %v3496 = vsel %vm446, %v3464, %v3495
      %v3498 = vunpack.c.l.s4 1934713408
      %v3499 = vunpack.c.0.s8 %v3498
      %v3500 = vperm.slane %v3494, %v3499
      %v3502 = vunpack.c.l.s4 1934713408
      %v3503 = vunpack.c.0.s8 %v3502
      %v3504 = vperm.slane %v3496, %v3503
      %v3505 = vrot.slane %v3468, 4
      %v3506 = vsel %vm446, %v3505, %v3456
      %v3507 = vrot.slane %v3456, 4
      %v3508 = vsel %vm446, %v3468, %v3507
      %v3510 = vunpack.c.l.s4 1934713408
      %v3511 = vunpack.c.0.s8 %v3510
      %v3512 = vperm.slane %v3506, %v3511
      %v3514 = vunpack.c.l.s4 1934713408
      %v3515 = vunpack.c.0.s8 %v3514
      %v3516 = vperm.slane %v3508, %v3515
      %v3517 = vrot.slane %v3488, 4
      %v3518 = vsel %vm446, %v3517, %v3476
      %v3519 = vrot.slane %v3476, 4
      %v3520 = vsel %vm446, %v3488, %v3519
      %v3522 = vunpack.c.l.s4 1934713408
      %v3523 = vunpack.c.0.s8 %v3522
      %v3524 = vperm.slane %v3518, %v3523
      %v3526 = vunpack.c.l.s4 1934713408
      %v3527 = vunpack.c.0.s8 %v3526
      %v3528 = vperm.slane %v3520, %v3527
      %v3529 = vrot.slane %v3492, 4
      %v3530 = vsel %vm446, %v3529, %v3480
      %v3531 = vrot.slane %v3480, 4
      %v3532 = vsel %vm446, %v3492, %v3531
      %v3534 = vunpack.c.l.s4 1934713408
      %v3535 = vunpack.c.0.s8 %v3534
      %v3536 = vperm.slane %v3530, %v3535
      %v3538 = vunpack.c.l.s4 1934713408
      %v3539 = vunpack.c.0.s8 %v3538
      %v3540 = vperm.slane %v3532, %v3539
      %v3541 = vrot.slane %v3524, 4
      %v3542 = vsel %vm446, %v3541, %v3500
      %v3543 = vrot.slane %v3500, 4
      %v3544 = vsel %vm446, %v3524, %v3543
      %v3545 = vrot.slane %v3528, 4
      %v3546 = vsel %vm446, %v3545, %v3504
      %v3547 = vrot.slane %v3504, 4
      %v3548 = vsel %vm446, %v3528, %v3547
      %v3549 = vrot.slane %v3536, 4
      %v3550 = vsel %vm446, %v3549, %v3512
      %v3551 = vrot.slane %v3512, 4
      %v3552 = vsel %vm446, %v3536, %v3551
      %v3553 = vrot.slane %v3540, 4
      %v3554 = vsel %vm446, %v3553, %v3516
      %v3555 = vrot.slane %v3516, 4
      %v3556 = vsel %vm446, %v3540, %v3555
      %3558 = vrot.lane.b32.xlu0 %v3432, 16
      %v3559 = vpop.permute.xlu0 %3558
      %3562 = vrot.lane.b32.xlu0 %v3434, 32
      %v3563 = vpop.permute.xlu0 %3562
      %3566 = vrot.lane.b32.xlu0 %v3436, 48
      %v3567 = vpop.permute.xlu0 %3566
      %3570 = vrot.lane.b32.xlu0 %v3438, 64
      %v3571 = vpop.permute.xlu0 %3570
      %3574 = vrot.lane.b32.xlu0 %v3440, 80
      %v3575 = vpop.permute.xlu0 %3574
      %3578 = vrot.lane.b32.xlu0 %v3442, 96
      %v3579 = vpop.permute.xlu0 %3578
      %3582 = vrot.lane.b32.xlu0 %v3444, 112
      %v3583 = vpop.permute.xlu0 %3582
      %3586 = vrot.lane.b32.xlu0 %v3544, 16
      %v3587 = vpop.permute.xlu0 %3586
      %3590 = vrot.lane.b32.xlu0 %v3546, 32
      %v3591 = vpop.permute.xlu0 %3590
      %3594 = vrot.lane.b32.xlu0 %v3548, 48
      %v3595 = vpop.permute.xlu0 %3594
      %3598 = vrot.lane.b32.xlu0 %v3550, 64
      %v3599 = vpop.permute.xlu0 %3598
      %3602 = vrot.lane.b32.xlu0 %v3552, 80
      %v3603 = vpop.permute.xlu0 %3602
      %3606 = vrot.lane.b32.xlu0 %v3554, 96
      %v3607 = vpop.permute.xlu0 %3606
      %3610 = vrot.lane.b32.xlu0 %v3556, 112
      %v3611 = vpop.permute.xlu0 %3610
      %v3613 = vsel %vm726, %v3430, %v3559
      %v3614 = vsel %vm728, %v3613, %v3563
      %v3615 = vsel %vm730, %v3614, %v3567
      %v3616 = vsel %vm732, %v3615, %v3571
      %v3617 = vsel %vm734, %v3616, %v3575
      %v3618 = vsel %vm736, %v3617, %v3579
      %v3619 = vsel %vm738, %v3618, %v3583
      %v3620 = vsel %vm726, %v3542, %v3587
      %v3621 = vsel %vm728, %v3620, %v3591
      %v3622 = vsel %vm730, %v3621, %v3595
      %v3623 = vsel %vm732, %v3622, %v3599
      %v3624 = vsel %vm734, %v3623, %v3603
      %v3625 = vsel %vm736, %v3624, %v3607
      %v3626 = vsel %vm738, %v3625, %v3611
      %3627 = vst [vmem:[#allocation3 + $0x80] sm:$0xff] %v3619
      %3628 = vst [vmem:[#allocation3 + $0x88] sm:$0xff] %v3626
      %v3629 = vld [vmem:[%s1] sm:$0xf]
      %v3630 = vld [vmem:[#allocation3] sm:$0xff]
      %v3631 = vld [vmem:[#allocation3 + $0x8] sm:$0xff]
      %v3632 = vld [vmem:[#allocation3 + $0x10] sm:$0xff]
      %v3633 = vld [vmem:[#allocation3 + $0x18] sm:$0xff]
      %v3634 = vld [vmem:[#allocation3 + $0x20] sm:$0xff]
      %v3635 = vld [vmem:[#allocation3 + $0x28] sm:$0xff]
      %v3636 = vld [vmem:[#allocation3 + $0x30] sm:$0xff]
      %v3637 = vld [vmem:[#allocation3 + $0x38] sm:$0xff]
      %v3638 = vld [vmem:[#allocation3 + $0x40] sm:$0xff]
      %v3639 = vld [vmem:[#allocation3 + $0x48] sm:$0xff]
      %v3640 = vld [vmem:[#allocation3 + $0x50] sm:$0xff]
      %v3641 = vld [vmem:[#allocation3 + $0x58] sm:$0xff]
      %v3642 = vld [vmem:[#allocation3 + $0x60] sm:$0xff]
      %v3643 = vld [vmem:[#allocation3 + $0x68] sm:$0xff]
      %v3644 = vld [vmem:[#allocation3 + $0x70] sm:$0xff]
      %v3645 = vld [vmem:[#allocation3 + $0x78] sm:$0xff]
      %v3646 = vld [vmem:[#allocation3 + $0x80] sm:$0xff]
      %v3647 = vld [vmem:[#allocation3 + $0x88] sm:$0xff]
      %v3648 = vld [vmem:[%s2] sm:$0xf]
      %3650 = vset.pattern.permute.xlu0 0
      %3651 = vperm.xlu0 %3650, %v3648
      %v3652 = vpop.permute.xlu0 %3651
      %vm3654 = vcmask 588800
      %v3656 = vsel %vm3654, %v3629, 0
      %3658 = vmatpush.msra.mxu0 0.0
      %3659 = vmatpush.msra.mxu0 0.0
      %3660 = vmatpush.msra.mxu0 0.0
      %3661 = vmatpush.msra.mxu0 0.0
      %3662 = vmatpush.msra.mxu0 0.0
      %3663 = vmatpush.msra.mxu0 0.0
      %3664 = vmatpush.msra.mxu0 0.0
      %3665 = vmatpush.msra.mxu0 %v3646
      %3666 = vmatpush.msra.mxu0 %v3644
      %3667 = vmatpush.msra.mxu0 %v3642
      %3668 = vmatpush.msra.mxu0 %v3640
      %3669 = vmatpush.msra.mxu0 %v3638
      %3670 = vmatpush.msra.mxu0 %v3636
      %3671 = vmatpush.msra.mxu0 %v3634
      %3672 = vmatpush.msra.mxu0 %v3632
      %3673 = vmatpush.msra.mxu0 %v3630
      %3674 = vmatmul.f32.gmra.mxu0 %v3656
      %v3675 = vpop.f32.mrf.mxu0
      %v3676 = vadd.f32 %v3652, %v3675
      %3677 = vdwg.mxu0
      %3678 = vmatpush.msra.mxu0 0.0
      %3679 = vmatpush.msra.mxu0 0.0
      %3680 = vmatpush.msra.mxu0 0.0
      %3681 = vmatpush.msra.mxu0 0.0
      %3682 = vmatpush.msra.mxu0 0.0
      %3683 = vmatpush.msra.mxu0 0.0
      %3684 = vmatpush.msra.mxu0 0.0
      %3685 = vmatpush.msra.mxu0 %v3647
      %3686 = vmatpush.msra.mxu0 %v3645
      %3687 = vmatpush.msra.mxu0 %v3643
      %3688 = vmatpush.msra.mxu0 %v3641
      %3689 = vmatpush.msra.mxu0 %v3639
      %3690 = vmatpush.msra.mxu0 %v3637
      %3691 = vmatpush.msra.mxu0 %v3635
      %3692 = vmatpush.msra.mxu0 %v3633
      %3693 = vmatpush.msra.mxu0 %v3631
      %3694 = vmatmul.f32.gmra.mxu0 %v3656
      %v3695 = vpop.f32.mrf.mxu0
      %v3696 = vadd.f32 %v3652, %v3695
      %3697 = vdwg.mxu0
      %v3698 = vld [vmem:[%s3] sm:$0xff]
      %v3699 = vld [vmem:[%s3 + $0x8] sm:$0xff]
      %v3700 = vld [vmem:[%s3 + $0x10] sm:$0xff]
      %v3701 = vld [vmem:[%s3 + $0x18] sm:$0xff]
      %v3702 = vld [vmem:[%s3 + $0x20] sm:$0xff]
      %v3703 = vld [vmem:[%s3 + $0x28] sm:$0xff]
      %v3704 = vld [vmem:[%s3 + $0x30] sm:$0xff]
      %v3705 = vld [vmem:[%s3 + $0x38] sm:$0xff]
      %v3706 = vld [vmem:[%s3 + $0x40] sm:$0xff]
      %v3707 = vld [vmem:[%s3 + $0x48] sm:$0xff]
      %v3708 = vld [vmem:[%s3 + $0x50] sm:$0xff]
      %v3709 = vld [vmem:[%s3 + $0x58] sm:$0xff]
      %v3710 = vld [vmem:[%s3 + $0x60] sm:$0xff]
      %v3711 = vld [vmem:[%s3 + $0x68] sm:$0xff]
      %v3712 = vld [vmem:[%s3 + $0x70] sm:$0xff]
      %v3713 = vld [vmem:[%s3 + $0x78] sm:$0xff]
      %v3714 = vld [vmem:[%s3 + $0x80] sm:$0xff]
      %v3715 = vld [vmem:[%s3 + $0x88] sm:$0xff]
      %v3716 = vld [vmem:[%s3 + $0x90] sm:$0xff]
      %v3717 = vld [vmem:[%s3 + $0x98] sm:$0xff]
      %v3718 = vld [vmem:[%s3 + $0xa0] sm:$0xff]
      %v3719 = vld [vmem:[%s3 + $0xa8] sm:$0xff]
      %v3720 = vld [vmem:[%s3 + $0xb0] sm:$0xff]
      %v3721 = vld [vmem:[%s3 + $0xb8] sm:$0xff]
      %v3722 = vld [vmem:[%s3 + $0xc0] sm:$0xff]
      %v3723 = vld [vmem:[%s3 + $0xc8] sm:$0xff]
      %v3724 = vld [vmem:[%s3 + $0xd0] sm:$0xff]
      %v3725 = vld [vmem:[%s3 + $0xd8] sm:$0xff]
      %v3726 = vld [vmem:[%s3 + $0xe0] sm:$0xff]
      %v3727 = vld [vmem:[%s3 + $0xe8] sm:$0xff]
      %v3728 = vld [vmem:[%s3 + $0xf0] sm:$0xff]
      %v3729 = vld [vmem:[%s3 + $0xf8] sm:$0xff]
      %v3730 = vld [vmem:[%s3 + $0x100] sm:$0xff]
      %v3731 = vld [vmem:[%s3 + $0x108] sm:$0xff]
      %v3732 = vld [vmem:[%s3 + $0x110] sm:$0xff]
      %v3733 = vld [vmem:[%s3 + $0x118] sm:$0xff]
      %v3734 = vld [vmem:[%s3 + $0x120] sm:$0xff]
      %v3735 = vld [vmem:[%s3 + $0x128] sm:$0xff]
      %v3736 = vld [vmem:[%s3 + $0x130] sm:$0xff]
      %v3737 = vld [vmem:[%s3 + $0x138] sm:$0xff]
      %v3738 = vld [vmem:[%s3 + $0x140] sm:$0xff]
      %v3739 = vld [vmem:[%s3 + $0x148] sm:$0xff]
      %v3740 = vld [vmem:[%s3 + $0x150] sm:$0xff]
      %v3741 = vld [vmem:[%s3 + $0x158] sm:$0xff]
      %v3742 = vld [vmem:[%s3 + $0x160] sm:$0xff]
      %v3743 = vld [vmem:[%s3 + $0x168] sm:$0xff]
      %v3744 = vld [vmem:[%s3 + $0x170] sm:$0xff]
      %v3745 = vld [vmem:[%s3 + $0x178] sm:$0xff]
      %v3746 = vld [vmem:[%s3 + $0x180] sm:$0xff]
      %v3747 = vld [vmem:[%s3 + $0x188] sm:$0xff]
      %v3748 = vld [vmem:[%s3 + $0x190] sm:$0xff]
      %v3749 = vld [vmem:[%s3 + $0x198] sm:$0xff]
      %v3750 = vld [vmem:[%s3 + $0x1a0] sm:$0xff]
      %v3751 = vld [vmem:[%s3 + $0x1a8] sm:$0xff]
      %v3752 = vld [vmem:[%s3 + $0x1b0] sm:$0xff]
      %v3753 = vld [vmem:[%s3 + $0x1b8] sm:$0xff]
      %v3754 = vld [vmem:[%s3 + $0x1c0] sm:$0xff]
      %v3755 = vld [vmem:[%s3 + $0x1c8] sm:$0xff]
      %v3756 = vld [vmem:[%s3 + $0x1d0] sm:$0xff]
      %v3757 = vld [vmem:[%s3 + $0x1d8] sm:$0xff]
      %v3758 = vld [vmem:[%s3 + $0x1e0] sm:$0xff]
      %v3759 = vld [vmem:[%s3 + $0x1e8] sm:$0xff]
      %v3760 = vld [vmem:[%s3 + $0x1f0] sm:$0xff]
      %v3761 = vld [vmem:[%s3 + $0x1f8] sm:$0xff]
      %v3762 = vld [vmem:[%s3 + $0x200] sm:$0xff]
      %v3763 = vld [vmem:[%s3 + $0x208] sm:$0xff]
      %v3764 = vld [vmem:[%s3 + $0x210] sm:$0xff]
      %v3765 = vld [vmem:[%s3 + $0x218] sm:$0xff]
      %v3766 = vld [vmem:[%s3 + $0x220] sm:$0xff]
      %v3767 = vld [vmem:[%s3 + $0x228] sm:$0xff]
      %v3768 = vld [vmem:[%s3 + $0x230] sm:$0xff]
      %v3769 = vld [vmem:[%s3 + $0x238] sm:$0xff]
      %v3770 = vld [vmem:[%s3 + $0x240] sm:$0xff]
      %v3771 = vld [vmem:[%s3 + $0x248] sm:$0xff]
      %v3772 = vld [vmem:[%s3 + $0x250] sm:$0xff]
      %v3773 = vld [vmem:[%s3 + $0x258] sm:$0xff]
      %v3774 = vld [vmem:[%s3 + $0x260] sm:$0xff]
      %v3775 = vld [vmem:[%s3 + $0x268] sm:$0xff]
      %v3776 = vld [vmem:[%s3 + $0x270] sm:$0xff]
      %v3777 = vld [vmem:[%s3 + $0x278] sm:$0xff]
      %v3778 = vld [vmem:[%s3 + $0x280] sm:$0xff]
      %v3779 = vld [vmem:[%s3 + $0x288] sm:$0xff]
      %v3780 = vld [vmem:[%s3 + $0x290] sm:$0xff]
      %v3781 = vld [vmem:[%s3 + $0x298] sm:$0xff]
      %v3782 = vld [vmem:[%s3 + $0x2a0] sm:$0xff]
      %v3783 = vld [vmem:[%s3 + $0x2a8] sm:$0xff]
      %v3784 = vld [vmem:[%s3 + $0x2b0] sm:$0xff]
      %v3785 = vld [vmem:[%s3 + $0x2b8] sm:$0xff]
      %v3786 = vld [vmem:[%s3 + $0x2c0] sm:$0xff]
      %v3787 = vld [vmem:[%s3 + $0x2c8] sm:$0xff]
      %v3788 = vld [vmem:[%s3 + $0x2d0] sm:$0xff]
      %v3789 = vld [vmem:[%s3 + $0x2d8] sm:$0xff]
      %v3790 = vld [vmem:[%s3 + $0x2e0] sm:$0xff]
      %v3791 = vld [vmem:[%s3 + $0x2e8] sm:$0xff]
      %v3792 = vld [vmem:[%s3 + $0x2f0] sm:$0xff]
      %v3793 = vld [vmem:[%s3 + $0x2f8] sm:$0xff]
      %v3794 = vld [vmem:[%s3 + $0x300] sm:$0xff]
      %v3795 = vld [vmem:[%s3 + $0x308] sm:$0xff]
      %v3796 = vld [vmem:[%s3 + $0x310] sm:$0xff]
      %v3797 = vld [vmem:[%s3 + $0x318] sm:$0xff]
      %v3798 = vld [vmem:[%s3 + $0x320] sm:$0xff]
      %v3799 = vld [vmem:[%s3 + $0x328] sm:$0xff]
      %v3800 = vld [vmem:[%s3 + $0x330] sm:$0xff]
      %v3801 = vld [vmem:[%s3 + $0x338] sm:$0xff]
      %v3802 = vld [vmem:[%s3 + $0x340] sm:$0xff]
      %v3803 = vld [vmem:[%s3 + $0x348] sm:$0xff]
      %v3804 = vld [vmem:[%s3 + $0x350] sm:$0xff]
      %v3805 = vld [vmem:[%s3 + $0x358] sm:$0xff]
      %v3806 = vld [vmem:[%s3 + $0x360] sm:$0xff]
      %v3807 = vld [vmem:[%s3 + $0x368] sm:$0xff]
      %v3808 = vld [vmem:[%s3 + $0x370] sm:$0xff]
      %v3809 = vld [vmem:[%s3 + $0x378] sm:$0xff]
      %v3810 = vld [vmem:[%s3 + $0x380] sm:$0xff]
      %v3811 = vld [vmem:[%s3 + $0x388] sm:$0xff]
      %v3812 = vld [vmem:[%s3 + $0x390] sm:$0xff]
      %v3813 = vld [vmem:[%s3 + $0x398] sm:$0xff]
      %v3814 = vld [vmem:[%s3 + $0x3a0] sm:$0xff]
      %v3815 = vld [vmem:[%s3 + $0x3a8] sm:$0xff]
      %v3816 = vld [vmem:[%s3 + $0x3b0] sm:$0xff]
      %v3817 = vld [vmem:[%s3 + $0x3b8] sm:$0xff]
      %v3818 = vld [vmem:[%s3 + $0x3c0] sm:$0xff]
      %v3819 = vld [vmem:[%s3 + $0x3c8] sm:$0xff]
      %v3820 = vld [vmem:[%s3 + $0x3d0] sm:$0xff]
      %v3821 = vld [vmem:[%s3 + $0x3d8] sm:$0xff]
      %v3822 = vld [vmem:[%s3 + $0x3e0] sm:$0xff]
      %v3823 = vld [vmem:[%s3 + $0x3e8] sm:$0xff]
      %v3824 = vld [vmem:[%s3 + $0x3f0] sm:$0xff]
      %v3825 = vld [vmem:[%s3 + $0x3f8] sm:$0xff]
      %v3826 = vld [vmem:[%s3 + $0x400] sm:$0xff]
      %v3827 = vld [vmem:[%s3 + $0x408] sm:$0xff]
      %v3828 = vld [vmem:[%s3 + $0x410] sm:$0xff]
      %v3829 = vld [vmem:[%s3 + $0x418] sm:$0xff]
      %v3830 = vld [vmem:[%s3 + $0x420] sm:$0xff]
      %v3831 = vld [vmem:[%s3 + $0x428] sm:$0xff]
      %v3832 = vld [vmem:[%s3 + $0x430] sm:$0xff]
      %v3833 = vld [vmem:[%s3 + $0x438] sm:$0xff]
      %v3834 = vld [vmem:[%s3 + $0x440] sm:$0xff]
      %v3835 = vld [vmem:[%s3 + $0x448] sm:$0xff]
      %v3836 = vld [vmem:[%s3 + $0x450] sm:$0xff]
      %v3837 = vld [vmem:[%s3 + $0x458] sm:$0xff]
      %v3838 = vld [vmem:[%s3 + $0x460] sm:$0xff]
      %v3839 = vld [vmem:[%s3 + $0x468] sm:$0xff]
      %v3840 = vld [vmem:[%s3 + $0x470] sm:$0xff]
      %v3841 = vld [vmem:[%s3 + $0x478] sm:$0xff]
      %v3842 = vld [vmem:[%s3 + $0x480] sm:$0xff]
      %v3843 = vld [vmem:[%s3 + $0x488] sm:$0xff]
      %v3844 = vld [vmem:[%s3 + $0x490] sm:$0xff]
      %v3845 = vld [vmem:[%s3 + $0x498] sm:$0xff]
      %v3846 = vld [vmem:[%s3 + $0x4a0] sm:$0xff]
      %v3847 = vld [vmem:[%s3 + $0x4a8] sm:$0xff]
      %v3848 = vld [vmem:[%s3 + $0x4b0] sm:$0xff]
      %v3849 = vld [vmem:[%s3 + $0x4b8] sm:$0xff]
      %v3850 = vld [vmem:[%s3 + $0x4c0] sm:$0xff]
      %v3851 = vld [vmem:[%s3 + $0x4c8] sm:$0xff]
      %v3852 = vld [vmem:[%s3 + $0x4d0] sm:$0xff]
      %v3853 = vld [vmem:[%s3 + $0x4d8] sm:$0xff]
      %v3854 = vld [vmem:[%s3 + $0x4e0] sm:$0xff]
      %v3855 = vld [vmem:[%s3 + $0x4e8] sm:$0xff]
      %v3856 = vld [vmem:[%s3 + $0x4f0] sm:$0xff]
      %v3857 = vld [vmem:[%s3 + $0x4f8] sm:$0xff]
      %v3858 = vld [vmem:[%s3 + $0x500] sm:$0xff]
      %v3859 = vld [vmem:[%s3 + $0x508] sm:$0xff]
      %v3860 = vld [vmem:[%s3 + $0x510] sm:$0xff]
      %v3861 = vld [vmem:[%s3 + $0x518] sm:$0xff]
      %v3862 = vld [vmem:[%s3 + $0x520] sm:$0xff]
      %v3863 = vld [vmem:[%s3 + $0x528] sm:$0xff]
      %v3864 = vld [vmem:[%s3 + $0x530] sm:$0xff]
      %v3865 = vld [vmem:[%s3 + $0x538] sm:$0xff]
      %v3866 = vld [vmem:[%s3 + $0x540] sm:$0xff]
      %v3867 = vld [vmem:[%s3 + $0x548] sm:$0xff]
      %v3868 = vld [vmem:[%s3 + $0x550] sm:$0xff]
      %v3869 = vld [vmem:[%s3 + $0x558] sm:$0xff]
      %v3870 = vld [vmem:[%s3 + $0x560] sm:$0xff]
      %v3871 = vld [vmem:[%s3 + $0x568] sm:$0xff]
      %v3872 = vld [vmem:[%s3 + $0x570] sm:$0xff]
      %v3873 = vld [vmem:[%s3 + $0x578] sm:$0xff]
      %v3874 = vld [vmem:[%s3 + $0x580] sm:$0xff]
      %v3875 = vld [vmem:[%s3 + $0x588] sm:$0xff]
      %v3876 = vld [vmem:[%s3 + $0x590] sm:$0xff]
      %v3877 = vld [vmem:[%s3 + $0x598] sm:$0xff]
      %v3878 = vld [vmem:[%s3 + $0x5a0] sm:$0xff]
      %v3879 = vld [vmem:[%s3 + $0x5a8] sm:$0xff]
      %v3880 = vld [vmem:[%s3 + $0x5b0] sm:$0xff]
      %v3881 = vld [vmem:[%s3 + $0x5b8] sm:$0xff]
      %v3882 = vld [vmem:[%s3 + $0x5c0] sm:$0xff]
      %v3883 = vld [vmem:[%s3 + $0x5c8] sm:$0xff]
      %v3884 = vld [vmem:[%s3 + $0x5d0] sm:$0xff]
      %v3885 = vld [vmem:[%s3 + $0x5d8] sm:$0xff]
      %v3886 = vld [vmem:[%s3 + $0x5e0] sm:$0xff]
      %v3887 = vld [vmem:[%s3 + $0x5e8] sm:$0xff]
      %v3888 = vld [vmem:[%s3 + $0x5f0] sm:$0xff]
      %v3889 = vld [vmem:[%s3 + $0x5f8] sm:$0xff]
      %v3890 = vld [vmem:[%s3 + $0x600] sm:$0xff]
      %v3891 = vld [vmem:[%s3 + $0x608] sm:$0xff]
      %v3892 = vld [vmem:[%s3 + $0x610] sm:$0xff]
      %v3893 = vld [vmem:[%s3 + $0x618] sm:$0xff]
      %v3894 = vld [vmem:[%s3 + $0x620] sm:$0xff]
      %v3895 = vld [vmem:[%s3 + $0x628] sm:$0xff]
      %v3896 = vld [vmem:[%s3 + $0x630] sm:$0xff]
      %v3897 = vld [vmem:[%s3 + $0x638] sm:$0xff]
      %v3898 = vld [vmem:[%s3 + $0x640] sm:$0xff]
      %v3899 = vld [vmem:[%s3 + $0x648] sm:$0xff]
      %v3900 = vld [vmem:[%s3 + $0x650] sm:$0xff]
      %v3901 = vld [vmem:[%s3 + $0x658] sm:$0xff]
      %v3902 = vld [vmem:[%s3 + $0x660] sm:$0xff]
      %v3903 = vld [vmem:[%s3 + $0x668] sm:$0xff]
      %v3904 = vld [vmem:[%s3 + $0x670] sm:$0xff]
      %v3905 = vld [vmem:[%s3 + $0x678] sm:$0xff]
      %v3906 = vld [vmem:[%s3 + $0x680] sm:$0xff]
      %v3907 = vld [vmem:[%s3 + $0x688] sm:$0xff]
      %v3908 = vld [vmem:[%s3 + $0x690] sm:$0xff]
      %v3909 = vld [vmem:[%s3 + $0x698] sm:$0xff]
      %v3910 = vld [vmem:[%s3 + $0x6a0] sm:$0xff]
      %v3911 = vld [vmem:[%s3 + $0x6a8] sm:$0xff]
      %v3912 = vld [vmem:[%s3 + $0x6b0] sm:$0xff]
      %v3913 = vld [vmem:[%s3 + $0x6b8] sm:$0xff]
      %v3914 = vld [vmem:[%s3 + $0x6c0] sm:$0xff]
      %v3915 = vld [vmem:[%s3 + $0x6c8] sm:$0xff]
      %v3916 = vld [vmem:[%s3 + $0x6d0] sm:$0xff]
      %v3917 = vld [vmem:[%s3 + $0x6d8] sm:$0xff]
      %v3918 = vld [vmem:[%s3 + $0x6e0] sm:$0xff]
      %v3919 = vld [vmem:[%s3 + $0x6e8] sm:$0xff]
      %v3920 = vld [vmem:[%s3 + $0x6f0] sm:$0xff]
      %v3921 = vld [vmem:[%s3 + $0x6f8] sm:$0xff]
      %v3922 = vld [vmem:[%s3 + $0x700] sm:$0xff]
      %v3923 = vld [vmem:[%s3 + $0x708] sm:$0xff]
      %v3924 = vld [vmem:[%s3 + $0x710] sm:$0xff]
      %v3925 = vld [vmem:[%s3 + $0x718] sm:$0xff]
      %v3926 = vld [vmem:[%s3 + $0x720] sm:$0xff]
      %v3927 = vld [vmem:[%s3 + $0x728] sm:$0xff]
      %v3928 = vld [vmem:[%s3 + $0x730] sm:$0xff]
      %v3929 = vld [vmem:[%s3 + $0x738] sm:$0xff]
      %v3930 = vld [vmem:[%s3 + $0x740] sm:$0xff]
      %v3931 = vld [vmem:[%s3 + $0x748] sm:$0xff]
      %v3932 = vld [vmem:[%s3 + $0x750] sm:$0xff]
      %v3933 = vld [vmem:[%s3 + $0x758] sm:$0xff]
      %v3934 = vld [vmem:[%s3 + $0x760] sm:$0xff]
      %v3935 = vld [vmem:[%s3 + $0x768] sm:$0xff]
      %v3936 = vld [vmem:[%s3 + $0x770] sm:$0xff]
      %v3937 = vld [vmem:[%s3 + $0x778] sm:$0xff]
      %v3938 = vld [vmem:[%s3 + $0x780] sm:$0xff]
      %v3939 = vld [vmem:[%s3 + $0x788] sm:$0xff]
      %v3940 = vld [vmem:[%s3 + $0x790] sm:$0xff]
      %v3941 = vld [vmem:[%s3 + $0x798] sm:$0xff]
      %v3942 = vld [vmem:[%s3 + $0x7a0] sm:$0xff]
      %v3943 = vld [vmem:[%s3 + $0x7a8] sm:$0xff]
      %v3944 = vld [vmem:[%s3 + $0x7b0] sm:$0xff]
      %v3945 = vld [vmem:[%s3 + $0x7b8] sm:$0xff]
      %v3946 = vld [vmem:[%s3 + $0x7c0] sm:$0xff]
      %v3947 = vld [vmem:[%s3 + $0x7c8] sm:$0xff]
      %v3948 = vld [vmem:[%s3 + $0x7d0] sm:$0xff]
      %v3949 = vld [vmem:[%s3 + $0x7d8] sm:$0xff]
      %v3950 = vld [vmem:[%s3 + $0x7e0] sm:$0xff]
      %v3951 = vld [vmem:[%s3 + $0x7e8] sm:$0xff]
      %v3952 = vld [vmem:[%s3 + $0x7f0] sm:$0xff]
      %v3953 = vld [vmem:[%s3 + $0x7f8] sm:$0xff]
      %3954 = vmatpush.msra.mxu0 %v3818
      %3955 = vmatpush.msra.mxu0 %v3810
      %3956 = vmatpush.msra.mxu0 %v3802
      %3957 = vmatpush.msra.mxu0 %v3794
      %3958 = vmatpush.msra.mxu0 %v3786
      %3959 = vmatpush.msra.mxu0 %v3778
      %3960 = vmatpush.msra.mxu0 %v3770
      %3961 = vmatpush.msra.mxu0 %v3762
      %3962 = vmatpush.msra.mxu0 %v3754
      %3963 = vmatpush.msra.mxu0 %v3746
      %3964 = vmatpush.msra.mxu0 %v3738
      %3965 = vmatpush.msra.mxu0 %v3730
      %3966 = vmatpush.msra.mxu0 %v3722
      %3967 = vmatpush.msra.mxu0 %v3714
      %3968 = vmatpush.msra.mxu0 %v3706
      %3969 = vmatpush.msra.mxu0 %v3698
      %3970 = vmatmul.f32.gmra.mxu0 %v3676
      %v3971 = vpop.f32.mrf.mxu0
      %v3972 = vadd.f32 0.0, %v3971
      %3973 = vdwg.mxu0
      %3974 = vmatpush.msra.mxu0 %v3946
      %3975 = vmatpush.msra.mxu0 %v3938
      %3976 = vmatpush.msra.mxu0 %v3930
      %3977 = vmatpush.msra.mxu0 %v3922
      %3978 = vmatpush.msra.mxu0 %v3914
      %3979 = vmatpush.msra.mxu0 %v3906
      %3980 = vmatpush.msra.mxu0 %v3898
      %3981 = vmatpush.msra.mxu0 %v3890
      %3982 = vmatpush.msra.mxu0 %v3882
      %3983 = vmatpush.msra.mxu0 %v3874
      %3984 = vmatpush.msra.mxu0 %v3866
      %3985 = vmatpush.msra.mxu0 %v3858
      %3986 = vmatpush.msra.mxu0 %v3850
      %3987 = vmatpush.msra.mxu0 %v3842
      %3988 = vmatpush.msra.mxu0 %v3834
      %3989 = vmatpush.msra.mxu0 %v3826
      %3990 = vmatmul.f32.gmra.mxu0 %v3696
      %v3991 = vpop.f32.mrf.mxu0
      %v3992 = vadd.f32 %v3972, %v3991
      %3993 = vdwg.mxu0
      %3994 = vmatpush.msra.mxu0 %v3819
      %3995 = vmatpush.msra.mxu0 %v3811
      %3996 = vmatpush.msra.mxu0 %v3803
      %3997 = vmatpush.msra.mxu0 %v3795
      %3998 = vmatpush.msra.mxu0 %v3787
      %3999 = vmatpush.msra.mxu0 %v3779
      %4000 = vmatpush.msra.mxu0 %v3771
      %4001 = vmatpush.msra.mxu0 %v3763
      %4002 = vmatpush.msra.mxu0 %v3755
      %4003 = vmatpush.msra.mxu0 %v3747
      %4004 = vmatpush.msra.mxu0 %v3739
      %4005 = vmatpush.msra.mxu0 %v3731
      %4006 = vmatpush.msra.mxu0 %v3723
      %4007 = vmatpush.msra.mxu0 %v3715
      %4008 = vmatpush.msra.mxu0 %v3707
      %4009 = vmatpush.msra.mxu0 %v3699
      %4010 = vmatmul.f32.gmra.mxu0 %v3676
      %v4011 = vpop.f32.mrf.mxu0
      %v4012 = vadd.f32 0.0, %v4011
      %4013 = vdwg.mxu0
      %4014 = vmatpush.msra.mxu0 %v3947
      %4015 = vmatpush.msra.mxu0 %v3939
      %4016 = vmatpush.msra.mxu0 %v3931
      %4017 = vmatpush.msra.mxu0 %v3923
      %4018 = vmatpush.msra.mxu0 %v3915
      %4019 = vmatpush.msra.mxu0 %v3907
      %4020 = vmatpush.msra.mxu0 %v3899
      %4021 = vmatpush.msra.mxu0 %v3891
      %4022 = vmatpush.msra.mxu0 %v3883
      %4023 = vmatpush.msra.mxu0 %v3875
      %4024 = vmatpush.msra.mxu0 %v3867
      %4025 = vmatpush.msra.mxu0 %v3859
      %4026 = vmatpush.msra.mxu0 %v3851
      %4027 = vmatpush.msra.mxu0 %v3843
      %4028 = vmatpush.msra.mxu0 %v3835
      %4029 = vmatpush.msra.mxu0 %v3827
      %4030 = vmatmul.f32.gmra.mxu0 %v3696
      %v4031 = vpop.f32.mrf.mxu0
      %v4032 = vadd.f32 %v4012, %v4031
      %4033 = vdwg.mxu0
      %4034 = vmatpush.msra.mxu0 %v3820
      %4035 = vmatpush.msra.mxu0 %v3812
      %4036 = vmatpush.msra.mxu0 %v3804
      %4037 = vmatpush.msra.mxu0 %v3796
      %4038 = vmatpush.msra.mxu0 %v3788
      %4039 = vmatpush.msra.mxu0 %v3780
      %4040 = vmatpush.msra.mxu0 %v3772
      %4041 = vmatpush.msra.mxu0 %v3764
      %4042 = vmatpush.msra.mxu0 %v3756
      %4043 = vmatpush.msra.mxu0 %v3748
      %4044 = vmatpush.msra.mxu0 %v3740
      %4045 = vmatpush.msra.mxu0 %v3732
      %4046 = vmatpush.msra.mxu0 %v3724
      %4047 = vmatpush.msra.mxu0 %v3716
      %4048 = vmatpush.msra.mxu0 %v3708
      %4049 = vmatpush.msra.mxu0 %v3700
      %4050 = vmatmul.f32.gmra.mxu0 %v3676
      %v4051 = vpop.f32.mrf.mxu0
      %v4052 = vadd.f32 0.0, %v4051
      %4053 = vdwg.mxu0
      %4054 = vmatpush.msra.mxu0 %v3948
      %4055 = vmatpush.msra.mxu0 %v3940
      %4056 = vmatpush.msra.mxu0 %v3932
      %4057 = vmatpush.msra.mxu0 %v3924
      %4058 = vmatpush.msra.mxu0 %v3916
      %4059 = vmatpush.msra.mxu0 %v3908
      %4060 = vmatpush.msra.mxu0 %v3900
      %4061 = vmatpush.msra.mxu0 %v3892
      %4062 = vmatpush.msra.mxu0 %v3884
      %4063 = vmatpush.msra.mxu0 %v3876
      %4064 = vmatpush.msra.mxu0 %v3868
      %4065 = vmatpush.msra.mxu0 %v3860
      %4066 = vmatpush.msra.mxu0 %v3852
      %4067 = vmatpush.msra.mxu0 %v3844
      %4068 = vmatpush.msra.mxu0 %v3836
      %4069 = vmatpush.msra.mxu0 %v3828
      %4070 = vmatmul.f32.gmra.mxu0 %v3696
      %v4071 = vpop.f32.mrf.mxu0
      %v4072 = vadd.f32 %v4052, %v4071
      %4073 = vdwg.mxu0
      %4074 = vmatpush.msra.mxu0 %v3821
      %4075 = vmatpush.msra.mxu0 %v3813
      %4076 = vmatpush.msra.mxu0 %v3805
      %4077 = vmatpush.msra.mxu0 %v3797
      %4078 = vmatpush.msra.mxu0 %v3789
      %4079 = vmatpush.msra.mxu0 %v3781
      %4080 = vmatpush.msra.mxu0 %v3773
      %4081 = vmatpush.msra.mxu0 %v3765
      %4082 = vmatpush.msra.mxu0 %v3757
      %4083 = vmatpush.msra.mxu0 %v3749
      %4084 = vmatpush.msra.mxu0 %v3741
      %4085 = vmatpush.msra.mxu0 %v3733
      %4086 = vmatpush.msra.mxu0 %v3725
      %4087 = vmatpush.msra.mxu0 %v3717
      %4088 = vmatpush.msra.mxu0 %v3709
      %4089 = vmatpush.msra.mxu0 %v3701
      %4090 = vmatmul.f32.gmra.mxu0 %v3676
      %v4091 = vpop.f32.mrf.mxu0
      %v4092 = vadd.f32 0.0, %v4091
      %4093 = vdwg.mxu0
      %4094 = vmatpush.msra.mxu0 %v3949
      %4095 = vmatpush.msra.mxu0 %v3941
      %4096 = vmatpush.msra.mxu0 %v3933
      %4097 = vmatpush.msra.mxu0 %v3925
      %4098 = vmatpush.msra.mxu0 %v3917
      %4099 = vmatpush.msra.mxu0 %v3909
      %4100 = vmatpush.msra.mxu0 %v3901
      %4101 = vmatpush.msra.mxu0 %v3893
      %4102 = vmatpush.msra.mxu0 %v3885
      %4103 = vmatpush.msra.mxu0 %v3877
      %4104 = vmatpush.msra.mxu0 %v3869
      %4105 = vmatpush.msra.mxu0 %v3861
      %4106 = vmatpush.msra.mxu0 %v3853
      %4107 = vmatpush.msra.mxu0 %v3845
      %4108 = vmatpush.msra.mxu0 %v3837
      %4109 = vmatpush.msra.mxu0 %v3829
      %4110 = vmatmul.f32.gmra.mxu0 %v3696
      %v4111 = vpop.f32.mrf.mxu0
      %v4112 = vadd.f32 %v4092, %v4111
      %4113 = vdwg.mxu0
      %4114 = vmatpush.msra.mxu0 %v3822
      %4115 = vmatpush.msra.mxu0 %v3814
      %4116 = vmatpush.msra.mxu0 %v3806
      %4117 = vmatpush.msra.mxu0 %v3798
      %4118 = vmatpush.msra.mxu0 %v3790
      %4119 = vmatpush.msra.mxu0 %v3782
      %4120 = vmatpush.msra.mxu0 %v3774
      %4121 = vmatpush.msra.mxu0 %v3766
      %4122 = vmatpush.msra.mxu0 %v3758
      %4123 = vmatpush.msra.mxu0 %v3750
      %4124 = vmatpush.msra.mxu0 %v3742
      %4125 = vmatpush.msra.mxu0 %v3734
      %4126 = vmatpush.msra.mxu0 %v3726
      %4127 = vmatpush.msra.mxu0 %v3718
      %4128 = vmatpush.msra.mxu0 %v3710
      %4129 = vmatpush.msra.mxu0 %v3702
      %4130 = vmatmul.f32.gmra.mxu0 %v3676
      %v4131 = vpop.f32.mrf.mxu0
      %v4132 = vadd.f32 0.0, %v4131
      %4133 = vdwg.mxu0
      %4134 = vmatpush.msra.mxu0 %v3950
      %4135 = vmatpush.msra.mxu0 %v3942
      %4136 = vmatpush.msra.mxu0 %v3934
      %4137 = vmatpush.msra.mxu0 %v3926
      %4138 = vmatpush.msra.mxu0 %v3918
      %4139 = vmatpush.msra.mxu0 %v3910
      %4140 = vmatpush.msra.mxu0 %v3902
      %4141 = vmatpush.msra.mxu0 %v3894
      %4142 = vmatpush.msra.mxu0 %v3886
      %4143 = vmatpush.msra.mxu0 %v3878
      %4144 = vmatpush.msra.mxu0 %v3870
      %4145 = vmatpush.msra.mxu0 %v3862
      %4146 = vmatpush.msra.mxu0 %v3854
      %4147 = vmatpush.msra.mxu0 %v3846
      %4148 = vmatpush.msra.mxu0 %v3838
      %4149 = vmatpush.msra.mxu0 %v3830
      %4150 = vmatmul.f32.gmra.mxu0 %v3696
      %v4151 = vpop.f32.mrf.mxu0
      %v4152 = vadd.f32 %v4132, %v4151
      %4153 = vdwg.mxu0
      %4154 = vmatpush.msra.mxu0 %v3823
      %4155 = vmatpush.msra.mxu0 %v3815
      %4156 = vmatpush.msra.mxu0 %v3807
      %4157 = vmatpush.msra.mxu0 %v3799
      %4158 = vmatpush.msra.mxu0 %v3791
      %4159 = vmatpush.msra.mxu0 %v3783
      %4160 = vmatpush.msra.mxu0 %v3775
      %4161 = vmatpush.msra.mxu0 %v3767
      %4162 = vmatpush.msra.mxu0 %v3759
      %4163 = vmatpush.msra.mxu0 %v3751
      %4164 = vmatpush.msra.mxu0 %v3743
      %4165 = vmatpush.msra.mxu0 %v3735
      %4166 = vmatpush.msra.mxu0 %v3727
      %4167 = vmatpush.msra.mxu0 %v3719
      %4168 = vmatpush.msra.mxu0 %v3711
      %4169 = vmatpush.msra.mxu0 %v3703
      %4170 = vmatmul.f32.gmra.mxu0 %v3676
      %v4171 = vpop.f32.mrf.mxu0
      %v4172 = vadd.f32 0.0, %v4171
      %4173 = vdwg.mxu0
      %4174 = vmatpush.msra.mxu0 %v3951
      %4175 = vmatpush.msra.mxu0 %v3943
      %4176 = vmatpush.msra.mxu0 %v3935
      %4177 = vmatpush.msra.mxu0 %v3927
      %4178 = vmatpush.msra.mxu0 %v3919
      %4179 = vmatpush.msra.mxu0 %v3911
      %4180 = vmatpush.msra.mxu0 %v3903
      %4181 = vmatpush.msra.mxu0 %v3895
      %4182 = vmatpush.msra.mxu0 %v3887
      %4183 = vmatpush.msra.mxu0 %v3879
      %4184 = vmatpush.msra.mxu0 %v3871
      %4185 = vmatpush.msra.mxu0 %v3863
      %4186 = vmatpush.msra.mxu0 %v3855
      %4187 = vmatpush.msra.mxu0 %v3847
      %4188 = vmatpush.msra.mxu0 %v3839
      %4189 = vmatpush.msra.mxu0 %v3831
      %4190 = vmatmul.f32.gmra.mxu0 %v3696
      %v4191 = vpop.f32.mrf.mxu0
      %v4192 = vadd.f32 %v4172, %v4191
      %4193 = vdwg.mxu0
      %4194 = vmatpush.msra.mxu0 %v3824
      %4195 = vmatpush.msra.mxu0 %v3816
      %4196 = vmatpush.msra.mxu0 %v3808
      %4197 = vmatpush.msra.mxu0 %v3800
      %4198 = vmatpush.msra.mxu0 %v3792
      %4199 = vmatpush.msra.mxu0 %v3784
      %4200 = vmatpush.msra.mxu0 %v3776
      %4201 = vmatpush.msra.mxu0 %v3768
      %4202 = vmatpush.msra.mxu0 %v3760
      %4203 = vmatpush.msra.mxu0 %v3752
      %4204 = vmatpush.msra.mxu0 %v3744
      %4205 = vmatpush.msra.mxu0 %v3736
      %4206 = vmatpush.msra.mxu0 %v3728
      %4207 = vmatpush.msra.mxu0 %v3720
      %4208 = vmatpush.msra.mxu0 %v3712
      %4209 = vmatpush.msra.mxu0 %v3704
      %4210 = vmatmul.f32.gmra.mxu0 %v3676
      %v4211 = vpop.f32.mrf.mxu0
      %v4212 = vadd.f32 0.0, %v4211
      %4213 = vdwg.mxu0
      %4214 = vmatpush.msra.mxu0 %v3952
      %4215 = vmatpush.msra.mxu0 %v3944
      %4216 = vmatpush.msra.mxu0 %v3936
      %4217 = vmatpush.msra.mxu0 %v3928
      %4218 = vmatpush.msra.mxu0 %v3920
      %4219 = vmatpush.msra.mxu0 %v3912
      %4220 = vmatpush.msra.mxu0 %v3904
      %4221 = vmatpush.msra.mxu0 %v3896
      %4222 = vmatpush.msra.mxu0 %v3888
      %4223 = vmatpush.msra.mxu0 %v3880
      %4224 = vmatpush.msra.mxu0 %v3872
      %4225 = vmatpush.msra.mxu0 %v3864
      %4226 = vmatpush.msra.mxu0 %v3856
      %4227 = vmatpush.msra.mxu0 %v3848
      %4228 = vmatpush.msra.mxu0 %v3840
      %4229 = vmatpush.msra.mxu0 %v3832
      %4230 = vmatmul.f32.gmra.mxu0 %v3696
      %v4231 = vpop.f32.mrf.mxu0
      %v4232 = vadd.f32 %v4212, %v4231
      %4233 = vdwg.mxu0
      %4234 = vmatpush.msra.mxu0 %v3825
      %4235 = vmatpush.msra.mxu0 %v3817
      %4236 = vmatpush.msra.mxu0 %v3809
      %4237 = vmatpush.msra.mxu0 %v3801
      %4238 = vmatpush.msra.mxu0 %v3793
      %4239 = vmatpush.msra.mxu0 %v3785
      %4240 = vmatpush.msra.mxu0 %v3777
      %4241 = vmatpush.msra.mxu0 %v3769
      %4242 = vmatpush.msra.mxu0 %v3761
      %4243 = vmatpush.msra.mxu0 %v3753
      %4244 = vmatpush.msra.mxu0 %v3745
      %4245 = vmatpush.msra.mxu0 %v3737
      %4246 = vmatpush.msra.mxu0 %v3729
      %4247 = vmatpush.msra.mxu0 %v3721
      %4248 = vmatpush.msra.mxu0 %v3713
      %4249 = vmatpush.msra.mxu0 %v3705
      %4250 = vmatmul.f32.gmra.mxu0 %v3676
      %v4251 = vpop.f32.mrf.mxu0
      %v4252 = vadd.f32 0.0, %v4251
      %4253 = vdwg.mxu0
      %4254 = vmatpush.msra.mxu0 %v3953
      %4255 = vmatpush.msra.mxu0 %v3945
      %4256 = vmatpush.msra.mxu0 %v3937
      %4257 = vmatpush.msra.mxu0 %v3929
      %4258 = vmatpush.msra.mxu0 %v3921
      %4259 = vmatpush.msra.mxu0 %v3913
      %4260 = vmatpush.msra.mxu0 %v3905
      %4261 = vmatpush.msra.mxu0 %v3897
      %4262 = vmatpush.msra.mxu0 %v3889
      %4263 = vmatpush.msra.mxu0 %v3881
      %4264 = vmatpush.msra.mxu0 %v3873
      %4265 = vmatpush.msra.mxu0 %v3865
      %4266 = vmatpush.msra.mxu0 %v3857
      %4267 = vmatpush.msra.mxu0 %v3849
      %4268 = vmatpush.msra.mxu0 %v3841
      %4269 = vmatpush.msra.mxu0 %v3833
      %4270 = vmatmul.f32.gmra.mxu0 %v3696
      %v4271 = vpop.f32.mrf.mxu0
      %v4272 = vadd.f32 %v4252, %v4271
      %4273 = vdwg.mxu0
      %vm4274 = vcmask 277504
      %4275 = vst.msk [vmem:[#allocation4] sm:$0xff] %vm4274, 0.0
      %4276 = vst.msk [vmem:[#allocation4 + $0x8] sm:$0xff] %vm4274, 0.0
      %4277 = vst.msk [vmem:[#allocation4 + $0x10] sm:$0xff] %vm4274, 0.0
      %4278 = vst.msk [vmem:[#allocation4 + $0x18] sm:$0xff] %vm4274, 0.0
      %vm4279 = vcmask 271360
      %4280 = vst.msk [vmem:[#allocation4 + $0x20] sm:$0x3] %vm4279, 0.0
      %4281 = vst.msk [vmem:[#allocation4 + $0x28] sm:$0xff] %vm4274, 0.0
      %4282 = vst.msk [vmem:[#allocation4 + $0x30] sm:$0xff] %vm4274, 0.0
      %4283 = vst.msk [vmem:[#allocation4 + $0x38] sm:$0xff] %vm4274, 0.0
      %4284 = vst.msk [vmem:[#allocation4 + $0x40] sm:$0xff] %vm4274, 0.0
      %4285 = vst.msk [vmem:[#allocation4 + $0x48] sm:$0x3] %vm4279, 0.0
      %4286 = vst.msk [vmem:[#allocation4 + $0x50] sm:$0xff] %vm4274, 0.0
      %4287 = vst.msk [vmem:[#allocation4 + $0x58] sm:$0xff] %vm4274, 0.0
      %4288 = vst.msk [vmem:[#allocation4 + $0x60] sm:$0xff] %vm4274, 0.0
      %4289 = vst.msk [vmem:[#allocation4 + $0x68] sm:$0xff] %vm4274, 0.0
      %4290 = vst.msk [vmem:[#allocation4 + $0x70] sm:$0x3] %vm4279, 0.0
      %4291 = vst.msk [vmem:[#allocation4 + $0x78] sm:$0xff] %vm4274, 0.0
      %4292 = vst.msk [vmem:[#allocation4 + $0x80] sm:$0xff] %vm4274, 0.0
      %4293 = vst.msk [vmem:[#allocation4 + $0x88] sm:$0xff] %vm4274, 0.0
      %4294 = vst.msk [vmem:[#allocation4 + $0x90] sm:$0xff] %vm4274, 0.0
      %4295 = vst.msk [vmem:[#allocation4 + $0x98] sm:$0x3] %vm4279, 0.0
      %4297 = vrot.lane.b32.xlu0 %v3992, 96
      %v4298 = vpop.permute.xlu0 %4297
      %4300 = vrot.lane.b32.xlu0 %v3992, 64
      %v4301 = vpop.permute.xlu0 %4300
      %4303 = vrot.lane.b32.xlu0 %v3992, 32
      %v4304 = vpop.permute.xlu0 %4303
      %4307 = vrot.lane.b32.xlu0 %v4032, 96
      %v4308 = vpop.permute.xlu0 %4307
      %4310 = vrot.lane.b32.xlu0 %v4032, 64
      %v4311 = vpop.permute.xlu0 %4310
      %4313 = vrot.lane.b32.xlu0 %v4032, 32
      %v4314 = vpop.permute.xlu0 %4313
      %4317 = vrot.lane.b32.xlu0 %v4072, 96
      %v4318 = vpop.permute.xlu0 %4317
      %4320 = vrot.lane.b32.xlu0 %v4072, 64
      %v4321 = vpop.permute.xlu0 %4320
      %4323 = vrot.lane.b32.xlu0 %v4072, 32
      %v4324 = vpop.permute.xlu0 %4323
      %4327 = vrot.lane.b32.xlu0 %v4112, 96
      %v4328 = vpop.permute.xlu0 %4327
      %4330 = vrot.lane.b32.xlu0 %v4112, 64
      %v4331 = vpop.permute.xlu0 %4330
      %4333 = vrot.lane.b32.xlu0 %v4112, 32
      %v4334 = vpop.permute.xlu0 %4333
      %4337 = vrot.lane.b32.xlu0 %v4152, 96
      %v4338 = vpop.permute.xlu0 %4337
      %4340 = vrot.lane.b32.xlu0 %v4152, 64
      %v4341 = vpop.permute.xlu0 %4340
      %4343 = vrot.lane.b32.xlu0 %v4152, 32
      %v4344 = vpop.permute.xlu0 %4343
      %4347 = vrot.lane.b32.xlu0 %v4192, 96
      %v4348 = vpop.permute.xlu0 %4347
      %4350 = vrot.lane.b32.xlu0 %v4192, 64
      %v4351 = vpop.permute.xlu0 %4350
      %4353 = vrot.lane.b32.xlu0 %v4192, 32
      %v4354 = vpop.permute.xlu0 %4353
      %4357 = vrot.lane.b32.xlu0 %v4232, 96
      %v4358 = vpop.permute.xlu0 %4357
      %4360 = vrot.lane.b32.xlu0 %v4232, 64
      %v4361 = vpop.permute.xlu0 %4360
      %4363 = vrot.lane.b32.xlu0 %v4232, 32
      %v4364 = vpop.permute.xlu0 %4363
      %4367 = vrot.lane.b32.xlu0 %v4272, 96
      %v4368 = vpop.permute.xlu0 %4367
      %4370 = vrot.lane.b32.xlu0 %v4272, 64
      %v4371 = vpop.permute.xlu0 %4370
      %4373 = vrot.lane.b32.xlu0 %v4272, 32
      %v4374 = vpop.permute.xlu0 %4373
      %v4376 = vrot.slane %v4301, 4
      %v4377 = vsel %vm446, %v4376, %v3992
      %v4379 = vunpack.c.l.s4 1983009808
      %v4380 = vunpack.c.0.s8 %v4379
      %v4381 = vperm.slane %v4377, %v4380
      %v4382 = vrot.slane %v4304, 4
      %v4383 = vsel %vm446, %v4382, %v4298
      %v4385 = vunpack.c.l.s4 1983009808
      %v4386 = vunpack.c.0.s8 %v4385
      %v4387 = vperm.slane %v4383, %v4386
      %v4388 = vrot.slane %v4311, 4
      %v4389 = vsel %vm446, %v4388, %v4032
      %v4391 = vunpack.c.l.s4 1983009808
      %v4392 = vunpack.c.0.s8 %v4391
      %v4393 = vperm.slane %v4389, %v4392
      %v4394 = vrot.slane %v4314, 4
      %v4395 = vsel %vm446, %v4394, %v4308
      %v4397 = vunpack.c.l.s4 1983009808
      %v4398 = vunpack.c.0.s8 %v4397
      %v4399 = vperm.slane %v4395, %v4398
      %v4400 = vrot.slane %v4387, 4
      %v4401 = vsel %vm446, %v4400, %v4381
      %v4402 = vrot.slane %v4381, 4
      %v4403 = vsel %vm446, %v4387, %v4402
      %v4405 = vunpack.c.l.s4 1934713408
      %v4406 = vunpack.c.0.s8 %v4405
      %v4407 = vperm.slane %v4401, %v4406
      %v4409 = vunpack.c.l.s4 1934713408
      %v4410 = vunpack.c.0.s8 %v4409
      %v4411 = vperm.slane %v4403, %v4410
      %v4412 = vrot.slane %v4399, 4
      %v4413 = vsel %vm446, %v4412, %v4393
      %v4414 = vrot.slane %v4393, 4
      %v4415 = vsel %vm446, %v4399, %v4414
      %v4417 = vunpack.c.l.s4 1934713408
      %v4418 = vunpack.c.0.s8 %v4417
      %v4419 = vperm.slane %v4413, %v4418
      %v4421 = vunpack.c.l.s4 1934713408
      %v4422 = vunpack.c.0.s8 %v4421
      %v4423 = vperm.slane %v4415, %v4422
      %v4424 = vrot.slane %v4419, 4
      %v4425 = vsel %vm446, %v4424, %v4407
      %v4426 = vrot.slane %v4407, 4
      %v4427 = vsel %vm446, %v4419, %v4426
      %v4428 = vrot.slane %v4423, 4
      %v4429 = vsel %vm446, %v4428, %v4411
      %v4430 = vrot.slane %v4411, 4
      %v4431 = vsel %vm446, %v4423, %v4430
      %v4432 = vrot.slane %v4321, 4
      %v4433 = vsel %vm446, %v4432, %v4072
      %v4435 = vunpack.c.l.s4 1983009808
      %v4436 = vunpack.c.0.s8 %v4435
      %v4437 = vperm.slane %v4433, %v4436
      %v4438 = vrot.slane %v4324, 4
      %v4439 = vsel %vm446, %v4438, %v4318
      %v4441 = vunpack.c.l.s4 1983009808
      %v4442 = vunpack.c.0.s8 %v4441
      %v4443 = vperm.slane %v4439, %v4442
      %v4444 = vrot.slane %v4331, 4
      %v4445 = vsel %vm446, %v4444, %v4112
      %v4447 = vunpack.c.l.s4 1983009808
      %v4448 = vunpack.c.0.s8 %v4447
      %v4449 = vperm.slane %v4445, %v4448
      %v4450 = vrot.slane %v4334, 4
      %v4451 = vsel %vm446, %v4450, %v4328
      %v4453 = vunpack.c.l.s4 1983009808
      %v4454 = vunpack.c.0.s8 %v4453
      %v4455 = vperm.slane %v4451, %v4454
      %v4456 = vrot.slane %v4443, 4
      %v4457 = vsel %vm446, %v4456, %v4437
      %v4458 = vrot.slane %v4437, 4
      %v4459 = vsel %vm446, %v4443, %v4458
      %v4461 = vunpack.c.l.s4 1934713408
      %v4462 = vunpack.c.0.s8 %v4461
      %v4463 = vperm.slane %v4457, %v4462
      %v4465 = vunpack.c.l.s4 1934713408
      %v4466 = vunpack.c.0.s8 %v4465
      %v4467 = vperm.slane %v4459, %v4466
      %v4468 = vrot.slane %v4455, 4
      %v4469 = vsel %vm446, %v4468, %v4449
      %v4470 = vrot.slane %v4449, 4
      %v4471 = vsel %vm446, %v4455, %v4470
      %v4473 = vunpack.c.l.s4 1934713408
      %v4474 = vunpack.c.0.s8 %v4473
      %v4475 = vperm.slane %v4469, %v4474
      %v4477 = vunpack.c.l.s4 1934713408
      %v4478 = vunpack.c.0.s8 %v4477
      %v4479 = vperm.slane %v4471, %v4478
      %v4480 = vrot.slane %v4475, 4
      %v4481 = vsel %vm446, %v4480, %v4463
      %v4482 = vrot.slane %v4463, 4
      %v4483 = vsel %vm446, %v4475, %v4482
      %v4484 = vrot.slane %v4479, 4
      %v4485 = vsel %vm446, %v4484, %v4467
      %v4486 = vrot.slane %v4467, 4
      %v4487 = vsel %vm446, %v4479, %v4486
      %v4488 = vrot.slane %v4341, 4
      %v4489 = vsel %vm446, %v4488, %v4152
      %v4491 = vunpack.c.l.s4 1983009808
      %v4492 = vunpack.c.0.s8 %v4491
      %v4493 = vperm.slane %v4489, %v4492
      %v4494 = vrot.slane %v4344, 4
      %v4495 = vsel %vm446, %v4494, %v4338
      %v4497 = vunpack.c.l.s4 1983009808
      %v4498 = vunpack.c.0.s8 %v4497
      %v4499 = vperm.slane %v4495, %v4498
      %v4500 = vrot.slane %v4351, 4
      %v4501 = vsel %vm446, %v4500, %v4192
      %v4503 = vunpack.c.l.s4 1983009808
      %v4504 = vunpack.c.0.s8 %v4503
      %v4505 = vperm.slane %v4501, %v4504
      %v4506 = vrot.slane %v4354, 4
      %v4507 = vsel %vm446, %v4506, %v4348
      %v4509 = vunpack.c.l.s4 1983009808
      %v4510 = vunpack.c.0.s8 %v4509
      %v4511 = vperm.slane %v4507, %v4510
      %v4512 = vrot.slane %v4499, 4
      %v4513 = vsel %vm446, %v4512, %v4493
      %v4514 = vrot.slane %v4493, 4
      %v4515 = vsel %vm446, %v4499, %v4514
      %v4517 = vunpack.c.l.s4 1934713408
      %v4518 = vunpack.c.0.s8 %v4517
      %v4519 = vperm.slane %v4513, %v4518
      %v4521 = vunpack.c.l.s4 1934713408
      %v4522 = vunpack.c.0.s8 %v4521
      %v4523 = vperm.slane %v4515, %v4522
      %v4524 = vrot.slane %v4511, 4
      %v4525 = vsel %vm446, %v4524, %v4505
      %v4526 = vrot.slane %v4505, 4
      %v4527 = vsel %vm446, %v4511, %v4526
      %v4529 = vunpack.c.l.s4 1934713408
      %v4530 = vunpack.c.0.s8 %v4529
      %v4531 = vperm.slane %v4525, %v4530
      %v4533 = vunpack.c.l.s4 1934713408
      %v4534 = vunpack.c.0.s8 %v4533
      %v4535 = vperm.slane %v4527, %v4534
      %v4536 = vrot.slane %v4531, 4
      %v4537 = vsel %vm446, %v4536, %v4519
      %v4538 = vrot.slane %v4519, 4
      %v4539 = vsel %vm446, %v4531, %v4538
      %v4540 = vrot.slane %v4535, 4
      %v4541 = vsel %vm446, %v4540, %v4523
      %v4542 = vrot.slane %v4523, 4
      %v4543 = vsel %vm446, %v4535, %v4542
      %v4544 = vrot.slane %v4361, 4
      %v4545 = vsel %vm446, %v4544, %v4232
      %v4547 = vunpack.c.l.s4 1983009808
      %v4548 = vunpack.c.0.s8 %v4547
      %v4549 = vperm.slane %v4545, %v4548
      %v4550 = vrot.slane %v4364, 4
      %v4551 = vsel %vm446, %v4550, %v4358
      %v4553 = vunpack.c.l.s4 1983009808
      %v4554 = vunpack.c.0.s8 %v4553
      %v4555 = vperm.slane %v4551, %v4554
      %v4556 = vrot.slane %v4371, 4
      %v4557 = vsel %vm446, %v4556, %v4272
      %v4559 = vunpack.c.l.s4 1983009808
      %v4560 = vunpack.c.0.s8 %v4559
      %v4561 = vperm.slane %v4557, %v4560
      %v4562 = vrot.slane %v4374, 4
      %v4563 = vsel %vm446, %v4562, %v4368
      %v4565 = vunpack.c.l.s4 1983009808
      %v4566 = vunpack.c.0.s8 %v4565
      %v4567 = vperm.slane %v4563, %v4566
      %v4568 = vrot.slane %v4555, 4
      %v4569 = vsel %vm446, %v4568, %v4549
      %v4570 = vrot.slane %v4549, 4
      %v4571 = vsel %vm446, %v4555, %v4570
      %v4573 = vunpack.c.l.s4 1934713408
      %v4574 = vunpack.c.0.s8 %v4573
      %v4575 = vperm.slane %v4569, %v4574
      %v4577 = vunpack.c.l.s4 1934713408
      %v4578 = vunpack.c.0.s8 %v4577
      %v4579 = vperm.slane %v4571, %v4578
      %v4580 = vrot.slane %v4567, 4
      %v4581 = vsel %vm446, %v4580, %v4561
      %v4582 = vrot.slane %v4561, 4
      %v4583 = vsel %vm446, %v4567, %v4582
      %v4585 = vunpack.c.l.s4 1934713408
      %v4586 = vunpack.c.0.s8 %v4585
      %v4587 = vperm.slane %v4581, %v4586
      %v4589 = vunpack.c.l.s4 1934713408
      %v4590 = vunpack.c.0.s8 %v4589
      %v4591 = vperm.slane %v4583, %v4590
      %v4592 = vrot.slane %v4587, 4
      %v4593 = vsel %vm446, %v4592, %v4575
      %v4594 = vrot.slane %v4575, 4
      %v4595 = vsel %vm446, %v4587, %v4594
      %v4596 = vrot.slane %v4591, 4
      %v4597 = vsel %vm446, %v4596, %v4579
      %v4598 = vrot.slane %v4579, 4
      %v4599 = vsel %vm446, %v4591, %v4598
      %4616 = vrot.lane.b32.xlu0 %v4425, 1
      %v4617 = vpop.permute.xlu0 %4616
      %4618 = vrot.lane.b32.xlu0 %v4481, 1
      %v4619 = vpop.permute.xlu0 %4618
      %4620 = vrot.lane.b32.xlu0 %v4537, 1
      %v4621 = vpop.permute.xlu0 %4620
      %4622 = vrot.lane.b32.xlu0 %v4593, 1
      %v4623 = vpop.permute.xlu0 %4622
      %4624 = vrot.lane.b32.xlu0 %v4427, 1
      %v4625 = vpop.permute.xlu0 %4624
      %4626 = vrot.lane.b32.xlu0 %v4483, 1
      %v4627 = vpop.permute.xlu0 %4626
      %4628 = vrot.lane.b32.xlu0 %v4539, 1
      %v4629 = vpop.permute.xlu0 %4628
      %4630 = vrot.lane.b32.xlu0 %v4595, 1
      %v4631 = vpop.permute.xlu0 %4630
      %4632 = vrot.lane.b32.xlu0 %v4429, 1
      %v4633 = vpop.permute.xlu0 %4632
      %4634 = vrot.lane.b32.xlu0 %v4485, 1
      %v4635 = vpop.permute.xlu0 %4634
      %4636 = vrot.lane.b32.xlu0 %v4541, 1
      %v4637 = vpop.permute.xlu0 %4636
      %4638 = vrot.lane.b32.xlu0 %v4597, 1
      %v4639 = vpop.permute.xlu0 %4638
      %4640 = vrot.lane.b32.xlu0 %v4431, 1
      %v4641 = vpop.permute.xlu0 %4640
      %4642 = vrot.lane.b32.xlu0 %v4487, 1
      %v4643 = vpop.permute.xlu0 %4642
      %4644 = vrot.lane.b32.xlu0 %v4543, 1
      %v4645 = vpop.permute.xlu0 %4644
      %4646 = vrot.lane.b32.xlu0 %v4599, 1
      %v4647 = vpop.permute.xlu0 %4646
      %vm4664 = vcmask 269320
      %4665 = vst.msk [vmem:[#allocation4 + $0x1] sm:$0xff] %vm4664, %v4617
      %4666 = vst.msk [vmem:[#allocation4 + $0x9] sm:$0xff] %vm4664, %v4619
      %4667 = vst.msk [vmem:[#allocation4 + $0x11] sm:$0xff] %vm4664, %v4621
      %4668 = vst.msk [vmem:[#allocation4 + $0x19] sm:$0xff] %vm4664, %v4623
      %4669 = vst.msk [vmem:[#allocation4 + $0x29] sm:$0xff] %vm4664, %v4625
      %4670 = vst.msk [vmem:[#allocation4 + $0x31] sm:$0xff] %vm4664, %v4627
      %4671 = vst.msk [vmem:[#allocation4 + $0x39] sm:$0xff] %vm4664, %v4629
      %4672 = vst.msk [vmem:[#allocation4 + $0x41] sm:$0xff] %vm4664, %v4631
      %4673 = vst.msk [vmem:[#allocation4 + $0x51] sm:$0xff] %vm4664, %v4633
      %4674 = vst.msk [vmem:[#allocation4 + $0x59] sm:$0xff] %vm4664, %v4635
      %4675 = vst.msk [vmem:[#allocation4 + $0x61] sm:$0xff] %vm4664, %v4637
      %4676 = vst.msk [vmem:[#allocation4 + $0x69] sm:$0xff] %vm4664, %v4639
      %4677 = vst.msk [vmem:[#allocation4 + $0x79] sm:$0xff] %vm4664, %v4641
      %4678 = vst.msk [vmem:[#allocation4 + $0x81] sm:$0xff] %vm4664, %v4643
      %4679 = vst.msk [vmem:[#allocation4 + $0x89] sm:$0xff] %vm4664, %v4645
      %4680 = vst.msk [vmem:[#allocation4 + $0x91] sm:$0xff] %vm4664, %v4647
      %v4681 = vld [vmem:[#allocation4] sm:$0xff]
      %v4682 = vld [vmem:[#allocation4 + $0x8] sm:$0xff]
      %v4683 = vld [vmem:[#allocation4 + $0x10] sm:$0xff]
      %v4684 = vld [vmem:[#allocation4 + $0x18] sm:$0xff]
      %v4685 = vld [vmem:[#allocation4 + $0x28] sm:$0xff]
      %v4686 = vld [vmem:[#allocation4 + $0x30] sm:$0xff]
      %v4687 = vld [vmem:[#allocation4 + $0x38] sm:$0xff]
      %v4688 = vld [vmem:[#allocation4 + $0x40] sm:$0xff]
      %v4689 = vld [vmem:[#allocation4 + $0x50] sm:$0xff]
      %v4690 = vld [vmem:[#allocation4 + $0x58] sm:$0xff]
      %v4691 = vld [vmem:[#allocation4 + $0x60] sm:$0xff]
      %v4692 = vld [vmem:[#allocation4 + $0x68] sm:$0xff]
      %v4693 = vld [vmem:[#allocation4 + $0x78] sm:$0xff]
      %v4694 = vld [vmem:[#allocation4 + $0x80] sm:$0xff]
      %v4695 = vld [vmem:[#allocation4 + $0x88] sm:$0xff]
      %v4696 = vld [vmem:[#allocation4 + $0x90] sm:$0xff]
      %v4697 = vrot.slane %v4689, 4
      %v4698 = vsel %vm446, %v4697, %v4681
      %v4699 = vrot.slane %v4681, 4
      %v4700 = vsel %vm446, %v4689, %v4699
      %v4702 = vunpack.c.l.s4 1983009808
      %v4703 = vunpack.c.0.s8 %v4702
      %v4704 = vperm.slane %v4698, %v4703
      %v4706 = vunpack.c.l.s4 1983009808
      %v4707 = vunpack.c.0.s8 %v4706
      %v4708 = vperm.slane %v4700, %v4707
      %v4709 = vrot.slane %v4693, 4
      %v4710 = vsel %vm446, %v4709, %v4685
      %v4711 = vrot.slane %v4685, 4
      %v4712 = vsel %vm446, %v4693, %v4711
      %v4714 = vunpack.c.l.s4 1983009808
      %v4715 = vunpack.c.0.s8 %v4714
      %v4716 = vperm.slane %v4710, %v4715
      %v4718 = vunpack.c.l.s4 1983009808
      %v4719 = vunpack.c.0.s8 %v4718
      %v4720 = vperm.slane %v4712, %v4719
      %v4721 = vrot.slane %v4716, 4
      %v4722 = vsel %vm446, %v4721, %v4704
      %v4723 = vrot.slane %v4704, 4
      %v4724 = vsel %vm446, %v4716, %v4723
      %v4726 = vunpack.c.l.s4 1934713408
      %v4727 = vunpack.c.0.s8 %v4726
      %v4728 = vperm.slane %v4722, %v4727
      %v4730 = vunpack.c.l.s4 1934713408
      %v4731 = vunpack.c.0.s8 %v4730
      %v4732 = vperm.slane %v4724, %v4731
      %v4733 = vrot.slane %v4720, 4
      %v4734 = vsel %vm446, %v4733, %v4708
      %v4735 = vrot.slane %v4708, 4
      %v4736 = vsel %vm446, %v4720, %v4735
      %v4738 = vunpack.c.l.s4 1934713408
      %v4739 = vunpack.c.0.s8 %v4738
      %v4740 = vperm.slane %v4734, %v4739
      %v4742 = vunpack.c.l.s4 1934713408
      %v4743 = vunpack.c.0.s8 %v4742
      %v4744 = vperm.slane %v4736, %v4743
      %v4745 = vrot.slane %v4728, 4
      %v4746 = vsel %vm446, 0.0, %v4745
      %v4747 = vrot.slane %v4732, 4
      %v4748 = vsel %vm446, 0.0, %v4747
      %v4749 = vrot.slane %v4740, 4
      %v4750 = vsel %vm446, 0.0, %v4749
      %v4751 = vrot.slane %v4744, 4
      %v4752 = vsel %vm446, 0.0, %v4751
      %v4753 = vrot.slane %v4690, 4
      %v4754 = vsel %vm446, %v4753, %v4682
      %v4755 = vrot.slane %v4682, 4
      %v4756 = vsel %vm446, %v4690, %v4755
      %v4758 = vunpack.c.l.s4 1983009808
      %v4759 = vunpack.c.0.s8 %v4758
      %v4760 = vperm.slane %v4754, %v4759
      %v4762 = vunpack.c.l.s4 1983009808
      %v4763 = vunpack.c.0.s8 %v4762
      %v4764 = vperm.slane %v4756, %v4763
      %v4765 = vrot.slane %v4694, 4
      %v4766 = vsel %vm446, %v4765, %v4686
      %v4767 = vrot.slane %v4686, 4
      %v4768 = vsel %vm446, %v4694, %v4767
      %v4770 = vunpack.c.l.s4 1983009808
      %v4771 = vunpack.c.0.s8 %v4770
      %v4772 = vperm.slane %v4766, %v4771
      %v4774 = vunpack.c.l.s4 1983009808
      %v4775 = vunpack.c.0.s8 %v4774
      %v4776 = vperm.slane %v4768, %v4775
      %v4777 = vrot.slane %v4772, 4
      %v4778 = vsel %vm446, %v4777, %v4760
      %v4779 = vrot.slane %v4760, 4
      %v4780 = vsel %vm446, %v4772, %v4779
      %v4782 = vunpack.c.l.s4 1934713408
      %v4783 = vunpack.c.0.s8 %v4782
      %v4784 = vperm.slane %v4778, %v4783
      %v4786 = vunpack.c.l.s4 1934713408
      %v4787 = vunpack.c.0.s8 %v4786
      %v4788 = vperm.slane %v4780, %v4787
      %v4789 = vrot.slane %v4776, 4
      %v4790 = vsel %vm446, %v4789, %v4764
      %v4791 = vrot.slane %v4764, 4
      %v4792 = vsel %vm446, %v4776, %v4791
      %v4794 = vunpack.c.l.s4 1934713408
      %v4795 = vunpack.c.0.s8 %v4794
      %v4796 = vperm.slane %v4790, %v4795
      %v4798 = vunpack.c.l.s4 1934713408
      %v4799 = vunpack.c.0.s8 %v4798
      %v4800 = vperm.slane %v4792, %v4799
      %v4801 = vrot.slane %v4784, 4
      %v4802 = vsel %vm446, 0.0, %v4801
      %v4803 = vrot.slane %v4788, 4
      %v4804 = vsel %vm446, 0.0, %v4803
      %v4805 = vrot.slane %v4796, 4
      %v4806 = vsel %vm446, 0.0, %v4805
      %v4807 = vrot.slane %v4800, 4
      %v4808 = vsel %vm446, 0.0, %v4807
      %v4809 = vrot.slane %v4691, 4
      %v4810 = vsel %vm446, %v4809, %v4683
      %v4811 = vrot.slane %v4683, 4
      %v4812 = vsel %vm446, %v4691, %v4811
      %v4814 = vunpack.c.l.s4 1983009808
      %v4815 = vunpack.c.0.s8 %v4814
      %v4816 = vperm.slane %v4810, %v4815
      %v4818 = vunpack.c.l.s4 1983009808
      %v4819 = vunpack.c.0.s8 %v4818
      %v4820 = vperm.slane %v4812, %v4819
      %v4821 = vrot.slane %v4695, 4
      %v4822 = vsel %vm446, %v4821, %v4687
      %v4823 = vrot.slane %v4687, 4
      %v4824 = vsel %vm446, %v4695, %v4823
      %v4826 = vunpack.c.l.s4 1983009808
      %v4827 = vunpack.c.0.s8 %v4826
      %v4828 = vperm.slane %v4822, %v4827
      %v4830 = vunpack.c.l.s4 1983009808
      %v4831 = vunpack.c.0.s8 %v4830
      %v4832 = vperm.slane %v4824, %v4831
      %v4833 = vrot.slane %v4828, 4
      %v4834 = vsel %vm446, %v4833, %v4816
      %v4835 = vrot.slane %v4816, 4
      %v4836 = vsel %vm446, %v4828, %v4835
      %v4838 = vunpack.c.l.s4 1934713408
      %v4839 = vunpack.c.0.s8 %v4838
      %v4840 = vperm.slane %v4834, %v4839
      %v4842 = vunpack.c.l.s4 1934713408
      %v4843 = vunpack.c.0.s8 %v4842
      %v4844 = vperm.slane %v4836, %v4843
      %v4845 = vrot.slane %v4832, 4
      %v4846 = vsel %vm446, %v4845, %v4820
      %v4847 = vrot.slane %v4820, 4
      %v4848 = vsel %vm446, %v4832, %v4847
      %v4850 = vunpack.c.l.s4 1934713408
      %v4851 = vunpack.c.0.s8 %v4850
      %v4852 = vperm.slane %v4846, %v4851
      %v4854 = vunpack.c.l.s4 1934713408
      %v4855 = vunpack.c.0.s8 %v4854
      %v4856 = vperm.slane %v4848, %v4855
      %v4857 = vrot.slane %v4840, 4
      %v4858 = vsel %vm446, 0.0, %v4857
      %v4859 = vrot.slane %v4844, 4
      %v4860 = vsel %vm446, 0.0, %v4859
      %v4861 = vrot.slane %v4852, 4
      %v4862 = vsel %vm446, 0.0, %v4861
      %v4863 = vrot.slane %v4856, 4
      %v4864 = vsel %vm446, 0.0, %v4863
      %v4865 = vrot.slane %v4692, 4
      %v4866 = vsel %vm446, %v4865, %v4684
      %v4867 = vrot.slane %v4684, 4
      %v4868 = vsel %vm446, %v4692, %v4867
      %v4870 = vunpack.c.l.s4 1983009808
      %v4871 = vunpack.c.0.s8 %v4870
      %v4872 = vperm.slane %v4866, %v4871
      %v4874 = vunpack.c.l.s4 1983009808
      %v4875 = vunpack.c.0.s8 %v4874
      %v4876 = vperm.slane %v4868, %v4875
      %v4877 = vrot.slane %v4696, 4
      %v4878 = vsel %vm446, %v4877, %v4688
      %v4879 = vrot.slane %v4688, 4
      %v4880 = vsel %vm446, %v4696, %v4879
      %v4882 = vunpack.c.l.s4 1983009808
      %v4883 = vunpack.c.0.s8 %v4882
      %v4884 = vperm.slane %v4878, %v4883
      %v4886 = vunpack.c.l.s4 1983009808
      %v4887 = vunpack.c.0.s8 %v4886
      %v4888 = vperm.slane %v4880, %v4887
      %v4889 = vrot.slane %v4884, 4
      %v4890 = vsel %vm446, %v4889, %v4872
      %v4891 = vrot.slane %v4872, 4
      %v4892 = vsel %vm446, %v4884, %v4891
      %v4894 = vunpack.c.l.s4 1934713408
      %v4895 = vunpack.c.0.s8 %v4894
      %v4896 = vperm.slane %v4890, %v4895
      %v4898 = vunpack.c.l.s4 1934713408
      %v4899 = vunpack.c.0.s8 %v4898
      %v4900 = vperm.slane %v4892, %v4899
      %v4901 = vrot.slane %v4888, 4
      %v4902 = vsel %vm446, %v4901, %v4876
      %v4903 = vrot.slane %v4876, 4
      %v4904 = vsel %vm446, %v4888, %v4903
      %v4906 = vunpack.c.l.s4 1934713408
      %v4907 = vunpack.c.0.s8 %v4906
      %v4908 = vperm.slane %v4902, %v4907
      %v4910 = vunpack.c.l.s4 1934713408
      %v4911 = vunpack.c.0.s8 %v4910
      %v4912 = vperm.slane %v4904, %v4911
      %v4913 = vrot.slane %v4896, 4
      %v4914 = vsel %vm446, 0.0, %v4913
      %v4915 = vrot.slane %v4900, 4
      %v4916 = vsel %vm446, 0.0, %v4915
      %v4917 = vrot.slane %v4908, 4
      %v4918 = vsel %vm446, 0.0, %v4917
      %v4919 = vrot.slane %v4912, 4
      %v4920 = vsel %vm446, 0.0, %v4919
      %4922 = vrot.lane.b32.xlu0 %v4746, 32
      %v4923 = vpop.permute.xlu0 %4922
      %4926 = vrot.lane.b32.xlu0 %v4732, 64
      %v4927 = vpop.permute.xlu0 %4926
      %4930 = vrot.lane.b32.xlu0 %v4748, 96
      %v4931 = vpop.permute.xlu0 %4930
      %4934 = vrot.lane.b32.xlu0 %v4750, 32
      %v4935 = vpop.permute.xlu0 %4934
      %4938 = vrot.lane.b32.xlu0 %v4744, 64
      %v4939 = vpop.permute.xlu0 %4938
      %4942 = vrot.lane.b32.xlu0 %v4752, 96
      %v4943 = vpop.permute.xlu0 %4942
      %4946 = vrot.lane.b32.xlu0 %v4802, 32
      %v4947 = vpop.permute.xlu0 %4946
      %4950 = vrot.lane.b32.xlu0 %v4788, 64
      %v4951 = vpop.permute.xlu0 %4950
      %4954 = vrot.lane.b32.xlu0 %v4804, 96
      %v4955 = vpop.permute.xlu0 %4954
      %4958 = vrot.lane.b32.xlu0 %v4806, 32
      %v4959 = vpop.permute.xlu0 %4958
      %4962 = vrot.lane.b32.xlu0 %v4800, 64
      %v4963 = vpop.permute.xlu0 %4962
      %4966 = vrot.lane.b32.xlu0 %v4808, 96
      %v4967 = vpop.permute.xlu0 %4966
      %4970 = vrot.lane.b32.xlu0 %v4858, 32
      %v4971 = vpop.permute.xlu0 %4970
      %4974 = vrot.lane.b32.xlu0 %v4844, 64
      %v4975 = vpop.permute.xlu0 %4974
      %4978 = vrot.lane.b32.xlu0 %v4860, 96
      %v4979 = vpop.permute.xlu0 %4978
      %4982 = vrot.lane.b32.xlu0 %v4862, 32
      %v4983 = vpop.permute.xlu0 %4982
      %4986 = vrot.lane.b32.xlu0 %v4856, 64
      %v4987 = vpop.permute.xlu0 %4986
      %4990 = vrot.lane.b32.xlu0 %v4864, 96
      %v4991 = vpop.permute.xlu0 %4990
      %4994 = vrot.lane.b32.xlu0 %v4914, 32
      %v4995 = vpop.permute.xlu0 %4994
      %4998 = vrot.lane.b32.xlu0 %v4900, 64
      %v4999 = vpop.permute.xlu0 %4998
      %5002 = vrot.lane.b32.xlu0 %v4916, 96
      %v5003 = vpop.permute.xlu0 %5002
      %5006 = vrot.lane.b32.xlu0 %v4918, 32
      %v5007 = vpop.permute.xlu0 %5006
      %5010 = vrot.lane.b32.xlu0 %v4912, 64
      %v5011 = vpop.permute.xlu0 %5010
      %5014 = vrot.lane.b32.xlu0 %v4920, 96
      %v5015 = vpop.permute.xlu0 %5014
      %v5017 = vsel %vm728, %v4728, %v4923
      %v5018 = vsel %vm732, %v5017, %v4927
      %v5019 = vsel %vm736, %v5018, %v4931
      %v5020 = vsel %vm728, %v4740, %v4935
      %v5021 = vsel %vm732, %v5020, %v4939
      %v5022 = vsel %vm736, %v5021, %v4943
      %v5023 = vsel %vm728, %v4784, %v4947
      %v5024 = vsel %vm732, %v5023, %v4951
      %v5025 = vsel %vm736, %v5024, %v4955
      %v5026 = vsel %vm728, %v4796, %v4959
      %v5027 = vsel %vm732, %v5026, %v4963
      %v5028 = vsel %vm736, %v5027, %v4967
      %v5029 = vsel %vm728, %v4840, %v4971
      %v5030 = vsel %vm732, %v5029, %v4975
      %v5031 = vsel %vm736, %v5030, %v4979
      %v5032 = vsel %vm728, %v4852, %v4983
      %v5033 = vsel %vm732, %v5032, %v4987
      %v5034 = vsel %vm736, %v5033, %v4991
      %v5035 = vsel %vm728, %v4896, %v4995
      %v5036 = vsel %vm732, %v5035, %v4999
      %v5037 = vsel %vm736, %v5036, %v5003
      %v5038 = vsel %vm728, %v4908, %v5007
      %v5039 = vsel %vm732, %v5038, %v5011
      %v5040 = vsel %vm736, %v5039, %v5015
      %5041 = vst [vmem:[#allocation5] sm:$0xf] %v5019
      %5042 = vst [vmem:[#allocation5 + $0x8] sm:$0xf] %v5022
      %5043 = vst [vmem:[#allocation5 + $0x10] sm:$0xf] %v5025
      %5044 = vst [vmem:[#allocation5 + $0x18] sm:$0xf] %v5028
      %5045 = vst [vmem:[#allocation5 + $0x20] sm:$0xf] %v5031
      %5046 = vst [vmem:[#allocation5 + $0x28] sm:$0xf] %v5034
      %5047 = vst [vmem:[#allocation5 + $0x30] sm:$0xf] %v5037
      %5048 = vst [vmem:[#allocation5 + $0x38] sm:$0xf] %v5040
      %v5049 = vld [vmem:[#allocation4] sm:$0xff]
      %v5050 = vld [vmem:[#allocation4 + $0x8] sm:$0xff]
      %v5051 = vld [vmem:[#allocation4 + $0x10] sm:$0xff]
      %v5052 = vld [vmem:[#allocation4 + $0x18] sm:$0xff]
      %v5053 = vld [vmem:[#allocation4 + $0x28] sm:$0xff]
      %v5054 = vld [vmem:[#allocation4 + $0x30] sm:$0xff]
      %v5055 = vld [vmem:[#allocation4 + $0x38] sm:$0xff]
      %v5056 = vld [vmem:[#allocation4 + $0x40] sm:$0xff]
      %v5057 = vld [vmem:[#allocation4 + $0x50] sm:$0xff]
      %v5058 = vld [vmem:[#allocation4 + $0x58] sm:$0xff]
      %v5059 = vld [vmem:[#allocation4 + $0x60] sm:$0xff]
      %v5060 = vld [vmem:[#allocation4 + $0x68] sm:$0xff]
      %v5061 = vld [vmem:[#allocation4 + $0x78] sm:$0xff]
      %v5062 = vld [vmem:[#allocation4 + $0x80] sm:$0xff]
      %v5063 = vld [vmem:[#allocation4 + $0x88] sm:$0xff]
      %v5064 = vld [vmem:[#allocation4 + $0x90] sm:$0xff]
      %5081 = vrot.lane.b32.xlu0 %v5049, 127
      %v5082 = vpop.permute.xlu0 %5081
      %5083 = vrot.lane.b32.xlu0 %v5050, 127
      %v5084 = vpop.permute.xlu0 %5083
      %5085 = vrot.lane.b32.xlu0 %v5051, 127
      %v5086 = vpop.permute.xlu0 %5085
      %5087 = vrot.lane.b32.xlu0 %v5052, 127
      %v5088 = vpop.permute.xlu0 %5087
      %5089 = vrot.lane.b32.xlu0 %v5053, 127
      %v5090 = vpop.permute.xlu0 %5089
      %5091 = vrot.lane.b32.xlu0 %v5054, 127
      %v5092 = vpop.permute.xlu0 %5091
      %5093 = vrot.lane.b32.xlu0 %v5055, 127
      %v5094 = vpop.permute.xlu0 %5093
      %5095 = vrot.lane.b32.xlu0 %v5056, 127
      %v5096 = vpop.permute.xlu0 %5095
      %5097 = vrot.lane.b32.xlu0 %v5057, 127
      %v5098 = vpop.permute.xlu0 %5097
      %5099 = vrot.lane.b32.xlu0 %v5058, 127
      %v5100 = vpop.permute.xlu0 %5099
      %5101 = vrot.lane.b32.xlu0 %v5059, 127
      %v5102 = vpop.permute.xlu0 %5101
      %5103 = vrot.lane.b32.xlu0 %v5060, 127
      %v5104 = vpop.permute.xlu0 %5103
      %5105 = vrot.lane.b32.xlu0 %v5061, 127
      %v5106 = vpop.permute.xlu0 %5105
      %5107 = vrot.lane.b32.xlu0 %v5062, 127
      %v5108 = vpop.permute.xlu0 %5107
      %5109 = vrot.lane.b32.xlu0 %v5063, 127
      %v5110 = vpop.permute.xlu0 %5109
      %5111 = vrot.lane.b32.xlu0 %v5064, 127
      %v5112 = vpop.permute.xlu0 %5111
      %v5129 = vrot.slane %v5098, 4
      %v5130 = vsel %vm446, %v5129, %v5082
      %v5131 = vrot.slane %v5082, 4
      %v5132 = vsel %vm446, %v5098, %v5131
      %v5134 = vunpack.c.l.s4 1983009808
      %v5135 = vunpack.c.0.s8 %v5134
      %v5136 = vperm.slane %v5130, %v5135
      %v5138 = vunpack.c.l.s4 1983009808
      %v5139 = vunpack.c.0.s8 %v5138
      %v5140 = vperm.slane %v5132, %v5139
      %v5141 = vrot.slane %v5106, 4
      %v5142 = vsel %vm446, %v5141, %v5090
      %v5143 = vrot.slane %v5090, 4
      %v5144 = vsel %vm446, %v5106, %v5143
      %v5146 = vunpack.c.l.s4 1983009808
      %v5147 = vunpack.c.0.s8 %v5146
      %v5148 = vperm.slane %v5142, %v5147
      %v5150 = vunpack.c.l.s4 1983009808
      %v5151 = vunpack.c.0.s8 %v5150
      %v5152 = vperm.slane %v5144, %v5151
      %v5153 = vrot.slane %v5148, 4
      %v5154 = vsel %vm446, %v5153, %v5136
      %v5155 = vrot.slane %v5136, 4
      %v5156 = vsel %vm446, %v5148, %v5155
      %v5158 = vunpack.c.l.s4 1934713408
      %v5159 = vunpack.c.0.s8 %v5158
      %v5160 = vperm.slane %v5154, %v5159
      %v5162 = vunpack.c.l.s4 1934713408
      %v5163 = vunpack.c.0.s8 %v5162
      %v5164 = vperm.slane %v5156, %v5163
      %v5165 = vrot.slane %v5152, 4
      %v5166 = vsel %vm446, %v5165, %v5140
      %v5167 = vrot.slane %v5140, 4
      %v5168 = vsel %vm446, %v5152, %v5167
      %v5170 = vunpack.c.l.s4 1934713408
      %v5171 = vunpack.c.0.s8 %v5170
      %v5172 = vperm.slane %v5166, %v5171
      %v5174 = vunpack.c.l.s4 1934713408
      %v5175 = vunpack.c.0.s8 %v5174
      %v5176 = vperm.slane %v5168, %v5175
      %v5177 = vrot.slane %v5160, 4
      %v5178 = vsel %vm446, 0.0, %v5177
      %v5179 = vrot.slane %v5164, 4
      %v5180 = vsel %vm446, 0.0, %v5179
      %v5181 = vrot.slane %v5172, 4
      %v5182 = vsel %vm446, 0.0, %v5181
      %v5183 = vrot.slane %v5176, 4
      %v5184 = vsel %vm446, 0.0, %v5183
      %v5185 = vrot.slane %v5100, 4
      %v5186 = vsel %vm446, %v5185, %v5084
      %v5187 = vrot.slane %v5084, 4
      %v5188 = vsel %vm446, %v5100, %v5187
      %v5190 = vunpack.c.l.s4 1983009808
      %v5191 = vunpack.c.0.s8 %v5190
      %v5192 = vperm.slane %v5186, %v5191
      %v5194 = vunpack.c.l.s4 1983009808
      %v5195 = vunpack.c.0.s8 %v5194
      %v5196 = vperm.slane %v5188, %v5195
      %v5197 = vrot.slane %v5108, 4
      %v5198 = vsel %vm446, %v5197, %v5092
      %v5199 = vrot.slane %v5092, 4
      %v5200 = vsel %vm446, %v5108, %v5199
      %v5202 = vunpack.c.l.s4 1983009808
      %v5203 = vunpack.c.0.s8 %v5202
      %v5204 = vperm.slane %v5198, %v5203
      %v5206 = vunpack.c.l.s4 1983009808
      %v5207 = vunpack.c.0.s8 %v5206
      %v5208 = vperm.slane %v5200, %v5207
      %v5209 = vrot.slane %v5204, 4
      %v5210 = vsel %vm446, %v5209, %v5192
      %v5211 = vrot.slane %v5192, 4
      %v5212 = vsel %vm446, %v5204, %v5211
      %v5214 = vunpack.c.l.s4 1934713408
      %v5215 = vunpack.c.0.s8 %v5214
      %v5216 = vperm.slane %v5210, %v5215
      %v5218 = vunpack.c.l.s4 1934713408
      %v5219 = vunpack.c.0.s8 %v5218
      %v5220 = vperm.slane %v5212, %v5219
      %v5221 = vrot.slane %v5208, 4
      %v5222 = vsel %vm446, %v5221, %v5196
      %v5223 = vrot.slane %v5196, 4
      %v5224 = vsel %vm446, %v5208, %v5223
      %v5226 = vunpack.c.l.s4 1934713408
      %v5227 = vunpack.c.0.s8 %v5226
      %v5228 = vperm.slane %v5222, %v5227
      %v5230 = vunpack.c.l.s4 1934713408
      %v5231 = vunpack.c.0.s8 %v5230
      %v5232 = vperm.slane %v5224, %v5231
      %v5233 = vrot.slane %v5216, 4
      %v5234 = vsel %vm446, 0.0, %v5233
      %v5235 = vrot.slane %v5220, 4
      %v5236 = vsel %vm446, 0.0, %v5235
      %v5237 = vrot.slane %v5228, 4
      %v5238 = vsel %vm446, 0.0, %v5237
      %v5239 = vrot.slane %v5232, 4
      %v5240 = vsel %vm446, 0.0, %v5239
      %v5241 = vrot.slane %v5102, 4
      %v5242 = vsel %vm446, %v5241, %v5086
      %v5243 = vrot.slane %v5086, 4
      %v5244 = vsel %vm446, %v5102, %v5243
      %v5246 = vunpack.c.l.s4 1983009808
      %v5247 = vunpack.c.0.s8 %v5246
      %v5248 = vperm.slane %v5242, %v5247
      %v5250 = vunpack.c.l.s4 1983009808
      %v5251 = vunpack.c.0.s8 %v5250
      %v5252 = vperm.slane %v5244, %v5251
      %v5253 = vrot.slane %v5110, 4
      %v5254 = vsel %vm446, %v5253, %v5094
      %v5255 = vrot.slane %v5094, 4
      %v5256 = vsel %vm446, %v5110, %v5255
      %v5258 = vunpack.c.l.s4 1983009808
      %v5259 = vunpack.c.0.s8 %v5258
      %v5260 = vperm.slane %v5254, %v5259
      %v5262 = vunpack.c.l.s4 1983009808
      %v5263 = vunpack.c.0.s8 %v5262
      %v5264 = vperm.slane %v5256, %v5263
      %v5265 = vrot.slane %v5260, 4
      %v5266 = vsel %vm446, %v5265, %v5248
      %v5267 = vrot.slane %v5248, 4
      %v5268 = vsel %vm446, %v5260, %v5267
      %v5270 = vunpack.c.l.s4 1934713408
      %v5271 = vunpack.c.0.s8 %v5270
      %v5272 = vperm.slane %v5266, %v5271
      %v5274 = vunpack.c.l.s4 1934713408
      %v5275 = vunpack.c.0.s8 %v5274
      %v5276 = vperm.slane %v5268, %v5275
      %v5277 = vrot.slane %v5264, 4
      %v5278 = vsel %vm446, %v5277, %v5252
      %v5279 = vrot.slane %v5252, 4
      %v5280 = vsel %vm446, %v5264, %v5279
      %v5282 = vunpack.c.l.s4 1934713408
      %v5283 = vunpack.c.0.s8 %v5282
      %v5284 = vperm.slane %v5278, %v5283
      %v5286 = vunpack.c.l.s4 1934713408
      %v5287 = vunpack.c.0.s8 %v5286
      %v5288 = vperm.slane %v5280, %v5287
      %v5289 = vrot.slane %v5272, 4
      %v5290 = vsel %vm446, 0.0, %v5289
      %v5291 = vrot.slane %v5276, 4
      %v5292 = vsel %vm446, 0.0, %v5291
      %v5293 = vrot.slane %v5284, 4
      %v5294 = vsel %vm446, 0.0, %v5293
      %v5295 = vrot.slane %v5288, 4
      %v5296 = vsel %vm446, 0.0, %v5295
      %v5297 = vrot.slane %v5104, 4
      %v5298 = vsel %vm446, %v5297, %v5088
      %v5299 = vrot.slane %v5088, 4
      %v5300 = vsel %vm446, %v5104, %v5299
      %v5302 = vunpack.c.l.s4 1983009808
      %v5303 = vunpack.c.0.s8 %v5302
      %v5304 = vperm.slane %v5298, %v5303
      %v5306 = vunpack.c.l.s4 1983009808
      %v5307 = vunpack.c.0.s8 %v5306
      %v5308 = vperm.slane %v5300, %v5307
      %v5309 = vrot.slane %v5112, 4
      %v5310 = vsel %vm446, %v5309, %v5096
      %v5311 = vrot.slane %v5096, 4
      %v5312 = vsel %vm446, %v5112, %v5311
      %v5314 = vunpack.c.l.s4 1983009808
      %v5315 = vunpack.c.0.s8 %v5314
      %v5316 = vperm.slane %v5310, %v5315
      %v5318 = vunpack.c.l.s4 1983009808
      %v5319 = vunpack.c.0.s8 %v5318
      %v5320 = vperm.slane %v5312, %v5319
      %v5321 = vrot.slane %v5316, 4
      %v5322 = vsel %vm446, %v5321, %v5304
      %v5323 = vrot.slane %v5304, 4
      %v5324 = vsel %vm446, %v5316, %v5323
      %v5326 = vunpack.c.l.s4 1934713408
      %v5327 = vunpack.c.0.s8 %v5326
      %v5328 = vperm.slane %v5322, %v5327
      %v5330 = vunpack.c.l.s4 1934713408
      %v5331 = vunpack.c.0.s8 %v5330
      %v5332 = vperm.slane %v5324, %v5331
      %v5333 = vrot.slane %v5320, 4
      %v5334 = vsel %vm446, %v5333, %v5308
      %v5335 = vrot.slane %v5308, 4
      %v5336 = vsel %vm446, %v5320, %v5335
      %v5338 = vunpack.c.l.s4 1934713408
      %v5339 = vunpack.c.0.s8 %v5338
      %v5340 = vperm.slane %v5334, %v5339
      %v5342 = vunpack.c.l.s4 1934713408
      %v5343 = vunpack.c.0.s8 %v5342
      %v5344 = vperm.slane %v5336, %v5343
      %v5345 = vrot.slane %v5328, 4
      %v5346 = vsel %vm446, 0.0, %v5345
      %v5347 = vrot.slane %v5332, 4
      %v5348 = vsel %vm446, 0.0, %v5347
      %v5349 = vrot.slane %v5340, 4
      %v5350 = vsel %vm446, 0.0, %v5349
      %v5351 = vrot.slane %v5344, 4
      %v5352 = vsel %vm446, 0.0, %v5351
      %5354 = vrot.lane.b32.xlu0 %v5178, 32
      %v5355 = vpop.permute.xlu0 %5354
      %5358 = vrot.lane.b32.xlu0 %v5164, 64
      %v5359 = vpop.permute.xlu0 %5358
      %5362 = vrot.lane.b32.xlu0 %v5180, 96
      %v5363 = vpop.permute.xlu0 %5362
      %5366 = vrot.lane.b32.xlu0 %v5182, 32
      %v5367 = vpop.permute.xlu0 %5366
      %5370 = vrot.lane.b32.xlu0 %v5176, 64
      %v5371 = vpop.permute.xlu0 %5370
      %5374 = vrot.lane.b32.xlu0 %v5184, 96
      %v5375 = vpop.permute.xlu0 %5374
      %5378 = vrot.lane.b32.xlu0 %v5234, 32
      %v5379 = vpop.permute.xlu0 %5378
      %5382 = vrot.lane.b32.xlu0 %v5220, 64
      %v5383 = vpop.permute.xlu0 %5382
      %5386 = vrot.lane.b32.xlu0 %v5236, 96
      %v5387 = vpop.permute.xlu0 %5386
      %5390 = vrot.lane.b32.xlu0 %v5238, 32
      %v5391 = vpop.permute.xlu0 %5390
      %5394 = vrot.lane.b32.xlu0 %v5232, 64
      %v5395 = vpop.permute.xlu0 %5394
      %5398 = vrot.lane.b32.xlu0 %v5240, 96
      %v5399 = vpop.permute.xlu0 %5398
      %5402 = vrot.lane.b32.xlu0 %v5290, 32
      %v5403 = vpop.permute.xlu0 %5402
      %5406 = vrot.lane.b32.xlu0 %v5276, 64
      %v5407 = vpop.permute.xlu0 %5406
      %5410 = vrot.lane.b32.xlu0 %v5292, 96
      %v5411 = vpop.permute.xlu0 %5410
      %5414 = vrot.lane.b32.xlu0 %v5294, 32
      %v5415 = vpop.permute.xlu0 %5414
      %5418 = vrot.lane.b32.xlu0 %v5288, 64
      %v5419 = vpop.permute.xlu0 %5418
      %5422 = vrot.lane.b32.xlu0 %v5296, 96
      %v5423 = vpop.permute.xlu0 %5422
      %5426 = vrot.lane.b32.xlu0 %v5346, 32
      %v5427 = vpop.permute.xlu0 %5426
      %5430 = vrot.lane.b32.xlu0 %v5332, 64
      %v5431 = vpop.permute.xlu0 %5430
      %5434 = vrot.lane.b32.xlu0 %v5348, 96
      %v5435 = vpop.permute.xlu0 %5434
      %5438 = vrot.lane.b32.xlu0 %v5350, 32
      %v5439 = vpop.permute.xlu0 %5438
      %5442 = vrot.lane.b32.xlu0 %v5344, 64
      %v5443 = vpop.permute.xlu0 %5442
      %5446 = vrot.lane.b32.xlu0 %v5352, 96
      %v5447 = vpop.permute.xlu0 %5446
      %v5449 = vsel %vm728, %v5160, %v5355
      %v5450 = vsel %vm732, %v5449, %v5359
      %v5451 = vsel %vm736, %v5450, %v5363
      %v5452 = vsel %vm728, %v5172, %v5367
      %v5453 = vsel %vm732, %v5452, %v5371
      %v5454 = vsel %vm736, %v5453, %v5375
      %v5455 = vsel %vm728, %v5216, %v5379
      %v5456 = vsel %vm732, %v5455, %v5383
      %v5457 = vsel %vm736, %v5456, %v5387
      %v5458 = vsel %vm728, %v5228, %v5391
      %v5459 = vsel %vm732, %v5458, %v5395
      %v5460 = vsel %vm736, %v5459, %v5399
      %v5461 = vsel %vm728, %v5272, %v5403
      %v5462 = vsel %vm732, %v5461, %v5407
      %v5463 = vsel %vm736, %v5462, %v5411
      %v5464 = vsel %vm728, %v5284, %v5415
      %v5465 = vsel %vm732, %v5464, %v5419
      %v5466 = vsel %vm736, %v5465, %v5423
      %v5467 = vsel %vm728, %v5328, %v5427
      %v5468 = vsel %vm732, %v5467, %v5431
      %v5469 = vsel %vm736, %v5468, %v5435
      %v5470 = vsel %vm728, %v5340, %v5439
      %v5471 = vsel %vm732, %v5470, %v5443
      %v5472 = vsel %vm736, %v5471, %v5447
      %v5481 = vrot.slane %v5451, 4
      %v5482 = vrot.slane %v5454, 4
      %v5483 = vrot.slane %v5457, 4
      %v5484 = vrot.slane %v5460, 4
      %v5485 = vrot.slane %v5463, 4
      %v5486 = vrot.slane %v5466, 4
      %v5487 = vrot.slane %v5469, 4
      %v5488 = vrot.slane %v5472, 4
      %5497 = vst [vmem:[#allocation5] sm:$0xf0] %v5481
      %5498 = vst [vmem:[#allocation5 + $0x8] sm:$0xf0] %v5482
      %5499 = vst [vmem:[#allocation5 + $0x10] sm:$0xf0] %v5483
      %5500 = vst [vmem:[#allocation5 + $0x18] sm:$0xf0] %v5484
      %5501 = vst [vmem:[#allocation5 + $0x20] sm:$0xf0] %v5485
      %5502 = vst [vmem:[#allocation5 + $0x28] sm:$0xf0] %v5486
      %5503 = vst [vmem:[#allocation5 + $0x30] sm:$0xf0] %v5487
      %5504 = vst [vmem:[#allocation5 + $0x38] sm:$0xf0] %v5488
      %v5505 = vld [vmem:[#allocation4] sm:$0xff]
      %v5506 = vld [vmem:[#allocation4 + $0x8] sm:$0xff]
      %v5507 = vld [vmem:[#allocation4 + $0x10] sm:$0xff]
      %v5508 = vld [vmem:[#allocation4 + $0x18] sm:$0xff]
      %v5509 = vld [vmem:[#allocation4 + $0x28] sm:$0xff]
      %v5510 = vld [vmem:[#allocation4 + $0x30] sm:$0xff]
      %v5511 = vld [vmem:[#allocation4 + $0x38] sm:$0xff]
      %v5512 = vld [vmem:[#allocation4 + $0x40] sm:$0xff]
      %v5513 = vld [vmem:[#allocation4 + $0x50] sm:$0xff]
      %v5514 = vld [vmem:[#allocation4 + $0x58] sm:$0xff]
      %v5515 = vld [vmem:[#allocation4 + $0x60] sm:$0xff]
      %v5516 = vld [vmem:[#allocation4 + $0x68] sm:$0xff]
      %v5517 = vld [vmem:[#allocation4 + $0x78] sm:$0xff]
      %v5518 = vld [vmem:[#allocation4 + $0x80] sm:$0xff]
      %v5519 = vld [vmem:[#allocation4 + $0x88] sm:$0xff]
      %v5520 = vld [vmem:[#allocation4 + $0x90] sm:$0xff]
      %5537 = vrot.lane.b32.xlu0 %v5505, 126
      %v5538 = vpop.permute.xlu0 %5537
      %5539 = vrot.lane.b32.xlu0 %v5506, 126
      %v5540 = vpop.permute.xlu0 %5539
      %5541 = vrot.lane.b32.xlu0 %v5507, 126
      %v5542 = vpop.permute.xlu0 %5541
      %5543 = vrot.lane.b32.xlu0 %v5508, 126
      %v5544 = vpop.permute.xlu0 %5543
      %5545 = vrot.lane.b32.xlu0 %v5509, 126
      %v5546 = vpop.permute.xlu0 %5545
      %5547 = vrot.lane.b32.xlu0 %v5510, 126
      %v5548 = vpop.permute.xlu0 %5547
      %5549 = vrot.lane.b32.xlu0 %v5511, 126
      %v5550 = vpop.permute.xlu0 %5549
      %5551 = vrot.lane.b32.xlu0 %v5512, 126
      %v5552 = vpop.permute.xlu0 %5551
      %5553 = vrot.lane.b32.xlu0 %v5513, 126
      %v5554 = vpop.permute.xlu0 %5553
      %5555 = vrot.lane.b32.xlu0 %v5514, 126
      %v5556 = vpop.permute.xlu0 %5555
      %5557 = vrot.lane.b32.xlu0 %v5515, 126
      %v5558 = vpop.permute.xlu0 %5557
      %5559 = vrot.lane.b32.xlu0 %v5516, 126
      %v5560 = vpop.permute.xlu0 %5559
      %5561 = vrot.lane.b32.xlu0 %v5517, 126
      %v5562 = vpop.permute.xlu0 %5561
      %5563 = vrot.lane.b32.xlu0 %v5518, 126
      %v5564 = vpop.permute.xlu0 %5563
      %5565 = vrot.lane.b32.xlu0 %v5519, 126
      %v5566 = vpop.permute.xlu0 %5565
      %5567 = vrot.lane.b32.xlu0 %v5520, 126
      %v5568 = vpop.permute.xlu0 %5567
      %v5585 = vrot.slane %v5554, 4
      %v5586 = vsel %vm446, %v5585, %v5538
      %v5587 = vrot.slane %v5538, 4
      %v5588 = vsel %vm446, %v5554, %v5587
      %v5590 = vunpack.c.l.s4 1983009808
      %v5591 = vunpack.c.0.s8 %v5590
      %v5592 = vperm.slane %v5586, %v5591
      %v5594 = vunpack.c.l.s4 1983009808
      %v5595 = vunpack.c.0.s8 %v5594
      %v5596 = vperm.slane %v5588, %v5595
      %v5597 = vrot.slane %v5562, 4
      %v5598 = vsel %vm446, %v5597, %v5546
      %v5599 = vrot.slane %v5546, 4
      %v5600 = vsel %vm446, %v5562, %v5599
      %v5602 = vunpack.c.l.s4 1983009808
      %v5603 = vunpack.c.0.s8 %v5602
      %v5604 = vperm.slane %v5598, %v5603
      %v5606 = vunpack.c.l.s4 1983009808
      %v5607 = vunpack.c.0.s8 %v5606
      %v5608 = vperm.slane %v5600, %v5607
      %v5609 = vrot.slane %v5604, 4
      %v5610 = vsel %vm446, %v5609, %v5592
      %v5611 = vrot.slane %v5592, 4
      %v5612 = vsel %vm446, %v5604, %v5611
      %v5614 = vunpack.c.l.s4 1934713408
      %v5615 = vunpack.c.0.s8 %v5614
      %v5616 = vperm.slane %v5610, %v5615
      %v5618 = vunpack.c.l.s4 1934713408
      %v5619 = vunpack.c.0.s8 %v5618
      %v5620 = vperm.slane %v5612, %v5619
      %v5621 = vrot.slane %v5608, 4
      %v5622 = vsel %vm446, %v5621, %v5596
      %v5623 = vrot.slane %v5596, 4
      %v5624 = vsel %vm446, %v5608, %v5623
      %v5626 = vunpack.c.l.s4 1934713408
      %v5627 = vunpack.c.0.s8 %v5626
      %v5628 = vperm.slane %v5622, %v5627
      %v5630 = vunpack.c.l.s4 1934713408
      %v5631 = vunpack.c.0.s8 %v5630
      %v5632 = vperm.slane %v5624, %v5631
      %v5633 = vrot.slane %v5616, 4
      %v5634 = vsel %vm446, 0.0, %v5633
      %v5635 = vrot.slane %v5620, 4
      %v5636 = vsel %vm446, 0.0, %v5635
      %v5637 = vrot.slane %v5628, 4
      %v5638 = vsel %vm446, 0.0, %v5637
      %v5639 = vrot.slane %v5632, 4
      %v5640 = vsel %vm446, 0.0, %v5639
      %v5641 = vrot.slane %v5556, 4
      %v5642 = vsel %vm446, %v5641, %v5540
      %v5643 = vrot.slane %v5540, 4
      %v5644 = vsel %vm446, %v5556, %v5643
      %v5646 = vunpack.c.l.s4 1983009808
      %v5647 = vunpack.c.0.s8 %v5646
      %v5648 = vperm.slane %v5642, %v5647
      %v5650 = vunpack.c.l.s4 1983009808
      %v5651 = vunpack.c.0.s8 %v5650
      %v5652 = vperm.slane %v5644, %v5651
      %v5653 = vrot.slane %v5564, 4
      %v5654 = vsel %vm446, %v5653, %v5548
      %v5655 = vrot.slane %v5548, 4
      %v5656 = vsel %vm446, %v5564, %v5655
      %v5658 = vunpack.c.l.s4 1983009808
      %v5659 = vunpack.c.0.s8 %v5658
      %v5660 = vperm.slane %v5654, %v5659
      %v5662 = vunpack.c.l.s4 1983009808
      %v5663 = vunpack.c.0.s8 %v5662
      %v5664 = vperm.slane %v5656, %v5663
      %v5665 = vrot.slane %v5660, 4
      %v5666 = vsel %vm446, %v5665, %v5648
      %v5667 = vrot.slane %v5648, 4
      %v5668 = vsel %vm446, %v5660, %v5667
      %v5670 = vunpack.c.l.s4 1934713408
      %v5671 = vunpack.c.0.s8 %v5670
      %v5672 = vperm.slane %v5666, %v5671
      %v5674 = vunpack.c.l.s4 1934713408
      %v5675 = vunpack.c.0.s8 %v5674
      %v5676 = vperm.slane %v5668, %v5675
      %v5677 = vrot.slane %v5664, 4
      %v5678 = vsel %vm446, %v5677, %v5652
      %v5679 = vrot.slane %v5652, 4
      %v5680 = vsel %vm446, %v5664, %v5679
      %v5682 = vunpack.c.l.s4 1934713408
      %v5683 = vunpack.c.0.s8 %v5682
      %v5684 = vperm.slane %v5678, %v5683
      %v5686 = vunpack.c.l.s4 1934713408
      %v5687 = vunpack.c.0.s8 %v5686
      %v5688 = vperm.slane %v5680, %v5687
      %v5689 = vrot.slane %v5672, 4
      %v5690 = vsel %vm446, 0.0, %v5689
      %v5691 = vrot.slane %v5676, 4
      %v5692 = vsel %vm446, 0.0, %v5691
      %v5693 = vrot.slane %v5684, 4
      %v5694 = vsel %vm446, 0.0, %v5693
      %v5695 = vrot.slane %v5688, 4
      %v5696 = vsel %vm446, 0.0, %v5695
      %v5697 = vrot.slane %v5558, 4
      %v5698 = vsel %vm446, %v5697, %v5542
      %v5699 = vrot.slane %v5542, 4
      %v5700 = vsel %vm446, %v5558, %v5699
      %v5702 = vunpack.c.l.s4 1983009808
      %v5703 = vunpack.c.0.s8 %v5702
      %v5704 = vperm.slane %v5698, %v5703
      %v5706 = vunpack.c.l.s4 1983009808
      %v5707 = vunpack.c.0.s8 %v5706
      %v5708 = vperm.slane %v5700, %v5707
      %v5709 = vrot.slane %v5566, 4
      %v5710 = vsel %vm446, %v5709, %v5550
      %v5711 = vrot.slane %v5550, 4
      %v5712 = vsel %vm446, %v5566, %v5711
      %v5714 = vunpack.c.l.s4 1983009808
      %v5715 = vunpack.c.0.s8 %v5714
      %v5716 = vperm.slane %v5710, %v5715
      %v5718 = vunpack.c.l.s4 1983009808
      %v5719 = vunpack.c.0.s8 %v5718
      %v5720 = vperm.slane %v5712, %v5719
      %v5721 = vrot.slane %v5716, 4
      %v5722 = vsel %vm446, %v5721, %v5704
      %v5723 = vrot.slane %v5704, 4
      %v5724 = vsel %vm446, %v5716, %v5723
      %v5726 = vunpack.c.l.s4 1934713408
      %v5727 = vunpack.c.0.s8 %v5726
      %v5728 = vperm.slane %v5722, %v5727
      %v5730 = vunpack.c.l.s4 1934713408
      %v5731 = vunpack.c.0.s8 %v5730
      %v5732 = vperm.slane %v5724, %v5731
      %v5733 = vrot.slane %v5720, 4
      %v5734 = vsel %vm446, %v5733, %v5708
      %v5735 = vrot.slane %v5708, 4
      %v5736 = vsel %vm446, %v5720, %v5735
      %v5738 = vunpack.c.l.s4 1934713408
      %v5739 = vunpack.c.0.s8 %v5738
      %v5740 = vperm.slane %v5734, %v5739
      %v5742 = vunpack.c.l.s4 1934713408
      %v5743 = vunpack.c.0.s8 %v5742
      %v5744 = vperm.slane %v5736, %v5743
      %v5745 = vrot.slane %v5728, 4
      %v5746 = vsel %vm446, 0.0, %v5745
      %v5747 = vrot.slane %v5732, 4
      %v5748 = vsel %vm446, 0.0, %v5747
      %v5749 = vrot.slane %v5740, 4
      %v5750 = vsel %vm446, 0.0, %v5749
      %v5751 = vrot.slane %v5744, 4
      %v5752 = vsel %vm446, 0.0, %v5751
      %v5753 = vrot.slane %v5560, 4
      %v5754 = vsel %vm446, %v5753, %v5544
      %v5755 = vrot.slane %v5544, 4
      %v5756 = vsel %vm446, %v5560, %v5755
      %v5758 = vunpack.c.l.s4 1983009808
      %v5759 = vunpack.c.0.s8 %v5758
      %v5760 = vperm.slane %v5754, %v5759
      %v5762 = vunpack.c.l.s4 1983009808
      %v5763 = vunpack.c.0.s8 %v5762
      %v5764 = vperm.slane %v5756, %v5763
      %v5765 = vrot.slane %v5568, 4
      %v5766 = vsel %vm446, %v5765, %v5552
      %v5767 = vrot.slane %v5552, 4
      %v5768 = vsel %vm446, %v5568, %v5767
      %v5770 = vunpack.c.l.s4 1983009808
      %v5771 = vunpack.c.0.s8 %v5770
      %v5772 = vperm.slane %v5766, %v5771
      %v5774 = vunpack.c.l.s4 1983009808
      %v5775 = vunpack.c.0.s8 %v5774
      %v5776 = vperm.slane %v5768, %v5775
      %v5777 = vrot.slane %v5772, 4
      %v5778 = vsel %vm446, %v5777, %v5760
      %v5779 = vrot.slane %v5760, 4
      %v5780 = vsel %vm446, %v5772, %v5779
      %v5782 = vunpack.c.l.s4 1934713408
      %v5783 = vunpack.c.0.s8 %v5782
      %v5784 = vperm.slane %v5778, %v5783
      %v5786 = vunpack.c.l.s4 1934713408
      %v5787 = vunpack.c.0.s8 %v5786
      %v5788 = vperm.slane %v5780, %v5787
      %v5789 = vrot.slane %v5776, 4
      %v5790 = vsel %vm446, %v5789, %v5764
      %v5791 = vrot.slane %v5764, 4
      %v5792 = vsel %vm446, %v5776, %v5791
      %v5794 = vunpack.c.l.s4 1934713408
      %v5795 = vunpack.c.0.s8 %v5794
      %v5796 = vperm.slane %v5790, %v5795
      %v5798 = vunpack.c.l.s4 1934713408
      %v5799 = vunpack.c.0.s8 %v5798
      %v5800 = vperm.slane %v5792, %v5799
      %v5801 = vrot.slane %v5784, 4
      %v5802 = vsel %vm446, 0.0, %v5801
      %v5803 = vrot.slane %v5788, 4
      %v5804 = vsel %vm446, 0.0, %v5803
      %v5805 = vrot.slane %v5796, 4
      %v5806 = vsel %vm446, 0.0, %v5805
      %v5807 = vrot.slane %v5800, 4
      %v5808 = vsel %vm446, 0.0, %v5807
      %5810 = vrot.lane.b32.xlu0 %v5634, 32
      %v5811 = vpop.permute.xlu0 %5810
      %5814 = vrot.lane.b32.xlu0 %v5620, 64
      %v5815 = vpop.permute.xlu0 %5814
      %5818 = vrot.lane.b32.xlu0 %v5636, 96
      %v5819 = vpop.permute.xlu0 %5818
      %5822 = vrot.lane.b32.xlu0 %v5638, 32
      %v5823 = vpop.permute.xlu0 %5822
      %5826 = vrot.lane.b32.xlu0 %v5632, 64
      %v5827 = vpop.permute.xlu0 %5826
      %5830 = vrot.lane.b32.xlu0 %v5640, 96
      %v5831 = vpop.permute.xlu0 %5830
      %5834 = vrot.lane.b32.xlu0 %v5690, 32
      %v5835 = vpop.permute.xlu0 %5834
      %5838 = vrot.lane.b32.xlu0 %v5676, 64
      %v5839 = vpop.permute.xlu0 %5838
      %5842 = vrot.lane.b32.xlu0 %v5692, 96
      %v5843 = vpop.permute.xlu0 %5842
      %5846 = vrot.lane.b32.xlu0 %v5694, 32
      %v5847 = vpop.permute.xlu0 %5846
      %5850 = vrot.lane.b32.xlu0 %v5688, 64
      %v5851 = vpop.permute.xlu0 %5850
      %5854 = vrot.lane.b32.xlu0 %v5696, 96
      %v5855 = vpop.permute.xlu0 %5854
      %5858 = vrot.lane.b32.xlu0 %v5746, 32
      %v5859 = vpop.permute.xlu0 %5858
      %5862 = vrot.lane.b32.xlu0 %v5732, 64
      %v5863 = vpop.permute.xlu0 %5862
      %5866 = vrot.lane.b32.xlu0 %v5748, 96
      %v5867 = vpop.permute.xlu0 %5866
      %5870 = vrot.lane.b32.xlu0 %v5750, 32
      %v5871 = vpop.permute.xlu0 %5870
      %5874 = vrot.lane.b32.xlu0 %v5744, 64
      %v5875 = vpop.permute.xlu0 %5874
      %5878 = vrot.lane.b32.xlu0 %v5752, 96
      %v5879 = vpop.permute.xlu0 %5878
      %5882 = vrot.lane.b32.xlu0 %v5802, 32
      %v5883 = vpop.permute.xlu0 %5882
      %5886 = vrot.lane.b32.xlu0 %v5788, 64
      %v5887 = vpop.permute.xlu0 %5886
      %5890 = vrot.lane.b32.xlu0 %v5804, 96
      %v5891 = vpop.permute.xlu0 %5890
      %5894 = vrot.lane.b32.xlu0 %v5806, 32
      %v5895 = vpop.permute.xlu0 %5894
      %5898 = vrot.lane.b32.xlu0 %v5800, 64
      %v5899 = vpop.permute.xlu0 %5898
      %5902 = vrot.lane.b32.xlu0 %v5808, 96
      %v5903 = vpop.permute.xlu0 %5902
      %v5905 = vsel %vm728, %v5616, %v5811
      %v5906 = vsel %vm732, %v5905, %v5815
      %v5907 = vsel %vm736, %v5906, %v5819
      %v5908 = vsel %vm728, %v5628, %v5823
      %v5909 = vsel %vm732, %v5908, %v5827
      %v5910 = vsel %vm736, %v5909, %v5831
      %v5911 = vsel %vm728, %v5672, %v5835
      %v5912 = vsel %vm732, %v5911, %v5839
      %v5913 = vsel %vm736, %v5912, %v5843
      %v5914 = vsel %vm728, %v5684, %v5847
      %v5915 = vsel %vm732, %v5914, %v5851
      %v5916 = vsel %vm736, %v5915, %v5855
      %v5917 = vsel %vm728, %v5728, %v5859
      %v5918 = vsel %vm732, %v5917, %v5863
      %v5919 = vsel %vm736, %v5918, %v5867
      %v5920 = vsel %vm728, %v5740, %v5871
      %v5921 = vsel %vm732, %v5920, %v5875
      %v5922 = vsel %vm736, %v5921, %v5879
      %v5923 = vsel %vm728, %v5784, %v5883
      %v5924 = vsel %vm732, %v5923, %v5887
      %v5925 = vsel %vm736, %v5924, %v5891
      %v5926 = vsel %vm728, %v5796, %v5895
      %v5927 = vsel %vm732, %v5926, %v5899
      %v5928 = vsel %vm736, %v5927, %v5903
      %5929 = vst [vmem:[#allocation5 + $0x40] sm:$0xf] %v5907
      %5930 = vst [vmem:[#allocation5 + $0x48] sm:$0xf] %v5910
      %5931 = vst [vmem:[#allocation5 + $0x50] sm:$0xf] %v5913
      %5932 = vst [vmem:[#allocation5 + $0x58] sm:$0xf] %v5916
      %5933 = vst [vmem:[#allocation5 + $0x60] sm:$0xf] %v5919
      %5934 = vst [vmem:[#allocation5 + $0x68] sm:$0xf] %v5922
      %5935 = vst [vmem:[#allocation5 + $0x70] sm:$0xf] %v5925
      %5936 = vst [vmem:[#allocation5 + $0x78] sm:$0xf] %v5928
      %v5937 = vld [vmem:[#allocation4 + $0x1] sm:$0xff]
      %v5938 = vld [vmem:[#allocation4 + $0x9] sm:$0xff]
      %v5939 = vld [vmem:[#allocation4 + $0x11] sm:$0xff]
      %v5940 = vld [vmem:[#allocation4 + $0x19] sm:$0xff]
      %v5941 = vld [vmem:[#allocation4 + $0x29] sm:$0xff]
      %v5942 = vld [vmem:[#allocation4 + $0x31] sm:$0xff]
      %v5943 = vld [vmem:[#allocation4 + $0x39] sm:$0xff]
      %v5944 = vld [vmem:[#allocation4 + $0x41] sm:$0xff]
      %v5945 = vld [vmem:[#allocation4 + $0x51] sm:$0xff]
      %v5946 = vld [vmem:[#allocation4 + $0x59] sm:$0xff]
      %v5947 = vld [vmem:[#allocation4 + $0x61] sm:$0xff]
      %v5948 = vld [vmem:[#allocation4 + $0x69] sm:$0xff]
      %v5949 = vld [vmem:[#allocation4 + $0x79] sm:$0xff]
      %v5950 = vld [vmem:[#allocation4 + $0x81] sm:$0xff]
      %v5951 = vld [vmem:[#allocation4 + $0x89] sm:$0xff]
      %v5952 = vld [vmem:[#allocation4 + $0x91] sm:$0xff]
      %v5953 = vrot.slane %v5945, 4
      %v5954 = vsel %vm446, %v5953, %v5937
      %v5955 = vrot.slane %v5937, 4
      %v5956 = vsel %vm446, %v5945, %v5955
      %v5958 = vunpack.c.l.s4 1983009808
      %v5959 = vunpack.c.0.s8 %v5958
      %v5960 = vperm.slane %v5954, %v5959
      %v5962 = vunpack.c.l.s4 1983009808
      %v5963 = vunpack.c.0.s8 %v5962
      %v5964 = vperm.slane %v5956, %v5963
      %v5965 = vrot.slane %v5949, 4
      %v5966 = vsel %vm446, %v5965, %v5941
      %v5967 = vrot.slane %v5941, 4
      %v5968 = vsel %vm446, %v5949, %v5967
      %v5970 = vunpack.c.l.s4 1983009808
      %v5971 = vunpack.c.0.s8 %v5970
      %v5972 = vperm.slane %v5966, %v5971
      %v5974 = vunpack.c.l.s4 1983009808
      %v5975 = vunpack.c.0.s8 %v5974
      %v5976 = vperm.slane %v5968, %v5975
      %v5977 = vrot.slane %v5972, 4
      %v5978 = vsel %vm446, %v5977, %v5960
      %v5979 = vrot.slane %v5960, 4
      %v5980 = vsel %vm446, %v5972, %v5979
      %v5982 = vunpack.c.l.s4 1934713408
      %v5983 = vunpack.c.0.s8 %v5982
      %v5984 = vperm.slane %v5978, %v5983
      %v5986 = vunpack.c.l.s4 1934713408
      %v5987 = vunpack.c.0.s8 %v5986
      %v5988 = vperm.slane %v5980, %v5987
      %v5989 = vrot.slane %v5976, 4
      %v5990 = vsel %vm446, %v5989, %v5964
      %v5991 = vrot.slane %v5964, 4
      %v5992 = vsel %vm446, %v5976, %v5991
      %v5994 = vunpack.c.l.s4 1934713408
      %v5995 = vunpack.c.0.s8 %v5994
      %v5996 = vperm.slane %v5990, %v5995
      %v5998 = vunpack.c.l.s4 1934713408
      %v5999 = vunpack.c.0.s8 %v5998
      %v6000 = vperm.slane %v5992, %v5999
      %v6001 = vrot.slane %v5984, 4
      %v6002 = vsel %vm446, 0.0, %v6001
      %v6003 = vrot.slane %v5988, 4
      %v6004 = vsel %vm446, 0.0, %v6003
      %v6005 = vrot.slane %v5996, 4
      %v6006 = vsel %vm446, 0.0, %v6005
      %v6007 = vrot.slane %v6000, 4
      %v6008 = vsel %vm446, 0.0, %v6007
      %v6009 = vrot.slane %v5946, 4
      %v6010 = vsel %vm446, %v6009, %v5938
      %v6011 = vrot.slane %v5938, 4
      %v6012 = vsel %vm446, %v5946, %v6011
      %v6014 = vunpack.c.l.s4 1983009808
      %v6015 = vunpack.c.0.s8 %v6014
      %v6016 = vperm.slane %v6010, %v6015
      %v6018 = vunpack.c.l.s4 1983009808
      %v6019 = vunpack.c.0.s8 %v6018
      %v6020 = vperm.slane %v6012, %v6019
      %v6021 = vrot.slane %v5950, 4
      %v6022 = vsel %vm446, %v6021, %v5942
      %v6023 = vrot.slane %v5942, 4
      %v6024 = vsel %vm446, %v5950, %v6023
      %v6026 = vunpack.c.l.s4 1983009808
      %v6027 = vunpack.c.0.s8 %v6026
      %v6028 = vperm.slane %v6022, %v6027
      %v6030 = vunpack.c.l.s4 1983009808
      %v6031 = vunpack.c.0.s8 %v6030
      %v6032 = vperm.slane %v6024, %v6031
      %v6033 = vrot.slane %v6028, 4
      %v6034 = vsel %vm446, %v6033, %v6016
      %v6035 = vrot.slane %v6016, 4
      %v6036 = vsel %vm446, %v6028, %v6035
      %v6038 = vunpack.c.l.s4 1934713408
      %v6039 = vunpack.c.0.s8 %v6038
      %v6040 = vperm.slane %v6034, %v6039
      %v6042 = vunpack.c.l.s4 1934713408
      %v6043 = vunpack.c.0.s8 %v6042
      %v6044 = vperm.slane %v6036, %v6043
      %v6045 = vrot.slane %v6032, 4
      %v6046 = vsel %vm446, %v6045, %v6020
      %v6047 = vrot.slane %v6020, 4
      %v6048 = vsel %vm446, %v6032, %v6047
      %v6050 = vunpack.c.l.s4 1934713408
      %v6051 = vunpack.c.0.s8 %v6050
      %v6052 = vperm.slane %v6046, %v6051
      %v6054 = vunpack.c.l.s4 1934713408
      %v6055 = vunpack.c.0.s8 %v6054
      %v6056 = vperm.slane %v6048, %v6055
      %v6057 = vrot.slane %v6040, 4
      %v6058 = vsel %vm446, 0.0, %v6057
      %v6059 = vrot.slane %v6044, 4
      %v6060 = vsel %vm446, 0.0, %v6059
      %v6061 = vrot.slane %v6052, 4
      %v6062 = vsel %vm446, 0.0, %v6061
      %v6063 = vrot.slane %v6056, 4
      %v6064 = vsel %vm446, 0.0, %v6063
      %v6065 = vrot.slane %v5947, 4
      %v6066 = vsel %vm446, %v6065, %v5939
      %v6067 = vrot.slane %v5939, 4
      %v6068 = vsel %vm446, %v5947, %v6067
      %v6070 = vunpack.c.l.s4 1983009808
      %v6071 = vunpack.c.0.s8 %v6070
      %v6072 = vperm.slane %v6066, %v6071
      %v6074 = vunpack.c.l.s4 1983009808
      %v6075 = vunpack.c.0.s8 %v6074
      %v6076 = vperm.slane %v6068, %v6075
      %v6077 = vrot.slane %v5951, 4
      %v6078 = vsel %vm446, %v6077, %v5943
      %v6079 = vrot.slane %v5943, 4
      %v6080 = vsel %vm446, %v5951, %v6079
      %v6082 = vunpack.c.l.s4 1983009808
      %v6083 = vunpack.c.0.s8 %v6082
      %v6084 = vperm.slane %v6078, %v6083
      %v6086 = vunpack.c.l.s4 1983009808
      %v6087 = vunpack.c.0.s8 %v6086
      %v6088 = vperm.slane %v6080, %v6087
      %v6089 = vrot.slane %v6084, 4
      %v6090 = vsel %vm446, %v6089, %v6072
      %v6091 = vrot.slane %v6072, 4
      %v6092 = vsel %vm446, %v6084, %v6091
      %v6094 = vunpack.c.l.s4 1934713408
      %v6095 = vunpack.c.0.s8 %v6094
      %v6096 = vperm.slane %v6090, %v6095
      %v6098 = vunpack.c.l.s4 1934713408
      %v6099 = vunpack.c.0.s8 %v6098
      %v6100 = vperm.slane %v6092, %v6099
      %v6101 = vrot.slane %v6088, 4
      %v6102 = vsel %vm446, %v6101, %v6076
      %v6103 = vrot.slane %v6076, 4
      %v6104 = vsel %vm446, %v6088, %v6103
      %v6106 = vunpack.c.l.s4 1934713408
      %v6107 = vunpack.c.0.s8 %v6106
      %v6108 = vperm.slane %v6102, %v6107
      %v6110 = vunpack.c.l.s4 1934713408
      %v6111 = vunpack.c.0.s8 %v6110
      %v6112 = vperm.slane %v6104, %v6111
      %v6113 = vrot.slane %v6096, 4
      %v6114 = vsel %vm446, 0.0, %v6113
      %v6115 = vrot.slane %v6100, 4
      %v6116 = vsel %vm446, 0.0, %v6115
      %v6117 = vrot.slane %v6108, 4
      %v6118 = vsel %vm446, 0.0, %v6117
      %v6119 = vrot.slane %v6112, 4
      %v6120 = vsel %vm446, 0.0, %v6119
      %v6121 = vrot.slane %v5948, 4
      %v6122 = vsel %vm446, %v6121, %v5940
      %v6123 = vrot.slane %v5940, 4
      %v6124 = vsel %vm446, %v5948, %v6123
      %v6126 = vunpack.c.l.s4 1983009808
      %v6127 = vunpack.c.0.s8 %v6126
      %v6128 = vperm.slane %v6122, %v6127
      %v6130 = vunpack.c.l.s4 1983009808
      %v6131 = vunpack.c.0.s8 %v6130
      %v6132 = vperm.slane %v6124, %v6131
      %v6133 = vrot.slane %v5952, 4
      %v6134 = vsel %vm446, %v6133, %v5944
      %v6135 = vrot.slane %v5944, 4
      %v6136 = vsel %vm446, %v5952, %v6135
      %v6138 = vunpack.c.l.s4 1983009808
      %v6139 = vunpack.c.0.s8 %v6138
      %v6140 = vperm.slane %v6134, %v6139
      %v6142 = vunpack.c.l.s4 1983009808
      %v6143 = vunpack.c.0.s8 %v6142
      %v6144 = vperm.slane %v6136, %v6143
      %v6145 = vrot.slane %v6140, 4
      %v6146 = vsel %vm446, %v6145, %v6128
      %v6147 = vrot.slane %v6128, 4
      %v6148 = vsel %vm446, %v6140, %v6147
      %v6150 = vunpack.c.l.s4 1934713408
      %v6151 = vunpack.c.0.s8 %v6150
      %v6152 = vperm.slane %v6146, %v6151
      %v6154 = vunpack.c.l.s4 1934713408
      %v6155 = vunpack.c.0.s8 %v6154
      %v6156 = vperm.slane %v6148, %v6155
      %v6157 = vrot.slane %v6144, 4
      %v6158 = vsel %vm446, %v6157, %v6132
      %v6159 = vrot.slane %v6132, 4
      %v6160 = vsel %vm446, %v6144, %v6159
      %v6162 = vunpack.c.l.s4 1934713408
      %v6163 = vunpack.c.0.s8 %v6162
      %v6164 = vperm.slane %v6158, %v6163
      %v6166 = vunpack.c.l.s4 1934713408
      %v6167 = vunpack.c.0.s8 %v6166
      %v6168 = vperm.slane %v6160, %v6167
      %v6169 = vrot.slane %v6152, 4
      %v6170 = vsel %vm446, 0.0, %v6169
      %v6171 = vrot.slane %v6156, 4
      %v6172 = vsel %vm446, 0.0, %v6171
      %v6173 = vrot.slane %v6164, 4
      %v6174 = vsel %vm446, 0.0, %v6173
      %v6175 = vrot.slane %v6168, 4
      %v6176 = vsel %vm446, 0.0, %v6175
      %6178 = vrot.lane.b32.xlu0 %v6002, 32
      %v6179 = vpop.permute.xlu0 %6178
      %6182 = vrot.lane.b32.xlu0 %v5988, 64
      %v6183 = vpop.permute.xlu0 %6182
      %6186 = vrot.lane.b32.xlu0 %v6004, 96
      %v6187 = vpop.permute.xlu0 %6186
      %6190 = vrot.lane.b32.xlu0 %v6006, 32
      %v6191 = vpop.permute.xlu0 %6190
      %6194 = vrot.lane.b32.xlu0 %v6000, 64
      %v6195 = vpop.permute.xlu0 %6194
      %6198 = vrot.lane.b32.xlu0 %v6008, 96
      %v6199 = vpop.permute.xlu0 %6198
      %6202 = vrot.lane.b32.xlu0 %v6058, 32
      %v6203 = vpop.permute.xlu0 %6202
      %6206 = vrot.lane.b32.xlu0 %v6044, 64
      %v6207 = vpop.permute.xlu0 %6206
      %6210 = vrot.lane.b32.xlu0 %v6060, 96
      %v6211 = vpop.permute.xlu0 %6210
      %6214 = vrot.lane.b32.xlu0 %v6062, 32
      %v6215 = vpop.permute.xlu0 %6214
      %6218 = vrot.lane.b32.xlu0 %v6056, 64
      %v6219 = vpop.permute.xlu0 %6218
      %6222 = vrot.lane.b32.xlu0 %v6064, 96
      %v6223 = vpop.permute.xlu0 %6222
      %6226 = vrot.lane.b32.xlu0 %v6114, 32
      %v6227 = vpop.permute.xlu0 %6226
      %6230 = vrot.lane.b32.xlu0 %v6100, 64
      %v6231 = vpop.permute.xlu0 %6230
      %6234 = vrot.lane.b32.xlu0 %v6116, 96
      %v6235 = vpop.permute.xlu0 %6234
      %6238 = vrot.lane.b32.xlu0 %v6118, 32
      %v6239 = vpop.permute.xlu0 %6238
      %6242 = vrot.lane.b32.xlu0 %v6112, 64
      %v6243 = vpop.permute.xlu0 %6242
      %6246 = vrot.lane.b32.xlu0 %v6120, 96
      %v6247 = vpop.permute.xlu0 %6246
      %6250 = vrot.lane.b32.xlu0 %v6170, 32
      %v6251 = vpop.permute.xlu0 %6250
      %6254 = vrot.lane.b32.xlu0 %v6156, 64
      %v6255 = vpop.permute.xlu0 %6254
      %6258 = vrot.lane.b32.xlu0 %v6172, 96
      %v6259 = vpop.permute.xlu0 %6258
      %6262 = vrot.lane.b32.xlu0 %v6174, 32
      %v6263 = vpop.permute.xlu0 %6262
      %6266 = vrot.lane.b32.xlu0 %v6168, 64
      %v6267 = vpop.permute.xlu0 %6266
      %6270 = vrot.lane.b32.xlu0 %v6176, 96
      %v6271 = vpop.permute.xlu0 %6270
      %v6273 = vsel %vm728, %v5984, %v6179
      %v6274 = vsel %vm732, %v6273, %v6183
      %v6275 = vsel %vm736, %v6274, %v6187
      %v6276 = vsel %vm728, %v5996, %v6191
      %v6277 = vsel %vm732, %v6276, %v6195
      %v6278 = vsel %vm736, %v6277, %v6199
      %v6279 = vsel %vm728, %v6040, %v6203
      %v6280 = vsel %vm732, %v6279, %v6207
      %v6281 = vsel %vm736, %v6280, %v6211
      %v6282 = vsel %vm728, %v6052, %v6215
      %v6283 = vsel %vm732, %v6282, %v6219
      %v6284 = vsel %vm736, %v6283, %v6223
      %v6285 = vsel %vm728, %v6096, %v6227
      %v6286 = vsel %vm732, %v6285, %v6231
      %v6287 = vsel %vm736, %v6286, %v6235
      %v6288 = vsel %vm728, %v6108, %v6239
      %v6289 = vsel %vm732, %v6288, %v6243
      %v6290 = vsel %vm736, %v6289, %v6247
      %v6291 = vsel %vm728, %v6152, %v6251
      %v6292 = vsel %vm732, %v6291, %v6255
      %v6293 = vsel %vm736, %v6292, %v6259
      %v6294 = vsel %vm728, %v6164, %v6263
      %v6295 = vsel %vm732, %v6294, %v6267
      %v6296 = vsel %vm736, %v6295, %v6271
      %v6305 = vrot.slane %v6275, 4
      %v6306 = vrot.slane %v6278, 4
      %v6307 = vrot.slane %v6281, 4
      %v6308 = vrot.slane %v6284, 4
      %v6309 = vrot.slane %v6287, 4
      %v6310 = vrot.slane %v6290, 4
      %v6311 = vrot.slane %v6293, 4
      %v6312 = vrot.slane %v6296, 4
      %6321 = vst [vmem:[#allocation5 + $0x40] sm:$0xf0] %v6305
      %6322 = vst [vmem:[#allocation5 + $0x48] sm:$0xf0] %v6306
      %6323 = vst [vmem:[#allocation5 + $0x50] sm:$0xf0] %v6307
      %6324 = vst [vmem:[#allocation5 + $0x58] sm:$0xf0] %v6308
      %6325 = vst [vmem:[#allocation5 + $0x60] sm:$0xf0] %v6309
      %6326 = vst [vmem:[#allocation5 + $0x68] sm:$0xf0] %v6310
      %6327 = vst [vmem:[#allocation5 + $0x70] sm:$0xf0] %v6311
      %6328 = vst [vmem:[#allocation5 + $0x78] sm:$0xf0] %v6312
      %v6329 = vld [vmem:[#allocation4 + $0x1] sm:$0xff]
      %v6330 = vld [vmem:[#allocation4 + $0x9] sm:$0xff]
      %v6331 = vld [vmem:[#allocation4 + $0x11] sm:$0xff]
      %v6332 = vld [vmem:[#allocation4 + $0x19] sm:$0xff]
      %v6333 = vld [vmem:[#allocation4 + $0x29] sm:$0xff]
      %v6334 = vld [vmem:[#allocation4 + $0x31] sm:$0xff]
      %v6335 = vld [vmem:[#allocation4 + $0x39] sm:$0xff]
      %v6336 = vld [vmem:[#allocation4 + $0x41] sm:$0xff]
      %v6337 = vld [vmem:[#allocation4 + $0x51] sm:$0xff]
      %v6338 = vld [vmem:[#allocation4 + $0x59] sm:$0xff]
      %v6339 = vld [vmem:[#allocation4 + $0x61] sm:$0xff]
      %v6340 = vld [vmem:[#allocation4 + $0x69] sm:$0xff]
      %v6341 = vld [vmem:[#allocation4 + $0x79] sm:$0xff]
      %v6342 = vld [vmem:[#allocation4 + $0x81] sm:$0xff]
      %v6343 = vld [vmem:[#allocation4 + $0x89] sm:$0xff]
      %v6344 = vld [vmem:[#allocation4 + $0x91] sm:$0xff]
      %6361 = vrot.lane.b32.xlu0 %v6329, 127
      %v6362 = vpop.permute.xlu0 %6361
      %6363 = vrot.lane.b32.xlu0 %v6330, 127
      %v6364 = vpop.permute.xlu0 %6363
      %6365 = vrot.lane.b32.xlu0 %v6331, 127
      %v6366 = vpop.permute.xlu0 %6365
      %6367 = vrot.lane.b32.xlu0 %v6332, 127
      %v6368 = vpop.permute.xlu0 %6367
      %6369 = vrot.lane.b32.xlu0 %v6333, 127
      %v6370 = vpop.permute.xlu0 %6369
      %6371 = vrot.lane.b32.xlu0 %v6334, 127
      %v6372 = vpop.permute.xlu0 %6371
      %6373 = vrot.lane.b32.xlu0 %v6335, 127
      %v6374 = vpop.permute.xlu0 %6373
      %6375 = vrot.lane.b32.xlu0 %v6336, 127
      %v6376 = vpop.permute.xlu0 %6375
      %6377 = vrot.lane.b32.xlu0 %v6337, 127
      %v6378 = vpop.permute.xlu0 %6377
      %6379 = vrot.lane.b32.xlu0 %v6338, 127
      %v6380 = vpop.permute.xlu0 %6379
      %6381 = vrot.lane.b32.xlu0 %v6339, 127
      %v6382 = vpop.permute.xlu0 %6381
      %6383 = vrot.lane.b32.xlu0 %v6340, 127
      %v6384 = vpop.permute.xlu0 %6383
      %6385 = vrot.lane.b32.xlu0 %v6341, 127
      %v6386 = vpop.permute.xlu0 %6385
      %6387 = vrot.lane.b32.xlu0 %v6342, 127
      %v6388 = vpop.permute.xlu0 %6387
      %6389 = vrot.lane.b32.xlu0 %v6343, 127
      %v6390 = vpop.permute.xlu0 %6389
      %6391 = vrot.lane.b32.xlu0 %v6344, 127
      %v6392 = vpop.permute.xlu0 %6391
      %v6409 = vrot.slane %v6378, 4
      %v6410 = vsel %vm446, %v6409, %v6362
      %v6411 = vrot.slane %v6362, 4
      %v6412 = vsel %vm446, %v6378, %v6411
      %v6414 = vunpack.c.l.s4 1983009808
      %v6415 = vunpack.c.0.s8 %v6414
      %v6416 = vperm.slane %v6410, %v6415
      %v6418 = vunpack.c.l.s4 1983009808
      %v6419 = vunpack.c.0.s8 %v6418
      %v6420 = vperm.slane %v6412, %v6419
      %v6421 = vrot.slane %v6386, 4
      %v6422 = vsel %vm446, %v6421, %v6370
      %v6423 = vrot.slane %v6370, 4
      %v6424 = vsel %vm446, %v6386, %v6423
      %v6426 = vunpack.c.l.s4 1983009808
      %v6427 = vunpack.c.0.s8 %v6426
      %v6428 = vperm.slane %v6422, %v6427
      %v6430 = vunpack.c.l.s4 1983009808
      %v6431 = vunpack.c.0.s8 %v6430
      %v6432 = vperm.slane %v6424, %v6431
      %v6433 = vrot.slane %v6428, 4
      %v6434 = vsel %vm446, %v6433, %v6416
      %v6435 = vrot.slane %v6416, 4
      %v6436 = vsel %vm446, %v6428, %v6435
      %v6438 = vunpack.c.l.s4 1934713408
      %v6439 = vunpack.c.0.s8 %v6438
      %v6440 = vperm.slane %v6434, %v6439
      %v6442 = vunpack.c.l.s4 1934713408
      %v6443 = vunpack.c.0.s8 %v6442
      %v6444 = vperm.slane %v6436, %v6443
      %v6445 = vrot.slane %v6432, 4
      %v6446 = vsel %vm446, %v6445, %v6420
      %v6447 = vrot.slane %v6420, 4
      %v6448 = vsel %vm446, %v6432, %v6447
      %v6450 = vunpack.c.l.s4 1934713408
      %v6451 = vunpack.c.0.s8 %v6450
      %v6452 = vperm.slane %v6446, %v6451
      %v6454 = vunpack.c.l.s4 1934713408
      %v6455 = vunpack.c.0.s8 %v6454
      %v6456 = vperm.slane %v6448, %v6455
      %v6457 = vrot.slane %v6440, 4
      %v6458 = vsel %vm446, 0.0, %v6457
      %v6459 = vrot.slane %v6444, 4
      %v6460 = vsel %vm446, 0.0, %v6459
      %v6461 = vrot.slane %v6452, 4
      %v6462 = vsel %vm446, 0.0, %v6461
      %v6463 = vrot.slane %v6456, 4
      %v6464 = vsel %vm446, 0.0, %v6463
      %v6465 = vrot.slane %v6380, 4
      %v6466 = vsel %vm446, %v6465, %v6364
      %v6467 = vrot.slane %v6364, 4
      %v6468 = vsel %vm446, %v6380, %v6467
      %v6470 = vunpack.c.l.s4 1983009808
      %v6471 = vunpack.c.0.s8 %v6470
      %v6472 = vperm.slane %v6466, %v6471
      %v6474 = vunpack.c.l.s4 1983009808
      %v6475 = vunpack.c.0.s8 %v6474
      %v6476 = vperm.slane %v6468, %v6475
      %v6477 = vrot.slane %v6388, 4
      %v6478 = vsel %vm446, %v6477, %v6372
      %v6479 = vrot.slane %v6372, 4
      %v6480 = vsel %vm446, %v6388, %v6479
      %v6482 = vunpack.c.l.s4 1983009808
      %v6483 = vunpack.c.0.s8 %v6482
      %v6484 = vperm.slane %v6478, %v6483
      %v6486 = vunpack.c.l.s4 1983009808
      %v6487 = vunpack.c.0.s8 %v6486
      %v6488 = vperm.slane %v6480, %v6487
      %v6489 = vrot.slane %v6484, 4
      %v6490 = vsel %vm446, %v6489, %v6472
      %v6491 = vrot.slane %v6472, 4
      %v6492 = vsel %vm446, %v6484, %v6491
      %v6494 = vunpack.c.l.s4 1934713408
      %v6495 = vunpack.c.0.s8 %v6494
      %v6496 = vperm.slane %v6490, %v6495
      %v6498 = vunpack.c.l.s4 1934713408
      %v6499 = vunpack.c.0.s8 %v6498
      %v6500 = vperm.slane %v6492, %v6499
      %v6501 = vrot.slane %v6488, 4
      %v6502 = vsel %vm446, %v6501, %v6476
      %v6503 = vrot.slane %v6476, 4
      %v6504 = vsel %vm446, %v6488, %v6503
      %v6506 = vunpack.c.l.s4 1934713408
      %v6507 = vunpack.c.0.s8 %v6506
      %v6508 = vperm.slane %v6502, %v6507
      %v6510 = vunpack.c.l.s4 1934713408
      %v6511 = vunpack.c.0.s8 %v6510
      %v6512 = vperm.slane %v6504, %v6511
      %v6513 = vrot.slane %v6496, 4
      %v6514 = vsel %vm446, 0.0, %v6513
      %v6515 = vrot.slane %v6500, 4
      %v6516 = vsel %vm446, 0.0, %v6515
      %v6517 = vrot.slane %v6508, 4
      %v6518 = vsel %vm446, 0.0, %v6517
      %v6519 = vrot.slane %v6512, 4
      %v6520 = vsel %vm446, 0.0, %v6519
      %v6521 = vrot.slane %v6382, 4
      %v6522 = vsel %vm446, %v6521, %v6366
      %v6523 = vrot.slane %v6366, 4
      %v6524 = vsel %vm446, %v6382, %v6523
      %v6526 = vunpack.c.l.s4 1983009808
      %v6527 = vunpack.c.0.s8 %v6526
      %v6528 = vperm.slane %v6522, %v6527
      %v6530 = vunpack.c.l.s4 1983009808
      %v6531 = vunpack.c.0.s8 %v6530
      %v6532 = vperm.slane %v6524, %v6531
      %v6533 = vrot.slane %v6390, 4
      %v6534 = vsel %vm446, %v6533, %v6374
      %v6535 = vrot.slane %v6374, 4
      %v6536 = vsel %vm446, %v6390, %v6535
      %v6538 = vunpack.c.l.s4 1983009808
      %v6539 = vunpack.c.0.s8 %v6538
      %v6540 = vperm.slane %v6534, %v6539
      %v6542 = vunpack.c.l.s4 1983009808
      %v6543 = vunpack.c.0.s8 %v6542
      %v6544 = vperm.slane %v6536, %v6543
      %v6545 = vrot.slane %v6540, 4
      %v6546 = vsel %vm446, %v6545, %v6528
      %v6547 = vrot.slane %v6528, 4
      %v6548 = vsel %vm446, %v6540, %v6547
      %v6550 = vunpack.c.l.s4 1934713408
      %v6551 = vunpack.c.0.s8 %v6550
      %v6552 = vperm.slane %v6546, %v6551
      %v6554 = vunpack.c.l.s4 1934713408
      %v6555 = vunpack.c.0.s8 %v6554
      %v6556 = vperm.slane %v6548, %v6555
      %v6557 = vrot.slane %v6544, 4
      %v6558 = vsel %vm446, %v6557, %v6532
      %v6559 = vrot.slane %v6532, 4
      %v6560 = vsel %vm446, %v6544, %v6559
      %v6562 = vunpack.c.l.s4 1934713408
      %v6563 = vunpack.c.0.s8 %v6562
      %v6564 = vperm.slane %v6558, %v6563
      %v6566 = vunpack.c.l.s4 1934713408
      %v6567 = vunpack.c.0.s8 %v6566
      %v6568 = vperm.slane %v6560, %v6567
      %v6569 = vrot.slane %v6552, 4
      %v6570 = vsel %vm446, 0.0, %v6569
      %v6571 = vrot.slane %v6556, 4
      %v6572 = vsel %vm446, 0.0, %v6571
      %v6573 = vrot.slane %v6564, 4
      %v6574 = vsel %vm446, 0.0, %v6573
      %v6575 = vrot.slane %v6568, 4
      %v6576 = vsel %vm446, 0.0, %v6575
      %v6577 = vrot.slane %v6384, 4
      %v6578 = vsel %vm446, %v6577, %v6368
      %v6579 = vrot.slane %v6368, 4
      %v6580 = vsel %vm446, %v6384, %v6579
      %v6582 = vunpack.c.l.s4 1983009808
      %v6583 = vunpack.c.0.s8 %v6582
      %v6584 = vperm.slane %v6578, %v6583
      %v6586 = vunpack.c.l.s4 1983009808
      %v6587 = vunpack.c.0.s8 %v6586
      %v6588 = vperm.slane %v6580, %v6587
      %v6589 = vrot.slane %v6392, 4
      %v6590 = vsel %vm446, %v6589, %v6376
      %v6591 = vrot.slane %v6376, 4
      %v6592 = vsel %vm446, %v6392, %v6591
      %v6594 = vunpack.c.l.s4 1983009808
      %v6595 = vunpack.c.0.s8 %v6594
      %v6596 = vperm.slane %v6590, %v6595
      %v6598 = vunpack.c.l.s4 1983009808
      %v6599 = vunpack.c.0.s8 %v6598
      %v6600 = vperm.slane %v6592, %v6599
      %v6601 = vrot.slane %v6596, 4
      %v6602 = vsel %vm446, %v6601, %v6584
      %v6603 = vrot.slane %v6584, 4
      %v6604 = vsel %vm446, %v6596, %v6603
      %v6606 = vunpack.c.l.s4 1934713408
      %v6607 = vunpack.c.0.s8 %v6606
      %v6608 = vperm.slane %v6602, %v6607
      %v6610 = vunpack.c.l.s4 1934713408
      %v6611 = vunpack.c.0.s8 %v6610
      %v6612 = vperm.slane %v6604, %v6611
      %v6613 = vrot.slane %v6600, 4
      %v6614 = vsel %vm446, %v6613, %v6588
      %v6615 = vrot.slane %v6588, 4
      %v6616 = vsel %vm446, %v6600, %v6615
      %v6618 = vunpack.c.l.s4 1934713408
      %v6619 = vunpack.c.0.s8 %v6618
      %v6620 = vperm.slane %v6614, %v6619
      %v6622 = vunpack.c.l.s4 1934713408
      %v6623 = vunpack.c.0.s8 %v6622
      %v6624 = vperm.slane %v6616, %v6623
      %v6625 = vrot.slane %v6608, 4
      %v6626 = vsel %vm446, 0.0, %v6625
      %v6627 = vrot.slane %v6612, 4
      %v6628 = vsel %vm446, 0.0, %v6627
      %v6629 = vrot.slane %v6620, 4
      %v6630 = vsel %vm446, 0.0, %v6629
      %v6631 = vrot.slane %v6624, 4
      %v6632 = vsel %vm446, 0.0, %v6631
      %6634 = vrot.lane.b32.xlu0 %v6458, 32
      %v6635 = vpop.permute.xlu0 %6634
      %6638 = vrot.lane.b32.xlu0 %v6444, 64
      %v6639 = vpop.permute.xlu0 %6638
      %6642 = vrot.lane.b32.xlu0 %v6460, 96
      %v6643 = vpop.permute.xlu0 %6642
      %6646 = vrot.lane.b32.xlu0 %v6462, 32
      %v6647 = vpop.permute.xlu0 %6646
      %6650 = vrot.lane.b32.xlu0 %v6456, 64
      %v6651 = vpop.permute.xlu0 %6650
      %6654 = vrot.lane.b32.xlu0 %v6464, 96
      %v6655 = vpop.permute.xlu0 %6654
      %6658 = vrot.lane.b32.xlu0 %v6514, 32
      %v6659 = vpop.permute.xlu0 %6658
      %6662 = vrot.lane.b32.xlu0 %v6500, 64
      %v6663 = vpop.permute.xlu0 %6662
      %6666 = vrot.lane.b32.xlu0 %v6516, 96
      %v6667 = vpop.permute.xlu0 %6666
      %6670 = vrot.lane.b32.xlu0 %v6518, 32
      %v6671 = vpop.permute.xlu0 %6670
      %6674 = vrot.lane.b32.xlu0 %v6512, 64
      %v6675 = vpop.permute.xlu0 %6674
      %6678 = vrot.lane.b32.xlu0 %v6520, 96
      %v6679 = vpop.permute.xlu0 %6678
      %6682 = vrot.lane.b32.xlu0 %v6570, 32
      %v6683 = vpop.permute.xlu0 %6682
      %6686 = vrot.lane.b32.xlu0 %v6556, 64
      %v6687 = vpop.permute.xlu0 %6686
      %6690 = vrot.lane.b32.xlu0 %v6572, 96
      %v6691 = vpop.permute.xlu0 %6690
      %6694 = vrot.lane.b32.xlu0 %v6574, 32
      %v6695 = vpop.permute.xlu0 %6694
      %6698 = vrot.lane.b32.xlu0 %v6568, 64
      %v6699 = vpop.permute.xlu0 %6698
      %6702 = vrot.lane.b32.xlu0 %v6576, 96
      %v6703 = vpop.permute.xlu0 %6702
      %6706 = vrot.lane.b32.xlu0 %v6626, 32
      %v6707 = vpop.permute.xlu0 %6706
      %6710 = vrot.lane.b32.xlu0 %v6612, 64
      %v6711 = vpop.permute.xlu0 %6710
      %6714 = vrot.lane.b32.xlu0 %v6628, 96
      %v6715 = vpop.permute.xlu0 %6714
      %6718 = vrot.lane.b32.xlu0 %v6630, 32
      %v6719 = vpop.permute.xlu0 %6718
      %6722 = vrot.lane.b32.xlu0 %v6624, 64
      %v6723 = vpop.permute.xlu0 %6722
      %6726 = vrot.lane.b32.xlu0 %v6632, 96
      %v6727 = vpop.permute.xlu0 %6726
      %v6729 = vsel %vm728, %v6440, %v6635
      %v6730 = vsel %vm732, %v6729, %v6639
      %v6731 = vsel %vm736, %v6730, %v6643
      %v6732 = vsel %vm728, %v6452, %v6647
      %v6733 = vsel %vm732, %v6732, %v6651
      %v6734 = vsel %vm736, %v6733, %v6655
      %v6735 = vsel %vm728, %v6496, %v6659
      %v6736 = vsel %vm732, %v6735, %v6663
      %v6737 = vsel %vm736, %v6736, %v6667
      %v6738 = vsel %vm728, %v6508, %v6671
      %v6739 = vsel %vm732, %v6738, %v6675
      %v6740 = vsel %vm736, %v6739, %v6679
      %v6741 = vsel %vm728, %v6552, %v6683
      %v6742 = vsel %vm732, %v6741, %v6687
      %v6743 = vsel %vm736, %v6742, %v6691
      %v6744 = vsel %vm728, %v6564, %v6695
      %v6745 = vsel %vm732, %v6744, %v6699
      %v6746 = vsel %vm736, %v6745, %v6703
      %v6747 = vsel %vm728, %v6608, %v6707
      %v6748 = vsel %vm732, %v6747, %v6711
      %v6749 = vsel %vm736, %v6748, %v6715
      %v6750 = vsel %vm728, %v6620, %v6719
      %v6751 = vsel %vm732, %v6750, %v6723
      %v6752 = vsel %vm736, %v6751, %v6727
      %6753 = vst [vmem:[#allocation5 + $0x80] sm:$0xf] %v6731
      %6754 = vst [vmem:[#allocation5 + $0x88] sm:$0xf] %v6734
      %6755 = vst [vmem:[#allocation5 + $0x90] sm:$0xf] %v6737
      %6756 = vst [vmem:[#allocation5 + $0x98] sm:$0xf] %v6740
      %6757 = vst [vmem:[#allocation5 + $0xa0] sm:$0xf] %v6743
      %6758 = vst [vmem:[#allocation5 + $0xa8] sm:$0xf] %v6746
      %6759 = vst [vmem:[#allocation5 + $0xb0] sm:$0xf] %v6749
      %6760 = vst [vmem:[#allocation5 + $0xb8] sm:$0xf] %v6752
      %v6761 = vld [vmem:[#allocation4 + $0x1] sm:$0xff]
      %v6762 = vld [vmem:[#allocation4 + $0x9] sm:$0xff]
      %v6763 = vld [vmem:[#allocation4 + $0x11] sm:$0xff]
      %v6764 = vld [vmem:[#allocation4 + $0x19] sm:$0xff]
      %v6765 = vld [vmem:[#allocation4 + $0x29] sm:$0xff]
      %v6766 = vld [vmem:[#allocation4 + $0x31] sm:$0xff]
      %v6767 = vld [vmem:[#allocation4 + $0x39] sm:$0xff]
      %v6768 = vld [vmem:[#allocation4 + $0x41] sm:$0xff]
      %v6769 = vld [vmem:[#allocation4 + $0x51] sm:$0xff]
      %v6770 = vld [vmem:[#allocation4 + $0x59] sm:$0xff]
      %v6771 = vld [vmem:[#allocation4 + $0x61] sm:$0xff]
      %v6772 = vld [vmem:[#allocation4 + $0x69] sm:$0xff]
      %v6773 = vld [vmem:[#allocation4 + $0x79] sm:$0xff]
      %v6774 = vld [vmem:[#allocation4 + $0x81] sm:$0xff]
      %v6775 = vld [vmem:[#allocation4 + $0x89] sm:$0xff]
      %v6776 = vld [vmem:[#allocation4 + $0x91] sm:$0xff]
      %6793 = vrot.lane.b32.xlu0 %v6761, 126
      %v6794 = vpop.permute.xlu0 %6793
      %6795 = vrot.lane.b32.xlu0 %v6762, 126
      %v6796 = vpop.permute.xlu0 %6795
      %6797 = vrot.lane.b32.xlu0 %v6763, 126
      %v6798 = vpop.permute.xlu0 %6797
      %6799 = vrot.lane.b32.xlu0 %v6764, 126
      %v6800 = vpop.permute.xlu0 %6799
      %6801 = vrot.lane.b32.xlu0 %v6765, 126
      %v6802 = vpop.permute.xlu0 %6801
      %6803 = vrot.lane.b32.xlu0 %v6766, 126
      %v6804 = vpop.permute.xlu0 %6803
      %6805 = vrot.lane.b32.xlu0 %v6767, 126
      %v6806 = vpop.permute.xlu0 %6805
      %6807 = vrot.lane.b32.xlu0 %v6768, 126
      %v6808 = vpop.permute.xlu0 %6807
      %6809 = vrot.lane.b32.xlu0 %v6769, 126
      %v6810 = vpop.permute.xlu0 %6809
      %6811 = vrot.lane.b32.xlu0 %v6770, 126
      %v6812 = vpop.permute.xlu0 %6811
      %6813 = vrot.lane.b32.xlu0 %v6771, 126
      %v6814 = vpop.permute.xlu0 %6813
      %6815 = vrot.lane.b32.xlu0 %v6772, 126
      %v6816 = vpop.permute.xlu0 %6815
      %6817 = vrot.lane.b32.xlu0 %v6773, 126
      %v6818 = vpop.permute.xlu0 %6817
      %6819 = vrot.lane.b32.xlu0 %v6774, 126
      %v6820 = vpop.permute.xlu0 %6819
      %6821 = vrot.lane.b32.xlu0 %v6775, 126
      %v6822 = vpop.permute.xlu0 %6821
      %6823 = vrot.lane.b32.xlu0 %v6776, 126
      %v6824 = vpop.permute.xlu0 %6823
      %v6841 = vrot.slane %v6810, 4
      %v6842 = vsel %vm446, %v6841, %v6794
      %v6843 = vrot.slane %v6794, 4
      %v6844 = vsel %vm446, %v6810, %v6843
      %v6846 = vunpack.c.l.s4 1983009808
      %v6847 = vunpack.c.0.s8 %v6846
      %v6848 = vperm.slane %v6842, %v6847
      %v6850 = vunpack.c.l.s4 1983009808
      %v6851 = vunpack.c.0.s8 %v6850
      %v6852 = vperm.slane %v6844, %v6851
      %v6853 = vrot.slane %v6818, 4
      %v6854 = vsel %vm446, %v6853, %v6802
      %v6855 = vrot.slane %v6802, 4
      %v6856 = vsel %vm446, %v6818, %v6855
      %v6858 = vunpack.c.l.s4 1983009808
      %v6859 = vunpack.c.0.s8 %v6858
      %v6860 = vperm.slane %v6854, %v6859
      %v6862 = vunpack.c.l.s4 1983009808
      %v6863 = vunpack.c.0.s8 %v6862
      %v6864 = vperm.slane %v6856, %v6863
      %v6865 = vrot.slane %v6860, 4
      %v6866 = vsel %vm446, %v6865, %v6848
      %v6867 = vrot.slane %v6848, 4
      %v6868 = vsel %vm446, %v6860, %v6867
      %v6870 = vunpack.c.l.s4 1934713408
      %v6871 = vunpack.c.0.s8 %v6870
      %v6872 = vperm.slane %v6866, %v6871
      %v6874 = vunpack.c.l.s4 1934713408
      %v6875 = vunpack.c.0.s8 %v6874
      %v6876 = vperm.slane %v6868, %v6875
      %v6877 = vrot.slane %v6864, 4
      %v6878 = vsel %vm446, %v6877, %v6852
      %v6879 = vrot.slane %v6852, 4
      %v6880 = vsel %vm446, %v6864, %v6879
      %v6882 = vunpack.c.l.s4 1934713408
      %v6883 = vunpack.c.0.s8 %v6882
      %v6884 = vperm.slane %v6878, %v6883
      %v6886 = vunpack.c.l.s4 1934713408
      %v6887 = vunpack.c.0.s8 %v6886
      %v6888 = vperm.slane %v6880, %v6887
      %v6889 = vrot.slane %v6872, 4
      %v6890 = vsel %vm446, 0.0, %v6889
      %v6891 = vrot.slane %v6876, 4
      %v6892 = vsel %vm446, 0.0, %v6891
      %v6893 = vrot.slane %v6884, 4
      %v6894 = vsel %vm446, 0.0, %v6893
      %v6895 = vrot.slane %v6888, 4
      %v6896 = vsel %vm446, 0.0, %v6895
      %v6897 = vrot.slane %v6812, 4
      %v6898 = vsel %vm446, %v6897, %v6796
      %v6899 = vrot.slane %v6796, 4
      %v6900 = vsel %vm446, %v6812, %v6899
      %v6902 = vunpack.c.l.s4 1983009808
      %v6903 = vunpack.c.0.s8 %v6902
      %v6904 = vperm.slane %v6898, %v6903
      %v6906 = vunpack.c.l.s4 1983009808
      %v6907 = vunpack.c.0.s8 %v6906
      %v6908 = vperm.slane %v6900, %v6907
      %v6909 = vrot.slane %v6820, 4
      %v6910 = vsel %vm446, %v6909, %v6804
      %v6911 = vrot.slane %v6804, 4
      %v6912 = vsel %vm446, %v6820, %v6911
      %v6914 = vunpack.c.l.s4 1983009808
      %v6915 = vunpack.c.0.s8 %v6914
      %v6916 = vperm.slane %v6910, %v6915
      %v6918 = vunpack.c.l.s4 1983009808
      %v6919 = vunpack.c.0.s8 %v6918
      %v6920 = vperm.slane %v6912, %v6919
      %v6921 = vrot.slane %v6916, 4
      %v6922 = vsel %vm446, %v6921, %v6904
      %v6923 = vrot.slane %v6904, 4
      %v6924 = vsel %vm446, %v6916, %v6923
      %v6926 = vunpack.c.l.s4 1934713408
      %v6927 = vunpack.c.0.s8 %v6926
      %v6928 = vperm.slane %v6922, %v6927
      %v6930 = vunpack.c.l.s4 1934713408
      %v6931 = vunpack.c.0.s8 %v6930
      %v6932 = vperm.slane %v6924, %v6931
      %v6933 = vrot.slane %v6920, 4
      %v6934 = vsel %vm446, %v6933, %v6908
      %v6935 = vrot.slane %v6908, 4
      %v6936 = vsel %vm446, %v6920, %v6935
      %v6938 = vunpack.c.l.s4 1934713408
      %v6939 = vunpack.c.0.s8 %v6938
      %v6940 = vperm.slane %v6934, %v6939
      %v6942 = vunpack.c.l.s4 1934713408
      %v6943 = vunpack.c.0.s8 %v6942
      %v6944 = vperm.slane %v6936, %v6943
      %v6945 = vrot.slane %v6928, 4
      %v6946 = vsel %vm446, 0.0, %v6945
      %v6947 = vrot.slane %v6932, 4
      %v6948 = vsel %vm446, 0.0, %v6947
      %v6949 = vrot.slane %v6940, 4
      %v6950 = vsel %vm446, 0.0, %v6949
      %v6951 = vrot.slane %v6944, 4
      %v6952 = vsel %vm446, 0.0, %v6951
      %v6953 = vrot.slane %v6814, 4
      %v6954 = vsel %vm446, %v6953, %v6798
      %v6955 = vrot.slane %v6798, 4
      %v6956 = vsel %vm446, %v6814, %v6955
      %v6958 = vunpack.c.l.s4 1983009808
      %v6959 = vunpack.c.0.s8 %v6958
      %v6960 = vperm.slane %v6954, %v6959
      %v6962 = vunpack.c.l.s4 1983009808
      %v6963 = vunpack.c.0.s8 %v6962
      %v6964 = vperm.slane %v6956, %v6963
      %v6965 = vrot.slane %v6822, 4
      %v6966 = vsel %vm446, %v6965, %v6806
      %v6967 = vrot.slane %v6806, 4
      %v6968 = vsel %vm446, %v6822, %v6967
      %v6970 = vunpack.c.l.s4 1983009808
      %v6971 = vunpack.c.0.s8 %v6970
      %v6972 = vperm.slane %v6966, %v6971
      %v6974 = vunpack.c.l.s4 1983009808
      %v6975 = vunpack.c.0.s8 %v6974
      %v6976 = vperm.slane %v6968, %v6975
      %v6977 = vrot.slane %v6972, 4
      %v6978 = vsel %vm446, %v6977, %v6960
      %v6979 = vrot.slane %v6960, 4
      %v6980 = vsel %vm446, %v6972, %v6979
      %v6982 = vunpack.c.l.s4 1934713408
      %v6983 = vunpack.c.0.s8 %v6982
      %v6984 = vperm.slane %v6978, %v6983
      %v6986 = vunpack.c.l.s4 1934713408
      %v6987 = vunpack.c.0.s8 %v6986
      %v6988 = vperm.slane %v6980, %v6987
      %v6989 = vrot.slane %v6976, 4
      %v6990 = vsel %vm446, %v6989, %v6964
      %v6991 = vrot.slane %v6964, 4
      %v6992 = vsel %vm446, %v6976, %v6991
      %v6994 = vunpack.c.l.s4 1934713408
      %v6995 = vunpack.c.0.s8 %v6994
      %v6996 = vperm.slane %v6990, %v6995
      %v6998 = vunpack.c.l.s4 1934713408
      %v6999 = vunpack.c.0.s8 %v6998
      %v7000 = vperm.slane %v6992, %v6999
      %v7001 = vrot.slane %v6984, 4
      %v7002 = vsel %vm446, 0.0, %v7001
      %v7003 = vrot.slane %v6988, 4
      %v7004 = vsel %vm446, 0.0, %v7003
      %v7005 = vrot.slane %v6996, 4
      %v7006 = vsel %vm446, 0.0, %v7005
      %v7007 = vrot.slane %v7000, 4
      %v7008 = vsel %vm446, 0.0, %v7007
      %v7009 = vrot.slane %v6816, 4
      %v7010 = vsel %vm446, %v7009, %v6800
      %v7011 = vrot.slane %v6800, 4
      %v7012 = vsel %vm446, %v6816, %v7011
      %v7014 = vunpack.c.l.s4 1983009808
      %v7015 = vunpack.c.0.s8 %v7014
      %v7016 = vperm.slane %v7010, %v7015
      %v7018 = vunpack.c.l.s4 1983009808
      %v7019 = vunpack.c.0.s8 %v7018
      %v7020 = vperm.slane %v7012, %v7019
      %v7021 = vrot.slane %v6824, 4
      %v7022 = vsel %vm446, %v7021, %v6808
      %v7023 = vrot.slane %v6808, 4
      %v7024 = vsel %vm446, %v6824, %v7023
      %v7026 = vunpack.c.l.s4 1983009808
      %v7027 = vunpack.c.0.s8 %v7026
      %v7028 = vperm.slane %v7022, %v7027
      %v7030 = vunpack.c.l.s4 1983009808
      %v7031 = vunpack.c.0.s8 %v7030
      %v7032 = vperm.slane %v7024, %v7031
      %v7033 = vrot.slane %v7028, 4
      %v7034 = vsel %vm446, %v7033, %v7016
      %v7035 = vrot.slane %v7016, 4
      %v7036 = vsel %vm446, %v7028, %v7035
      %v7038 = vunpack.c.l.s4 1934713408
      %v7039 = vunpack.c.0.s8 %v7038
      %v7040 = vperm.slane %v7034, %v7039
      %v7042 = vunpack.c.l.s4 1934713408
      %v7043 = vunpack.c.0.s8 %v7042
      %v7044 = vperm.slane %v7036, %v7043
      %v7045 = vrot.slane %v7032, 4
      %v7046 = vsel %vm446, %v7045, %v7020
      %v7047 = vrot.slane %v7020, 4
      %v7048 = vsel %vm446, %v7032, %v7047
      %v7050 = vunpack.c.l.s4 1934713408
      %v7051 = vunpack.c.0.s8 %v7050
      %v7052 = vperm.slane %v7046, %v7051
      %v7054 = vunpack.c.l.s4 1934713408
      %v7055 = vunpack.c.0.s8 %v7054
      %v7056 = vperm.slane %v7048, %v7055
      %v7057 = vrot.slane %v7040, 4
      %v7058 = vsel %vm446, 0.0, %v7057
      %v7059 = vrot.slane %v7044, 4
      %v7060 = vsel %vm446, 0.0, %v7059
      %v7061 = vrot.slane %v7052, 4
      %v7062 = vsel %vm446, 0.0, %v7061
      %v7063 = vrot.slane %v7056, 4
      %v7064 = vsel %vm446, 0.0, %v7063
      %7066 = vrot.lane.b32.xlu0 %v6890, 32
      %v7067 = vpop.permute.xlu0 %7066
      %7070 = vrot.lane.b32.xlu0 %v6876, 64
      %v7071 = vpop.permute.xlu0 %7070
      %7074 = vrot.lane.b32.xlu0 %v6892, 96
      %v7075 = vpop.permute.xlu0 %7074
      %7078 = vrot.lane.b32.xlu0 %v6894, 32
      %v7079 = vpop.permute.xlu0 %7078
      %7082 = vrot.lane.b32.xlu0 %v6888, 64
      %v7083 = vpop.permute.xlu0 %7082
      %7086 = vrot.lane.b32.xlu0 %v6896, 96
      %v7087 = vpop.permute.xlu0 %7086
      %7090 = vrot.lane.b32.xlu0 %v6946, 32
      %v7091 = vpop.permute.xlu0 %7090
      %7094 = vrot.lane.b32.xlu0 %v6932, 64
      %v7095 = vpop.permute.xlu0 %7094
      %7098 = vrot.lane.b32.xlu0 %v6948, 96
      %v7099 = vpop.permute.xlu0 %7098
      %7102 = vrot.lane.b32.xlu0 %v6950, 32
      %v7103 = vpop.permute.xlu0 %7102
      %7106 = vrot.lane.b32.xlu0 %v6944, 64
      %v7107 = vpop.permute.xlu0 %7106
      %7110 = vrot.lane.b32.xlu0 %v6952, 96
      %v7111 = vpop.permute.xlu0 %7110
      %7114 = vrot.lane.b32.xlu0 %v7002, 32
      %v7115 = vpop.permute.xlu0 %7114
      %7118 = vrot.lane.b32.xlu0 %v6988, 64
      %v7119 = vpop.permute.xlu0 %7118
      %7122 = vrot.lane.b32.xlu0 %v7004, 96
      %v7123 = vpop.permute.xlu0 %7122
      %7126 = vrot.lane.b32.xlu0 %v7006, 32
      %v7127 = vpop.permute.xlu0 %7126
      %7130 = vrot.lane.b32.xlu0 %v7000, 64
      %v7131 = vpop.permute.xlu0 %7130
      %7134 = vrot.lane.b32.xlu0 %v7008, 96
      %v7135 = vpop.permute.xlu0 %7134
      %7138 = vrot.lane.b32.xlu0 %v7058, 32
      %v7139 = vpop.permute.xlu0 %7138
      %7142 = vrot.lane.b32.xlu0 %v7044, 64
      %v7143 = vpop.permute.xlu0 %7142
      %7146 = vrot.lane.b32.xlu0 %v7060, 96
      %v7147 = vpop.permute.xlu0 %7146
      %7150 = vrot.lane.b32.xlu0 %v7062, 32
      %v7151 = vpop.permute.xlu0 %7150
      %7154 = vrot.lane.b32.xlu0 %v7056, 64
      %v7155 = vpop.permute.xlu0 %7154
      %7158 = vrot.lane.b32.xlu0 %v7064, 96
      %v7159 = vpop.permute.xlu0 %7158
      %v7161 = vsel %vm728, %v6872, %v7067
      %v7162 = vsel %vm732, %v7161, %v7071
      %v7163 = vsel %vm736, %v7162, %v7075
      %v7164 = vsel %vm728, %v6884, %v7079
      %v7165 = vsel %vm732, %v7164, %v7083
      %v7166 = vsel %vm736, %v7165, %v7087
      %v7167 = vsel %vm728, %v6928, %v7091
      %v7168 = vsel %vm732, %v7167, %v7095
      %v7169 = vsel %vm736, %v7168, %v7099
      %v7170 = vsel %vm728, %v6940, %v7103
      %v7171 = vsel %vm732, %v7170, %v7107
      %v7172 = vsel %vm736, %v7171, %v7111
      %v7173 = vsel %vm728, %v6984, %v7115
      %v7174 = vsel %vm732, %v7173, %v7119
      %v7175 = vsel %vm736, %v7174, %v7123
      %v7176 = vsel %vm728, %v6996, %v7127
      %v7177 = vsel %vm732, %v7176, %v7131
      %v7178 = vsel %vm736, %v7177, %v7135
      %v7179 = vsel %vm728, %v7040, %v7139
      %v7180 = vsel %vm732, %v7179, %v7143
      %v7181 = vsel %vm736, %v7180, %v7147
      %v7182 = vsel %vm728, %v7052, %v7151
      %v7183 = vsel %vm732, %v7182, %v7155
      %v7184 = vsel %vm736, %v7183, %v7159
      %v7193 = vrot.slane %v7163, 4
      %v7194 = vrot.slane %v7166, 4
      %v7195 = vrot.slane %v7169, 4
      %v7196 = vrot.slane %v7172, 4
      %v7197 = vrot.slane %v7175, 4
      %v7198 = vrot.slane %v7178, 4
      %v7199 = vrot.slane %v7181, 4
      %v7200 = vrot.slane %v7184, 4
      %7209 = vst [vmem:[#allocation5 + $0x80] sm:$0xf0] %v7193
      %7210 = vst [vmem:[#allocation5 + $0x88] sm:$0xf0] %v7194
      %7211 = vst [vmem:[#allocation5 + $0x90] sm:$0xf0] %v7195
      %7212 = vst [vmem:[#allocation5 + $0x98] sm:$0xf0] %v7196
      %7213 = vst [vmem:[#allocation5 + $0xa0] sm:$0xf0] %v7197
      %7214 = vst [vmem:[#allocation5 + $0xa8] sm:$0xf0] %v7198
      %7215 = vst [vmem:[#allocation5 + $0xb0] sm:$0xf0] %v7199
      %7216 = vst [vmem:[#allocation5 + $0xb8] sm:$0xf0] %v7200
      %v7217 = vld [vmem:[#allocation4 + $0x2] sm:$0xff]
      %v7218 = vld [vmem:[#allocation4 + $0xa] sm:$0xff]
      %v7219 = vld [vmem:[#allocation4 + $0x12] sm:$0xff]
      %v7220 = vld [vmem:[#allocation4 + $0x1a] sm:$0xff]
      %v7221 = vld [vmem:[#allocation4 + $0x2a] sm:$0xff]
      %v7222 = vld [vmem:[#allocation4 + $0x32] sm:$0xff]
      %v7223 = vld [vmem:[#allocation4 + $0x3a] sm:$0xff]
      %v7224 = vld [vmem:[#allocation4 + $0x42] sm:$0xff]
      %v7225 = vld [vmem:[#allocation4 + $0x52] sm:$0xff]
      %v7226 = vld [vmem:[#allocation4 + $0x5a] sm:$0xff]
      %v7227 = vld [vmem:[#allocation4 + $0x62] sm:$0xff]
      %v7228 = vld [vmem:[#allocation4 + $0x6a] sm:$0xff]
      %v7229 = vld [vmem:[#allocation4 + $0x7a] sm:$0xff]
      %v7230 = vld [vmem:[#allocation4 + $0x82] sm:$0xff]
      %v7231 = vld [vmem:[#allocation4 + $0x8a] sm:$0xff]
      %v7232 = vld [vmem:[#allocation4 + $0x92] sm:$0xff]
      %v7233 = vrot.slane %v7225, 4
      %v7234 = vsel %vm446, %v7233, %v7217
      %v7235 = vrot.slane %v7217, 4
      %v7236 = vsel %vm446, %v7225, %v7235
      %v7238 = vunpack.c.l.s4 1983009808
      %v7239 = vunpack.c.0.s8 %v7238
      %v7240 = vperm.slane %v7234, %v7239
      %v7242 = vunpack.c.l.s4 1983009808
      %v7243 = vunpack.c.0.s8 %v7242
      %v7244 = vperm.slane %v7236, %v7243
      %v7245 = vrot.slane %v7229, 4
      %v7246 = vsel %vm446, %v7245, %v7221
      %v7247 = vrot.slane %v7221, 4
      %v7248 = vsel %vm446, %v7229, %v7247
      %v7250 = vunpack.c.l.s4 1983009808
      %v7251 = vunpack.c.0.s8 %v7250
      %v7252 = vperm.slane %v7246, %v7251
      %v7254 = vunpack.c.l.s4 1983009808
      %v7255 = vunpack.c.0.s8 %v7254
      %v7256 = vperm.slane %v7248, %v7255
      %v7257 = vrot.slane %v7252, 4
      %v7258 = vsel %vm446, %v7257, %v7240
      %v7259 = vrot.slane %v7240, 4
      %v7260 = vsel %vm446, %v7252, %v7259
      %v7262 = vunpack.c.l.s4 1934713408
      %v7263 = vunpack.c.0.s8 %v7262
      %v7264 = vperm.slane %v7258, %v7263
      %v7266 = vunpack.c.l.s4 1934713408
      %v7267 = vunpack.c.0.s8 %v7266
      %v7268 = vperm.slane %v7260, %v7267
      %v7269 = vrot.slane %v7256, 4
      %v7270 = vsel %vm446, %v7269, %v7244
      %v7271 = vrot.slane %v7244, 4
      %v7272 = vsel %vm446, %v7256, %v7271
      %v7274 = vunpack.c.l.s4 1934713408
      %v7275 = vunpack.c.0.s8 %v7274
      %v7276 = vperm.slane %v7270, %v7275
      %v7278 = vunpack.c.l.s4 1934713408
      %v7279 = vunpack.c.0.s8 %v7278
      %v7280 = vperm.slane %v7272, %v7279
      %v7281 = vrot.slane %v7264, 4
      %v7282 = vsel %vm446, 0.0, %v7281
      %v7283 = vrot.slane %v7268, 4
      %v7284 = vsel %vm446, 0.0, %v7283
      %v7285 = vrot.slane %v7276, 4
      %v7286 = vsel %vm446, 0.0, %v7285
      %v7287 = vrot.slane %v7280, 4
      %v7288 = vsel %vm446, 0.0, %v7287
      %v7289 = vrot.slane %v7226, 4
      %v7290 = vsel %vm446, %v7289, %v7218
      %v7291 = vrot.slane %v7218, 4
      %v7292 = vsel %vm446, %v7226, %v7291
      %v7294 = vunpack.c.l.s4 1983009808
      %v7295 = vunpack.c.0.s8 %v7294
      %v7296 = vperm.slane %v7290, %v7295
      %v7298 = vunpack.c.l.s4 1983009808
      %v7299 = vunpack.c.0.s8 %v7298
      %v7300 = vperm.slane %v7292, %v7299
      %v7301 = vrot.slane %v7230, 4
      %v7302 = vsel %vm446, %v7301, %v7222
      %v7303 = vrot.slane %v7222, 4
      %v7304 = vsel %vm446, %v7230, %v7303
      %v7306 = vunpack.c.l.s4 1983009808
      %v7307 = vunpack.c.0.s8 %v7306
      %v7308 = vperm.slane %v7302, %v7307
      %v7310 = vunpack.c.l.s4 1983009808
      %v7311 = vunpack.c.0.s8 %v7310
      %v7312 = vperm.slane %v7304, %v7311
      %v7313 = vrot.slane %v7308, 4
      %v7314 = vsel %vm446, %v7313, %v7296
      %v7315 = vrot.slane %v7296, 4
      %v7316 = vsel %vm446, %v7308, %v7315
      %v7318 = vunpack.c.l.s4 1934713408
      %v7319 = vunpack.c.0.s8 %v7318
      %v7320 = vperm.slane %v7314, %v7319
      %v7322 = vunpack.c.l.s4 1934713408
      %v7323 = vunpack.c.0.s8 %v7322
      %v7324 = vperm.slane %v7316, %v7323
      %v7325 = vrot.slane %v7312, 4
      %v7326 = vsel %vm446, %v7325, %v7300
      %v7327 = vrot.slane %v7300, 4
      %v7328 = vsel %vm446, %v7312, %v7327
      %v7330 = vunpack.c.l.s4 1934713408
      %v7331 = vunpack.c.0.s8 %v7330
      %v7332 = vperm.slane %v7326, %v7331
      %v7334 = vunpack.c.l.s4 1934713408
      %v7335 = vunpack.c.0.s8 %v7334
      %v7336 = vperm.slane %v7328, %v7335
      %v7337 = vrot.slane %v7320, 4
      %v7338 = vsel %vm446, 0.0, %v7337
      %v7339 = vrot.slane %v7324, 4
      %v7340 = vsel %vm446, 0.0, %v7339
      %v7341 = vrot.slane %v7332, 4
      %v7342 = vsel %vm446, 0.0, %v7341
      %v7343 = vrot.slane %v7336, 4
      %v7344 = vsel %vm446, 0.0, %v7343
      %v7345 = vrot.slane %v7227, 4
      %v7346 = vsel %vm446, %v7345, %v7219
      %v7347 = vrot.slane %v7219, 4
      %v7348 = vsel %vm446, %v7227, %v7347
      %v7350 = vunpack.c.l.s4 1983009808
      %v7351 = vunpack.c.0.s8 %v7350
      %v7352 = vperm.slane %v7346, %v7351
      %v7354 = vunpack.c.l.s4 1983009808
      %v7355 = vunpack.c.0.s8 %v7354
      %v7356 = vperm.slane %v7348, %v7355
      %v7357 = vrot.slane %v7231, 4
      %v7358 = vsel %vm446, %v7357, %v7223
      %v7359 = vrot.slane %v7223, 4
      %v7360 = vsel %vm446, %v7231, %v7359
      %v7362 = vunpack.c.l.s4 1983009808
      %v7363 = vunpack.c.0.s8 %v7362
      %v7364 = vperm.slane %v7358, %v7363
      %v7366 = vunpack.c.l.s4 1983009808
      %v7367 = vunpack.c.0.s8 %v7366
      %v7368 = vperm.slane %v7360, %v7367
      %v7369 = vrot.slane %v7364, 4
      %v7370 = vsel %vm446, %v7369, %v7352
      %v7371 = vrot.slane %v7352, 4
      %v7372 = vsel %vm446, %v7364, %v7371
      %v7374 = vunpack.c.l.s4 1934713408
      %v7375 = vunpack.c.0.s8 %v7374
      %v7376 = vperm.slane %v7370, %v7375
      %v7378 = vunpack.c.l.s4 1934713408
      %v7379 = vunpack.c.0.s8 %v7378
      %v7380 = vperm.slane %v7372, %v7379
      %v7381 = vrot.slane %v7368, 4
      %v7382 = vsel %vm446, %v7381, %v7356
      %v7383 = vrot.slane %v7356, 4
      %v7384 = vsel %vm446, %v7368, %v7383
      %v7386 = vunpack.c.l.s4 1934713408
      %v7387 = vunpack.c.0.s8 %v7386
      %v7388 = vperm.slane %v7382, %v7387
      %v7390 = vunpack.c.l.s4 1934713408
      %v7391 = vunpack.c.0.s8 %v7390
      %v7392 = vperm.slane %v7384, %v7391
      %v7393 = vrot.slane %v7376, 4
      %v7394 = vsel %vm446, 0.0, %v7393
      %v7395 = vrot.slane %v7380, 4
      %v7396 = vsel %vm446, 0.0, %v7395
      %v7397 = vrot.slane %v7388, 4
      %v7398 = vsel %vm446, 0.0, %v7397
      %v7399 = vrot.slane %v7392, 4
      %v7400 = vsel %vm446, 0.0, %v7399
      %v7401 = vrot.slane %v7228, 4
      %v7402 = vsel %vm446, %v7401, %v7220
      %v7403 = vrot.slane %v7220, 4
      %v7404 = vsel %vm446, %v7228, %v7403
      %v7406 = vunpack.c.l.s4 1983009808
      %v7407 = vunpack.c.0.s8 %v7406
      %v7408 = vperm.slane %v7402, %v7407
      %v7410 = vunpack.c.l.s4 1983009808
      %v7411 = vunpack.c.0.s8 %v7410
      %v7412 = vperm.slane %v7404, %v7411
      %v7413 = vrot.slane %v7232, 4
      %v7414 = vsel %vm446, %v7413, %v7224
      %v7415 = vrot.slane %v7224, 4
      %v7416 = vsel %vm446, %v7232, %v7415
      %v7418 = vunpack.c.l.s4 1983009808
      %v7419 = vunpack.c.0.s8 %v7418
      %v7420 = vperm.slane %v7414, %v7419
      %v7422 = vunpack.c.l.s4 1983009808
      %v7423 = vunpack.c.0.s8 %v7422
      %v7424 = vperm.slane %v7416, %v7423
      %v7425 = vrot.slane %v7420, 4
      %v7426 = vsel %vm446, %v7425, %v7408
      %v7427 = vrot.slane %v7408, 4
      %v7428 = vsel %vm446, %v7420, %v7427
      %v7430 = vunpack.c.l.s4 1934713408
      %v7431 = vunpack.c.0.s8 %v7430
      %v7432 = vperm.slane %v7426, %v7431
      %v7434 = vunpack.c.l.s4 1934713408
      %v7435 = vunpack.c.0.s8 %v7434
      %v7436 = vperm.slane %v7428, %v7435
      %v7437 = vrot.slane %v7424, 4
      %v7438 = vsel %vm446, %v7437, %v7412
      %v7439 = vrot.slane %v7412, 4
      %v7440 = vsel %vm446, %v7424, %v7439
      %v7442 = vunpack.c.l.s4 1934713408
      %v7443 = vunpack.c.0.s8 %v7442
      %v7444 = vperm.slane %v7438, %v7443
      %v7446 = vunpack.c.l.s4 1934713408
      %v7447 = vunpack.c.0.s8 %v7446
      %v7448 = vperm.slane %v7440, %v7447
      %v7449 = vrot.slane %v7432, 4
      %v7450 = vsel %vm446, 0.0, %v7449
      %v7451 = vrot.slane %v7436, 4
      %v7452 = vsel %vm446, 0.0, %v7451
      %v7453 = vrot.slane %v7444, 4
      %v7454 = vsel %vm446, 0.0, %v7453
      %v7455 = vrot.slane %v7448, 4
      %v7456 = vsel %vm446, 0.0, %v7455
      %7458 = vrot.lane.b32.xlu0 %v7282, 32
      %v7459 = vpop.permute.xlu0 %7458
      %7462 = vrot.lane.b32.xlu0 %v7268, 64
      %v7463 = vpop.permute.xlu0 %7462
      %7466 = vrot.lane.b32.xlu0 %v7284, 96
      %v7467 = vpop.permute.xlu0 %7466
      %7470 = vrot.lane.b32.xlu0 %v7286, 32
      %v7471 = vpop.permute.xlu0 %7470
      %7474 = vrot.lane.b32.xlu0 %v7280, 64
      %v7475 = vpop.permute.xlu0 %7474
      %7478 = vrot.lane.b32.xlu0 %v7288, 96
      %v7479 = vpop.permute.xlu0 %7478
      %7482 = vrot.lane.b32.xlu0 %v7338, 32
      %v7483 = vpop.permute.xlu0 %7482
      %7486 = vrot.lane.b32.xlu0 %v7324, 64
      %v7487 = vpop.permute.xlu0 %7486
      %7490 = vrot.lane.b32.xlu0 %v7340, 96
      %v7491 = vpop.permute.xlu0 %7490
      %7494 = vrot.lane.b32.xlu0 %v7342, 32
      %v7495 = vpop.permute.xlu0 %7494
      %7498 = vrot.lane.b32.xlu0 %v7336, 64
      %v7499 = vpop.permute.xlu0 %7498
      %7502 = vrot.lane.b32.xlu0 %v7344, 96
      %v7503 = vpop.permute.xlu0 %7502
      %7506 = vrot.lane.b32.xlu0 %v7394, 32
      %v7507 = vpop.permute.xlu0 %7506
      %7510 = vrot.lane.b32.xlu0 %v7380, 64
      %v7511 = vpop.permute.xlu0 %7510
      %7514 = vrot.lane.b32.xlu0 %v7396, 96
      %v7515 = vpop.permute.xlu0 %7514
      %7518 = vrot.lane.b32.xlu0 %v7398, 32
      %v7519 = vpop.permute.xlu0 %7518
      %7522 = vrot.lane.b32.xlu0 %v7392, 64
      %v7523 = vpop.permute.xlu0 %7522
      %7526 = vrot.lane.b32.xlu0 %v7400, 96
      %v7527 = vpop.permute.xlu0 %7526
      %7530 = vrot.lane.b32.xlu0 %v7450, 32
      %v7531 = vpop.permute.xlu0 %7530
      %7534 = vrot.lane.b32.xlu0 %v7436, 64
      %v7535 = vpop.permute.xlu0 %7534
      %7538 = vrot.lane.b32.xlu0 %v7452, 96
      %v7539 = vpop.permute.xlu0 %7538
      %7542 = vrot.lane.b32.xlu0 %v7454, 32
      %v7543 = vpop.permute.xlu0 %7542
      %7546 = vrot.lane.b32.xlu0 %v7448, 64
      %v7547 = vpop.permute.xlu0 %7546
      %7550 = vrot.lane.b32.xlu0 %v7456, 96
      %v7551 = vpop.permute.xlu0 %7550
      %v7553 = vsel %vm728, %v7264, %v7459
      %v7554 = vsel %vm732, %v7553, %v7463
      %v7555 = vsel %vm736, %v7554, %v7467
      %v7556 = vsel %vm728, %v7276, %v7471
      %v7557 = vsel %vm732, %v7556, %v7475
      %v7558 = vsel %vm736, %v7557, %v7479
      %v7559 = vsel %vm728, %v7320, %v7483
      %v7560 = vsel %vm732, %v7559, %v7487
      %v7561 = vsel %vm736, %v7560, %v7491
      %v7562 = vsel %vm728, %v7332, %v7495
      %v7563 = vsel %vm732, %v7562, %v7499
      %v7564 = vsel %vm736, %v7563, %v7503
      %v7565 = vsel %vm728, %v7376, %v7507
      %v7566 = vsel %vm732, %v7565, %v7511
      %v7567 = vsel %vm736, %v7566, %v7515
      %v7568 = vsel %vm728, %v7388, %v7519
      %v7569 = vsel %vm732, %v7568, %v7523
      %v7570 = vsel %vm736, %v7569, %v7527
      %v7571 = vsel %vm728, %v7432, %v7531
      %v7572 = vsel %vm732, %v7571, %v7535
      %v7573 = vsel %vm736, %v7572, %v7539
      %v7574 = vsel %vm728, %v7444, %v7543
      %v7575 = vsel %vm732, %v7574, %v7547
      %v7576 = vsel %vm736, %v7575, %v7551
      %7577 = vst [vmem:[#allocation5 + $0xc0] sm:$0xf] %v7555
      %7578 = vst [vmem:[#allocation5 + $0xc8] sm:$0xf] %v7558
      %7579 = vst [vmem:[#allocation5 + $0xd0] sm:$0xf] %v7561
      %7580 = vst [vmem:[#allocation5 + $0xd8] sm:$0xf] %v7564
      %7581 = vst [vmem:[#allocation5 + $0xe0] sm:$0xf] %v7567
      %7582 = vst [vmem:[#allocation5 + $0xe8] sm:$0xf] %v7570
      %7583 = vst [vmem:[#allocation5 + $0xf0] sm:$0xf] %v7573
      %7584 = vst [vmem:[#allocation5 + $0xf8] sm:$0xf] %v7576
      %v7585 = vld [vmem:[#allocation4 + $0x2] sm:$0xff]
      %v7586 = vld [vmem:[#allocation4 + $0xa] sm:$0xff]
      %v7587 = vld [vmem:[#allocation4 + $0x12] sm:$0xff]
      %v7588 = vld [vmem:[#allocation4 + $0x1a] sm:$0xff]
      %v7589 = vld [vmem:[#allocation4 + $0x2a] sm:$0xff]
      %v7590 = vld [vmem:[#allocation4 + $0x32] sm:$0xff]
      %v7591 = vld [vmem:[#allocation4 + $0x3a] sm:$0xff]
      %v7592 = vld [vmem:[#allocation4 + $0x42] sm:$0xff]
      %v7593 = vld [vmem:[#allocation4 + $0x52] sm:$0xff]
      %v7594 = vld [vmem:[#allocation4 + $0x5a] sm:$0xff]
      %v7595 = vld [vmem:[#allocation4 + $0x62] sm:$0xff]
      %v7596 = vld [vmem:[#allocation4 + $0x6a] sm:$0xff]
      %v7597 = vld [vmem:[#allocation4 + $0x7a] sm:$0xff]
      %v7598 = vld [vmem:[#allocation4 + $0x82] sm:$0xff]
      %v7599 = vld [vmem:[#allocation4 + $0x8a] sm:$0xff]
      %v7600 = vld [vmem:[#allocation4 + $0x92] sm:$0xff]
      %7617 = vrot.lane.b32.xlu0 %v7585, 127
      %v7618 = vpop.permute.xlu0 %7617
      %7619 = vrot.lane.b32.xlu0 %v7586, 127
      %v7620 = vpop.permute.xlu0 %7619
      %7621 = vrot.lane.b32.xlu0 %v7587, 127
      %v7622 = vpop.permute.xlu0 %7621
      %7623 = vrot.lane.b32.xlu0 %v7588, 127
      %v7624 = vpop.permute.xlu0 %7623
      %7625 = vrot.lane.b32.xlu0 %v7589, 127
      %v7626 = vpop.permute.xlu0 %7625
      %7627 = vrot.lane.b32.xlu0 %v7590, 127
      %v7628 = vpop.permute.xlu0 %7627
      %7629 = vrot.lane.b32.xlu0 %v7591, 127
      %v7630 = vpop.permute.xlu0 %7629
      %7631 = vrot.lane.b32.xlu0 %v7592, 127
      %v7632 = vpop.permute.xlu0 %7631
      %7633 = vrot.lane.b32.xlu0 %v7593, 127
      %v7634 = vpop.permute.xlu0 %7633
      %7635 = vrot.lane.b32.xlu0 %v7594, 127
      %v7636 = vpop.permute.xlu0 %7635
      %7637 = vrot.lane.b32.xlu0 %v7595, 127
      %v7638 = vpop.permute.xlu0 %7637
      %7639 = vrot.lane.b32.xlu0 %v7596, 127
      %v7640 = vpop.permute.xlu0 %7639
      %7641 = vrot.lane.b32.xlu0 %v7597, 127
      %v7642 = vpop.permute.xlu0 %7641
      %7643 = vrot.lane.b32.xlu0 %v7598, 127
      %v7644 = vpop.permute.xlu0 %7643
      %7645 = vrot.lane.b32.xlu0 %v7599, 127
      %v7646 = vpop.permute.xlu0 %7645
      %7647 = vrot.lane.b32.xlu0 %v7600, 127
      %v7648 = vpop.permute.xlu0 %7647
      %v7665 = vrot.slane %v7634, 4
      %v7666 = vsel %vm446, %v7665, %v7618
      %v7667 = vrot.slane %v7618, 4
      %v7668 = vsel %vm446, %v7634, %v7667
      %v7670 = vunpack.c.l.s4 1983009808
      %v7671 = vunpack.c.0.s8 %v7670
      %v7672 = vperm.slane %v7666, %v7671
      %v7674 = vunpack.c.l.s4 1983009808
      %v7675 = vunpack.c.0.s8 %v7674
      %v7676 = vperm.slane %v7668, %v7675
      %v7677 = vrot.slane %v7642, 4
      %v7678 = vsel %vm446, %v7677, %v7626
      %v7679 = vrot.slane %v7626, 4
      %v7680 = vsel %vm446, %v7642, %v7679
      %v7682 = vunpack.c.l.s4 1983009808
      %v7683 = vunpack.c.0.s8 %v7682
      %v7684 = vperm.slane %v7678, %v7683
      %v7686 = vunpack.c.l.s4 1983009808
      %v7687 = vunpack.c.0.s8 %v7686
      %v7688 = vperm.slane %v7680, %v7687
      %v7689 = vrot.slane %v7684, 4
      %v7690 = vsel %vm446, %v7689, %v7672
      %v7691 = vrot.slane %v7672, 4
      %v7692 = vsel %vm446, %v7684, %v7691
      %v7694 = vunpack.c.l.s4 1934713408
      %v7695 = vunpack.c.0.s8 %v7694
      %v7696 = vperm.slane %v7690, %v7695
      %v7698 = vunpack.c.l.s4 1934713408
      %v7699 = vunpack.c.0.s8 %v7698
      %v7700 = vperm.slane %v7692, %v7699
      %v7701 = vrot.slane %v7688, 4
      %v7702 = vsel %vm446, %v7701, %v7676
      %v7703 = vrot.slane %v7676, 4
      %v7704 = vsel %vm446, %v7688, %v7703
      %v7706 = vunpack.c.l.s4 1934713408
      %v7707 = vunpack.c.0.s8 %v7706
      %v7708 = vperm.slane %v7702, %v7707
      %v7710 = vunpack.c.l.s4 1934713408
      %v7711 = vunpack.c.0.s8 %v7710
      %v7712 = vperm.slane %v7704, %v7711
      %v7713 = vrot.slane %v7696, 4
      %v7714 = vsel %vm446, 0.0, %v7713
      %v7715 = vrot.slane %v7700, 4
      %v7716 = vsel %vm446, 0.0, %v7715
      %v7717 = vrot.slane %v7708, 4
      %v7718 = vsel %vm446, 0.0, %v7717
      %v7719 = vrot.slane %v7712, 4
      %v7720 = vsel %vm446, 0.0, %v7719
      %v7721 = vrot.slane %v7636, 4
      %v7722 = vsel %vm446, %v7721, %v7620
      %v7723 = vrot.slane %v7620, 4
      %v7724 = vsel %vm446, %v7636, %v7723
      %v7726 = vunpack.c.l.s4 1983009808
      %v7727 = vunpack.c.0.s8 %v7726
      %v7728 = vperm.slane %v7722, %v7727
      %v7730 = vunpack.c.l.s4 1983009808
      %v7731 = vunpack.c.0.s8 %v7730
      %v7732 = vperm.slane %v7724, %v7731
      %v7733 = vrot.slane %v7644, 4
      %v7734 = vsel %vm446, %v7733, %v7628
      %v7735 = vrot.slane %v7628, 4
      %v7736 = vsel %vm446, %v7644, %v7735
      %v7738 = vunpack.c.l.s4 1983009808
      %v7739 = vunpack.c.0.s8 %v7738
      %v7740 = vperm.slane %v7734, %v7739
      %v7742 = vunpack.c.l.s4 1983009808
      %v7743 = vunpack.c.0.s8 %v7742
      %v7744 = vperm.slane %v7736, %v7743
      %v7745 = vrot.slane %v7740, 4
      %v7746 = vsel %vm446, %v7745, %v7728
      %v7747 = vrot.slane %v7728, 4
      %v7748 = vsel %vm446, %v7740, %v7747
      %v7750 = vunpack.c.l.s4 1934713408
      %v7751 = vunpack.c.0.s8 %v7750
      %v7752 = vperm.slane %v7746, %v7751
      %v7754 = vunpack.c.l.s4 1934713408
      %v7755 = vunpack.c.0.s8 %v7754
      %v7756 = vperm.slane %v7748, %v7755
      %v7757 = vrot.slane %v7744, 4
      %v7758 = vsel %vm446, %v7757, %v7732
      %v7759 = vrot.slane %v7732, 4
      %v7760 = vsel %vm446, %v7744, %v7759
      %v7762 = vunpack.c.l.s4 1934713408
      %v7763 = vunpack.c.0.s8 %v7762
      %v7764 = vperm.slane %v7758, %v7763
      %v7766 = vunpack.c.l.s4 1934713408
      %v7767 = vunpack.c.0.s8 %v7766
      %v7768 = vperm.slane %v7760, %v7767
      %v7769 = vrot.slane %v7752, 4
      %v7770 = vsel %vm446, 0.0, %v7769
      %v7771 = vrot.slane %v7756, 4
      %v7772 = vsel %vm446, 0.0, %v7771
      %v7773 = vrot.slane %v7764, 4
      %v7774 = vsel %vm446, 0.0, %v7773
      %v7775 = vrot.slane %v7768, 4
      %v7776 = vsel %vm446, 0.0, %v7775
      %v7777 = vrot.slane %v7638, 4
      %v7778 = vsel %vm446, %v7777, %v7622
      %v7779 = vrot.slane %v7622, 4
      %v7780 = vsel %vm446, %v7638, %v7779
      %v7782 = vunpack.c.l.s4 1983009808
      %v7783 = vunpack.c.0.s8 %v7782
      %v7784 = vperm.slane %v7778, %v7783
      %v7786 = vunpack.c.l.s4 1983009808
      %v7787 = vunpack.c.0.s8 %v7786
      %v7788 = vperm.slane %v7780, %v7787
      %v7789 = vrot.slane %v7646, 4
      %v7790 = vsel %vm446, %v7789, %v7630
      %v7791 = vrot.slane %v7630, 4
      %v7792 = vsel %vm446, %v7646, %v7791
      %v7794 = vunpack.c.l.s4 1983009808
      %v7795 = vunpack.c.0.s8 %v7794
      %v7796 = vperm.slane %v7790, %v7795
      %v7798 = vunpack.c.l.s4 1983009808
      %v7799 = vunpack.c.0.s8 %v7798
      %v7800 = vperm.slane %v7792, %v7799
      %v7801 = vrot.slane %v7796, 4
      %v7802 = vsel %vm446, %v7801, %v7784
      %v7803 = vrot.slane %v7784, 4
      %v7804 = vsel %vm446, %v7796, %v7803
      %v7806 = vunpack.c.l.s4 1934713408
      %v7807 = vunpack.c.0.s8 %v7806
      %v7808 = vperm.slane %v7802, %v7807
      %v7810 = vunpack.c.l.s4 1934713408
      %v7811 = vunpack.c.0.s8 %v7810
      %v7812 = vperm.slane %v7804, %v7811
      %v7813 = vrot.slane %v7800, 4
      %v7814 = vsel %vm446, %v7813, %v7788
      %v7815 = vrot.slane %v7788, 4
      %v7816 = vsel %vm446, %v7800, %v7815
      %v7818 = vunpack.c.l.s4 1934713408
      %v7819 = vunpack.c.0.s8 %v7818
      %v7820 = vperm.slane %v7814, %v7819
      %v7822 = vunpack.c.l.s4 1934713408
      %v7823 = vunpack.c.0.s8 %v7822
      %v7824 = vperm.slane %v7816, %v7823
      %v7825 = vrot.slane %v7808, 4
      %v7826 = vsel %vm446, 0.0, %v7825
      %v7827 = vrot.slane %v7812, 4
      %v7828 = vsel %vm446, 0.0, %v7827
      %v7829 = vrot.slane %v7820, 4
      %v7830 = vsel %vm446, 0.0, %v7829
      %v7831 = vrot.slane %v7824, 4
      %v7832 = vsel %vm446, 0.0, %v7831
      %v7833 = vrot.slane %v7640, 4
      %v7834 = vsel %vm446, %v7833, %v7624
      %v7835 = vrot.slane %v7624, 4
      %v7836 = vsel %vm446, %v7640, %v7835
      %v7838 = vunpack.c.l.s4 1983009808
      %v7839 = vunpack.c.0.s8 %v7838
      %v7840 = vperm.slane %v7834, %v7839
      %v7842 = vunpack.c.l.s4 1983009808
      %v7843 = vunpack.c.0.s8 %v7842
      %v7844 = vperm.slane %v7836, %v7843
      %v7845 = vrot.slane %v7648, 4
      %v7846 = vsel %vm446, %v7845, %v7632
      %v7847 = vrot.slane %v7632, 4
      %v7848 = vsel %vm446, %v7648, %v7847
      %v7850 = vunpack.c.l.s4 1983009808
      %v7851 = vunpack.c.0.s8 %v7850
      %v7852 = vperm.slane %v7846, %v7851
      %v7854 = vunpack.c.l.s4 1983009808
      %v7855 = vunpack.c.0.s8 %v7854
      %v7856 = vperm.slane %v7848, %v7855
      %v7857 = vrot.slane %v7852, 4
      %v7858 = vsel %vm446, %v7857, %v7840
      %v7859 = vrot.slane %v7840, 4
      %v7860 = vsel %vm446, %v7852, %v7859
      %v7862 = vunpack.c.l.s4 1934713408
      %v7863 = vunpack.c.0.s8 %v7862
      %v7864 = vperm.slane %v7858, %v7863
      %v7866 = vunpack.c.l.s4 1934713408
      %v7867 = vunpack.c.0.s8 %v7866
      %v7868 = vperm.slane %v7860, %v7867
      %v7869 = vrot.slane %v7856, 4
      %v7870 = vsel %vm446, %v7869, %v7844
      %v7871 = vrot.slane %v7844, 4
      %v7872 = vsel %vm446, %v7856, %v7871
      %v7874 = vunpack.c.l.s4 1934713408
      %v7875 = vunpack.c.0.s8 %v7874
      %v7876 = vperm.slane %v7870, %v7875
      %v7878 = vunpack.c.l.s4 1934713408
      %v7879 = vunpack.c.0.s8 %v7878
      %v7880 = vperm.slane %v7872, %v7879
      %v7881 = vrot.slane %v7864, 4
      %v7882 = vsel %vm446, 0.0, %v7881
      %v7883 = vrot.slane %v7868, 4
      %v7884 = vsel %vm446, 0.0, %v7883
      %v7885 = vrot.slane %v7876, 4
      %v7886 = vsel %vm446, 0.0, %v7885
      %v7887 = vrot.slane %v7880, 4
      %v7888 = vsel %vm446, 0.0, %v7887
      %7890 = vrot.lane.b32.xlu0 %v7714, 32
      %v7891 = vpop.permute.xlu0 %7890
      %7894 = vrot.lane.b32.xlu0 %v7700, 64
      %v7895 = vpop.permute.xlu0 %7894
      %7898 = vrot.lane.b32.xlu0 %v7716, 96
      %v7899 = vpop.permute.xlu0 %7898
      %7902 = vrot.lane.b32.xlu0 %v7718, 32
      %v7903 = vpop.permute.xlu0 %7902
      %7906 = vrot.lane.b32.xlu0 %v7712, 64
      %v7907 = vpop.permute.xlu0 %7906
      %7910 = vrot.lane.b32.xlu0 %v7720, 96
      %v7911 = vpop.permute.xlu0 %7910
      %7914 = vrot.lane.b32.xlu0 %v7770, 32
      %v7915 = vpop.permute.xlu0 %7914
      %7918 = vrot.lane.b32.xlu0 %v7756, 64
      %v7919 = vpop.permute.xlu0 %7918
      %7922 = vrot.lane.b32.xlu0 %v7772, 96
      %v7923 = vpop.permute.xlu0 %7922
      %7926 = vrot.lane.b32.xlu0 %v7774, 32
      %v7927 = vpop.permute.xlu0 %7926
      %7930 = vrot.lane.b32.xlu0 %v7768, 64
      %v7931 = vpop.permute.xlu0 %7930
      %7934 = vrot.lane.b32.xlu0 %v7776, 96
      %v7935 = vpop.permute.xlu0 %7934
      %7938 = vrot.lane.b32.xlu0 %v7826, 32
      %v7939 = vpop.permute.xlu0 %7938
      %7942 = vrot.lane.b32.xlu0 %v7812, 64
      %v7943 = vpop.permute.xlu0 %7942
      %7946 = vrot.lane.b32.xlu0 %v7828, 96
      %v7947 = vpop.permute.xlu0 %7946
      %7950 = vrot.lane.b32.xlu0 %v7830, 32
      %v7951 = vpop.permute.xlu0 %7950
      %7954 = vrot.lane.b32.xlu0 %v7824, 64
      %v7955 = vpop.permute.xlu0 %7954
      %7958 = vrot.lane.b32.xlu0 %v7832, 96
      %v7959 = vpop.permute.xlu0 %7958
      %7962 = vrot.lane.b32.xlu0 %v7882, 32
      %v7963 = vpop.permute.xlu0 %7962
      %7966 = vrot.lane.b32.xlu0 %v7868, 64
      %v7967 = vpop.permute.xlu0 %7966
      %7970 = vrot.lane.b32.xlu0 %v7884, 96
      %v7971 = vpop.permute.xlu0 %7970
      %7974 = vrot.lane.b32.xlu0 %v7886, 32
      %v7975 = vpop.permute.xlu0 %7974
      %7978 = vrot.lane.b32.xlu0 %v7880, 64
      %v7979 = vpop.permute.xlu0 %7978
      %7982 = vrot.lane.b32.xlu0 %v7888, 96
      %v7983 = vpop.permute.xlu0 %7982
      %v7985 = vsel %vm728, %v7696, %v7891
      %v7986 = vsel %vm732, %v7985, %v7895
      %v7987 = vsel %vm736, %v7986, %v7899
      %v7988 = vsel %vm728, %v7708, %v7903
      %v7989 = vsel %vm732, %v7988, %v7907
      %v7990 = vsel %vm736, %v7989, %v7911
      %v7991 = vsel %vm728, %v7752, %v7915
      %v7992 = vsel %vm732, %v7991, %v7919
      %v7993 = vsel %vm736, %v7992, %v7923
      %v7994 = vsel %vm728, %v7764, %v7927
      %v7995 = vsel %vm732, %v7994, %v7931
      %v7996 = vsel %vm736, %v7995, %v7935
      %v7997 = vsel %vm728, %v7808, %v7939
      %v7998 = vsel %vm732, %v7997, %v7943
      %v7999 = vsel %vm736, %v7998, %v7947
      %v8000 = vsel %vm728, %v7820, %v7951
      %v8001 = vsel %vm732, %v8000, %v7955
      %v8002 = vsel %vm736, %v8001, %v7959
      %v8003 = vsel %vm728, %v7864, %v7963
      %v8004 = vsel %vm732, %v8003, %v7967
      %v8005 = vsel %vm736, %v8004, %v7971
      %v8006 = vsel %vm728, %v7876, %v7975
      %v8007 = vsel %vm732, %v8006, %v7979
      %v8008 = vsel %vm736, %v8007, %v7983
      %v8017 = vrot.slane %v7987, 4
      %v8018 = vrot.slane %v7990, 4
      %v8019 = vrot.slane %v7993, 4
      %v8020 = vrot.slane %v7996, 4
      %v8021 = vrot.slane %v7999, 4
      %v8022 = vrot.slane %v8002, 4
      %v8023 = vrot.slane %v8005, 4
      %v8024 = vrot.slane %v8008, 4
      %8033 = vst [vmem:[#allocation5 + $0xc0] sm:$0xf0] %v8017
      %8034 = vst [vmem:[#allocation5 + $0xc8] sm:$0xf0] %v8018
      %8035 = vst [vmem:[#allocation5 + $0xd0] sm:$0xf0] %v8019
      %8036 = vst [vmem:[#allocation5 + $0xd8] sm:$0xf0] %v8020
      %8037 = vst [vmem:[#allocation5 + $0xe0] sm:$0xf0] %v8021
      %8038 = vst [vmem:[#allocation5 + $0xe8] sm:$0xf0] %v8022
      %8039 = vst [vmem:[#allocation5 + $0xf0] sm:$0xf0] %v8023
      %8040 = vst [vmem:[#allocation5 + $0xf8] sm:$0xf0] %v8024
      %v8041 = vld [vmem:[#allocation4 + $0x2] sm:$0xff]
      %v8042 = vld [vmem:[#allocation4 + $0xa] sm:$0xff]
      %v8043 = vld [vmem:[#allocation4 + $0x12] sm:$0xff]
      %v8044 = vld [vmem:[#allocation4 + $0x1a] sm:$0xff]
      %v8045 = vld [vmem:[#allocation4 + $0x2a] sm:$0xff]
      %v8046 = vld [vmem:[#allocation4 + $0x32] sm:$0xff]
      %v8047 = vld [vmem:[#allocation4 + $0x3a] sm:$0xff]
      %v8048 = vld [vmem:[#allocation4 + $0x42] sm:$0xff]
      %v8049 = vld [vmem:[#allocation4 + $0x52] sm:$0xff]
      %v8050 = vld [vmem:[#allocation4 + $0x5a] sm:$0xff]
      %v8051 = vld [vmem:[#allocation4 + $0x62] sm:$0xff]
      %v8052 = vld [vmem:[#allocation4 + $0x6a] sm:$0xff]
      %v8053 = vld [vmem:[#allocation4 + $0x7a] sm:$0xff]
      %v8054 = vld [vmem:[#allocation4 + $0x82] sm:$0xff]
      %v8055 = vld [vmem:[#allocation4 + $0x8a] sm:$0xff]
      %v8056 = vld [vmem:[#allocation4 + $0x92] sm:$0xff]
      %8073 = vrot.lane.b32.xlu0 %v8041, 126
      %v8074 = vpop.permute.xlu0 %8073
      %8075 = vrot.lane.b32.xlu0 %v8042, 126
      %v8076 = vpop.permute.xlu0 %8075
      %8077 = vrot.lane.b32.xlu0 %v8043, 126
      %v8078 = vpop.permute.xlu0 %8077
      %8079 = vrot.lane.b32.xlu0 %v8044, 126
      %v8080 = vpop.permute.xlu0 %8079
      %8081 = vrot.lane.b32.xlu0 %v8045, 126
      %v8082 = vpop.permute.xlu0 %8081
      %8083 = vrot.lane.b32.xlu0 %v8046, 126
      %v8084 = vpop.permute.xlu0 %8083
      %8085 = vrot.lane.b32.xlu0 %v8047, 126
      %v8086 = vpop.permute.xlu0 %8085
      %8087 = vrot.lane.b32.xlu0 %v8048, 126
      %v8088 = vpop.permute.xlu0 %8087
      %8089 = vrot.lane.b32.xlu0 %v8049, 126
      %v8090 = vpop.permute.xlu0 %8089
      %8091 = vrot.lane.b32.xlu0 %v8050, 126
      %v8092 = vpop.permute.xlu0 %8091
      %8093 = vrot.lane.b32.xlu0 %v8051, 126
      %v8094 = vpop.permute.xlu0 %8093
      %8095 = vrot.lane.b32.xlu0 %v8052, 126
      %v8096 = vpop.permute.xlu0 %8095
      %8097 = vrot.lane.b32.xlu0 %v8053, 126
      %v8098 = vpop.permute.xlu0 %8097
      %8099 = vrot.lane.b32.xlu0 %v8054, 126
      %v8100 = vpop.permute.xlu0 %8099
      %8101 = vrot.lane.b32.xlu0 %v8055, 126
      %v8102 = vpop.permute.xlu0 %8101
      %8103 = vrot.lane.b32.xlu0 %v8056, 126
      %v8104 = vpop.permute.xlu0 %8103
      %v8121 = vrot.slane %v8090, 4
      %v8122 = vsel %vm446, %v8121, %v8074
      %v8123 = vrot.slane %v8074, 4
      %v8124 = vsel %vm446, %v8090, %v8123
      %v8126 = vunpack.c.l.s4 1983009808
      %v8127 = vunpack.c.0.s8 %v8126
      %v8128 = vperm.slane %v8122, %v8127
      %v8130 = vunpack.c.l.s4 1983009808
      %v8131 = vunpack.c.0.s8 %v8130
      %v8132 = vperm.slane %v8124, %v8131
      %v8133 = vrot.slane %v8098, 4
      %v8134 = vsel %vm446, %v8133, %v8082
      %v8135 = vrot.slane %v8082, 4
      %v8136 = vsel %vm446, %v8098, %v8135
      %v8138 = vunpack.c.l.s4 1983009808
      %v8139 = vunpack.c.0.s8 %v8138
      %v8140 = vperm.slane %v8134, %v8139
      %v8142 = vunpack.c.l.s4 1983009808
      %v8143 = vunpack.c.0.s8 %v8142
      %v8144 = vperm.slane %v8136, %v8143
      %v8145 = vrot.slane %v8140, 4
      %v8146 = vsel %vm446, %v8145, %v8128
      %v8147 = vrot.slane %v8128, 4
      %v8148 = vsel %vm446, %v8140, %v8147
      %v8150 = vunpack.c.l.s4 1934713408
      %v8151 = vunpack.c.0.s8 %v8150
      %v8152 = vperm.slane %v8146, %v8151
      %v8154 = vunpack.c.l.s4 1934713408
      %v8155 = vunpack.c.0.s8 %v8154
      %v8156 = vperm.slane %v8148, %v8155
      %v8157 = vrot.slane %v8144, 4
      %v8158 = vsel %vm446, %v8157, %v8132
      %v8159 = vrot.slane %v8132, 4
      %v8160 = vsel %vm446, %v8144, %v8159
      %v8162 = vunpack.c.l.s4 1934713408
      %v8163 = vunpack.c.0.s8 %v8162
      %v8164 = vperm.slane %v8158, %v8163
      %v8166 = vunpack.c.l.s4 1934713408
      %v8167 = vunpack.c.0.s8 %v8166
      %v8168 = vperm.slane %v8160, %v8167
      %v8169 = vrot.slane %v8152, 4
      %v8170 = vsel %vm446, 0.0, %v8169
      %v8171 = vrot.slane %v8156, 4
      %v8172 = vsel %vm446, 0.0, %v8171
      %v8173 = vrot.slane %v8164, 4
      %v8174 = vsel %vm446, 0.0, %v8173
      %v8175 = vrot.slane %v8168, 4
      %v8176 = vsel %vm446, 0.0, %v8175
      %v8177 = vrot.slane %v8092, 4
      %v8178 = vsel %vm446, %v8177, %v8076
      %v8179 = vrot.slane %v8076, 4
      %v8180 = vsel %vm446, %v8092, %v8179
      %v8182 = vunpack.c.l.s4 1983009808
      %v8183 = vunpack.c.0.s8 %v8182
      %v8184 = vperm.slane %v8178, %v8183
      %v8186 = vunpack.c.l.s4 1983009808
      %v8187 = vunpack.c.0.s8 %v8186
      %v8188 = vperm.slane %v8180, %v8187
      %v8189 = vrot.slane %v8100, 4
      %v8190 = vsel %vm446, %v8189, %v8084
      %v8191 = vrot.slane %v8084, 4
      %v8192 = vsel %vm446, %v8100, %v8191
      %v8194 = vunpack.c.l.s4 1983009808
      %v8195 = vunpack.c.0.s8 %v8194
      %v8196 = vperm.slane %v8190, %v8195
      %v8198 = vunpack.c.l.s4 1983009808
      %v8199 = vunpack.c.0.s8 %v8198
      %v8200 = vperm.slane %v8192, %v8199
      %v8201 = vrot.slane %v8196, 4
      %v8202 = vsel %vm446, %v8201, %v8184
      %v8203 = vrot.slane %v8184, 4
      %v8204 = vsel %vm446, %v8196, %v8203
      %v8206 = vunpack.c.l.s4 1934713408
      %v8207 = vunpack.c.0.s8 %v8206
      %v8208 = vperm.slane %v8202, %v8207
      %v8210 = vunpack.c.l.s4 1934713408
      %v8211 = vunpack.c.0.s8 %v8210
      %v8212 = vperm.slane %v8204, %v8211
      %v8213 = vrot.slane %v8200, 4
      %v8214 = vsel %vm446, %v8213, %v8188
      %v8215 = vrot.slane %v8188, 4
      %v8216 = vsel %vm446, %v8200, %v8215
      %v8218 = vunpack.c.l.s4 1934713408
      %v8219 = vunpack.c.0.s8 %v8218
      %v8220 = vperm.slane %v8214, %v8219
      %v8222 = vunpack.c.l.s4 1934713408
      %v8223 = vunpack.c.0.s8 %v8222
      %v8224 = vperm.slane %v8216, %v8223
      %v8225 = vrot.slane %v8208, 4
      %v8226 = vsel %vm446, 0.0, %v8225
      %v8227 = vrot.slane %v8212, 4
      %v8228 = vsel %vm446, 0.0, %v8227
      %v8229 = vrot.slane %v8220, 4
      %v8230 = vsel %vm446, 0.0, %v8229
      %v8231 = vrot.slane %v8224, 4
      %v8232 = vsel %vm446, 0.0, %v8231
      %v8233 = vrot.slane %v8094, 4
      %v8234 = vsel %vm446, %v8233, %v8078
      %v8235 = vrot.slane %v8078, 4
      %v8236 = vsel %vm446, %v8094, %v8235
      %v8238 = vunpack.c.l.s4 1983009808
      %v8239 = vunpack.c.0.s8 %v8238
      %v8240 = vperm.slane %v8234, %v8239
      %v8242 = vunpack.c.l.s4 1983009808
      %v8243 = vunpack.c.0.s8 %v8242
      %v8244 = vperm.slane %v8236, %v8243
      %v8245 = vrot.slane %v8102, 4
      %v8246 = vsel %vm446, %v8245, %v8086
      %v8247 = vrot.slane %v8086, 4
      %v8248 = vsel %vm446, %v8102, %v8247
      %v8250 = vunpack.c.l.s4 1983009808
      %v8251 = vunpack.c.0.s8 %v8250
      %v8252 = vperm.slane %v8246, %v8251
      %v8254 = vunpack.c.l.s4 1983009808
      %v8255 = vunpack.c.0.s8 %v8254
      %v8256 = vperm.slane %v8248, %v8255
      %v8257 = vrot.slane %v8252, 4
      %v8258 = vsel %vm446, %v8257, %v8240
      %v8259 = vrot.slane %v8240, 4
      %v8260 = vsel %vm446, %v8252, %v8259
      %v8262 = vunpack.c.l.s4 1934713408
      %v8263 = vunpack.c.0.s8 %v8262
      %v8264 = vperm.slane %v8258, %v8263
      %v8266 = vunpack.c.l.s4 1934713408
      %v8267 = vunpack.c.0.s8 %v8266
      %v8268 = vperm.slane %v8260, %v8267
      %v8269 = vrot.slane %v8256, 4
      %v8270 = vsel %vm446, %v8269, %v8244
      %v8271 = vrot.slane %v8244, 4
      %v8272 = vsel %vm446, %v8256, %v8271
      %v8274 = vunpack.c.l.s4 1934713408
      %v8275 = vunpack.c.0.s8 %v8274
      %v8276 = vperm.slane %v8270, %v8275
      %v8278 = vunpack.c.l.s4 1934713408
      %v8279 = vunpack.c.0.s8 %v8278
      %v8280 = vperm.slane %v8272, %v8279
      %v8281 = vrot.slane %v8264, 4
      %v8282 = vsel %vm446, 0.0, %v8281
      %v8283 = vrot.slane %v8268, 4
      %v8284 = vsel %vm446, 0.0, %v8283
      %v8285 = vrot.slane %v8276, 4
      %v8286 = vsel %vm446, 0.0, %v8285
      %v8287 = vrot.slane %v8280, 4
      %v8288 = vsel %vm446, 0.0, %v8287
      %v8289 = vrot.slane %v8096, 4
      %v8290 = vsel %vm446, %v8289, %v8080
      %v8291 = vrot.slane %v8080, 4
      %v8292 = vsel %vm446, %v8096, %v8291
      %v8294 = vunpack.c.l.s4 1983009808
      %v8295 = vunpack.c.0.s8 %v8294
      %v8296 = vperm.slane %v8290, %v8295
      %v8298 = vunpack.c.l.s4 1983009808
      %v8299 = vunpack.c.0.s8 %v8298
      %v8300 = vperm.slane %v8292, %v8299
      %v8301 = vrot.slane %v8104, 4
      %v8302 = vsel %vm446, %v8301, %v8088
      %v8303 = vrot.slane %v8088, 4
      %v8304 = vsel %vm446, %v8104, %v8303
      %v8306 = vunpack.c.l.s4 1983009808
      %v8307 = vunpack.c.0.s8 %v8306
      %v8308 = vperm.slane %v8302, %v8307
      %v8310 = vunpack.c.l.s4 1983009808
      %v8311 = vunpack.c.0.s8 %v8310
      %v8312 = vperm.slane %v8304, %v8311
      %v8313 = vrot.slane %v8308, 4
      %v8314 = vsel %vm446, %v8313, %v8296
      %v8315 = vrot.slane %v8296, 4
      %v8316 = vsel %vm446, %v8308, %v8315
      %v8318 = vunpack.c.l.s4 1934713408
      %v8319 = vunpack.c.0.s8 %v8318
      %v8320 = vperm.slane %v8314, %v8319
      %v8322 = vunpack.c.l.s4 1934713408
      %v8323 = vunpack.c.0.s8 %v8322
      %v8324 = vperm.slane %v8316, %v8323
      %v8325 = vrot.slane %v8312, 4
      %v8326 = vsel %vm446, %v8325, %v8300
      %v8327 = vrot.slane %v8300, 4
      %v8328 = vsel %vm446, %v8312, %v8327
      %v8330 = vunpack.c.l.s4 1934713408
      %v8331 = vunpack.c.0.s8 %v8330
      %v8332 = vperm.slane %v8326, %v8331
      %v8334 = vunpack.c.l.s4 1934713408
      %v8335 = vunpack.c.0.s8 %v8334
      %v8336 = vperm.slane %v8328, %v8335
      %v8337 = vrot.slane %v8320, 4
      %v8338 = vsel %vm446, 0.0, %v8337
      %v8339 = vrot.slane %v8324, 4
      %v8340 = vsel %vm446, 0.0, %v8339
      %v8341 = vrot.slane %v8332, 4
      %v8342 = vsel %vm446, 0.0, %v8341
      %v8343 = vrot.slane %v8336, 4
      %v8344 = vsel %vm446, 0.0, %v8343
      %8346 = vrot.lane.b32.xlu0 %v8170, 32
      %v8347 = vpop.permute.xlu0 %8346
      %8350 = vrot.lane.b32.xlu0 %v8156, 64
      %v8351 = vpop.permute.xlu0 %8350
      %8354 = vrot.lane.b32.xlu0 %v8172, 96
      %v8355 = vpop.permute.xlu0 %8354
      %8358 = vrot.lane.b32.xlu0 %v8174, 32
      %v8359 = vpop.permute.xlu0 %8358
      %8362 = vrot.lane.b32.xlu0 %v8168, 64
      %v8363 = vpop.permute.xlu0 %8362
      %8366 = vrot.lane.b32.xlu0 %v8176, 96
      %v8367 = vpop.permute.xlu0 %8366
      %8370 = vrot.lane.b32.xlu0 %v8226, 32
      %v8371 = vpop.permute.xlu0 %8370
      %8374 = vrot.lane.b32.xlu0 %v8212, 64
      %v8375 = vpop.permute.xlu0 %8374
      %8378 = vrot.lane.b32.xlu0 %v8228, 96
      %v8379 = vpop.permute.xlu0 %8378
      %8382 = vrot.lane.b32.xlu0 %v8230, 32
      %v8383 = vpop.permute.xlu0 %8382
      %8386 = vrot.lane.b32.xlu0 %v8224, 64
      %v8387 = vpop.permute.xlu0 %8386
      %8390 = vrot.lane.b32.xlu0 %v8232, 96
      %v8391 = vpop.permute.xlu0 %8390
      %8394 = vrot.lane.b32.xlu0 %v8282, 32
      %v8395 = vpop.permute.xlu0 %8394
      %8398 = vrot.lane.b32.xlu0 %v8268, 64
      %v8399 = vpop.permute.xlu0 %8398
      %8402 = vrot.lane.b32.xlu0 %v8284, 96
      %v8403 = vpop.permute.xlu0 %8402
      %8406 = vrot.lane.b32.xlu0 %v8286, 32
      %v8407 = vpop.permute.xlu0 %8406
      %8410 = vrot.lane.b32.xlu0 %v8280, 64
      %v8411 = vpop.permute.xlu0 %8410
      %8414 = vrot.lane.b32.xlu0 %v8288, 96
      %v8415 = vpop.permute.xlu0 %8414
      %8418 = vrot.lane.b32.xlu0 %v8338, 32
      %v8419 = vpop.permute.xlu0 %8418
      %8422 = vrot.lane.b32.xlu0 %v8324, 64
      %v8423 = vpop.permute.xlu0 %8422
      %8426 = vrot.lane.b32.xlu0 %v8340, 96
      %v8427 = vpop.permute.xlu0 %8426
      %8430 = vrot.lane.b32.xlu0 %v8342, 32
      %v8431 = vpop.permute.xlu0 %8430
      %8434 = vrot.lane.b32.xlu0 %v8336, 64
      %v8435 = vpop.permute.xlu0 %8434
      %8438 = vrot.lane.b32.xlu0 %v8344, 96
      %v8439 = vpop.permute.xlu0 %8438
      %v8441 = vsel %vm728, %v8152, %v8347
      %v8442 = vsel %vm732, %v8441, %v8351
      %v8443 = vsel %vm736, %v8442, %v8355
      %v8444 = vsel %vm728, %v8164, %v8359
      %v8445 = vsel %vm732, %v8444, %v8363
      %v8446 = vsel %vm736, %v8445, %v8367
      %v8447 = vsel %vm728, %v8208, %v8371
      %v8448 = vsel %vm732, %v8447, %v8375
      %v8449 = vsel %vm736, %v8448, %v8379
      %v8450 = vsel %vm728, %v8220, %v8383
      %v8451 = vsel %vm732, %v8450, %v8387
      %v8452 = vsel %vm736, %v8451, %v8391
      %v8453 = vsel %vm728, %v8264, %v8395
      %v8454 = vsel %vm732, %v8453, %v8399
      %v8455 = vsel %vm736, %v8454, %v8403
      %v8456 = vsel %vm728, %v8276, %v8407
      %v8457 = vsel %vm732, %v8456, %v8411
      %v8458 = vsel %vm736, %v8457, %v8415
      %v8459 = vsel %vm728, %v8320, %v8419
      %v8460 = vsel %vm732, %v8459, %v8423
      %v8461 = vsel %vm736, %v8460, %v8427
      %v8462 = vsel %vm728, %v8332, %v8431
      %v8463 = vsel %vm732, %v8462, %v8435
      %v8464 = vsel %vm736, %v8463, %v8439
      %8465 = vst [vmem:[#allocation5 + $0x100] sm:$0xf] %v8443
      %8466 = vst [vmem:[#allocation5 + $0x108] sm:$0xf] %v8446
      %8467 = vst [vmem:[#allocation5 + $0x110] sm:$0xf] %v8449
      %8468 = vst [vmem:[#allocation5 + $0x118] sm:$0xf] %v8452
      %8469 = vst [vmem:[#allocation5 + $0x120] sm:$0xf] %v8455
      %8470 = vst [vmem:[#allocation5 + $0x128] sm:$0xf] %v8458
      %8471 = vst [vmem:[#allocation5 + $0x130] sm:$0xf] %v8461
      %8472 = vst [vmem:[#allocation5 + $0x138] sm:$0xf] %v8464
      %v8473 = vld [vmem:[%s4] sm:$0xff]
      %v8474 = vld [vmem:[%s4 + $0x8] sm:$0xff]
      %v8475 = vld [vmem:[%s4 + $0x10] sm:$0xff]
      %v8476 = vld [vmem:[%s4 + $0x18] sm:$0xff]
      %v8477 = vld [vmem:[#allocation5] sm:$0xff]
      %v8478 = vld [vmem:[#allocation5 + $0x8] sm:$0xff]
      %v8479 = vld [vmem:[#allocation5 + $0x10] sm:$0xff]
      %v8480 = vld [vmem:[#allocation5 + $0x18] sm:$0xff]
      %v8481 = vld [vmem:[#allocation5 + $0x20] sm:$0xff]
      %v8482 = vld [vmem:[#allocation5 + $0x28] sm:$0xff]
      %v8483 = vld [vmem:[#allocation5 + $0x30] sm:$0xff]
      %v8484 = vld [vmem:[#allocation5 + $0x38] sm:$0xff]
      %v8485 = vld [vmem:[#allocation5 + $0x40] sm:$0xff]
      %v8486 = vld [vmem:[#allocation5 + $0x48] sm:$0xff]
      %v8487 = vld [vmem:[#allocation5 + $0x50] sm:$0xff]
      %v8488 = vld [vmem:[#allocation5 + $0x58] sm:$0xff]
      %v8489 = vld [vmem:[#allocation5 + $0x60] sm:$0xff]
      %v8490 = vld [vmem:[#allocation5 + $0x68] sm:$0xff]
      %v8491 = vld [vmem:[#allocation5 + $0x70] sm:$0xff]
      %v8492 = vld [vmem:[#allocation5 + $0x78] sm:$0xff]
      %v8493 = vld [vmem:[#allocation5 + $0x80] sm:$0xff]
      %v8494 = vld [vmem:[#allocation5 + $0x88] sm:$0xff]
      %v8495 = vld [vmem:[#allocation5 + $0x90] sm:$0xff]
      %v8496 = vld [vmem:[#allocation5 + $0x98] sm:$0xff]
      %v8497 = vld [vmem:[#allocation5 + $0xa0] sm:$0xff]
      %v8498 = vld [vmem:[#allocation5 + $0xa8] sm:$0xff]
      %v8499 = vld [vmem:[#allocation5 + $0xb0] sm:$0xff]
      %v8500 = vld [vmem:[#allocation5 + $0xb8] sm:$0xff]
      %v8501 = vld [vmem:[#allocation5 + $0xc0] sm:$0xff]
      %v8502 = vld [vmem:[#allocation5 + $0xc8] sm:$0xff]
      %v8503 = vld [vmem:[#allocation5 + $0xd0] sm:$0xff]
      %v8504 = vld [vmem:[#allocation5 + $0xd8] sm:$0xff]
      %v8505 = vld [vmem:[#allocation5 + $0xe0] sm:$0xff]
      %v8506 = vld [vmem:[#allocation5 + $0xe8] sm:$0xff]
      %v8507 = vld [vmem:[#allocation5 + $0xf0] sm:$0xff]
      %v8508 = vld [vmem:[#allocation5 + $0xf8] sm:$0xff]
      %v8509 = vld [vmem:[#allocation5 + $0x100] sm:$0xf]
      %v8510 = vld [vmem:[#allocation5 + $0x108] sm:$0xf]
      %v8511 = vld [vmem:[#allocation5 + $0x110] sm:$0xf]
      %v8512 = vld [vmem:[#allocation5 + $0x118] sm:$0xf]
      %v8513 = vld [vmem:[#allocation5 + $0x120] sm:$0xf]
      %v8514 = vld [vmem:[#allocation5 + $0x128] sm:$0xf]
      %v8515 = vld [vmem:[#allocation5 + $0x130] sm:$0xf]
      %v8516 = vld [vmem:[#allocation5 + $0x138] sm:$0xf]
      %v8517 = vld [vmem:[%s5] sm:$0xff]
      %v8518 = vld [vmem:[%s5 + $0x8] sm:$0xff]
      %v8519 = vld [vmem:[%s5 + $0x10] sm:$0xff]
      %v8520 = vld [vmem:[%s5 + $0x18] sm:$0xff]
      %8522 = vset.pattern.permute.xlu0 0
      %8523 = vperm.xlu0 %8522, %v8517
      %v8524 = vpop.permute.xlu0 %8523
      %8527 = vset.pattern.permute.xlu0 0
      %8528 = vperm.xlu0 %8527, %v8518
      %v8529 = vpop.permute.xlu0 %8528
      %8532 = vset.pattern.permute.xlu0 0
      %8533 = vperm.xlu0 %8532, %v8519
      %v8534 = vpop.permute.xlu0 %8533
      %8537 = vset.pattern.permute.xlu0 0
      %8538 = vperm.xlu0 %8537, %v8520
      %v8539 = vpop.permute.xlu0 %8538
      %vm8541 = vcmask 293888
      %v8543 = vsel %vm8541, %v8473, 0
      %v8546 = vsel %vm8541, %v8474, 0
      %v8549 = vsel %vm8541, %v8475, 0
      %v8552 = vsel %vm8541, %v8476, 0
      %vm8554 = vcmask 1043456
      %v8556 = vsel %vm8554, %v8509, 0
      %v8559 = vsel %vm8554, %v8510, 0
      %v8562 = vsel %vm8554, %v8511, 0
      %v8565 = vsel %vm8554, %v8512, 0
      %v8568 = vsel %vm8554, %v8513, 0
      %v8571 = vsel %vm8554, %v8514, 0
      %v8574 = vsel %vm8554, %v8515, 0
      %v8577 = vsel %vm8554, %v8516, 0
      %8579 = vmatpush.msra.mxu0 0.0
      %8580 = vmatpush.msra.mxu0 0.0
      %8581 = vmatpush.msra.mxu0 0.0
      %8582 = vmatpush.msra.mxu0 0.0
      %8583 = vmatpush.msra.mxu0 0.0
      %8584 = vmatpush.msra.mxu0 0.0
      %8585 = vmatpush.msra.mxu0 0.0
      %8586 = vmatpush.msra.mxu0 0.0
      %8587 = vmatpush.msra.mxu0 0.0
      %8588 = vmatpush.msra.mxu0 0.0
      %8589 = vmatpush.msra.mxu0 0.0
      %8590 = vmatpush.msra.mxu0 %v8556
      %8591 = vmatpush.msra.mxu0 %v8501
      %8592 = vmatpush.msra.mxu0 %v8493
      %8593 = vmatpush.msra.mxu0 %v8485
      %8594 = vmatpush.msra.mxu0 %v8477
      %8595 = vmatmul.f32.gmra.mxu0 %v8543
      %v8596 = vpop.f32.mrf.mxu0
      %v8597 = vadd.f32 %v8524, %v8596
      %8598 = vmatmul.f32.gmra.mxu0 %v8546
      %v8599 = vpop.f32.mrf.mxu0
      %v8600 = vadd.f32 %v8529, %v8599
      %8601 = vmatmul.f32.gmra.mxu0 %v8549
      %v8602 = vpop.f32.mrf.mxu0
      %v8603 = vadd.f32 %v8534, %v8602
      %8604 = vmatmul.f32.gmra.mxu0 %v8552
      %v8605 = vpop.f32.mrf.mxu0
      %v8606 = vadd.f32 %v8539, %v8605
      %8607 = vdwg.mxu0
      %8608 = vmatpush.msra.mxu0 0.0
      %8609 = vmatpush.msra.mxu0 0.0
      %8610 = vmatpush.msra.mxu0 0.0
      %8611 = vmatpush.msra.mxu0 0.0
      %8612 = vmatpush.msra.mxu0 0.0
      %8613 = vmatpush.msra.mxu0 0.0
      %8614 = vmatpush.msra.mxu0 0.0
      %8615 = vmatpush.msra.mxu0 0.0
      %8616 = vmatpush.msra.mxu0 0.0
      %8617 = vmatpush.msra.mxu0 0.0
      %8618 = vmatpush.msra.mxu0 0.0
      %8619 = vmatpush.msra.mxu0 %v8559
      %8620 = vmatpush.msra.mxu0 %v8502
      %8621 = vmatpush.msra.mxu0 %v8494
      %8622 = vmatpush.msra.mxu0 %v8486
      %8623 = vmatpush.msra.mxu0 %v8478
      %8624 = vmatmul.f32.gmra.mxu0 %v8543
      %v8625 = vpop.f32.mrf.mxu0
      %v8626 = vadd.f32 %v8524, %v8625
      %8627 = vmatmul.f32.gmra.mxu0 %v8546
      %v8628 = vpop.f32.mrf.mxu0
      %v8629 = vadd.f32 %v8529, %v8628
      %8630 = vmatmul.f32.gmra.mxu0 %v8549
      %v8631 = vpop.f32.mrf.mxu0
      %v8632 = vadd.f32 %v8534, %v8631
      %8633 = vmatmul.f32.gmra.mxu0 %v8552
      %v8634 = vpop.f32.mrf.mxu0
      %v8635 = vadd.f32 %v8539, %v8634
      %8636 = vdwg.mxu0
      %8637 = vmatpush.msra.mxu0 0.0
      %8638 = vmatpush.msra.mxu0 0.0
      %8639 = vmatpush.msra.mxu0 0.0
      %8640 = vmatpush.msra.mxu0 0.0
      %8641 = vmatpush.msra.mxu0 0.0
      %8642 = vmatpush.msra.mxu0 0.0
      %8643 = vmatpush.msra.mxu0 0.0
      %8644 = vmatpush.msra.mxu0 0.0
      %8645 = vmatpush.msra.mxu0 0.0
      %8646 = vmatpush.msra.mxu0 0.0
      %8647 = vmatpush.msra.mxu0 0.0
      %8648 = vmatpush.msra.mxu0 %v8562
      %8649 = vmatpush.msra.mxu0 %v8503
      %8650 = vmatpush.msra.mxu0 %v8495
      %8651 = vmatpush.msra.mxu0 %v8487
      %8652 = vmatpush.msra.mxu0 %v8479
      %8653 = vmatmul.f32.gmra.mxu0 %v8543
      %v8654 = vpop.f32.mrf.mxu0
      %v8655 = vadd.f32 %v8524, %v8654
      %8656 = vmatmul.f32.gmra.mxu0 %v8546
      %v8657 = vpop.f32.mrf.mxu0
      %v8658 = vadd.f32 %v8529, %v8657
      %8659 = vmatmul.f32.gmra.mxu0 %v8549
      %v8660 = vpop.f32.mrf.mxu0
      %v8661 = vadd.f32 %v8534, %v8660
      %8662 = vmatmul.f32.gmra.mxu0 %v8552
      %v8663 = vpop.f32.mrf.mxu0
      %v8664 = vadd.f32 %v8539, %v8663
      %8665 = vdwg.mxu0
      %8666 = vmatpush.msra.mxu0 0.0
      %8667 = vmatpush.msra.mxu0 0.0
      %8668 = vmatpush.msra.mxu0 0.0
      %8669 = vmatpush.msra.mxu0 0.0
      %8670 = vmatpush.msra.mxu0 0.0
      %8671 = vmatpush.msra.mxu0 0.0
      %8672 = vmatpush.msra.mxu0 0.0
      %8673 = vmatpush.msra.mxu0 0.0
      %8674 = vmatpush.msra.mxu0 0.0
      %8675 = vmatpush.msra.mxu0 0.0
      %8676 = vmatpush.msra.mxu0 0.0
      %8677 = vmatpush.msra.mxu0 %v8565
      %8678 = vmatpush.msra.mxu0 %v8504
      %8679 = vmatpush.msra.mxu0 %v8496
      %8680 = vmatpush.msra.mxu0 %v8488
      %8681 = vmatpush.msra.mxu0 %v8480
      %8682 = vmatmul.f32.gmra.mxu0 %v8543
      %v8683 = vpop.f32.mrf.mxu0
      %v8684 = vadd.f32 %v8524, %v8683
      %8685 = vmatmul.f32.gmra.mxu0 %v8546
      %v8686 = vpop.f32.mrf.mxu0
      %v8687 = vadd.f32 %v8529, %v8686
      %8688 = vmatmul.f32.gmra.mxu0 %v8549
      %v8689 = vpop.f32.mrf.mxu0
      %v8690 = vadd.f32 %v8534, %v8689
      %8691 = vmatmul.f32.gmra.mxu0 %v8552
      %v8692 = vpop.f32.mrf.mxu0
      %v8693 = vadd.f32 %v8539, %v8692
      %8694 = vdwg.mxu0
      %8695 = vmatpush.msra.mxu0 0.0
      %8696 = vmatpush.msra.mxu0 0.0
      %8697 = vmatpush.msra.mxu0 0.0
      %8698 = vmatpush.msra.mxu0 0.0
      %8699 = vmatpush.msra.mxu0 0.0
      %8700 = vmatpush.msra.mxu0 0.0
      %8701 = vmatpush.msra.mxu0 0.0
      %8702 = vmatpush.msra.mxu0 0.0
      %8703 = vmatpush.msra.mxu0 0.0
      %8704 = vmatpush.msra.mxu0 0.0
      %8705 = vmatpush.msra.mxu0 0.0
      %8706 = vmatpush.msra.mxu0 %v8568
      %8707 = vmatpush.msra.mxu0 %v8505
      %8708 = vmatpush.msra.mxu0 %v8497
      %8709 = vmatpush.msra.mxu0 %v8489
      %8710 = vmatpush.msra.mxu0 %v8481
      %8711 = vmatmul.f32.gmra.mxu0 %v8543
      %v8712 = vpop.f32.mrf.mxu0
      %v8713 = vadd.f32 %v8524, %v8712
      %8714 = vmatmul.f32.gmra.mxu0 %v8546
      %v8715 = vpop.f32.mrf.mxu0
      %v8716 = vadd.f32 %v8529, %v8715
      %8717 = vmatmul.f32.gmra.mxu0 %v8549
      %v8718 = vpop.f32.mrf.mxu0
      %v8719 = vadd.f32 %v8534, %v8718
      %8720 = vmatmul.f32.gmra.mxu0 %v8552
      %v8721 = vpop.f32.mrf.mxu0
      %v8722 = vadd.f32 %v8539, %v8721
      %8723 = vdwg.mxu0
      %8724 = vmatpush.msra.mxu0 0.0
      %8725 = vmatpush.msra.mxu0 0.0
      %8726 = vmatpush.msra.mxu0 0.0
      %8727 = vmatpush.msra.mxu0 0.0
      %8728 = vmatpush.msra.mxu0 0.0
      %8729 = vmatpush.msra.mxu0 0.0
      %8730 = vmatpush.msra.mxu0 0.0
      %8731 = vmatpush.msra.mxu0 0.0
      %8732 = vmatpush.msra.mxu0 0.0
      %8733 = vmatpush.msra.mxu0 0.0
      %8734 = vmatpush.msra.mxu0 0.0
      %8735 = vmatpush.msra.mxu0 %v8571
      %8736 = vmatpush.msra.mxu0 %v8506
      %8737 = vmatpush.msra.mxu0 %v8498
      %8738 = vmatpush.msra.mxu0 %v8490
      %8739 = vmatpush.msra.mxu0 %v8482
      %8740 = vmatmul.f32.gmra.mxu0 %v8543
      %v8741 = vpop.f32.mrf.mxu0
      %v8742 = vadd.f32 %v8524, %v8741
      %8743 = vmatmul.f32.gmra.mxu0 %v8546
      %v8744 = vpop.f32.mrf.mxu0
      %v8745 = vadd.f32 %v8529, %v8744
      %8746 = vmatmul.f32.gmra.mxu0 %v8549
      %v8747 = vpop.f32.mrf.mxu0
      %v8748 = vadd.f32 %v8534, %v8747
      %8749 = vmatmul.f32.gmra.mxu0 %v8552
      %v8750 = vpop.f32.mrf.mxu0
      %v8751 = vadd.f32 %v8539, %v8750
      %8752 = vdwg.mxu0
      %8753 = vmatpush.msra.mxu0 0.0
      %8754 = vmatpush.msra.mxu0 0.0
      %8755 = vmatpush.msra.mxu0 0.0
      %8756 = vmatpush.msra.mxu0 0.0
      %8757 = vmatpush.msra.mxu0 0.0
      %8758 = vmatpush.msra.mxu0 0.0
      %8759 = vmatpush.msra.mxu0 0.0
      %8760 = vmatpush.msra.mxu0 0.0
      %8761 = vmatpush.msra.mxu0 0.0
      %8762 = vmatpush.msra.mxu0 0.0
      %8763 = vmatpush.msra.mxu0 0.0
      %8764 = vmatpush.msra.mxu0 %v8574
      %8765 = vmatpush.msra.mxu0 %v8507
      %8766 = vmatpush.msra.mxu0 %v8499
      %8767 = vmatpush.msra.mxu0 %v8491
      %8768 = vmatpush.msra.mxu0 %v8483
      %8769 = vmatmul.f32.gmra.mxu0 %v8543
      %v8770 = vpop.f32.mrf.mxu0
      %v8771 = vadd.f32 %v8524, %v8770
      %8772 = vmatmul.f32.gmra.mxu0 %v8546
      %v8773 = vpop.f32.mrf.mxu0
      %v8774 = vadd.f32 %v8529, %v8773
      %8775 = vmatmul.f32.gmra.mxu0 %v8549
      %v8776 = vpop.f32.mrf.mxu0
      %v8777 = vadd.f32 %v8534, %v8776
      %8778 = vmatmul.f32.gmra.mxu0 %v8552
      %v8779 = vpop.f32.mrf.mxu0
      %v8780 = vadd.f32 %v8539, %v8779
      %8781 = vdwg.mxu0
      %8782 = vmatpush.msra.mxu0 0.0
      %8783 = vmatpush.msra.mxu0 0.0
      %8784 = vmatpush.msra.mxu0 0.0
      %8785 = vmatpush.msra.mxu0 0.0
      %8786 = vmatpush.msra.mxu0 0.0
      %8787 = vmatpush.msra.mxu0 0.0
      %8788 = vmatpush.msra.mxu0 0.0
      %8789 = vmatpush.msra.mxu0 0.0
      %8790 = vmatpush.msra.mxu0 0.0
      %8791 = vmatpush.msra.mxu0 0.0
      %8792 = vmatpush.msra.mxu0 0.0
      %8793 = vmatpush.msra.mxu0 %v8577
      %8794 = vmatpush.msra.mxu0 %v8508
      %8795 = vmatpush.msra.mxu0 %v8500
      %8796 = vmatpush.msra.mxu0 %v8492
      %8797 = vmatpush.msra.mxu0 %v8484
      %8798 = vmatmul.f32.gmra.mxu0 %v8543
      %v8799 = vpop.f32.mrf.mxu0
      %v8800 = vadd.f32 %v8524, %v8799
      %8801 = vmatmul.f32.gmra.mxu0 %v8546
      %v8802 = vpop.f32.mrf.mxu0
      %v8803 = vadd.f32 %v8529, %v8802
      %8804 = vmatmul.f32.gmra.mxu0 %v8549
      %v8805 = vpop.f32.mrf.mxu0
      %v8806 = vadd.f32 %v8534, %v8805
      %8807 = vmatmul.f32.gmra.mxu0 %v8552
      %v8808 = vpop.f32.mrf.mxu0
      %v8809 = vadd.f32 %v8539, %v8808
      %8810 = vdwg.mxu0
      %v8811 = vmax.f32 %v8597, 0.0
      %v8812 = vmax.f32 %v8626, 0.0
      %v8813 = vmax.f32 %v8655, 0.0
      %v8814 = vmax.f32 %v8684, 0.0
      %v8815 = vmax.f32 %v8713, 0.0
      %v8816 = vmax.f32 %v8742, 0.0
      %v8817 = vmax.f32 %v8771, 0.0
      %v8818 = vmax.f32 %v8800, 0.0
      %v8819 = vmax.f32 %v8600, 0.0
      %v8820 = vmax.f32 %v8629, 0.0
      %v8821 = vmax.f32 %v8658, 0.0
      %v8822 = vmax.f32 %v8687, 0.0
      %v8823 = vmax.f32 %v8716, 0.0
      %v8824 = vmax.f32 %v8745, 0.0
      %v8825 = vmax.f32 %v8774, 0.0
      %v8826 = vmax.f32 %v8803, 0.0
      %v8827 = vmax.f32 %v8603, 0.0
      %v8828 = vmax.f32 %v8632, 0.0
      %v8829 = vmax.f32 %v8661, 0.0
      %v8830 = vmax.f32 %v8690, 0.0
      %v8831 = vmax.f32 %v8719, 0.0
      %v8832 = vmax.f32 %v8748, 0.0
      %v8833 = vmax.f32 %v8777, 0.0
      %v8834 = vmax.f32 %v8806, 0.0
      %v8835 = vmax.f32 %v8606, 0.0
      %v8836 = vmax.f32 %v8635, 0.0
      %v8837 = vmax.f32 %v8664, 0.0
      %v8838 = vmax.f32 %v8693, 0.0
      %v8839 = vmax.f32 %v8722, 0.0
      %v8840 = vmax.f32 %v8751, 0.0
      %v8841 = vmax.f32 %v8780, 0.0
      %v8842 = vmax.f32 %v8809, 0.0
      %v8843 = vld [vmem:[%s6] sm:$0x1]
      %v8844 = vld [vmem:[#allocation6] sm:$0x1]
      %8846 = vset.pattern.permute.xlu0 0
      %8847 = vperm.xlu0 %8846, %v8844
      %v8848 = vpop.permute.xlu0 %8847
      %v8850 = vperm.slane %v8848, 0
      %v8852 = vsel %vm728, %v8843, 0
      %8854 = vmatpush.msra.mxu0 0.0
      %8855 = vmatpush.msra.mxu0 0.0
      %8856 = vmatpush.msra.mxu0 0.0
      %8857 = vmatpush.msra.mxu0 0.0
      %8858 = vmatpush.msra.mxu0 0.0
      %8859 = vmatpush.msra.mxu0 0.0
      %8860 = vmatpush.msra.mxu0 0.0
      %8861 = vmatpush.msra.mxu0 0.0
      %8862 = vmatpush.msra.mxu0 0.0
      %8863 = vmatpush.msra.mxu0 0.0
      %8864 = vmatpush.msra.mxu0 0.0
      %8865 = vmatpush.msra.mxu0 0.0
      %8866 = vmatpush.msra.mxu0 %v8835
      %8867 = vmatpush.msra.mxu0 %v8827
      %8868 = vmatpush.msra.mxu0 %v8819
      %8869 = vmatpush.msra.mxu0 %v8811
      %8870 = vmatmul.f32.gmra.mxu0 %v8852
      %v8871 = vpop.f32.mrf.mxu0
      %v8872 = vadd.f32 %v8850, %v8871
      %8873 = vdwg.mxu0
      %8874 = vmatpush.msra.mxu0 0.0
      %8875 = vmatpush.msra.mxu0 0.0
      %8876 = vmatpush.msra.mxu0 0.0
      %8877 = vmatpush.msra.mxu0 0.0
      %8878 = vmatpush.msra.mxu0 0.0
      %8879 = vmatpush.msra.mxu0 0.0
      %8880 = vmatpush.msra.mxu0 0.0
      %8881 = vmatpush.msra.mxu0 0.0
      %8882 = vmatpush.msra.mxu0 0.0
      %8883 = vmatpush.msra.mxu0 0.0
      %8884 = vmatpush.msra.mxu0 0.0
      %8885 = vmatpush.msra.mxu0 0.0
      %8886 = vmatpush.msra.mxu0 %v8836
      %8887 = vmatpush.msra.mxu0 %v8828
      %8888 = vmatpush.msra.mxu0 %v8820
      %8889 = vmatpush.msra.mxu0 %v8812
      %8890 = vmatmul.f32.gmra.mxu0 %v8852
      %v8891 = vpop.f32.mrf.mxu0
      %v8892 = vadd.f32 %v8850, %v8891
      %8893 = vdwg.mxu0
      %8894 = vmatpush.msra.mxu0 0.0
      %8895 = vmatpush.msra.mxu0 0.0
      %8896 = vmatpush.msra.mxu0 0.0
      %8897 = vmatpush.msra.mxu0 0.0
      %8898 = vmatpush.msra.mxu0 0.0
      %8899 = vmatpush.msra.mxu0 0.0
      %8900 = vmatpush.msra.mxu0 0.0
      %8901 = vmatpush.msra.mxu0 0.0
      %8902 = vmatpush.msra.mxu0 0.0
      %8903 = vmatpush.msra.mxu0 0.0
      %8904 = vmatpush.msra.mxu0 0.0
      %8905 = vmatpush.msra.mxu0 0.0
      %8906 = vmatpush.msra.mxu0 %v8837
      %8907 = vmatpush.msra.mxu0 %v8829
      %8908 = vmatpush.msra.mxu0 %v8821
      %8909 = vmatpush.msra.mxu0 %v8813
      %8910 = vmatmul.f32.gmra.mxu0 %v8852
      %v8911 = vpop.f32.mrf.mxu0
      %v8912 = vadd.f32 %v8850, %v8911
      %8913 = vdwg.mxu0
      %8914 = vmatpush.msra.mxu0 0.0
      %8915 = vmatpush.msra.mxu0 0.0
      %8916 = vmatpush.msra.mxu0 0.0
      %8917 = vmatpush.msra.mxu0 0.0
      %8918 = vmatpush.msra.mxu0 0.0
      %8919 = vmatpush.msra.mxu0 0.0
      %8920 = vmatpush.msra.mxu0 0.0
      %8921 = vmatpush.msra.mxu0 0.0
      %8922 = vmatpush.msra.mxu0 0.0
      %8923 = vmatpush.msra.mxu0 0.0
      %8924 = vmatpush.msra.mxu0 0.0
      %8925 = vmatpush.msra.mxu0 0.0
      %8926 = vmatpush.msra.mxu0 %v8838
      %8927 = vmatpush.msra.mxu0 %v8830
      %8928 = vmatpush.msra.mxu0 %v8822
      %8929 = vmatpush.msra.mxu0 %v8814
      %8930 = vmatmul.f32.gmra.mxu0 %v8852
      %v8931 = vpop.f32.mrf.mxu0
      %v8932 = vadd.f32 %v8850, %v8931
      %8933 = vdwg.mxu0
      %8934 = vmatpush.msra.mxu0 0.0
      %8935 = vmatpush.msra.mxu0 0.0
      %8936 = vmatpush.msra.mxu0 0.0
      %8937 = vmatpush.msra.mxu0 0.0
      %8938 = vmatpush.msra.mxu0 0.0
      %8939 = vmatpush.msra.mxu0 0.0
      %8940 = vmatpush.msra.mxu0 0.0
      %8941 = vmatpush.msra.mxu0 0.0
      %8942 = vmatpush.msra.mxu0 0.0
      %8943 = vmatpush.msra.mxu0 0.0
      %8944 = vmatpush.msra.mxu0 0.0
      %8945 = vmatpush.msra.mxu0 0.0
      %8946 = vmatpush.msra.mxu0 %v8839
      %8947 = vmatpush.msra.mxu0 %v8831
      %8948 = vmatpush.msra.mxu0 %v8823
      %8949 = vmatpush.msra.mxu0 %v8815
      %8950 = vmatmul.f32.gmra.mxu0 %v8852
      %v8951 = vpop.f32.mrf.mxu0
      %v8952 = vadd.f32 %v8850, %v8951
      %8953 = vdwg.mxu0
      %8954 = vmatpush.msra.mxu0 0.0
      %8955 = vmatpush.msra.mxu0 0.0
      %8956 = vmatpush.msra.mxu0 0.0
      %8957 = vmatpush.msra.mxu0 0.0
      %8958 = vmatpush.msra.mxu0 0.0
      %8959 = vmatpush.msra.mxu0 0.0
      %8960 = vmatpush.msra.mxu0 0.0
      %8961 = vmatpush.msra.mxu0 0.0
      %8962 = vmatpush.msra.mxu0 0.0
      %8963 = vmatpush.msra.mxu0 0.0
      %8964 = vmatpush.msra.mxu0 0.0
      %8965 = vmatpush.msra.mxu0 0.0
      %8966 = vmatpush.msra.mxu0 %v8840
      %8967 = vmatpush.msra.mxu0 %v8832
      %8968 = vmatpush.msra.mxu0 %v8824
      %8969 = vmatpush.msra.mxu0 %v8816
      %8970 = vmatmul.f32.gmra.mxu0 %v8852
      %v8971 = vpop.f32.mrf.mxu0
      %v8972 = vadd.f32 %v8850, %v8971
      %8973 = vdwg.mxu0
      %8974 = vmatpush.msra.mxu0 0.0
      %8975 = vmatpush.msra.mxu0 0.0
      %8976 = vmatpush.msra.mxu0 0.0
      %8977 = vmatpush.msra.mxu0 0.0
      %8978 = vmatpush.msra.mxu0 0.0
      %8979 = vmatpush.msra.mxu0 0.0
      %8980 = vmatpush.msra.mxu0 0.0
      %8981 = vmatpush.msra.mxu0 0.0
      %8982 = vmatpush.msra.mxu0 0.0
      %8983 = vmatpush.msra.mxu0 0.0
      %8984 = vmatpush.msra.mxu0 0.0
      %8985 = vmatpush.msra.mxu0 0.0
      %8986 = vmatpush.msra.mxu0 %v8841
      %8987 = vmatpush.msra.mxu0 %v8833
      %8988 = vmatpush.msra.mxu0 %v8825
      %8989 = vmatpush.msra.mxu0 %v8817
      %8990 = vmatmul.f32.gmra.mxu0 %v8852
      %v8991 = vpop.f32.mrf.mxu0
      %v8992 = vadd.f32 %v8850, %v8991
      %8993 = vdwg.mxu0
      %8994 = vmatpush.msra.mxu0 0.0
      %8995 = vmatpush.msra.mxu0 0.0
      %8996 = vmatpush.msra.mxu0 0.0
      %8997 = vmatpush.msra.mxu0 0.0
      %8998 = vmatpush.msra.mxu0 0.0
      %8999 = vmatpush.msra.mxu0 0.0
      %9000 = vmatpush.msra.mxu0 0.0
      %9001 = vmatpush.msra.mxu0 0.0
      %9002 = vmatpush.msra.mxu0 0.0
      %9003 = vmatpush.msra.mxu0 0.0
      %9004 = vmatpush.msra.mxu0 0.0
      %9005 = vmatpush.msra.mxu0 0.0
      %9006 = vmatpush.msra.mxu0 %v8842
      %9007 = vmatpush.msra.mxu0 %v8834
      %9008 = vmatpush.msra.mxu0 %v8826
      %9009 = vmatpush.msra.mxu0 %v8818
      %9010 = vmatmul.f32.gmra.mxu0 %v8852
      %v9011 = vpop.f32.mrf.mxu0
      %v9012 = vadd.f32 %v8850, %v9011
      %9013 = vdwg.mxu0
      %v9014 = vxor.u32 %v8872, 2147483648
      %v9015 = vxor.u32 %v8892, 2147483648
      %v9016 = vxor.u32 %v8912, 2147483648
      %v9017 = vxor.u32 %v8932, 2147483648
      %v9018 = vxor.u32 %v8952, 2147483648
      %v9019 = vxor.u32 %v8972, 2147483648
      %v9020 = vxor.u32 %v8992, 2147483648
      %v9021 = vxor.u32 %v9012, 2147483648
      %v9022 = vmul.f32 %v9014, 1.442695
      %v9023 = vpow.pop %v9022
      %v9024 = vmul.f32 %v9015, 1.442695
      %v9025 = vpow.pop %v9024
      %v9026 = vmul.f32 %v9016, 1.442695
      %v9027 = vpow.pop %v9026
      %v9028 = vmul.f32 %v9017, 1.442695
      %v9029 = vpow.pop %v9028
      %v9030 = vmul.f32 %v9018, 1.442695
      %v9031 = vpow.pop %v9030
      %v9032 = vmul.f32 %v9019, 1.442695
      %v9033 = vpow.pop %v9032
      %v9034 = vmul.f32 %v9020, 1.442695
      %v9035 = vpow.pop %v9034
      %v9036 = vmul.f32 %v9021, 1.442695
      %v9037 = vpow.pop %v9036
      %v9038 = vadd.f32 %v9023, 1.0
      %v9039 = vadd.f32 %v9025, 1.0
      %v9040 = vadd.f32 %v9027, 1.0
      %v9041 = vadd.f32 %v9029, 1.0
      %v9042 = vadd.f32 %v9031, 1.0
      %v9043 = vadd.f32 %v9033, 1.0
      %v9044 = vadd.f32 %v9035, 1.0
      %v9045 = vadd.f32 %v9037, 1.0
      %v9046 = vrcp.pop %v9038
      %v9047 = vmul.f32 %v9038, %v9046
      %v9048 = vsub.f32 1.0, %v9047
      %v9049 = vmul.f32 %v9046, %v9048
      %v9050 = vadd.f32 %v9046, %v9049
      %vm9051 = vweird.f32 %v9038
      %vm9052 = vweird.f32 %v9046
      %vm9053 = vmor %vm9051, %vm9052
      %v9054 = vsel %vm9053, %v9046, %v9050
      %v9055 = vand.u32 2147483647, %v9038
      %vm9056 = vcmp.eq.f32.partialorder %v9055, 8.507059e+37
      %v9057 = vand.u32 %v9038, 2147483648
      %v9058 = vor.u32 1.1754944e-38, %v9057
      %v9059 = vsel %vm9056, %v9058, %v9054
      %v9060 = vmul.f32 1.0, %v9059
      %v9061 = vrcp.pop %v9039
      %v9062 = vmul.f32 %v9039, %v9061
      %v9063 = vsub.f32 1.0, %v9062
      %v9064 = vmul.f32 %v9061, %v9063
      %v9065 = vadd.f32 %v9061, %v9064
      %vm9066 = vweird.f32 %v9039
      %vm9067 = vweird.f32 %v9061
      %vm9068 = vmor %vm9066, %vm9067
      %v9069 = vsel %vm9068, %v9061, %v9065
      %v9070 = vand.u32 2147483647, %v9039
      %vm9071 = vcmp.eq.f32.partialorder %v9070, 8.507059e+37
      %v9072 = vand.u32 %v9039, 2147483648
      %v9073 = vor.u32 1.1754944e-38, %v9072
      %v9074 = vsel %vm9071, %v9073, %v9069
      %v9075 = vmul.f32 1.0, %v9074
      %v9076 = vrcp.pop %v9040
      %v9077 = vmul.f32 %v9040, %v9076
      %v9078 = vsub.f32 1.0, %v9077
      %v9079 = vmul.f32 %v9076, %v9078
      %v9080 = vadd.f32 %v9076, %v9079
      %vm9081 = vweird.f32 %v9040
      %vm9082 = vweird.f32 %v9076
      %vm9083 = vmor %vm9081, %vm9082
      %v9084 = vsel %vm9083, %v9076, %v9080
      %v9085 = vand.u32 2147483647, %v9040
      %vm9086 = vcmp.eq.f32.partialorder %v9085, 8.507059e+37
      %v9087 = vand.u32 %v9040, 2147483648
      %v9088 = vor.u32 1.1754944e-38, %v9087
      %v9089 = vsel %vm9086, %v9088, %v9084
      %v9090 = vmul.f32 1.0, %v9089
      %v9091 = vrcp.pop %v9041
      %v9092 = vmul.f32 %v9041, %v9091
      %v9093 = vsub.f32 1.0, %v9092
      %v9094 = vmul.f32 %v9091, %v9093
      %v9095 = vadd.f32 %v9091, %v9094
      %vm9096 = vweird.f32 %v9041
      %vm9097 = vweird.f32 %v9091
      %vm9098 = vmor %vm9096, %vm9097
      %v9099 = vsel %vm9098, %v9091, %v9095
      %v9100 = vand.u32 2147483647, %v9041
      %vm9101 = vcmp.eq.f32.partialorder %v9100, 8.507059e+37
      %v9102 = vand.u32 %v9041, 2147483648
      %v9103 = vor.u32 1.1754944e-38, %v9102
      %v9104 = vsel %vm9101, %v9103, %v9099
      %v9105 = vmul.f32 1.0, %v9104
      %v9106 = vrcp.pop %v9042
      %v9107 = vmul.f32 %v9042, %v9106
      %v9108 = vsub.f32 1.0, %v9107
      %v9109 = vmul.f32 %v9106, %v9108
      %v9110 = vadd.f32 %v9106, %v9109
      %vm9111 = vweird.f32 %v9042
      %vm9112 = vweird.f32 %v9106
      %vm9113 = vmor %vm9111, %vm9112
      %v9114 = vsel %vm9113, %v9106, %v9110
      %v9115 = vand.u32 2147483647, %v9042
      %vm9116 = vcmp.eq.f32.partialorder %v9115, 8.507059e+37
      %v9117 = vand.u32 %v9042, 2147483648
      %v9118 = vor.u32 1.1754944e-38, %v9117
      %v9119 = vsel %vm9116, %v9118, %v9114
      %v9120 = vmul.f32 1.0, %v9119
      %v9121 = vrcp.pop %v9043
      %v9122 = vmul.f32 %v9043, %v9121
      %v9123 = vsub.f32 1.0, %v9122
      %v9124 = vmul.f32 %v9121, %v9123
      %v9125 = vadd.f32 %v9121, %v9124
      %vm9126 = vweird.f32 %v9043
      %vm9127 = vweird.f32 %v9121
      %vm9128 = vmor %vm9126, %vm9127
      %v9129 = vsel %vm9128, %v9121, %v9125
      %v9130 = vand.u32 2147483647, %v9043
      %vm9131 = vcmp.eq.f32.partialorder %v9130, 8.507059e+37
      %v9132 = vand.u32 %v9043, 2147483648
      %v9133 = vor.u32 1.1754944e-38, %v9132
      %v9134 = vsel %vm9131, %v9133, %v9129
      %v9135 = vmul.f32 1.0, %v9134
      %v9136 = vrcp.pop %v9044
      %v9137 = vmul.f32 %v9044, %v9136
      %v9138 = vsub.f32 1.0, %v9137
      %v9139 = vmul.f32 %v9136, %v9138
      %v9140 = vadd.f32 %v9136, %v9139
      %vm9141 = vweird.f32 %v9044
      %vm9142 = vweird.f32 %v9136
      %vm9143 = vmor %vm9141, %vm9142
      %v9144 = vsel %vm9143, %v9136, %v9140
      %v9145 = vand.u32 2147483647, %v9044
      %vm9146 = vcmp.eq.f32.partialorder %v9145, 8.507059e+37
      %v9147 = vand.u32 %v9044, 2147483648
      %v9148 = vor.u32 1.1754944e-38, %v9147
      %v9149 = vsel %vm9146, %v9148, %v9144
      %v9150 = vmul.f32 1.0, %v9149
      %v9151 = vrcp.pop %v9045
      %v9152 = vmul.f32 %v9045, %v9151
      %v9153 = vsub.f32 1.0, %v9152
      %v9154 = vmul.f32 %v9151, %v9153
      %v9155 = vadd.f32 %v9151, %v9154
      %vm9156 = vweird.f32 %v9045
      %vm9157 = vweird.f32 %v9151
      %vm9158 = vmor %vm9156, %vm9157
      %v9159 = vsel %vm9158, %v9151, %v9155
      %v9160 = vand.u32 2147483647, %v9045
      %vm9161 = vcmp.eq.f32.partialorder %v9160, 8.507059e+37
      %v9162 = vand.u32 %v9045, 2147483648
      %v9163 = vor.u32 1.1754944e-38, %v9162
      %v9164 = vsel %vm9161, %v9163, %v9159
      %v9165 = vmul.f32 1.0, %v9164
      %v9174 = vrot.slane %v9075, 7
      %v9175 = vrot.slane %v9090, 6
      %v9176 = vrot.slane %v9105, 5
      %v9177 = vrot.slane %v9120, 4
      %v9178 = vrot.slane %v9135, 3
      %v9179 = vrot.slane %v9150, 2
      %v9180 = vrot.slane %v9165, 1
      %vm9181 = vcmask 1040384
      %v9182 = vsel %vm9181, %v9060, %v9174
      %vm9183 = vcmask 1042434
      %v9184 = vsel %vm9183, %v9175, %v9176
      %vm9185 = vcmask 1041408
      %v9186 = vsel %vm9185, %v9182, %v9184
      %vm9187 = vcmask 1044484
      %v9188 = vsel %vm9187, %v9177, %v9178
      %vm9189 = vcmask 1046534
      %v9190 = vsel %vm9189, %v9179, %v9180
      %vm9191 = vcmask 1045508
      %v9192 = vsel %vm9191, %v9188, %v9190
      %v9193 = vsel %vm8554, %v9186, %v9192
      %9195 = vst [vmem:[%s305] sm:$0xff] %v9193
      %p9196 = scmp.lt.s32.totalorder %s21, 1
      %s9197 = scalar_select %p9196, %s21, 1
      %s9198 = smul.addr %s9197, 8
      %s9199 = scalar_lea.vmem %s8, %s9198
      // Predicated region
      $region53: #{head_depth_forward.1} parent=51 // pred_check
        %p9200 = pneg %p212
      $region54: #{head_depth_forward.1} parent=51 // pred_check_branch
        %9202 = sbr.rel (%p9200) target = $region56
      $region55: #{head_depth_forward.1} parent=51 // pred_region
        _
      $region56: #{head_depth_forward.1} parent=51 // pred_fallthru
        _
    $region52: #{head_depth_forward.1} parent=5 // pred_fallthru
      _
    %p9203 = scmp.le.s32.totalorder 2, %s16
    // Predicated region
    $region57: #{head_depth_forward.1} parent=5 // pred_check
      %p9204 = pneg %p9203
    $region58: #{head_depth_forward.1} parent=5 // pred_check_branch
      %9206 = sbr.rel (%p9204) target = $region60
    $region59: #{head_depth_forward.1} parent=5 // pred_region
      %s9207 = ssub.s32 %s16, 2
      // Predicated region
      $region61: #{head_depth_forward.1} parent=59 // pred_check
        %p9208 = pneg %p218
      $region62: #{head_depth_forward.1} parent=59 // pred_check_branch
        %9210 = sbr.rel (%p9208) target = $region64
      $region63: #{head_depth_forward.1} parent=59 // pred_region
        %p9211 = scmp.lt.s32.totalorder %s22, 1
        %s9212 = scalar_select %p9211, %s22, 1
        %s9213 = smul.addr %s9212, 8
        %s9214 = scalar_lea.vmem %s8, %s9213
      $region64: #{head_depth_forward.1} parent=59 // pred_fallthru
        _
    $region60: #{head_depth_forward.1} parent=5 // pred_fallthru
      _
  $region6: #{head_depth_forward.1} parent=0 // loop_footer
    %s20 = sadd.s32 1, %s16
  $region7: #{head_depth_forward.1} parent=0 // loop_footer_branch
    %15 = sbr.rel target = $region3
  $region8: #{head_depth_forward.1} parent=0 // loop_exit
    _

</llo_original>
